<compile_context>
chip_gen: v7x
topology: tpu7x:2x2x1
jax: 0.10.0
libtpu: 0.0.40
codegen_flags: <defaults>
</compile_context>

<pallas_src>
import jax
import jax.numpy as jnp
from jax import lax
from jax.experimental import pallas as pl
from jax.experimental.pallas import tpu as pltpu


def _dot_tc(x, w):
    # x: (B, T, Cin), w: (Cin, Fout) -> (B, T, Fout); MXU matmul, f32 accumulate.
    return lax.dot_general(x, w, (((2,), (0,)), ((), ())),
                           preferred_element_type=jnp.float32)


def timnet_kernel(x2_ref, w0_ref, b0_ref, tabw_ref, tabb_ref, out_ref):
    # x2_ref:   (2, TB, T, C)     forward / channel-flipped ("backward") inputs
    # w0_ref:   (2, C, F)         kernel-size-1 causal convs (fwd, bwd), (Cin, Fout)
    # b0_ref:   (2, 1, F)
    # tabw_ref: (2*D*2, C, 2F)    per conv: [tap@t | tap@(t-d)], BN scale folded in
    # tabb_ref: (2*D*2, 1, F)     conv bias with eval-mode BN folded in
    # out_ref:  (TB, D*F)         per-dilation pooled skip sums, lane-dense
    _, TB, T, C = x2_ref.shape
    F = b0_ref.shape[-1]
    D = out_ref.shape[-1] // F

    # Initial kernel-size-1 "causal" convs (pointwise matmuls).
    skips = []
    for br in range(2):
        xb = x2_ref[br]                                   # (TB, T, C)
        skips.append(_dot_tc(xb, w0_ref[br]) + b0_ref[br])

    for dl in range(D):
        d = 2 ** dl
        for br in range(2):
            s_in = skips[br]                              # (TB, T, F)
            y = s_in
            for ci in range(2):                           # two convs per tab
                cidx = (br * D + dl) * 2 + ci
                q = _dot_tc(y, tabw_ref[cidx])            # (TB, T, 2F): both taps fused
                q1 = q[:, :, :F]                          # tap multiplying x[t]
                q0 = q[:, :, F:]                          # tap multiplying x[t-d]
                # Causal dilated shift: zero-pad d steps on the time (sublane) axis.
                q0s = jnp.concatenate(
                    [jnp.zeros((TB, d, F), jnp.float32), q0[:, :T - d, :]], axis=1)
                z = q1 + q0s + tabb_ref[cidx]             # conv + bias (BN folded)
                y = jnp.maximum(z, 0.0)                   # ReLU; Dropout1d eval = id
            gate = jax.nn.sigmoid(y)                      # EUP path
            skips[br] = s_in * gate                       # skip = skip * sigmoid(tab(skip))
        temp = skips[0] + skips[1]                        # (TB, T, F)
        pooled = jnp.mean(temp, axis=1)                   # AvgPool2d((1, T)) -> (TB, F)
        out_ref[:, dl * F:(dl + 1) * F] = pooled


def init_params(key, C, F, D):
    # Raw "PyTorch-like" parameters (conv weights (F, C, k), per-filter BN stats).
    assert F == C, "TIMNET tabs declare in_channels == input_shape[0]; need nb_filters == C"
    N = 2 * D * 2                                         # branches * dilation-levels * convs/tab
    ks = jax.random.split(key, 8)
    return dict(
        w0=0.2 * jax.random.normal(ks[0], (2, F, C), jnp.float32),
        b0=0.1 * jax.random.normal(ks[1], (2, F), jnp.float32),
        tab_w=0.2 * jax.random.normal(ks[2], (N, F, C, 2), jnp.float32),
        tab_b=0.1 * jax.random.normal(ks[3], (N, F), jnp.float32),
        bn_gamma=1.0 + 0.1 * jax.random.normal(ks[4], (N, F), jnp.float32),
        bn_beta=0.1 * jax.random.normal(ks[5], (N, F), jnp.float32),
        bn_mean=0.1 * jax.random.normal(ks[6], (N, F), jnp.float32),
        bn_var=0.5 + jax.random.uniform(ks[7], (N, F), jnp.float32),
    )


def pack_params(raw, eps=1e-5):
    # Fold eval-mode BatchNorm into the conv weights/bias; transpose to (Cin, Fout).
    w0 = jnp.transpose(raw['w0'], (0, 2, 1))                        # (2, C, F)
    b0 = raw['b0'][:, None, :]                                      # (2, 1, F)
    scale = raw['bn_gamma'] / jnp.sqrt(raw['bn_var'] + eps)         # (N, F)
    shift = raw['bn_beta'] - raw['bn_mean'] * scale                 # (N, F)
    tw = raw['tab_w']                                               # (N, F, C, 2)
    w_t1 = jnp.transpose(tw[..., 1] * scale[:, :, None], (0, 2, 1))  # (N, C, F) tap @ t
    w_t0 = jnp.transpose(tw[..., 0] * scale[:, :, None], (0, 2, 1))  # (N, C, F) tap @ t-d
    tabw = jnp.concatenate([w_t1, w_t0], axis=-1)                   # (N, C, 2F)
    tabb = (raw['tab_b'] * scale + shift)[:, None, :]               # (N, 1, F)
    return w0, b0, tabw, tabb


def timnet_forward(x, raw, D, block_b=8):
    # x: (B, C, T) — PyTorch Conv1d layout.
    B, C, T = x.shape
    F = raw['w0'].shape[1]
    w0, b0, tabw, tabb = pack_params(raw)

    x_f = jnp.transpose(x, (0, 2, 1))                     # (B, T, C)
    x_b = x_f[:, :, ::-1]                                 # torch.flip(dims=[1]) flips channels
    x2 = jnp.stack([x_f, x_b], axis=0)                    # (2, B, T, C)

    TB = min(block_b, B)
    N = 2 * D * 2
    out = pl.pallas_call(
        timnet_kernel,
        out_shape=jax.ShapeDtypeStruct((B, D * F), jnp.float32),
        grid_spec=pltpu.PrefetchScalarGridSpec(
            num_scalar_prefetch=0,
            grid=(pl.cdiv(B, TB),),
            in_specs=[
                pl.BlockSpec((2, TB, T, C), lambda b: (0, b, 0, 0)),
                pl.BlockSpec((2, C, F), lambda b: (0, 0, 0)),
                pl.BlockSpec((2, 1, F), lambda b: (0, 0, 0)),
                pl.BlockSpec((N, C, 2 * F), lambda b: (0, 0, 0)),
                pl.BlockSpec((N, 1, F), lambda b: (0, 0, 0)),
            ],
            out_specs=pl.BlockSpec((TB, D * F), lambda b: (b, 0)),
        ),
        compiler_params=pltpu.CompilerParams(
            dimension_semantics=("parallel",),
            vmem_limit_bytes=32 * 1024 * 1024),
    )(x2, w0, b0, tabw, tabb)

    out = out.reshape(B, D, F)
    return jnp.transpose(out, (0, 2, 1))                  # (B, nb_filters, D)


def timnet_reference(x, raw, D, eps=1e-5):
    # Pure-JAX reference in the original PyTorch (B, C, T) layout, eval-mode BN.
    w0, b0 = raw['w0'], raw['b0']
    tw, tb = raw['tab_w'], raw['tab_b']
    g, bt, mu, var = raw['bn_gamma'], raw['bn_beta'], raw['bn_mean'], raw['bn_var']
    B, C, T = x.shape

    def pconv(inp, w, b):                                 # (B,C,T),(F,C),(F,) -> (B,F,T)
        return jnp.einsum('fc,bct->bft', w, inp) + b[:, None]

    skip = [pconv(x, w0[0], b0[0]), pconv(x[:, ::-1, :], w0[1], b0[1])]
    outs = []
    for dl in range(D):
        d = 2 ** dl
        for br in range(2):
            s = skip[br]
            y = s
            for ci in range(2):
                cidx = (br * D + dl) * 2 + ci
                prev = jnp.pad(y, ((0, 0), (0, 0), (d, 0)))[:, :, :T]
                z = (jnp.einsum('fc,bct->bft', tw[cidx, :, :, 1], y)
                     + jnp.einsum('fc,bct->bft', tw[cidx, :, :, 0], prev)
                     + tb[cidx][:, None])
                scale = g[cidx] / jnp.sqrt(var[cidx] + eps)
                shift = bt[cidx] - mu[cidx] * scale
                z = z * scale[:, None] + shift[:, None]
                y = jnp.maximum(z, 0.0)
            skip[br] = s * jax.nn.sigmoid(y)
        outs.append(jnp.mean(skip[0] + skip[1], axis=2, keepdims=True))
    return jnp.concatenate(outs, axis=-1)                 # (B, F, D)


if __name__ == "__main__":
    B, C, T = 16, 16, 32     # batch, input channels (= nb_filters), time steps
    F = C                    # model constraint (tab convs declare in_channels = C)
    D = 3                    # dilation levels -> dilations 1, 2, 4

    root = jax.random.PRNGKey(0)
    kx, kp = jax.random.split(root)
    x = jax.random.normal(kx, (B, C, T), jnp.float32)
    raw = init_params(kp, C, F, D)

    out = jax.block_until_ready(timnet_forward(x, raw, D, block_b=8))
    ref = timnet_reference(x, raw, D)

    assert out.shape == (B, F, D), out.shape
    assert jnp.allclose(out, ref, atol=1e-3, rtol=1e-3), \
        float(jnp.max(jnp.abs(out - ref)))
    print("KERNEL_OK")
</pallas_src>

<mosaic_0001>
module attributes {stable_mosaic.version = 11 : i64} {
  func.func @timnet_kernel(%arg0: i32, %arg1: memref<2x8x32x16xf32, #tpu.memory_space<vmem>>, %arg2: memref<2x16x16xf32, #tpu.memory_space<vmem>>, %arg3: memref<2x1x16xf32, #tpu.memory_space<vmem>>, %arg4: memref<12x16x32xf32, #tpu.memory_space<vmem>>, %arg5: memref<12x1x16xf32, #tpu.memory_space<vmem>>, %arg6: memref<8x48xf32, #tpu.memory_space<vmem>>) attributes {dimension_semantics = [#tpu.dimension_semantics<parallel>], iteration_bounds = array<i64: 2>, scalar_prefetch = 0 : i64, scratch_operands = 0 : i64, tpu.core_type = #tpu.core_type<tc>, window_params = [{transform_indices = @transform_0, window_bounds = array<i64: 2, 8, 32, 16>}, {pipeline_mode = #tpu.pipeline_mode<synchronous>, transform_indices = @transform_1, window_bounds = array<i64: 2, 16, 16>}, {pipeline_mode = #tpu.pipeline_mode<synchronous>, transform_indices = @transform_2, window_bounds = array<i64: 2, 1, 16>}, {pipeline_mode = #tpu.pipeline_mode<synchronous>, transform_indices = @transform_3, window_bounds = array<i64: 12, 16, 32>}, {pipeline_mode = #tpu.pipeline_mode<synchronous>, transform_indices = @transform_4, window_bounds = array<i64: 12, 1, 16>}, {transform_indices = @transform_5, window_bounds = array<i64: 8, 48>}]} {
    %c0 = arith.constant 0 : index
    %c0_0 = arith.constant 0 : index
    %c0_1 = arith.constant 0 : index
    %c0_2 = arith.constant 0 : index
    %0 = vector.load %arg1[%c0, %c0_0, %c0_1, %c0_2] : memref<2x8x32x16xf32, #tpu.memory_space<vmem>>, vector<1x8x32x16xf32>
    %1 = vector.shape_cast %0 : vector<1x8x32x16xf32> to vector<8x32x16xf32>
    %c0_3 = arith.constant 0 : index
    %c0_4 = arith.constant 0 : index
    %c0_5 = arith.constant 0 : index
    %2 = vector.load %arg2[%c0_3, %c0_4, %c0_5] : memref<2x16x16xf32, #tpu.memory_space<vmem>>, vector<1x16x16xf32>
    %3 = vector.shape_cast %2 : vector<1x16x16xf32> to vector<16x16xf32>
    %cst = arith.constant dense<0.000000e+00> : vector<8x32x16xf32>
    %4 = tpu.matmul %1, %3, %cst {dimension_numbers = #tpu.dot_dimension_numbers<[2], [0], [0, 1], [1], [0, 0, 0, 1, 1, 1], [], []>} : vector<8x32x16xf32>, vector<16x16xf32>, vector<8x32x16xf32> -> vector<8x32x16xf32>
    %c0_6 = arith.constant 0 : index
    %c0_7 = arith.constant 0 : index
    %c0_8 = arith.constant 0 : index
    %5 = vector.load %arg3[%c0_6, %c0_7, %c0_8] : memref<2x1x16xf32, #tpu.memory_space<vmem>>, vector<1x1x16xf32>
    %6 = vector.shape_cast %5 : vector<1x1x16xf32> to vector<1x16xf32>
    %7 = vector.shape_cast %6 : vector<1x16xf32> to vector<1x1x16xf32>
    %8 = vector.broadcast %7 : vector<1x1x16xf32> to vector<8x32x16xf32>
    %9 = arith.addf %4, %8 : vector<8x32x16xf32>
    %c1 = arith.constant 1 : index
    %c0_9 = arith.constant 0 : index
    %c0_10 = arith.constant 0 : index
    %c0_11 = arith.constant 0 : index
    %10 = vector.load %arg1[%c1, %c0_9, %c0_10, %c0_11] : memref<2x8x32x16xf32, #tpu.memory_space<vmem>>, vector<1x8x32x16xf32>
    %11 = vector.shape_cast %10 : vector<1x8x32x16xf32> to vector<8x32x16xf32>
    %c1_12 = arith.constant 1 : index
    %c0_13 = arith.constant 0 : index
    %c0_14 = arith.constant 0 : index
    %12 = vector.load %arg2[%c1_12, %c0_13, %c0_14] : memref<2x16x16xf32, #tpu.memory_space<vmem>>, vector<1x16x16xf32>
    %13 = vector.shape_cast %12 : vector<1x16x16xf32> to vector<16x16xf32>
    %cst_15 = arith.constant dense<0.000000e+00> : vector<8x32x16xf32>
    %14 = tpu.matmul %11, %13, %cst_15 {dimension_numbers = #tpu.dot_dimension_numbers<[2], [0], [0, 1], [1], [0, 0, 0, 1, 1, 1], [], []>} : vector<8x32x16xf32>, vector<16x16xf32>, vector<8x32x16xf32> -> vector<8x32x16xf32>
    %c1_16 = arith.constant 1 : index
    %c0_17 = arith.constant 0 : index
    %c0_18 = arith.constant 0 : index
    %15 = vector.load %arg3[%c1_16, %c0_17, %c0_18] : memref<2x1x16xf32, #tpu.memory_space<vmem>>, vector<1x1x16xf32>
    %16 = vector.shape_cast %15 : vector<1x1x16xf32> to vector<1x16xf32>
    %17 = vector.shape_cast %16 : vector<1x16xf32> to vector<1x1x16xf32>
    %18 = vector.broadcast %17 : vector<1x1x16xf32> to vector<8x32x16xf32>
    %19 = arith.addf %14, %18 : vector<8x32x16xf32>
    %c0_19 = arith.constant 0 : index
    %c0_20 = arith.constant 0 : index
    %c0_21 = arith.constant 0 : index
    %20 = vector.load %arg4[%c0_19, %c0_20, %c0_21] : memref<12x16x32xf32, #tpu.memory_space<vmem>>, vector<1x16x32xf32>
    %21 = vector.shape_cast %20 : vector<1x16x32xf32> to vector<16x32xf32>
    %cst_22 = arith.constant dense<0.000000e+00> : vector<8x32x32xf32>
    %22 = tpu.matmul %9, %21, %cst_22 {dimension_numbers = #tpu.dot_dimension_numbers<[2], [0], [0, 1], [1], [0, 0, 0, 1, 1, 1], [], []>} : vector<8x32x16xf32>, vector<16x32xf32>, vector<8x32x32xf32> -> vector<8x32x32xf32>
    %23 = vector.extract_strided_slice %22 {offsets = [0, 0, 0], sizes = [8, 32, 16], strides = [1, 1, 1]} : vector<8x32x32xf32> to vector<8x32x16xf32>
    %24 = vector.extract_strided_slice %22 {offsets = [0, 0, 16], sizes = [8, 32, 16], strides = [1, 1, 1]} : vector<8x32x32xf32> to vector<8x32x16xf32>
    %cst_23 = arith.constant 0.000000e+00 : f32
    %25 = vector.broadcast %cst_23 : f32 to vector<8x1x16xf32>
    %26 = vector.extract_strided_slice %24 {offsets = [0, 0, 0], sizes = [8, 31, 16], strides = [1, 1, 1]} : vector<8x32x16xf32> to vector<8x31x16xf32>
    %27 = tpu.concatenate %25, %26 in 1 : vector<8x1x16xf32>, vector<8x31x16xf32> -> vector<8x32x16xf32>
    %28 = arith.addf %23, %27 : vector<8x32x16xf32>
    %c0_24 = arith.constant 0 : index
    %c0_25 = arith.constant 0 : index
    %c0_26 = arith.constant 0 : index
    %29 = vector.load %arg5[%c0_24, %c0_25, %c0_26] : memref<12x1x16xf32, #tpu.memory_space<vmem>>, vector<1x1x16xf32>
    %30 = vector.shape_cast %29 : vector<1x1x16xf32> to vector<1x16xf32>
    %31 = vector.shape_cast %30 : vector<1x16xf32> to vector<1x1x16xf32>
    %32 = vector.broadcast %31 : vector<1x1x16xf32> to vector<8x32x16xf32>
    %33 = arith.addf %28, %32 : vector<8x32x16xf32>
    %cst_27 = arith.constant 0.000000e+00 : f32
    %34 = vector.broadcast %cst_27 : f32 to vector<8x32x16xf32>
    %35 = arith.maximumf %33, %34 : vector<8x32x16xf32>
    %c1_28 = arith.constant 1 : index
    %c0_29 = arith.constant 0 : index
    %c0_30 = arith.constant 0 : index
    %36 = vector.load %arg4[%c1_28, %c0_29, %c0_30] : memref<12x16x32xf32, #tpu.memory_space<vmem>>, vector<1x16x32xf32>
    %37 = vector.shape_cast %36 : vector<1x16x32xf32> to vector<16x32xf32>
    %cst_31 = arith.constant dense<0.000000e+00> : vector<8x32x32xf32>
    %38 = tpu.matmul %35, %37, %cst_31 {dimension_numbers = #tpu.dot_dimension_numbers<[2], [0], [0, 1], [1], [0, 0, 0, 1, 1, 1], [], []>} : vector<8x32x16xf32>, vector<16x32xf32>, vector<8x32x32xf32> -> vector<8x32x32xf32>
    %39 = vector.extract_strided_slice %38 {offsets = [0, 0, 0], sizes = [8, 32, 16], strides = [1, 1, 1]} : vector<8x32x32xf32> to vector<8x32x16xf32>
    %40 = vector.extract_strided_slice %38 {offsets = [0, 0, 16], sizes = [8, 32, 16], strides = [1, 1, 1]} : vector<8x32x32xf32> to vector<8x32x16xf32>
    %cst_32 = arith.constant 0.000000e+00 : f32
    %41 = vector.broadcast %cst_32 : f32 to vector<8x1x16xf32>
    %42 = vector.extract_strided_slice %40 {offsets = [0, 0, 0], sizes = [8, 31, 16], strides = [1, 1, 1]} : vector<8x32x16xf32> to vector<8x31x16xf32>
    %43 = tpu.concatenate %41, %42 in 1 : vector<8x1x16xf32>, vector<8x31x16xf32> -> vector<8x32x16xf32>
    %44 = arith.addf %39, %43 : vector<8x32x16xf32>
    %c1_33 = arith.constant 1 : index
    %c0_34 = arith.constant 0 : index
    %c0_35 = arith.constant 0 : index
    %45 = vector.load %arg5[%c1_33, %c0_34, %c0_35] : memref<12x1x16xf32, #tpu.memory_space<vmem>>, vector<1x1x16xf32>
    %46 = vector.shape_cast %45 : vector<1x1x16xf32> to vector<1x16xf32>
    %47 = vector.shape_cast %46 : vector<1x16xf32> to vector<1x1x16xf32>
    %48 = vector.broadcast %47 : vector<1x1x16xf32> to vector<8x32x16xf32>
    %49 = arith.addf %44, %48 : vector<8x32x16xf32>
    %cst_36 = arith.constant 0.000000e+00 : f32
    %50 = vector.broadcast %cst_36 : f32 to vector<8x32x16xf32>
    %51 = arith.maximumf %49, %50 : vector<8x32x16xf32>
    %52 = arith.negf %51 : vector<8x32x16xf32>
    %53 = math.exp %52 : vector<8x32x16xf32>
    %cst_37 = arith.constant 1.000000e+00 : f32
    %54 = vector.broadcast %cst_37 : f32 to vector<8x32x16xf32>
    %55 = arith.addf %54, %53 : vector<8x32x16xf32>
    %56 = arith.divf %54, %55 : vector<8x32x16xf32>
    %57 = arith.mulf %9, %56 : vector<8x32x16xf32>
    %c6 = arith.constant 6 : index
    %c0_38 = arith.constant 0 : index
    %c0_39 = arith.constant 0 : index
    %58 = vector.load %arg4[%c6, %c0_38, %c0_39] : memref<12x16x32xf32, #tpu.memory_space<vmem>>, vector<1x16x32xf32>
    %59 = vector.shape_cast %58 : vector<1x16x32xf32> to vector<16x32xf32>
    %cst_40 = arith.constant dense<0.000000e+00> : vector<8x32x32xf32>
    %60 = tpu.matmul %19, %59, %cst_40 {dimension_numbers = #tpu.dot_dimension_numbers<[2], [0], [0, 1], [1], [0, 0, 0, 1, 1, 1], [], []>} : vector<8x32x16xf32>, vector<16x32xf32>, vector<8x32x32xf32> -> vector<8x32x32xf32>
    %61 = vector.extract_strided_slice %60 {offsets = [0, 0, 0], sizes = [8, 32, 16], strides = [1, 1, 1]} : vector<8x32x32xf32> to vector<8x32x16xf32>
    %62 = vector.extract_strided_slice %60 {offsets = [0, 0, 16], sizes = [8, 32, 16], strides = [1, 1, 1]} : vector<8x32x32xf32> to vector<8x32x16xf32>
    %cst_41 = arith.constant 0.000000e+00 : f32
    %63 = vector.broadcast %cst_41 : f32 to vector<8x1x16xf32>
    %64 = vector.extract_strided_slice %62 {offsets = [0, 0, 0], sizes = [8, 31, 16], strides = [1, 1, 1]} : vector<8x32x16xf32> to vector<8x31x16xf32>
    %65 = tpu.concatenate %63, %64 in 1 : vector<8x1x16xf32>, vector<8x31x16xf32> -> vector<8x32x16xf32>
    %66 = arith.addf %61, %65 : vector<8x32x16xf32>
    %c6_42 = arith.constant 6 : index
    %c0_43 = arith.constant 0 : index
    %c0_44 = arith.constant 0 : index
    %67 = vector.load %arg5[%c6_42, %c0_43, %c0_44] : memref<12x1x16xf32, #tpu.memory_space<vmem>>, vector<1x1x16xf32>
    %68 = vector.shape_cast %67 : vector<1x1x16xf32> to vector<1x16xf32>
    %69 = vector.shape_cast %68 : vector<1x16xf32> to vector<1x1x16xf32>
    %70 = vector.broadcast %69 : vector<1x1x16xf32> to vector<8x32x16xf32>
    %71 = arith.addf %66, %70 : vector<8x32x16xf32>
    %cst_45 = arith.constant 0.000000e+00 : f32
    %72 = vector.broadcast %cst_45 : f32 to vector<8x32x16xf32>
    %73 = arith.maximumf %71, %72 : vector<8x32x16xf32>
    %c7 = arith.constant 7 : index
    %c0_46 = arith.constant 0 : index
    %c0_47 = arith.constant 0 : index
    %74 = vector.load %arg4[%c7, %c0_46, %c0_47] : memref<12x16x32xf32, #tpu.memory_space<vmem>>, vector<1x16x32xf32>
    %75 = vector.shape_cast %74 : vector<1x16x32xf32> to vector<16x32xf32>
    %cst_48 = arith.constant dense<0.000000e+00> : vector<8x32x32xf32>
    %76 = tpu.matmul %73, %75, %cst_48 {dimension_numbers = #tpu.dot_dimension_numbers<[2], [0], [0, 1], [1], [0, 0, 0, 1, 1, 1], [], []>} : vector<8x32x16xf32>, vector<16x32xf32>, vector<8x32x32xf32> -> vector<8x32x32xf32>
    %77 = vector.extract_strided_slice %76 {offsets = [0, 0, 0], sizes = [8, 32, 16], strides = [1, 1, 1]} : vector<8x32x32xf32> to vector<8x32x16xf32>
    %78 = vector.extract_strided_slice %76 {offsets = [0, 0, 16], sizes = [8, 32, 16], strides = [1, 1, 1]} : vector<8x32x32xf32> to vector<8x32x16xf32>
    %cst_49 = arith.constant 0.000000e+00 : f32
    %79 = vector.broadcast %cst_49 : f32 to vector<8x1x16xf32>
    %80 = vector.extract_strided_slice %78 {offsets = [0, 0, 0], sizes = [8, 31, 16], strides = [1, 1, 1]} : vector<8x32x16xf32> to vector<8x31x16xf32>
    %81 = tpu.concatenate %79, %80 in 1 : vector<8x1x16xf32>, vector<8x31x16xf32> -> vector<8x32x16xf32>
    %82 = arith.addf %77, %81 : vector<8x32x16xf32>
    %c7_50 = arith.constant 7 : index
    %c0_51 = arith.constant 0 : index
    %c0_52 = arith.constant 0 : index
    %83 = vector.load %arg5[%c7_50, %c0_51, %c0_52] : memref<12x1x16xf32, #tpu.memory_space<vmem>>, vector<1x1x16xf32>
    %84 = vector.shape_cast %83 : vector<1x1x16xf32> to vector<1x16xf32>
    %85 = vector.shape_cast %84 : vector<1x16xf32> to vector<1x1x16xf32>
    %86 = vector.broadcast %85 : vector<1x1x16xf32> to vector<8x32x16xf32>
    %87 = arith.addf %82, %86 : vector<8x32x16xf32>
    %cst_53 = arith.constant 0.000000e+00 : f32
    %88 = vector.broadcast %cst_53 : f32 to vector<8x32x16xf32>
    %89 = arith.maximumf %87, %88 : vector<8x32x16xf32>
    %90 = arith.negf %89 : vector<8x32x16xf32>
    %91 = math.exp %90 : vector<8x32x16xf32>
    %cst_54 = arith.constant 1.000000e+00 : f32
    %92 = vector.broadcast %cst_54 : f32 to vector<8x32x16xf32>
    %93 = arith.addf %92, %91 : vector<8x32x16xf32>
    %94 = arith.divf %92, %93 : vector<8x32x16xf32>
    %95 = arith.mulf %19, %94 : vector<8x32x16xf32>
    %96 = arith.addf %57, %95 : vector<8x32x16xf32>
    %cst_55 = arith.constant dense<0.000000e+00> : vector<8x16xf32>
    %97 = vector.multi_reduction <add>, %96, %cst_55 [1] : vector<8x32x16xf32> to vector<8x16xf32>
    %cst_56 = arith.constant 3.200000e+01 : f32
    %98 = vector.broadcast %cst_56 : f32 to vector<8x16xf32>
    %99 = arith.divf %97, %98 : vector<8x16xf32>
    %c0_57 = arith.constant 0 : index
    %c0_58 = arith.constant 0 : index
    %100 = vector.load %arg6[%c0_57, %c0_58] : memref<8x48xf32, #tpu.memory_space<vmem>>, vector<8x16xf32>
    tpu.vector_store %arg6[%c0_57, %c0_58], %99 {strides = array<i32>} : memref<8x48xf32, #tpu.memory_space<vmem>>, vector<8x16xf32>,
    %c2 = arith.constant 2 : index
    %c0_59 = arith.constant 0 : index
    %c0_60 = arith.constant 0 : index
    %101 = vector.load %arg4[%c2, %c0_59, %c0_60] : memref<12x16x32xf32, #tpu.memory_space<vmem>>, vector<1x16x32xf32>
    %102 = vector.shape_cast %101 : vector<1x16x32xf32> to vector<16x32xf32>
    %cst_61 = arith.constant dense<0.000000e+00> : vector<8x32x32xf32>
    %103 = tpu.matmul %57, %102, %cst_61 {dimension_numbers = #tpu.dot_dimension_numbers<[2], [0], [0, 1], [1], [0, 0, 0, 1, 1, 1], [], []>} : vector<8x32x16xf32>, vector<16x32xf32>, vector<8x32x32xf32> -> vector<8x32x32xf32>
    %104 = vector.extract_strided_slice %103 {offsets = [0, 0, 0], sizes = [8, 32, 16], strides = [1, 1, 1]} : vector<8x32x32xf32> to vector<8x32x16xf32>
    %105 = vector.extract_strided_slice %103 {offsets = [0, 0, 16], sizes = [8, 32, 16], strides = [1, 1, 1]} : vector<8x32x32xf32> to vector<8x32x16xf32>
    %cst_62 = arith.constant 0.000000e+00 : f32
    %106 = vector.broadcast %cst_62 : f32 to vector<8x2x16xf32>
    %107 = vector.extract_strided_slice %105 {offsets = [0, 0, 0], sizes = [8, 30, 16], strides = [1, 1, 1]} : vector<8x32x16xf32> to vector<8x30x16xf32>
    %108 = tpu.concatenate %106, %107 in 1 : vector<8x2x16xf32>, vector<8x30x16xf32> -> vector<8x32x16xf32>
    %109 = arith.addf %104, %108 : vector<8x32x16xf32>
    %c2_63 = arith.constant 2 : index
    %c0_64 = arith.constant 0 : index
    %c0_65 = arith.constant 0 : index
    %110 = vector.load %arg5[%c2_63, %c0_64, %c0_65] : memref<12x1x16xf32, #tpu.memory_space<vmem>>, vector<1x1x16xf32>
    %111 = vector.shape_cast %110 : vector<1x1x16xf32> to vector<1x16xf32>
    %112 = vector.shape_cast %111 : vector<1x16xf32> to vector<1x1x16xf32>
    %113 = vector.broadcast %112 : vector<1x1x16xf32> to vector<8x32x16xf32>
    %114 = arith.addf %109, %113 : vector<8x32x16xf32>
    %cst_66 = arith.constant 0.000000e+00 : f32
    %115 = vector.broadcast %cst_66 : f32 to vector<8x32x16xf32>
    %116 = arith.maximumf %114, %115 : vector<8x32x16xf32>
    %c3 = arith.constant 3 : index
    %c0_67 = arith.constant 0 : index
    %c0_68 = arith.constant 0 : index
    %117 = vector.load %arg4[%c3, %c0_67, %c0_68] : memref<12x16x32xf32, #tpu.memory_space<vmem>>, vector<1x16x32xf32>
    %118 = vector.shape_cast %117 : vector<1x16x32xf32> to vector<16x32xf32>
    %cst_69 = arith.constant dense<0.000000e+00> : vector<8x32x32xf32>
    %119 = tpu.matmul %116, %118, %cst_69 {dimension_numbers = #tpu.dot_dimension_numbers<[2], [0], [0, 1], [1], [0, 0, 0, 1, 1, 1], [], []>} : vector<8x32x16xf32>, vector<16x32xf32>, vector<8x32x32xf32> -> vector<8x32x32xf32>
    %120 = vector.extract_strided_slice %119 {offsets = [0, 0, 0], sizes = [8, 32, 16], strides = [1, 1, 1]} : vector<8x32x32xf32> to vector<8x32x16xf32>
    %121 = vector.extract_strided_slice %119 {offsets = [0, 0, 16], sizes = [8, 32, 16], strides = [1, 1, 1]} : vector<8x32x32xf32> to vector<8x32x16xf32>
    %cst_70 = arith.constant 0.000000e+00 : f32
    %122 = vector.broadcast %cst_70 : f32 to vector<8x2x16xf32>
    %123 = vector.extract_strided_slice %121 {offsets = [0, 0, 0], sizes = [8, 30, 16], strides = [1, 1, 1]} : vector<8x32x16xf32> to vector<8x30x16xf32>
    %124 = tpu.concatenate %122, %123 in 1 : vector<8x2x16xf32>, vector<8x30x16xf32> -> vector<8x32x16xf32>
    %125 = arith.addf %120, %124 : vector<8x32x16xf32>
    %c3_71 = arith.constant 3 : index
    %c0_72 = arith.constant 0 : index
    %c0_73 = arith.constant 0 : index
    %126 = vector.load %arg5[%c3_71, %c0_72, %c0_73] : memref<12x1x16xf32, #tpu.memory_space<vmem>>, vector<1x1x16xf32>
    %127 = vector.shape_cast %126 : vector<1x1x16xf32> to vector<1x16xf32>
    %128 = vector.shape_cast %127 : vector<1x16xf32> to vector<1x1x16xf32>
    %129 = vector.broadcast %128 : vector<1x1x16xf32> to vector<8x32x16xf32>
    %130 = arith.addf %125, %129 : vector<8x32x16xf32>
    %cst_74 = arith.constant 0.000000e+00 : f32
    %131 = vector.broadcast %cst_74 : f32 to vector<8x32x16xf32>
    %132 = arith.maximumf %130, %131 : vector<8x32x16xf32>
    %133 = arith.negf %132 : vector<8x32x16xf32>
    %134 = math.exp %133 : vector<8x32x16xf32>
    %cst_75 = arith.constant 1.000000e+00 : f32
    %135 = vector.broadcast %cst_75 : f32 to vector<8x32x16xf32>
    %136 = arith.addf %135, %134 : vector<8x32x16xf32>
    %137 = arith.divf %135, %136 : vector<8x32x16xf32>
    %138 = arith.mulf %57, %137 : vector<8x32x16xf32>
    %c8 = arith.constant 8 : index
    %c0_76 = arith.constant 0 : index
    %c0_77 = arith.constant 0 : index
    %139 = vector.load %arg4[%c8, %c0_76, %c0_77] : memref<12x16x32xf32, #tpu.memory_space<vmem>>, vector<1x16x32xf32>
    %140 = vector.shape_cast %139 : vector<1x16x32xf32> to vector<16x32xf32>
    %cst_78 = arith.constant dense<0.000000e+00> : vector<8x32x32xf32>
    %141 = tpu.matmul %95, %140, %cst_78 {dimension_numbers = #tpu.dot_dimension_numbers<[2], [0], [0, 1], [1], [0, 0, 0, 1, 1, 1], [], []>} : vector<8x32x16xf32>, vector<16x32xf32>, vector<8x32x32xf32> -> vector<8x32x32xf32>
    %142 = vector.extract_strided_slice %141 {offsets = [0, 0, 0], sizes = [8, 32, 16], strides = [1, 1, 1]} : vector<8x32x32xf32> to vector<8x32x16xf32>
    %143 = vector.extract_strided_slice %141 {offsets = [0, 0, 16], sizes = [8, 32, 16], strides = [1, 1, 1]} : vector<8x32x32xf32> to vector<8x32x16xf32>
    %cst_79 = arith.constant 0.000000e+00 : f32
    %144 = vector.broadcast %cst_79 : f32 to vector<8x2x16xf32>
    %145 = vector.extract_strided_slice %143 {offsets = [0, 0, 0], sizes = [8, 30, 16], strides = [1, 1, 1]} : vector<8x32x16xf32> to vector<8x30x16xf32>
    %146 = tpu.concatenate %144, %145 in 1 : vector<8x2x16xf32>, vector<8x30x16xf32> -> vector<8x32x16xf32>
    %147 = arith.addf %142, %146 : vector<8x32x16xf32>
    %c8_80 = arith.constant 8 : index
    %c0_81 = arith.constant 0 : index
    %c0_82 = arith.constant 0 : index
    %148 = vector.load %arg5[%c8_80, %c0_81, %c0_82] : memref<12x1x16xf32, #tpu.memory_space<vmem>>, vector<1x1x16xf32>
    %149 = vector.shape_cast %148 : vector<1x1x16xf32> to vector<1x16xf32>
    %150 = vector.shape_cast %149 : vector<1x16xf32> to vector<1x1x16xf32>
    %151 = vector.broadcast %150 : vector<1x1x16xf32> to vector<8x32x16xf32>
    %152 = arith.addf %147, %151 : vector<8x32x16xf32>
    %cst_83 = arith.constant 0.000000e+00 : f32
    %153 = vector.broadcast %cst_83 : f32 to vector<8x32x16xf32>
    %154 = arith.maximumf %152, %153 : vector<8x32x16xf32>
    %c9 = arith.constant 9 : index
    %c0_84 = arith.constant 0 : index
    %c0_85 = arith.constant 0 : index
    %155 = vector.load %arg4[%c9, %c0_84, %c0_85] : memref<12x16x32xf32, #tpu.memory_space<vmem>>, vector<1x16x32xf32>
    %156 = vector.shape_cast %155 : vector<1x16x32xf32> to vector<16x32xf32>
    %cst_86 = arith.constant dense<0.000000e+00> : vector<8x32x32xf32>
    %157 = tpu.matmul %154, %156, %cst_86 {dimension_numbers = #tpu.dot_dimension_numbers<[2], [0], [0, 1], [1], [0, 0, 0, 1, 1, 1], [], []>} : vector<8x32x16xf32>, vector<16x32xf32>, vector<8x32x32xf32> -> vector<8x32x32xf32>
    %158 = vector.extract_strided_slice %157 {offsets = [0, 0, 0], sizes = [8, 32, 16], strides = [1, 1, 1]} : vector<8x32x32xf32> to vector<8x32x16xf32>
    %159 = vector.extract_strided_slice %157 {offsets = [0, 0, 16], sizes = [8, 32, 16], strides = [1, 1, 1]} : vector<8x32x32xf32> to vector<8x32x16xf32>
    %cst_87 = arith.constant 0.000000e+00 : f32
    %160 = vector.broadcast %cst_87 : f32 to vector<8x2x16xf32>
    %161 = vector.extract_strided_slice %159 {offsets = [0, 0, 0], sizes = [8, 30, 16], strides = [1, 1, 1]} : vector<8x32x16xf32> to vector<8x30x16xf32>
    %162 = tpu.concatenate %160, %161 in 1 : vector<8x2x16xf32>, vector<8x30x16xf32> -> vector<8x32x16xf32>
    %163 = arith.addf %158, %162 : vector<8x32x16xf32>
    %c9_88 = arith.constant 9 : index
    %c0_89 = arith.constant 0 : index
    %c0_90 = arith.constant 0 : index
    %164 = vector.load %arg5[%c9_88, %c0_89, %c0_90] : memref<12x1x16xf32, #tpu.memory_space<vmem>>, vector<1x1x16xf32>
    %165 = vector.shape_cast %164 : vector<1x1x16xf32> to vector<1x16xf32>
    %166 = vector.shape_cast %165 : vector<1x16xf32> to vector<1x1x16xf32>
    %167 = vector.broadcast %166 : vector<1x1x16xf32> to vector<8x32x16xf32>
    %168 = arith.addf %163, %167 : vector<8x32x16xf32>
    %cst_91 = arith.constant 0.000000e+00 : f32
    %169 = vector.broadcast %cst_91 : f32 to vector<8x32x16xf32>
    %170 = arith.maximumf %168, %169 : vector<8x32x16xf32>
    %171 = arith.negf %170 : vector<8x32x16xf32>
    %172 = math.exp %171 : vector<8x32x16xf32>
    %cst_92 = arith.constant 1.000000e+00 : f32
    %173 = vector.broadcast %cst_92 : f32 to vector<8x32x16xf32>
    %174 = arith.addf %173, %172 : vector<8x32x16xf32>
    %175 = arith.divf %173, %174 : vector<8x32x16xf32>
    %176 = arith.mulf %95, %175 : vector<8x32x16xf32>
    %177 = arith.addf %138, %176 : vector<8x32x16xf32>
    %cst_93 = arith.constant dense<0.000000e+00> : vector<8x16xf32>
    %178 = vector.multi_reduction <add>, %177, %cst_93 [1] : vector<8x32x16xf32> to vector<8x16xf32>
    %cst_94 = arith.constant 3.200000e+01 : f32
    %179 = vector.broadcast %cst_94 : f32 to vector<8x16xf32>
    %180 = arith.divf %178, %179 : vector<8x16xf32>
    %c0_95 = arith.constant 0 : index
    %c16 = arith.constant 16 : index
    %181 = vector.load %arg6[%c0_95, %c16] : memref<8x48xf32, #tpu.memory_space<vmem>>, vector<8x16xf32>
    tpu.vector_store %arg6[%c0_95, %c16], %180 {strides = array<i32>} : memref<8x48xf32, #tpu.memory_space<vmem>>, vector<8x16xf32>,
    %c4 = arith.constant 4 : index
    %c0_96 = arith.constant 0 : index
    %c0_97 = arith.constant 0 : index
    %182 = vector.load %arg4[%c4, %c0_96, %c0_97] : memref<12x16x32xf32, #tpu.memory_space<vmem>>, vector<1x16x32xf32>
    %183 = vector.shape_cast %182 : vector<1x16x32xf32> to vector<16x32xf32>
    %cst_98 = arith.constant dense<0.000000e+00> : vector<8x32x32xf32>
    %184 = tpu.matmul %138, %183, %cst_98 {dimension_numbers = #tpu.dot_dimension_numbers<[2], [0], [0, 1], [1], [0, 0, 0, 1, 1, 1], [], []>} : vector<8x32x16xf32>, vector<16x32xf32>, vector<8x32x32xf32> -> vector<8x32x32xf32>
    %185 = vector.extract_strided_slice %184 {offsets = [0, 0, 0], sizes = [8, 32, 16], strides = [1, 1, 1]} : vector<8x32x32xf32> to vector<8x32x16xf32>
    %186 = vector.extract_strided_slice %184 {offsets = [0, 0, 16], sizes = [8, 32, 16], strides = [1, 1, 1]} : vector<8x32x32xf32> to vector<8x32x16xf32>
    %cst_99 = arith.constant 0.000000e+00 : f32
    %187 = vector.broadcast %cst_99 : f32 to vector<8x4x16xf32>
    %188 = vector.extract_strided_slice %186 {offsets = [0, 0, 0], sizes = [8, 28, 16], strides = [1, 1, 1]} : vector<8x32x16xf32> to vector<8x28x16xf32>
    %189 = tpu.concatenate %187, %188 in 1 : vector<8x4x16xf32>, vector<8x28x16xf32> -> vector<8x32x16xf32>
    %190 = arith.addf %185, %189 : vector<8x32x16xf32>
    %c4_100 = arith.constant 4 : index
    %c0_101 = arith.constant 0 : index
    %c0_102 = arith.constant 0 : index
    %191 = vector.load %arg5[%c4_100, %c0_101, %c0_102] : memref<12x1x16xf32, #tpu.memory_space<vmem>>, vector<1x1x16xf32>
    %192 = vector.shape_cast %191 : vector<1x1x16xf32> to vector<1x16xf32>
    %193 = vector.shape_cast %192 : vector<1x16xf32> to vector<1x1x16xf32>
    %194 = vector.broadcast %193 : vector<1x1x16xf32> to vector<8x32x16xf32>
    %195 = arith.addf %190, %194 : vector<8x32x16xf32>
    %cst_103 = arith.constant 0.000000e+00 : f32
    %196 = vector.broadcast %cst_103 : f32 to vector<8x32x16xf32>
    %197 = arith.maximumf %195, %196 : vector<8x32x16xf32>
    %c5 = arith.constant 5 : index
    %c0_104 = arith.constant 0 : index
    %c0_105 = arith.constant 0 : index
    %198 = vector.load %arg4[%c5, %c0_104, %c0_105] : memref<12x16x32xf32, #tpu.memory_space<vmem>>, vector<1x16x32xf32>
    %199 = vector.shape_cast %198 : vector<1x16x32xf32> to vector<16x32xf32>
    %cst_106 = arith.constant dense<0.000000e+00> : vector<8x32x32xf32>
    %200 = tpu.matmul %197, %199, %cst_106 {dimension_numbers = #tpu.dot_dimension_numbers<[2], [0], [0, 1], [1], [0, 0, 0, 1, 1, 1], [], []>} : vector<8x32x16xf32>, vector<16x32xf32>, vector<8x32x32xf32> -> vector<8x32x32xf32>
    %201 = vector.extract_strided_slice %200 {offsets = [0, 0, 0], sizes = [8, 32, 16], strides = [1, 1, 1]} : vector<8x32x32xf32> to vector<8x32x16xf32>
    %202 = vector.extract_strided_slice %200 {offsets = [0, 0, 16], sizes = [8, 32, 16], strides = [1, 1, 1]} : vector<8x32x32xf32> to vector<8x32x16xf32>
    %cst_107 = arith.constant 0.000000e+00 : f32
    %203 = vector.broadcast %cst_107 : f32 to vector<8x4x16xf32>
    %204 = vector.extract_strided_slice %202 {offsets = [0, 0, 0], sizes = [8, 28, 16], strides = [1, 1, 1]} : vector<8x32x16xf32> to vector<8x28x16xf32>
    %205 = tpu.concatenate %203, %204 in 1 : vector<8x4x16xf32>, vector<8x28x16xf32> -> vector<8x32x16xf32>
    %206 = arith.addf %201, %205 : vector<8x32x16xf32>
    %c5_108 = arith.constant 5 : index
    %c0_109 = arith.constant 0 : index
    %c0_110 = arith.constant 0 : index
    %207 = vector.load %arg5[%c5_108, %c0_109, %c0_110] : memref<12x1x16xf32, #tpu.memory_space<vmem>>, vector<1x1x16xf32>
    %208 = vector.shape_cast %207 : vector<1x1x16xf32> to vector<1x16xf32>
    %209 = vector.shape_cast %208 : vector<1x16xf32> to vector<1x1x16xf32>
    %210 = vector.broadcast %209 : vector<1x1x16xf32> to vector<8x32x16xf32>
    %211 = arith.addf %206, %210 : vector<8x32x16xf32>
    %cst_111 = arith.constant 0.000000e+00 : f32
    %212 = vector.broadcast %cst_111 : f32 to vector<8x32x16xf32>
    %213 = arith.maximumf %211, %212 : vector<8x32x16xf32>
    %214 = arith.negf %213 : vector<8x32x16xf32>
    %215 = math.exp %214 : vector<8x32x16xf32>
    %cst_112 = arith.constant 1.000000e+00 : f32
    %216 = vector.broadcast %cst_112 : f32 to vector<8x32x16xf32>
    %217 = arith.addf %216, %215 : vector<8x32x16xf32>
    %218 = arith.divf %216, %217 : vector<8x32x16xf32>
    %219 = arith.mulf %138, %218 : vector<8x32x16xf32>
    %c10 = arith.constant 10 : index
    %c0_113 = arith.constant 0 : index
    %c0_114 = arith.constant 0 : index
    %220 = vector.load %arg4[%c10, %c0_113, %c0_114] : memref<12x16x32xf32, #tpu.memory_space<vmem>>, vector<1x16x32xf32>
    %221 = vector.shape_cast %220 : vector<1x16x32xf32> to vector<16x32xf32>
    %cst_115 = arith.constant dense<0.000000e+00> : vector<8x32x32xf32>
    %222 = tpu.matmul %176, %221, %cst_115 {dimension_numbers = #tpu.dot_dimension_numbers<[2], [0], [0, 1], [1], [0, 0, 0, 1, 1, 1], [], []>} : vector<8x32x16xf32>, vector<16x32xf32>, vector<8x32x32xf32> -> vector<8x32x32xf32>
    %223 = vector.extract_strided_slice %222 {offsets = [0, 0, 0], sizes = [8, 32, 16], strides = [1, 1, 1]} : vector<8x32x32xf32> to vector<8x32x16xf32>
    %224 = vector.extract_strided_slice %222 {offsets = [0, 0, 16], sizes = [8, 32, 16], strides = [1, 1, 1]} : vector<8x32x32xf32> to vector<8x32x16xf32>
    %cst_116 = arith.constant 0.000000e+00 : f32
    %225 = vector.broadcast %cst_116 : f32 to vector<8x4x16xf32>
    %226 = vector.extract_strided_slice %224 {offsets = [0, 0, 0], sizes = [8, 28, 16], strides = [1, 1, 1]} : vector<8x32x16xf32> to vector<8x28x16xf32>
    %227 = tpu.concatenate %225, %226 in 1 : vector<8x4x16xf32>, vector<8x28x16xf32> -> vector<8x32x16xf32>
    %228 = arith.addf %223, %227 : vector<8x32x16xf32>
    %c10_117 = arith.constant 10 : index
    %c0_118 = arith.constant 0 : index
    %c0_119 = arith.constant 0 : index
    %229 = vector.load %arg5[%c10_117, %c0_118, %c0_119] : memref<12x1x16xf32, #tpu.memory_space<vmem>>, vector<1x1x16xf32>
    %230 = vector.shape_cast %229 : vector<1x1x16xf32> to vector<1x16xf32>
    %231 = vector.shape_cast %230 : vector<1x16xf32> to vector<1x1x16xf32>
    %232 = vector.broadcast %231 : vector<1x1x16xf32> to vector<8x32x16xf32>
    %233 = arith.addf %228, %232 : vector<8x32x16xf32>
    %cst_120 = arith.constant 0.000000e+00 : f32
    %234 = vector.broadcast %cst_120 : f32 to vector<8x32x16xf32>
    %235 = arith.maximumf %233, %234 : vector<8x32x16xf32>
    %c11 = arith.constant 11 : index
    %c0_121 = arith.constant 0 : index
    %c0_122 = arith.constant 0 : index
    %236 = vector.load %arg4[%c11, %c0_121, %c0_122] : memref<12x16x32xf32, #tpu.memory_space<vmem>>, vector<1x16x32xf32>
    %237 = vector.shape_cast %236 : vector<1x16x32xf32> to vector<16x32xf32>
    %cst_123 = arith.constant dense<0.000000e+00> : vector<8x32x32xf32>
    %238 = tpu.matmul %235, %237, %cst_123 {dimension_numbers = #tpu.dot_dimension_numbers<[2], [0], [0, 1], [1], [0, 0, 0, 1, 1, 1], [], []>} : vector<8x32x16xf32>, vector<16x32xf32>, vector<8x32x32xf32> -> vector<8x32x32xf32>
    %239 = vector.extract_strided_slice %238 {offsets = [0, 0, 0], sizes = [8, 32, 16], strides = [1, 1, 1]} : vector<8x32x32xf32> to vector<8x32x16xf32>
    %240 = vector.extract_strided_slice %238 {offsets = [0, 0, 16], sizes = [8, 32, 16], strides = [1, 1, 1]} : vector<8x32x32xf32> to vector<8x32x16xf32>
    %cst_124 = arith.constant 0.000000e+00 : f32
    %241 = vector.broadcast %cst_124 : f32 to vector<8x4x16xf32>
    %242 = vector.extract_strided_slice %240 {offsets = [0, 0, 0], sizes = [8, 28, 16], strides = [1, 1, 1]} : vector<8x32x16xf32> to vector<8x28x16xf32>
    %243 = tpu.concatenate %241, %242 in 1 : vector<8x4x16xf32>, vector<8x28x16xf32> -> vector<8x32x16xf32>
    %244 = arith.addf %239, %243 : vector<8x32x16xf32>
    %c11_125 = arith.constant 11 : index
    %c0_126 = arith.constant 0 : index
    %c0_127 = arith.constant 0 : index
    %245 = vector.load %arg5[%c11_125, %c0_126, %c0_127] : memref<12x1x16xf32, #tpu.memory_space<vmem>>, vector<1x1x16xf32>
    %246 = vector.shape_cast %245 : vector<1x1x16xf32> to vector<1x16xf32>
    %247 = vector.shape_cast %246 : vector<1x16xf32> to vector<1x1x16xf32>
    %248 = vector.broadcast %247 : vector<1x1x16xf32> to vector<8x32x16xf32>
    %249 = arith.addf %244, %248 : vector<8x32x16xf32>
    %cst_128 = arith.constant 0.000000e+00 : f32
    %250 = vector.broadcast %cst_128 : f32 to vector<8x32x16xf32>
    %251 = arith.maximumf %249, %250 : vector<8x32x16xf32>
    %252 = arith.negf %251 : vector<8x32x16xf32>
    %253 = math.exp %252 : vector<8x32x16xf32>
    %cst_129 = arith.constant 1.000000e+00 : f32
    %254 = vector.broadcast %cst_129 : f32 to vector<8x32x16xf32>
    %255 = arith.addf %254, %253 : vector<8x32x16xf32>
    %256 = arith.divf %254, %255 : vector<8x32x16xf32>
    %257 = arith.mulf %176, %256 : vector<8x32x16xf32>
    %258 = arith.addf %219, %257 : vector<8x32x16xf32>
    %cst_130 = arith.constant dense<0.000000e+00> : vector<8x16xf32>
    %259 = vector.multi_reduction <add>, %258, %cst_130 [1] : vector<8x32x16xf32> to vector<8x16xf32>
    %cst_131 = arith.constant 3.200000e+01 : f32
    %260 = vector.broadcast %cst_131 : f32 to vector<8x16xf32>
    %261 = arith.divf %259, %260 : vector<8x16xf32>
    %c0_132 = arith.constant 0 : index
    %c32 = arith.constant 32 : index
    %262 = vector.load %arg6[%c0_132, %c32] : memref<8x48xf32, #tpu.memory_space<vmem>>, vector<8x16xf32>
    tpu.vector_store %arg6[%c0_132, %c32], %261 {strides = array<i32>} : memref<8x48xf32, #tpu.memory_space<vmem>>, vector<8x16xf32>,
    return
  }
  func.func @transform_0(%arg0: i32) -> (i32, i32, i32, i32) {
    %c0_i32 = arith.constant 0 : i32
    %c0_i32_0 = arith.constant 0 : i32
    %c0_i32_1 = arith.constant 0 : i32
    %c0_i32_2 = arith.constant 0 : i32
    return %c0_i32, %arg0, %c0_i32_0, %c0_i32_1 : i32, i32, i32, i32
  }
  func.func @transform_1(%arg0: i32) -> (i32, i32, i32) {
    %c0_i32 = arith.constant 0 : i32
    %c0_i32_0 = arith.constant 0 : i32
    %c0_i32_1 = arith.constant 0 : i32
    %c0_i32_2 = arith.constant 0 : i32
    return %c0_i32, %c0_i32_0, %c0_i32_1 : i32, i32, i32
  }
  func.func @transform_2(%arg0: i32) -> (i32, i32, i32) {
    %c0_i32 = arith.constant 0 : i32
    %c0_i32_0 = arith.constant 0 : i32
    %c0_i32_1 = arith.constant 0 : i32
    %c0_i32_2 = arith.constant 0 : i32
    return %c0_i32, %c0_i32_0, %c0_i32_1 : i32, i32, i32
  }
  func.func @transform_3(%arg0: i32) -> (i32, i32, i32) {
    %c0_i32 = arith.constant 0 : i32
    %c0_i32_0 = arith.constant 0 : i32
    %c0_i32_1 = arith.constant 0 : i32
    %c0_i32_2 = arith.constant 0 : i32
    return %c0_i32, %c0_i32_0, %c0_i32_1 : i32, i32, i32
  }
  func.func @transform_4(%arg0: i32) -> (i32, i32, i32) {
    %c0_i32 = arith.constant 0 : i32
    %c0_i32_0 = arith.constant 0 : i32
    %c0_i32_1 = arith.constant 0 : i32
    %c0_i32_2 = arith.constant 0 : i32
    return %c0_i32, %c0_i32_0, %c0_i32_1 : i32, i32, i32
  }
  func.func @transform_5(%arg0: i32) -> (i32, i32) {
    %c0_i32 = arith.constant 0 : i32
    %c0_i32_0 = arith.constant 0 : i32
    return %arg0, %c0_i32 : i32, i32
  }
}

</mosaic_0001>

<llo_original>
// kernel: tpu_custom_call.1
$region0: #{tpu_custom_call.1}
  #allocation0 [shape = 'u32[]', space=smem, size = 0x4, offset = 0x4, fixed_abs, tag = 'smem constant byte address 0x4 - core index']
  #allocation1 [shape = 'u32[144,128]{1,0:T(1,128)}', space=vmem, size = 0x12000, scoped, tag = 'internal scratch']
  %s0 = inlined_call_operand.vmem [shape: f32[2,16,32,16], index: 0, kind: input, shape index: {}]
  %s1 = inlined_call_operand.vmem [shape: f32[2,16,16], index: 1, kind: input, shape index: {}]
  %s2 = inlined_call_operand.vmem [shape: f32[2,1,16], index: 2, kind: input, shape index: {}]
  %s3 = inlined_call_operand.vmem [shape: f32[12,16,32], index: 3, kind: input, shape index: {}]
  %s4 = inlined_call_operand.vmem [shape: f32[12,1,16], index: 4, kind: input, shape index: {}]
  %s5 = inlined_call_operand.hbm [shape: f32[16,48], index: 5, kind: output, shape index: {}]
  %s6 = sld [smem:[#allocation0]]
  $region91: #{tpu_custom_call.1} parent=0
    _
  %s8 = ssub.s32 1, %s6
  %s9 = scalar_select 0, %s8, %s6
  $region1: #{tpu_custom_call.1} parent=0
    #allocation2 [shape = 'u8[524288]{0}', space=vmem, size = 0x80000, scoped, tag = 'input window, operand 0']
    #allocation3 [shape = 'u8[8192]{0}', space=vmem, size = 0x2000, scoped, tag = 'output window, operand 0']
    #allocation4 [shape = 's32[2]{0}', space=sflag, size = 0x8, scoped, tag = 'scoped memory for tpu_custom_call.1']
    %10 = vsyncpa [#allocation4], 0
    %s11 = scalar_lea.sflag [#allocation4], 1
    %12 = vsyncpa %s11, 0
    loop: start=0, step=1, limit=4
    $region2: #{tpu_custom_call.1} parent=1 // loop_pre_header
      _
    $region3: #{tpu_custom_call.1} parent=1 // loop_header
      %s14 = sphi 0, %s18
      %p15 = scmp.ge.s32.totalorder %s14, 4
      %s24 = sphi 0, %s26
      %s27 = sphi 0, %s24
      %s28 = sphi 0, %s27
      %s44 = sphi 0, %s28
      %s48 = sphi 0, %s48
      %s50 = sphi 0, %s48
      %s51 = sphi 0, %s50
      %s65 = sphi 0, %s51
      %s69 = sphi 0, %s69
      %s71 = sphi 0, %s69
      %s72 = sphi 0, %s71
      %s86 = sphi 0, %s72
      %s90 = sphi 0, %s90
      %s92 = sphi 0, %s90
      %s93 = sphi 0, %s92
      %s107 = sphi 0, %s93
      %s111 = sphi 0, %s111
      %s113 = sphi 0, %s111
      %s114 = sphi 0, %s113
      %s128 = sphi 0, %s114
      %s134 = sphi 0, %s136
      %s137 = sphi 0, %s134
      %s138 = sphi 0, %s137
      %s154 = sphi 0, %s138
    $region4: #{tpu_custom_call.1} parent=1 // loop_header_branch
      %17 = sbr.rel (%p15) target = $region8
    $region5: #{tpu_custom_call.1} parent=1 // loop_body
      %s19 = ssub.s32 %s14, 1
      %s20 = ssub.s32 %s14, 2
      %s21 = sadd.s32 %s14, 1
      %s22 = ssub.s32 %s14, %s21
      %p23 = scmp.eq.s32.totalorder %s22, 0
      %s25 = sadd.s32 %s24, 1
      %s26 = scalar_select %p23, %s24, %s25
      %p29 = pneg %p23
      %p30 = scmp.eq.s32.totalorder %s14, 1
      %p31 = por %p29, %p30
      %p32 = scmp.ne.s32.totalorder %s24, %s27
      %p33 = scmp.eq.s32.totalorder %s14, 0
      %p34 = por %p32, %p33
      %p35 = scmp.ne.s32.totalorder %s24, %s27
      %p36 = scmp.eq.s32.totalorder %s19, 1
      %p37 = por %p35, %p36
      %p38 = scmp.ne.s32.totalorder %s27, %s28
      %p39 = scmp.eq.s32.totalorder %s19, 0
      %p40 = por %p38, %p39
      %p41 = scmp.ne.s32.totalorder %s27, %s28
      %p42 = scmp.eq.s32.totalorder %s20, 1
      %p43 = por %p41, %p42
      %p45 = scmp.ne.s32.totalorder %s28, %s44
      %p46 = scmp.eq.s32.totalorder %s20, 0
      %p47 = por %p45, %p46
      %s49 = sadd.s32 %s48, 1
      %p52 = scmp.eq.s32.totalorder %s14, 1
      %p53 = scmp.ne.s32.totalorder %s48, %s50
      %p54 = scmp.eq.s32.totalorder %s14, 0
      %p55 = por %p53, %p54
      %p56 = scmp.ne.s32.totalorder %s48, %s50
      %p57 = scmp.eq.s32.totalorder %s19, 1
      %p58 = por %p56, %p57
      %p59 = scmp.ne.s32.totalorder %s50, %s51
      %p60 = scmp.eq.s32.totalorder %s19, 0
      %p61 = por %p59, %p60
      %p62 = scmp.ne.s32.totalorder %s50, %s51
      %p63 = scmp.eq.s32.totalorder %s20, 1
      %p64 = por %p62, %p63
      %p66 = scmp.ne.s32.totalorder %s51, %s65
      %p67 = scmp.eq.s32.totalorder %s20, 0
      %p68 = por %p66, %p67
      %s70 = sadd.s32 %s69, 1
      %p73 = scmp.eq.s32.totalorder %s14, 1
      %p74 = scmp.ne.s32.totalorder %s69, %s71
      %p75 = scmp.eq.s32.totalorder %s14, 0
      %p76 = por %p74, %p75
      %p77 = scmp.ne.s32.totalorder %s69, %s71
      %p78 = scmp.eq.s32.totalorder %s19, 1
      %p79 = por %p77, %p78
      %p80 = scmp.ne.s32.totalorder %s71, %s72
      %p81 = scmp.eq.s32.totalorder %s19, 0
      %p82 = por %p80, %p81
      %p83 = scmp.ne.s32.totalorder %s71, %s72
      %p84 = scmp.eq.s32.totalorder %s20, 1
      %p85 = por %p83, %p84
      %p87 = scmp.ne.s32.totalorder %s72, %s86
      %p88 = scmp.eq.s32.totalorder %s20, 0
      %p89 = por %p87, %p88
      %s91 = sadd.s32 %s90, 1
      %p94 = scmp.eq.s32.totalorder %s14, 1
      %p95 = scmp.ne.s32.totalorder %s90, %s92
      %p96 = scmp.eq.s32.totalorder %s14, 0
      %p97 = por %p95, %p96
      %p98 = scmp.ne.s32.totalorder %s90, %s92
      %p99 = scmp.eq.s32.totalorder %s19, 1
      %p100 = por %p98, %p99
      %p101 = scmp.ne.s32.totalorder %s92, %s93
      %p102 = scmp.eq.s32.totalorder %s19, 0
      %p103 = por %p101, %p102
      %p104 = scmp.ne.s32.totalorder %s92, %s93
      %p105 = scmp.eq.s32.totalorder %s20, 1
      %p106 = por %p104, %p105
      %p108 = scmp.ne.s32.totalorder %s93, %s107
      %p109 = scmp.eq.s32.totalorder %s20, 0
      %p110 = por %p108, %p109
      %s112 = sadd.s32 %s111, 1
      %p115 = scmp.eq.s32.totalorder %s14, 1
      %p116 = scmp.ne.s32.totalorder %s111, %s113
      %p117 = scmp.eq.s32.totalorder %s14, 0
      %p118 = por %p116, %p117
      %p119 = scmp.ne.s32.totalorder %s111, %s113
      %p120 = scmp.eq.s32.totalorder %s19, 1
      %p121 = por %p119, %p120
      %p122 = scmp.ne.s32.totalorder %s113, %s114
      %p123 = scmp.eq.s32.totalorder %s19, 0
      %p124 = por %p122, %p123
      %p125 = scmp.ne.s32.totalorder %s113, %s114
      %p126 = scmp.eq.s32.totalorder %s20, 1
      %p127 = por %p125, %p126
      %p129 = scmp.ne.s32.totalorder %s114, %s128
      %p130 = scmp.eq.s32.totalorder %s20, 0
      %p131 = por %p129, %p130
      %s132 = ssub.s32 %s14, %s21
      %p133 = scmp.eq.s32.totalorder %s132, 0
      %s135 = sadd.s32 %s134, 1
      %s136 = scalar_select %p133, %s134, %s135
      %p139 = pneg %p133
      %p140 = scmp.eq.s32.totalorder %s14, 1
      %p141 = por %p139, %p140
      %p142 = scmp.ne.s32.totalorder %s134, %s137
      %p143 = scmp.eq.s32.totalorder %s14, 0
      %p144 = por %p142, %p143
      %p145 = scmp.ne.s32.totalorder %s134, %s137
      %p146 = scmp.eq.s32.totalorder %s19, 1
      %p147 = por %p145, %p146
      %p148 = scmp.ne.s32.totalorder %s137, %s138
      %p149 = scmp.eq.s32.totalorder %s19, 0
      %p150 = por %p148, %p149
      %p151 = scmp.ne.s32.totalorder %s137, %s138
      %p152 = scmp.eq.s32.totalorder %s20, 1
      %p153 = por %p151, %p152
      %p155 = scmp.ne.s32.totalorder %s138, %s154
      %p156 = scmp.eq.s32.totalorder %s20, 0
      %p157 = por %p155, %p156
      %p158 = scmp.le.s32.totalorder 1, %s14
      %p159 = scmp.lt.s32.totalorder %s14, 3
      %p160 = pnand %p158, %p159
      %p161 = pneg %p160
      // Predicated region
      $region9: #{tpu_custom_call.1} parent=5 // pred_check
        _
      $region10: #{tpu_custom_call.1} parent=5 // pred_check_branch
        %163 = sbr.rel (%p160) target = $region12
      $region11: #{tpu_custom_call.1} parent=5 // pred_region
        %s164 = ssub.s32 %s14, 1
        // Predicated region
        $region13: #{tpu_custom_call.1} parent=11 // pred_check
          %p165 = pneg %p61
        $region14: #{tpu_custom_call.1} parent=11 // pred_check_branch
          %167 = sbr.rel (%p165) target = $region16
        $region15: #{tpu_custom_call.1} parent=11 // pred_region
          _
        $region16: #{tpu_custom_call.1} parent=11 // pred_fallthru
          _
        // Predicated region
        $region17: #{tpu_custom_call.1} parent=11 // pred_check
          %p168 = pneg %p82
        $region18: #{tpu_custom_call.1} parent=11 // pred_check_branch
          %170 = sbr.rel (%p168) target = $region20
        $region19: #{tpu_custom_call.1} parent=11 // pred_region
          _
        $region20: #{tpu_custom_call.1} parent=11 // pred_fallthru
          _
        // Predicated region
        $region21: #{tpu_custom_call.1} parent=11 // pred_check
          %p171 = pneg %p103
        $region22: #{tpu_custom_call.1} parent=11 // pred_check_branch
          %173 = sbr.rel (%p171) target = $region24
        $region23: #{tpu_custom_call.1} parent=11 // pred_region
          _
        $region24: #{tpu_custom_call.1} parent=11 // pred_fallthru
          _
        // Predicated region
        $region25: #{tpu_custom_call.1} parent=11 // pred_check
          %p174 = pneg %p124
        $region26: #{tpu_custom_call.1} parent=11 // pred_check_branch
          %176 = sbr.rel (%p174) target = $region28
        $region27: #{tpu_custom_call.1} parent=11 // pred_region
          _
        $region28: #{tpu_custom_call.1} parent=11 // pred_fallthru
          _
      $region12: #{tpu_custom_call.1} parent=5 // pred_fallthru
        _
      %p177 = scmp.lt.s32.totalorder %s14, 2
      // Predicated region
      $region29: #{tpu_custom_call.1} parent=5 // pred_check
        %p178 = pneg %p177
      $region30: #{tpu_custom_call.1} parent=5 // pred_check_branch
        %180 = sbr.rel (%p178) target = $region32
      $region31: #{tpu_custom_call.1} parent=5 // pred_region
        // Predicated region
        $region33: #{tpu_custom_call.1} parent=31 // pred_check
          %p181 = pneg %p34
        $region34: #{tpu_custom_call.1} parent=31 // pred_check_branch
          %183 = sbr.rel (%p181) target = $region36
        $region35: #{tpu_custom_call.1} parent=31 // pred_region
          %s184 = sand.u32 %s24, 1
          %s185 = sand.u32 %s24, 1
          %s186 = smul.addr %s185, 512
          %s187 = scalar_lea.vmem [#allocation2], %s186
          %s188 = smul.u32 8, %s14
          %s189 = smul.addr %s188, 4
          %s190 = smul.addr %s189, 8
          %s191 = scalar_lea.vmem %s0, %s190
          // Predicated region
          $region37: #{tpu_custom_call.1} parent=35 // pred_check
            _
          $region38: #{tpu_custom_call.1} parent=35 // pred_check_branch
            %193 = sbr.rel (0) target = $region40
          $region39: #{tpu_custom_call.1} parent=35 // pred_region
            // Predicated region
            $region41: #{tpu_custom_call.1} parent=39 // pred_check
              _
            $region42: #{tpu_custom_call.1} parent=39 // pred_check_branch
              %195 = sbr.rel (0) target = $region44
            $region43: #{tpu_custom_call.1} parent=39 // pred_region
              // Predicated region
              $region56: #{tpu_custom_call.1} parent=43 // pred_check
                _
              $region57: #{tpu_custom_call.1} parent=43 // pred_check_branch
                %336 = sbr.rel (0) target = $region59
              $region58: #{tpu_custom_call.1} parent=43 // pred_region
                loop: start=0, step=1, limit=1
                $region60: #{tpu_custom_call.1} parent=58 // loop_pre_header
                  _
                $region61: #{tpu_custom_call.1} parent=58 // loop_header
                  %s338 = sphi 0, %s342
                  %p339 = scmp.ge.s32.totalorder %s338, 1
                  %s343 = sphi %s191, %s191
                  %s344 = sphi %s187, %s187
                $region62: #{tpu_custom_call.1} parent=58 // loop_header_branch
                  %341 = sbr.rel (%p339) target = $region66
                $region63: #{tpu_custom_call.1} parent=58 // loop_body
                  %v345 = vld [vmem:[%s343] sm:$0xff]
                  %346 = vst [vmem:[%s344] sm:$0xff] %v345
                  %v347 = vld [vmem:[%s343 + $0x8] sm:$0xff]
                  %348 = vst [vmem:[%s344 + $0x8] sm:$0xff] %v347
                  %v349 = vld [vmem:[%s343 + $0x10] sm:$0xff]
                  %350 = vst [vmem:[%s344 + $0x10] sm:$0xff] %v349
                  %v351 = vld [vmem:[%s343 + $0x18] sm:$0xff]
                  %352 = vst [vmem:[%s344 + $0x18] sm:$0xff] %v351
                  %v353 = vld [vmem:[%s343 + $0x20] sm:$0xff]
                  %354 = vst [vmem:[%s344 + $0x20] sm:$0xff] %v353
                  %v355 = vld [vmem:[%s343 + $0x28] sm:$0xff]
                  %356 = vst [vmem:[%s344 + $0x28] sm:$0xff] %v355
                  %v357 = vld [vmem:[%s343 + $0x30] sm:$0xff]
                  %358 = vst [vmem:[%s344 + $0x30] sm:$0xff] %v357
                  %v359 = vld [vmem:[%s343 + $0x38] sm:$0xff]
                  %360 = vst [vmem:[%s344 + $0x38] sm:$0xff] %v359
                  %v361 = vld [vmem:[%s343 + $0x40] sm:$0xff]
                  %362 = vst [vmem:[%s344 + $0x40] sm:$0xff] %v361
                  %v363 = vld [vmem:[%s343 + $0x48] sm:$0xff]
                  %364 = vst [vmem:[%s344 + $0x48] sm:$0xff] %v363
                  %v365 = vld [vmem:[%s343 + $0x50] sm:$0xff]
                  %366 = vst [vmem:[%s344 + $0x50] sm:$0xff] %v365
                  %v367 = vld [vmem:[%s343 + $0x58] sm:$0xff]
                  %368 = vst [vmem:[%s344 + $0x58] sm:$0xff] %v367
                  %v369 = vld [vmem:[%s343 + $0x60] sm:$0xff]
                  %370 = vst [vmem:[%s344 + $0x60] sm:$0xff] %v369
                  %v371 = vld [vmem:[%s343 + $0x68] sm:$0xff]
                  %372 = vst [vmem:[%s344 + $0x68] sm:$0xff] %v371
                  %v373 = vld [vmem:[%s343 + $0x70] sm:$0xff]
                  %374 = vst [vmem:[%s344 + $0x70] sm:$0xff] %v373
                  %v375 = vld [vmem:[%s343 + $0x78] sm:$0xff]
                  %376 = vst [vmem:[%s344 + $0x78] sm:$0xff] %v375
                  %v377 = vld [vmem:[%s343 + $0x80] sm:$0xff]
                  %378 = vst [vmem:[%s344 + $0x80] sm:$0xff] %v377
                  %v379 = vld [vmem:[%s343 + $0x88] sm:$0xff]
                  %380 = vst [vmem:[%s344 + $0x88] sm:$0xff] %v379
                  %v381 = vld [vmem:[%s343 + $0x90] sm:$0xff]
                  %382 = vst [vmem:[%s344 + $0x90] sm:$0xff] %v381
                  %v383 = vld [vmem:[%s343 + $0x98] sm:$0xff]
                  %384 = vst [vmem:[%s344 + $0x98] sm:$0xff] %v383
                  %v385 = vld [vmem:[%s343 + $0xa0] sm:$0xff]
                  %386 = vst [vmem:[%s344 + $0xa0] sm:$0xff] %v385
                  %v387 = vld [vmem:[%s343 + $0xa8] sm:$0xff]
                  %388 = vst [vmem:[%s344 + $0xa8] sm:$0xff] %v387
                  %v389 = vld [vmem:[%s343 + $0xb0] sm:$0xff]
                  %390 = vst [vmem:[%s344 + $0xb0] sm:$0xff] %v389
                  %v391 = vld [vmem:[%s343 + $0xb8] sm:$0xff]
                  %392 = vst [vmem:[%s344 + $0xb8] sm:$0xff] %v391
                  %v393 = vld [vmem:[%s343 + $0xc0] sm:$0xff]
                  %394 = vst [vmem:[%s344 + $0xc0] sm:$0xff] %v393
                  %v395 = vld [vmem:[%s343 + $0xc8] sm:$0xff]
                  %396 = vst [vmem:[%s344 + $0xc8] sm:$0xff] %v395
                  %v397 = vld [vmem:[%s343 + $0xd0] sm:$0xff]
                  %398 = vst [vmem:[%s344 + $0xd0] sm:$0xff] %v397
                  %v399 = vld [vmem:[%s343 + $0xd8] sm:$0xff]
                  %400 = vst [vmem:[%s344 + $0xd8] sm:$0xff] %v399
                  %v401 = vld [vmem:[%s343 + $0xe0] sm:$0xff]
                  %402 = vst [vmem:[%s344 + $0xe0] sm:$0xff] %v401
                  %v403 = vld [vmem:[%s343 + $0xe8] sm:$0xff]
                  %404 = vst [vmem:[%s344 + $0xe8] sm:$0xff] %v403
                  %v405 = vld [vmem:[%s343 + $0xf0] sm:$0xff]
                  %406 = vst [vmem:[%s344 + $0xf0] sm:$0xff] %v405
                  %v407 = vld [vmem:[%s343 + $0xf8] sm:$0xff]
                  %408 = vst [vmem:[%s344 + $0xf8] sm:$0xff] %v407
                  %v409 = vld [vmem:[%s343 + $0x200] sm:$0xff]
                  %410 = vst [vmem:[%s344 + $0x100] sm:$0xff] %v409
                  %v411 = vld [vmem:[%s343 + $0x208] sm:$0xff]
                  %412 = vst [vmem:[%s344 + $0x108] sm:$0xff] %v411
                  %v413 = vld [vmem:[%s343 + $0x210] sm:$0xff]
                  %414 = vst [vmem:[%s344 + $0x110] sm:$0xff] %v413
                  %v415 = vld [vmem:[%s343 + $0x218] sm:$0xff]
                  %416 = vst [vmem:[%s344 + $0x118] sm:$0xff] %v415
                  %v417 = vld [vmem:[%s343 + $0x220] sm:$0xff]
                  %418 = vst [vmem:[%s344 + $0x120] sm:$0xff] %v417
                  %v419 = vld [vmem:[%s343 + $0x228] sm:$0xff]
                  %420 = vst [vmem:[%s344 + $0x128] sm:$0xff] %v419
                  %v421 = vld [vmem:[%s343 + $0x230] sm:$0xff]
                  %422 = vst [vmem:[%s344 + $0x130] sm:$0xff] %v421
                  %v423 = vld [vmem:[%s343 + $0x238] sm:$0xff]
                  %424 = vst [vmem:[%s344 + $0x138] sm:$0xff] %v423
                  %v425 = vld [vmem:[%s343 + $0x240] sm:$0xff]
                  %426 = vst [vmem:[%s344 + $0x140] sm:$0xff] %v425
                  %v427 = vld [vmem:[%s343 + $0x248] sm:$0xff]
                  %428 = vst [vmem:[%s344 + $0x148] sm:$0xff] %v427
                  %v429 = vld [vmem:[%s343 + $0x250] sm:$0xff]
                  %430 = vst [vmem:[%s344 + $0x150] sm:$0xff] %v429
                  %v431 = vld [vmem:[%s343 + $0x258] sm:$0xff]
                  %432 = vst [vmem:[%s344 + $0x158] sm:$0xff] %v431
                  %v433 = vld [vmem:[%s343 + $0x260] sm:$0xff]
                  %434 = vst [vmem:[%s344 + $0x160] sm:$0xff] %v433
                  %v435 = vld [vmem:[%s343 + $0x268] sm:$0xff]
                  %436 = vst [vmem:[%s344 + $0x168] sm:$0xff] %v435
                  %v437 = vld [vmem:[%s343 + $0x270] sm:$0xff]
                  %438 = vst [vmem:[%s344 + $0x170] sm:$0xff] %v437
                  %v439 = vld [vmem:[%s343 + $0x278] sm:$0xff]
                  %440 = vst [vmem:[%s344 + $0x178] sm:$0xff] %v439
                  %v441 = vld [vmem:[%s343 + $0x280] sm:$0xff]
                  %442 = vst [vmem:[%s344 + $0x180] sm:$0xff] %v441
                  %v443 = vld [vmem:[%s343 + $0x288] sm:$0xff]
                  %444 = vst [vmem:[%s344 + $0x188] sm:$0xff] %v443
                  %v445 = vld [vmem:[%s343 + $0x290] sm:$0xff]
                  %446 = vst [vmem:[%s344 + $0x190] sm:$0xff] %v445
                  %v447 = vld [vmem:[%s343 + $0x298] sm:$0xff]
                  %448 = vst [vmem:[%s344 + $0x198] sm:$0xff] %v447
                  %v449 = vld [vmem:[%s343 + $0x2a0] sm:$0xff]
                  %450 = vst [vmem:[%s344 + $0x1a0] sm:$0xff] %v449
                  %v451 = vld [vmem:[%s343 + $0x2a8] sm:$0xff]
                  %452 = vst [vmem:[%s344 + $0x1a8] sm:$0xff] %v451
                  %v453 = vld [vmem:[%s343 + $0x2b0] sm:$0xff]
                  %454 = vst [vmem:[%s344 + $0x1b0] sm:$0xff] %v453
                  %v455 = vld [vmem:[%s343 + $0x2b8] sm:$0xff]
                  %456 = vst [vmem:[%s344 + $0x1b8] sm:$0xff] %v455
                  %v457 = vld [vmem:[%s343 + $0x2c0] sm:$0xff]
                  %458 = vst [vmem:[%s344 + $0x1c0] sm:$0xff] %v457
                  %v459 = vld [vmem:[%s343 + $0x2c8] sm:$0xff]
                  %460 = vst [vmem:[%s344 + $0x1c8] sm:$0xff] %v459
                  %v461 = vld [vmem:[%s343 + $0x2d0] sm:$0xff]
                  %462 = vst [vmem:[%s344 + $0x1d0] sm:$0xff] %v461
                  %v463 = vld [vmem:[%s343 + $0x2d8] sm:$0xff]
                  %464 = vst [vmem:[%s344 + $0x1d8] sm:$0xff] %v463
                  %v465 = vld [vmem:[%s343 + $0x2e0] sm:$0xff]
                  %466 = vst [vmem:[%s344 + $0x1e0] sm:$0xff] %v465
                  %v467 = vld [vmem:[%s343 + $0x2e8] sm:$0xff]
                  %468 = vst [vmem:[%s344 + $0x1e8] sm:$0xff] %v467
                  %v469 = vld [vmem:[%s343 + $0x2f0] sm:$0xff]
                  %470 = vst [vmem:[%s344 + $0x1f0] sm:$0xff] %v469
                  %v471 = vld [vmem:[%s343 + $0x2f8] sm:$0xff]
                  %472 = vst [vmem:[%s344 + $0x1f8] sm:$0xff] %v471
                $region64: #{tpu_custom_call.1} parent=58 // loop_footer
                  %s342 = sadd.s32 1, %s338
                $region65: #{tpu_custom_call.1} parent=58 // loop_footer_branch
                  %337 = sbr.rel target = $region61
                $region66: #{tpu_custom_call.1} parent=58 // loop_exit
                  _
              $region59: #{tpu_custom_call.1} parent=43 // pred_fallthru
                _
              // Predicated region
              $region67: #{tpu_custom_call.1} parent=43 // pred_check
                _
              $region68: #{tpu_custom_call.1} parent=43 // pred_check_branch
                %474 = sbr.rel target = $region70
              $region69: #{tpu_custom_call.1} parent=43 // pred_region
                _
              $region70: #{tpu_custom_call.1} parent=43 // pred_fallthru
                _
            $region44: #{tpu_custom_call.1} parent=39 // pred_fallthru
              _
            // Predicated region
            $region45: #{tpu_custom_call.1} parent=39 // pred_check
              _
            $region46: #{tpu_custom_call.1} parent=39 // pred_check_branch
              %197 = sbr.rel target = $region48
            $region47: #{tpu_custom_call.1} parent=39 // pred_region
              loop: start=0, step=1, limit=1
              $region49: #{tpu_custom_call.1} parent=47 // loop_pre_header
                _
              $region50: #{tpu_custom_call.1} parent=47 // loop_header
                %s200 = sphi 0, %s204
                %p201 = scmp.ge.s32.totalorder %s200, 1
                %s205 = sphi %s191, %s191
                %s206 = sphi %s187, %s187
              $region51: #{tpu_custom_call.1} parent=47 // loop_header_branch
                %203 = sbr.rel (%p201) target = $region55
              $region52: #{tpu_custom_call.1} parent=47 // loop_body
                %v207 = vld [vmem:[%s205] sm:$0xff]
                %208 = vst [vmem:[%s206] sm:$0xff] %v207
                %v209 = vld [vmem:[%s205 + $0x8] sm:$0xff]
                %210 = vst [vmem:[%s206 + $0x8] sm:$0xff] %v209
                %v211 = vld [vmem:[%s205 + $0x10] sm:$0xff]
                %212 = vst [vmem:[%s206 + $0x10] sm:$0xff] %v211
                %v213 = vld [vmem:[%s205 + $0x18] sm:$0xff]
                %214 = vst [vmem:[%s206 + $0x18] sm:$0xff] %v213
                %v215 = vld [vmem:[%s205 + $0x20] sm:$0xff]
                %216 = vst [vmem:[%s206 + $0x20] sm:$0xff] %v215
                %v217 = vld [vmem:[%s205 + $0x28] sm:$0xff]
                %218 = vst [vmem:[%s206 + $0x28] sm:$0xff] %v217
                %v219 = vld [vmem:[%s205 + $0x30] sm:$0xff]
                %220 = vst [vmem:[%s206 + $0x30] sm:$0xff] %v219
                %v221 = vld [vmem:[%s205 + $0x38] sm:$0xff]
                %222 = vst [vmem:[%s206 + $0x38] sm:$0xff] %v221
                %v223 = vld [vmem:[%s205 + $0x40] sm:$0xff]
                %224 = vst [vmem:[%s206 + $0x40] sm:$0xff] %v223
                %v225 = vld [vmem:[%s205 + $0x48] sm:$0xff]
                %226 = vst [vmem:[%s206 + $0x48] sm:$0xff] %v225
                %v227 = vld [vmem:[%s205 + $0x50] sm:$0xff]
                %228 = vst [vmem:[%s206 + $0x50] sm:$0xff] %v227
                %v229 = vld [vmem:[%s205 + $0x58] sm:$0xff]
                %230 = vst [vmem:[%s206 + $0x58] sm:$0xff] %v229
                %v231 = vld [vmem:[%s205 + $0x60] sm:$0xff]
                %232 = vst [vmem:[%s206 + $0x60] sm:$0xff] %v231
                %v233 = vld [vmem:[%s205 + $0x68] sm:$0xff]
                %234 = vst [vmem:[%s206 + $0x68] sm:$0xff] %v233
                %v235 = vld [vmem:[%s205 + $0x70] sm:$0xff]
                %236 = vst [vmem:[%s206 + $0x70] sm:$0xff] %v235
                %v237 = vld [vmem:[%s205 + $0x78] sm:$0xff]
                %238 = vst [vmem:[%s206 + $0x78] sm:$0xff] %v237
                %v239 = vld [vmem:[%s205 + $0x80] sm:$0xff]
                %240 = vst [vmem:[%s206 + $0x80] sm:$0xff] %v239
                %v241 = vld [vmem:[%s205 + $0x88] sm:$0xff]
                %242 = vst [vmem:[%s206 + $0x88] sm:$0xff] %v241
                %v243 = vld [vmem:[%s205 + $0x90] sm:$0xff]
                %244 = vst [vmem:[%s206 + $0x90] sm:$0xff] %v243
                %v245 = vld [vmem:[%s205 + $0x98] sm:$0xff]
                %246 = vst [vmem:[%s206 + $0x98] sm:$0xff] %v245
                %v247 = vld [vmem:[%s205 + $0xa0] sm:$0xff]
                %248 = vst [vmem:[%s206 + $0xa0] sm:$0xff] %v247
                %v249 = vld [vmem:[%s205 + $0xa8] sm:$0xff]
                %250 = vst [vmem:[%s206 + $0xa8] sm:$0xff] %v249
                %v251 = vld [vmem:[%s205 + $0xb0] sm:$0xff]
                %252 = vst [vmem:[%s206 + $0xb0] sm:$0xff] %v251
                %v253 = vld [vmem:[%s205 + $0xb8] sm:$0xff]
                %254 = vst [vmem:[%s206 + $0xb8] sm:$0xff] %v253
                %v255 = vld [vmem:[%s205 + $0xc0] sm:$0xff]
                %256 = vst [vmem:[%s206 + $0xc0] sm:$0xff] %v255
                %v257 = vld [vmem:[%s205 + $0xc8] sm:$0xff]
                %258 = vst [vmem:[%s206 + $0xc8] sm:$0xff] %v257
                %v259 = vld [vmem:[%s205 + $0xd0] sm:$0xff]
                %260 = vst [vmem:[%s206 + $0xd0] sm:$0xff] %v259
                %v261 = vld [vmem:[%s205 + $0xd8] sm:$0xff]
                %262 = vst [vmem:[%s206 + $0xd8] sm:$0xff] %v261
                %v263 = vld [vmem:[%s205 + $0xe0] sm:$0xff]
                %264 = vst [vmem:[%s206 + $0xe0] sm:$0xff] %v263
                %v265 = vld [vmem:[%s205 + $0xe8] sm:$0xff]
                %266 = vst [vmem:[%s206 + $0xe8] sm:$0xff] %v265
                %v267 = vld [vmem:[%s205 + $0xf0] sm:$0xff]
                %268 = vst [vmem:[%s206 + $0xf0] sm:$0xff] %v267
                %v269 = vld [vmem:[%s205 + $0xf8] sm:$0xff]
                %270 = vst [vmem:[%s206 + $0xf8] sm:$0xff] %v269
                %v271 = vld [vmem:[%s205 + $0x200] sm:$0xff]
                %272 = vst [vmem:[%s206 + $0x100] sm:$0xff] %v271
                %v273 = vld [vmem:[%s205 + $0x208] sm:$0xff]
                %274 = vst [vmem:[%s206 + $0x108] sm:$0xff] %v273
                %v275 = vld [vmem:[%s205 + $0x210] sm:$0xff]
                %276 = vst [vmem:[%s206 + $0x110] sm:$0xff] %v275
                %v277 = vld [vmem:[%s205 + $0x218] sm:$0xff]
                %278 = vst [vmem:[%s206 + $0x118] sm:$0xff] %v277
                %v279 = vld [vmem:[%s205 + $0x220] sm:$0xff]
                %280 = vst [vmem:[%s206 + $0x120] sm:$0xff] %v279
                %v281 = vld [vmem:[%s205 + $0x228] sm:$0xff]
                %282 = vst [vmem:[%s206 + $0x128] sm:$0xff] %v281
                %v283 = vld [vmem:[%s205 + $0x230] sm:$0xff]
                %284 = vst [vmem:[%s206 + $0x130] sm:$0xff] %v283
                %v285 = vld [vmem:[%s205 + $0x238] sm:$0xff]
                %286 = vst [vmem:[%s206 + $0x138] sm:$0xff] %v285
                %v287 = vld [vmem:[%s205 + $0x240] sm:$0xff]
                %288 = vst [vmem:[%s206 + $0x140] sm:$0xff] %v287
                %v289 = vld [vmem:[%s205 + $0x248] sm:$0xff]
                %290 = vst [vmem:[%s206 + $0x148] sm:$0xff] %v289
                %v291 = vld [vmem:[%s205 + $0x250] sm:$0xff]
                %292 = vst [vmem:[%s206 + $0x150] sm:$0xff] %v291
                %v293 = vld [vmem:[%s205 + $0x258] sm:$0xff]
                %294 = vst [vmem:[%s206 + $0x158] sm:$0xff] %v293
                %v295 = vld [vmem:[%s205 + $0x260] sm:$0xff]
                %296 = vst [vmem:[%s206 + $0x160] sm:$0xff] %v295
                %v297 = vld [vmem:[%s205 + $0x268] sm:$0xff]
                %298 = vst [vmem:[%s206 + $0x168] sm:$0xff] %v297
                %v299 = vld [vmem:[%s205 + $0x270] sm:$0xff]
                %300 = vst [vmem:[%s206 + $0x170] sm:$0xff] %v299
                %v301 = vld [vmem:[%s205 + $0x278] sm:$0xff]
                %302 = vst [vmem:[%s206 + $0x178] sm:$0xff] %v301
                %v303 = vld [vmem:[%s205 + $0x280] sm:$0xff]
                %304 = vst [vmem:[%s206 + $0x180] sm:$0xff] %v303
                %v305 = vld [vmem:[%s205 + $0x288] sm:$0xff]
                %306 = vst [vmem:[%s206 + $0x188] sm:$0xff] %v305
                %v307 = vld [vmem:[%s205 + $0x290] sm:$0xff]
                %308 = vst [vmem:[%s206 + $0x190] sm:$0xff] %v307
                %v309 = vld [vmem:[%s205 + $0x298] sm:$0xff]
                %310 = vst [vmem:[%s206 + $0x198] sm:$0xff] %v309
                %v311 = vld [vmem:[%s205 + $0x2a0] sm:$0xff]
                %312 = vst [vmem:[%s206 + $0x1a0] sm:$0xff] %v311
                %v313 = vld [vmem:[%s205 + $0x2a8] sm:$0xff]
                %314 = vst [vmem:[%s206 + $0x1a8] sm:$0xff] %v313
                %v315 = vld [vmem:[%s205 + $0x2b0] sm:$0xff]
                %316 = vst [vmem:[%s206 + $0x1b0] sm:$0xff] %v315
                %v317 = vld [vmem:[%s205 + $0x2b8] sm:$0xff]
                %318 = vst [vmem:[%s206 + $0x1b8] sm:$0xff] %v317
                %v319 = vld [vmem:[%s205 + $0x2c0] sm:$0xff]
                %320 = vst [vmem:[%s206 + $0x1c0] sm:$0xff] %v319
                %v321 = vld [vmem:[%s205 + $0x2c8] sm:$0xff]
                %322 = vst [vmem:[%s206 + $0x1c8] sm:$0xff] %v321
                %v323 = vld [vmem:[%s205 + $0x2d0] sm:$0xff]
                %324 = vst [vmem:[%s206 + $0x1d0] sm:$0xff] %v323
                %v325 = vld [vmem:[%s205 + $0x2d8] sm:$0xff]
                %326 = vst [vmem:[%s206 + $0x1d8] sm:$0xff] %v325
                %v327 = vld [vmem:[%s205 + $0x2e0] sm:$0xff]
                %328 = vst [vmem:[%s206 + $0x1e0] sm:$0xff] %v327
                %v329 = vld [vmem:[%s205 + $0x2e8] sm:$0xff]
                %330 = vst [vmem:[%s206 + $0x1e8] sm:$0xff] %v329
                %v331 = vld [vmem:[%s205 + $0x2f0] sm:$0xff]
                %332 = vst [vmem:[%s206 + $0x1f0] sm:$0xff] %v331
                %v333 = vld [vmem:[%s205 + $0x2f8] sm:$0xff]
                %334 = vst [vmem:[%s206 + $0x1f8] sm:$0xff] %v333
              $region53: #{tpu_custom_call.1} parent=47 // loop_footer
                %s204 = sadd.s32 1, %s200
              $region54: #{tpu_custom_call.1} parent=47 // loop_footer_branch
                %199 = sbr.rel target = $region50
              $region55: #{tpu_custom_call.1} parent=47 // loop_exit
                _
            $region48: #{tpu_custom_call.1} parent=39 // pred_fallthru
              _
          $region40: #{tpu_custom_call.1} parent=35 // pred_fallthru
            _
          %475 = vnop
        $region36: #{tpu_custom_call.1} parent=31 // pred_fallthru
          _
      $region32: #{tpu_custom_call.1} parent=5 // pred_fallthru
        _
      %p476 = scmp.le.s32.totalorder 1, %s14
      %p477 = scmp.lt.s32.totalorder %s14, 3
      %p478 = pnand %p476, %p477
      %p479 = pneg %p478
      // Predicated region
      $region71: #{tpu_custom_call.1} parent=5 // pred_check
        _
      $region72: #{tpu_custom_call.1} parent=5 // pred_check_branch
        %481 = sbr.rel (%p478) target = $region74
      $region73: #{tpu_custom_call.1} parent=5 // pred_region
        %s482 = ssub.s32 %s14, 1
        %s483 = sand.u32 %s27, 1
        %s484 = sand.u32 %s27, 1
        %s485 = smul.addr %s484, 512
        %s486 = scalar_lea.vmem [#allocation2], %s485
        // Predicated region
        $region75: #{tpu_custom_call.1} parent=73 // pred_check
          %p487 = pneg %p40
        $region76: #{tpu_custom_call.1} parent=73 // pred_check_branch
          %489 = sbr.rel (%p487) target = $region78
        $region77: #{tpu_custom_call.1} parent=73 // pred_region
          _
        $region78: #{tpu_custom_call.1} parent=73 // pred_fallthru
          _
        %s490 = sand.u32 %s27, 1
        %s491 = sand.u32 %s27, 1
        %s492 = smul.addr %s491, 512
        %s493 = scalar_lea.vmem [#allocation2], %s492
        %p494 = pneg %p40
        %p495 = pneg %p37
        %p496 = pneg %p61
        %p497 = pneg %p58
        %p498 = pneg %p82
        %p499 = pneg %p79
        %p500 = pneg %p103
        %p501 = pneg %p100
        %p502 = pneg %p124
        %p503 = pneg %p121
        %p504 = pneg %p150
        %p505 = pneg %p147
        %s506 = sand.u32 %s137, 1
        %s507 = scalar_lea.sflag [#allocation4], %s506
        %s508 = sand.u32 %s137, 1
        %s509 = smul.addr %s508, 8
        %s510 = scalar_lea.vmem [#allocation3], %s509
        %s511 = smul.u32 8, %s19
        %v512 = vld [vmem:[%s486] sm:$0xff]
        %v513 = vld [vmem:[%s486 + $0x8] sm:$0xff]
        %v514 = vld [vmem:[%s486 + $0x10] sm:$0xff]
        %v515 = vld [vmem:[%s486 + $0x18] sm:$0xff]
        %v516 = vld [vmem:[%s486 + $0x20] sm:$0xff]
        %v517 = vld [vmem:[%s486 + $0x28] sm:$0xff]
        %v518 = vld [vmem:[%s486 + $0x30] sm:$0xff]
        %v519 = vld [vmem:[%s486 + $0x38] sm:$0xff]
        %v520 = vld [vmem:[%s486 + $0x40] sm:$0xff]
        %v521 = vld [vmem:[%s486 + $0x48] sm:$0xff]
        %v522 = vld [vmem:[%s486 + $0x50] sm:$0xff]
        %v523 = vld [vmem:[%s486 + $0x58] sm:$0xff]
        %v524 = vld [vmem:[%s486 + $0x60] sm:$0xff]
        %v525 = vld [vmem:[%s486 + $0x68] sm:$0xff]
        %v526 = vld [vmem:[%s486 + $0x70] sm:$0xff]
        %v527 = vld [vmem:[%s486 + $0x78] sm:$0xff]
        %v528 = vld [vmem:[%s486 + $0x80] sm:$0xff]
        %v529 = vld [vmem:[%s486 + $0x88] sm:$0xff]
        %v530 = vld [vmem:[%s486 + $0x90] sm:$0xff]
        %v531 = vld [vmem:[%s486 + $0x98] sm:$0xff]
        %v532 = vld [vmem:[%s486 + $0xa0] sm:$0xff]
        %v533 = vld [vmem:[%s486 + $0xa8] sm:$0xff]
        %v534 = vld [vmem:[%s486 + $0xb0] sm:$0xff]
        %v535 = vld [vmem:[%s486 + $0xb8] sm:$0xff]
        %v536 = vld [vmem:[%s486 + $0xc0] sm:$0xff]
        %v537 = vld [vmem:[%s486 + $0xc8] sm:$0xff]
        %v538 = vld [vmem:[%s486 + $0xd0] sm:$0xff]
        %v539 = vld [vmem:[%s486 + $0xd8] sm:$0xff]
        %v540 = vld [vmem:[%s486 + $0xe0] sm:$0xff]
        %v541 = vld [vmem:[%s486 + $0xe8] sm:$0xff]
        %v542 = vld [vmem:[%s486 + $0xf0] sm:$0xff]
        %v543 = vld [vmem:[%s486 + $0xf8] sm:$0xff]
        %v544 = vld [vmem:[%s1] sm:$0xff]
        %v545 = vld [vmem:[%s1 + $0x8] sm:$0xff]
        %v546 = vld [vmem:[%s2] sm:$0x1]
        %v548 = vlaneseq
        %v549 = vshrl.u32 %v548, 7
        %v550 = vsub.s32 0, %v549
        %v551 = vrot.slane %v546, %v550
        %vm553 = vcmask 130048
        %v555 = vsel %vm553, %v512, 0
        %v558 = vsel %vm553, %v513, 0
        %v561 = vsel %vm553, %v514, 0
        %v564 = vsel %vm553, %v515, 0
        %v567 = vsel %vm553, %v516, 0
        %v570 = vsel %vm553, %v517, 0
        %v573 = vsel %vm553, %v518, 0
        %v576 = vsel %vm553, %v519, 0
        %v579 = vsel %vm553, %v520, 0
        %v582 = vsel %vm553, %v521, 0
        %v585 = vsel %vm553, %v522, 0
        %v588 = vsel %vm553, %v523, 0
        %v591 = vsel %vm553, %v524, 0
        %v594 = vsel %vm553, %v525, 0
        %v597 = vsel %vm553, %v526, 0
        %v600 = vsel %vm553, %v527, 0
        %v603 = vsel %vm553, %v528, 0
        %v606 = vsel %vm553, %v529, 0
        %v609 = vsel %vm553, %v530, 0
        %v612 = vsel %vm553, %v531, 0
        %v615 = vsel %vm553, %v532, 0
        %v618 = vsel %vm553, %v533, 0
        %v621 = vsel %vm553, %v534, 0
        %v624 = vsel %vm553, %v535, 0
        %v627 = vsel %vm553, %v536, 0
        %v630 = vsel %vm553, %v537, 0
        %v633 = vsel %vm553, %v538, 0
        %v636 = vsel %vm553, %v539, 0
        %v639 = vsel %vm553, %v540, 0
        %v642 = vsel %vm553, %v541, 0
        %v645 = vsel %vm553, %v542, 0
        %v648 = vsel %vm553, %v543, 0
        %650 = vmatprep.subr.mxu0 0.0
        %651 = vmatpush1.msra.mxu0 %v544
        %652 = vmatprep.subr.mxu0 0.0
        %653 = vmatpush1.msra.mxu0 %v545
        %654 = vmatprep.subr.mxu0 0.0
        %655 = vmatpush1.msra.mxu0 0.0
        %656 = vmatprep.subr.mxu0 0.0
        %657 = vmatpush1.msra.mxu0 0.0
        %658 = vmatprep.subr.mxu0 0.0
        %659 = vmatpush1.msra.mxu0 0.0
        %660 = vmatprep.subr.mxu0 0.0
        %661 = vmatpush1.msra.mxu0 0.0
        %662 = vmatprep.subr.mxu0 0.0
        %663 = vmatpush1.msra.mxu0 0.0
        %664 = vmatprep.subr.mxu0 0.0
        %665 = vmatpush1.msra.mxu0 0.0
        %666 = vmatprep.subr.mxu0 0.0
        %667 = vmatpush1.msra.mxu0 0.0
        %668 = vmatprep.subr.mxu0 0.0
        %669 = vmatpush1.msra.mxu0 0.0
        %670 = vmatprep.subr.mxu0 0.0
        %671 = vmatpush1.msra.mxu0 0.0
        %672 = vmatprep.subr.mxu0 0.0
        %673 = vmatpush1.msra.mxu0 0.0
        %674 = vmatprep.subr.mxu0 0.0
        %675 = vmatpush1.msra.mxu0 0.0
        %676 = vmatprep.subr.mxu0 0.0
        %677 = vmatpush1.msra.mxu0 0.0
        %678 = vmatprep.subr.mxu0 0.0
        %679 = vmatpush1.msra.mxu0 0.0
        %680 = vmatprep.subr.mxu0 0.0
        %681 = vmatpush1.msra.mxu0 0.0
        %682 = vmatprep.subr.mxu0 0.0
        %683 = vmatpush1.msra.mxu0 0.0
        %684 = vmatprep.subr.mxu0 0.0
        %685 = vmatpush1.msra.mxu0 0.0
        %686 = vmatprep.subr.mxu0 0.0
        %687 = vmatpush1.msra.mxu0 0.0
        %688 = vmatprep.subr.mxu0 0.0
        %689 = vmatpush1.msra.mxu0 0.0
        %690 = vmatprep.subr.mxu0 0.0
        %691 = vmatpush1.msra.mxu0 0.0
        %692 = vmatprep.subr.mxu0 0.0
        %693 = vmatpush1.msra.mxu0 0.0
        %694 = vmatprep.subr.mxu0 0.0
        %695 = vmatpush1.msra.mxu0 0.0
        %696 = vmatprep.subr.mxu0 0.0
        %697 = vmatpush1.msra.mxu0 0.0
        %698 = vmatprep.subr.mxu0 0.0
        %699 = vmatpush1.msra.mxu0 0.0
        %700 = vmatprep.subr.mxu0 0.0
        %701 = vmatpush1.msra.mxu0 0.0
        %702 = vmatprep.subr.mxu0 0.0
        %703 = vmatpush1.msra.mxu0 0.0
        %704 = vmatprep.subr.mxu0 0.0
        %705 = vmatpush1.msra.mxu0 0.0
        %706 = vmatprep.subr.mxu0 0.0
        %707 = vmatpush1.msra.mxu0 0.0
        %708 = vmatprep.subr.mxu0 0.0
        %709 = vmatpush1.msra.mxu0 0.0
        %710 = vmatprep.subr.mxu0 0.0
        %711 = vmatpush1.msra.mxu0 0.0
        %712 = vmatprep.subr.mxu0 0.0
        %713 = vmatpush1.msra.mxu0 0.0
        %714 = vmatprep.mubr.f32.mxu0 0.0
        %715 = vmatmul.mubr.f32.gmra.mrb[0].mxu0 %v555
        %v716 = vpop.f32.mrb[0].mxu0
        %v717 = vadd.f32 %v551, %v716
        %v718 = vpop.f32.mrb[0].mxu0
        %719 = vmatprep.mubr.f32.mxu0 0.0
        %720 = vmatmul.mubr.f32.gmra.mrb[0].mxu0 %v558
        %v721 = vpop.f32.mrb[0].mxu0
        %v722 = vadd.f32 %v551, %v721
        %v723 = vpop.f32.mrb[0].mxu0
        %724 = vmatprep.mubr.f32.mxu0 0.0
        %725 = vmatmul.mubr.f32.gmra.mrb[0].mxu0 %v561
        %v726 = vpop.f32.mrb[0].mxu0
        %v727 = vadd.f32 %v551, %v726
        %v728 = vpop.f32.mrb[0].mxu0
        %729 = vmatprep.mubr.f32.mxu0 0.0
        %730 = vmatmul.mubr.f32.gmra.mrb[0].mxu0 %v564
        %v731 = vpop.f32.mrb[0].mxu0
        %v732 = vadd.f32 %v551, %v731
        %v733 = vpop.f32.mrb[0].mxu0
        %734 = vmatprep.mubr.f32.mxu0 0.0
        %735 = vmatmul.mubr.f32.gmra.mrb[0].mxu0 %v567
        %v736 = vpop.f32.mrb[0].mxu0
        %v737 = vadd.f32 %v551, %v736
        %v738 = vpop.f32.mrb[0].mxu0
        %739 = vmatprep.mubr.f32.mxu0 0.0
        %740 = vmatmul.mubr.f32.gmra.mrb[0].mxu0 %v570
        %v741 = vpop.f32.mrb[0].mxu0
        %v742 = vadd.f32 %v551, %v741
        %v743 = vpop.f32.mrb[0].mxu0
        %744 = vmatprep.mubr.f32.mxu0 0.0
        %745 = vmatmul.mubr.f32.gmra.mrb[0].mxu0 %v573
        %v746 = vpop.f32.mrb[0].mxu0
        %v747 = vadd.f32 %v551, %v746
        %v748 = vpop.f32.mrb[0].mxu0
        %749 = vmatprep.mubr.f32.mxu0 0.0
        %750 = vmatmul.mubr.f32.gmra.mrb[0].mxu0 %v576
        %v751 = vpop.f32.mrb[0].mxu0
        %v752 = vadd.f32 %v551, %v751
        %v753 = vpop.f32.mrb[0].mxu0
        %754 = vmatprep.mubr.f32.mxu0 0.0
        %755 = vmatmul.mubr.f32.gmra.mrb[0].mxu0 %v579
        %v756 = vpop.f32.mrb[0].mxu0
        %v757 = vadd.f32 %v551, %v756
        %v758 = vpop.f32.mrb[0].mxu0
        %759 = vmatprep.mubr.f32.mxu0 0.0
        %760 = vmatmul.mubr.f32.gmra.mrb[0].mxu0 %v582
        %v761 = vpop.f32.mrb[0].mxu0
        %v762 = vadd.f32 %v551, %v761
        %v763 = vpop.f32.mrb[0].mxu0
        %764 = vmatprep.mubr.f32.mxu0 0.0
        %765 = vmatmul.mubr.f32.gmra.mrb[0].mxu0 %v585
        %v766 = vpop.f32.mrb[0].mxu0
        %v767 = vadd.f32 %v551, %v766
        %v768 = vpop.f32.mrb[0].mxu0
        %769 = vmatprep.mubr.f32.mxu0 0.0
        %770 = vmatmul.mubr.f32.gmra.mrb[0].mxu0 %v588
        %v771 = vpop.f32.mrb[0].mxu0
        %v772 = vadd.f32 %v551, %v771
        %v773 = vpop.f32.mrb[0].mxu0
        %774 = vmatprep.mubr.f32.mxu0 0.0
        %775 = vmatmul.mubr.f32.gmra.mrb[0].mxu0 %v591
        %v776 = vpop.f32.mrb[0].mxu0
        %v777 = vadd.f32 %v551, %v776
        %v778 = vpop.f32.mrb[0].mxu0
        %779 = vmatprep.mubr.f32.mxu0 0.0
        %780 = vmatmul.mubr.f32.gmra.mrb[0].mxu0 %v594
        %v781 = vpop.f32.mrb[0].mxu0
        %v782 = vadd.f32 %v551, %v781
        %v783 = vpop.f32.mrb[0].mxu0
        %784 = vmatprep.mubr.f32.mxu0 0.0
        %785 = vmatmul.mubr.f32.gmra.mrb[0].mxu0 %v597
        %v786 = vpop.f32.mrb[0].mxu0
        %v787 = vadd.f32 %v551, %v786
        %v788 = vpop.f32.mrb[0].mxu0
        %789 = vmatprep.mubr.f32.mxu0 0.0
        %790 = vmatmul.mubr.f32.gmra.mrb[0].mxu0 %v600
        %v791 = vpop.f32.mrb[0].mxu0
        %v792 = vadd.f32 %v551, %v791
        %v793 = vpop.f32.mrb[0].mxu0
        %794 = vmatprep.mubr.f32.mxu0 0.0
        %795 = vmatmul.mubr.f32.gmra.mrb[0].mxu0 %v603
        %v796 = vpop.f32.mrb[0].mxu0
        %v797 = vadd.f32 %v551, %v796
        %v798 = vpop.f32.mrb[0].mxu0
        %799 = vmatprep.mubr.f32.mxu0 0.0
        %800 = vmatmul.mubr.f32.gmra.mrb[0].mxu0 %v606
        %v801 = vpop.f32.mrb[0].mxu0
        %v802 = vadd.f32 %v551, %v801
        %v803 = vpop.f32.mrb[0].mxu0
        %804 = vmatprep.mubr.f32.mxu0 0.0
        %805 = vmatmul.mubr.f32.gmra.mrb[0].mxu0 %v609
        %v806 = vpop.f32.mrb[0].mxu0
        %v807 = vadd.f32 %v551, %v806
        %v808 = vpop.f32.mrb[0].mxu0
        %809 = vmatprep.mubr.f32.mxu0 0.0
        %810 = vmatmul.mubr.f32.gmra.mrb[0].mxu0 %v612
        %v811 = vpop.f32.mrb[0].mxu0
        %v812 = vadd.f32 %v551, %v811
        %v813 = vpop.f32.mrb[0].mxu0
        %814 = vmatprep.mubr.f32.mxu0 0.0
        %815 = vmatmul.mubr.f32.gmra.mrb[0].mxu0 %v615
        %v816 = vpop.f32.mrb[0].mxu0
        %v817 = vadd.f32 %v551, %v816
        %v818 = vpop.f32.mrb[0].mxu0
        %819 = vmatprep.mubr.f32.mxu0 0.0
        %820 = vmatmul.mubr.f32.gmra.mrb[0].mxu0 %v618
        %v821 = vpop.f32.mrb[0].mxu0
        %v822 = vadd.f32 %v551, %v821
        %v823 = vpop.f32.mrb[0].mxu0
        %824 = vmatprep.mubr.f32.mxu0 0.0
        %825 = vmatmul.mubr.f32.gmra.mrb[0].mxu0 %v621
        %v826 = vpop.f32.mrb[0].mxu0
        %v827 = vadd.f32 %v551, %v826
        %v828 = vpop.f32.mrb[0].mxu0
        %829 = vmatprep.mubr.f32.mxu0 0.0
        %830 = vmatmul.mubr.f32.gmra.mrb[0].mxu0 %v624
        %v831 = vpop.f32.mrb[0].mxu0
        %v832 = vadd.f32 %v551, %v831
        %v833 = vpop.f32.mrb[0].mxu0
        %834 = vmatprep.mubr.f32.mxu0 0.0
        %835 = vmatmul.mubr.f32.gmra.mrb[0].mxu0 %v627
        %v836 = vpop.f32.mrb[0].mxu0
        %v837 = vadd.f32 %v551, %v836
        %v838 = vpop.f32.mrb[0].mxu0
        %839 = vmatprep.mubr.f32.mxu0 0.0
        %840 = vmatmul.mubr.f32.gmra.mrb[0].mxu0 %v630
        %v841 = vpop.f32.mrb[0].mxu0
        %v842 = vadd.f32 %v551, %v841
        %v843 = vpop.f32.mrb[0].mxu0
        %844 = vmatprep.mubr.f32.mxu0 0.0
        %845 = vmatmul.mubr.f32.gmra.mrb[0].mxu0 %v633
        %v846 = vpop.f32.mrb[0].mxu0
        %v847 = vadd.f32 %v551, %v846
        %v848 = vpop.f32.mrb[0].mxu0
        %849 = vmatprep.mubr.f32.mxu0 0.0
        %850 = vmatmul.mubr.f32.gmra.mrb[0].mxu0 %v636
        %v851 = vpop.f32.mrb[0].mxu0
        %v852 = vadd.f32 %v551, %v851
        %v853 = vpop.f32.mrb[0].mxu0
        %854 = vmatprep.mubr.f32.mxu0 0.0
        %855 = vmatmul.mubr.f32.gmra.mrb[0].mxu0 %v639
        %v856 = vpop.f32.mrb[0].mxu0
        %v857 = vadd.f32 %v551, %v856
        %v858 = vpop.f32.mrb[0].mxu0
        %859 = vmatprep.mubr.f32.mxu0 0.0
        %860 = vmatmul.mubr.f32.gmra.mrb[0].mxu0 %v642
        %v861 = vpop.f32.mrb[0].mxu0
        %v862 = vadd.f32 %v551, %v861
        %v863 = vpop.f32.mrb[0].mxu0
        %864 = vmatprep.mubr.f32.mxu0 0.0
        %865 = vmatmul.mubr.f32.gmra.mrb[0].mxu0 %v645
        %v866 = vpop.f32.mrb[0].mxu0
        %v867 = vadd.f32 %v551, %v866
        %v868 = vpop.f32.mrb[0].mxu0
        %869 = vmatprep.mubr.f32.mxu0 0.0
        %870 = vmatmul.mubr.f32.gmra.mrb[0].mxu0 %v648
        %v871 = vpop.f32.mrb[0].mxu0
        %v872 = vadd.f32 %v551, %v871
        %v873 = vpop.f32.mrb[0].mxu0
        %874 = vdwg.mxu0
        %s875 = scalar_lea.vmem %s486, 256 [#allocation2]
        %v876 = vld [vmem:[%s875] sm:$0xff]
        %v877 = vld [vmem:[%s875 + $0x8] sm:$0xff]
        %v878 = vld [vmem:[%s875 + $0x10] sm:$0xff]
        %v879 = vld [vmem:[%s875 + $0x18] sm:$0xff]
        %v880 = vld [vmem:[%s875 + $0x20] sm:$0xff]
        %v881 = vld [vmem:[%s875 + $0x28] sm:$0xff]
        %v882 = vld [vmem:[%s875 + $0x30] sm:$0xff]
        %v883 = vld [vmem:[%s875 + $0x38] sm:$0xff]
        %v884 = vld [vmem:[%s875 + $0x40] sm:$0xff]
        %v885 = vld [vmem:[%s875 + $0x48] sm:$0xff]
        %v886 = vld [vmem:[%s875 + $0x50] sm:$0xff]
        %v887 = vld [vmem:[%s875 + $0x58] sm:$0xff]
        %v888 = vld [vmem:[%s875 + $0x60] sm:$0xff]
        %v889 = vld [vmem:[%s875 + $0x68] sm:$0xff]
        %v890 = vld [vmem:[%s875 + $0x70] sm:$0xff]
        %v891 = vld [vmem:[%s875 + $0x78] sm:$0xff]
        %v892 = vld [vmem:[%s875 + $0x80] sm:$0xff]
        %v893 = vld [vmem:[%s875 + $0x88] sm:$0xff]
        %v894 = vld [vmem:[%s875 + $0x90] sm:$0xff]
        %v895 = vld [vmem:[%s875 + $0x98] sm:$0xff]
        %v896 = vld [vmem:[%s875 + $0xa0] sm:$0xff]
        %v897 = vld [vmem:[%s875 + $0xa8] sm:$0xff]
        %v898 = vld [vmem:[%s875 + $0xb0] sm:$0xff]
        %v899 = vld [vmem:[%s875 + $0xb8] sm:$0xff]
        %v900 = vld [vmem:[%s875 + $0xc0] sm:$0xff]
        %v901 = vld [vmem:[%s875 + $0xc8] sm:$0xff]
        %v902 = vld [vmem:[%s875 + $0xd0] sm:$0xff]
        %v903 = vld [vmem:[%s875 + $0xd8] sm:$0xff]
        %v904 = vld [vmem:[%s875 + $0xe0] sm:$0xff]
        %v905 = vld [vmem:[%s875 + $0xe8] sm:$0xff]
        %v906 = vld [vmem:[%s875 + $0xf0] sm:$0xff]
        %v907 = vld [vmem:[%s875 + $0xf8] sm:$0xff]
        %s908 = scalar_lea.vmem %s1, 16
        %v909 = vld [vmem:[%s908] sm:$0xff]
        %v910 = vld [vmem:[%s908 + $0x8] sm:$0xff]
        %s911 = scalar_lea.vmem %s2, 1
        %v912 = vld [vmem:[%s911] sm:$0x1]
        %v914 = vlaneseq
        %v915 = vshrl.u32 %v914, 7
        %v916 = vsub.s32 0, %v915
        %v917 = vrot.slane %v912, %v916
        %v920 = vsel %vm553, %v876, 0
        %v923 = vsel %vm553, %v877, 0
        %v926 = vsel %vm553, %v878, 0
        %v929 = vsel %vm553, %v879, 0
        %v932 = vsel %vm553, %v880, 0
        %v935 = vsel %vm553, %v881, 0
        %v938 = vsel %vm553, %v882, 0
        %v941 = vsel %vm553, %v883, 0
        %v944 = vsel %vm553, %v884, 0
        %v947 = vsel %vm553, %v885, 0
        %v950 = vsel %vm553, %v886, 0
        %v953 = vsel %vm553, %v887, 0
        %v956 = vsel %vm553, %v888, 0
        %v959 = vsel %vm553, %v889, 0
        %v962 = vsel %vm553, %v890, 0
        %v965 = vsel %vm553, %v891, 0
        %v968 = vsel %vm553, %v892, 0
        %v971 = vsel %vm553, %v893, 0
        %v974 = vsel %vm553, %v894, 0
        %v977 = vsel %vm553, %v895, 0
        %v980 = vsel %vm553, %v896, 0
        %v983 = vsel %vm553, %v897, 0
        %v986 = vsel %vm553, %v898, 0
        %v989 = vsel %vm553, %v899, 0
        %v992 = vsel %vm553, %v900, 0
        %v995 = vsel %vm553, %v901, 0
        %v998 = vsel %vm553, %v902, 0
        %v1001 = vsel %vm553, %v903, 0
        %v1004 = vsel %vm553, %v904, 0
        %v1007 = vsel %vm553, %v905, 0
        %v1010 = vsel %vm553, %v906, 0
        %v1013 = vsel %vm553, %v907, 0
        %1015 = vmatprep.subr.mxu0 0.0
        %1016 = vmatpush1.msra.mxu0 %v909
        %1017 = vmatprep.subr.mxu0 0.0
        %1018 = vmatpush1.msra.mxu0 %v910
        %1019 = vmatprep.subr.mxu0 0.0
        %1020 = vmatpush1.msra.mxu0 0.0
        %1021 = vmatprep.subr.mxu0 0.0
        %1022 = vmatpush1.msra.mxu0 0.0
        %1023 = vmatprep.subr.mxu0 0.0
        %1024 = vmatpush1.msra.mxu0 0.0
        %1025 = vmatprep.subr.mxu0 0.0
        %1026 = vmatpush1.msra.mxu0 0.0
        %1027 = vmatprep.subr.mxu0 0.0
        %1028 = vmatpush1.msra.mxu0 0.0
        %1029 = vmatprep.subr.mxu0 0.0
        %1030 = vmatpush1.msra.mxu0 0.0
        %1031 = vmatprep.subr.mxu0 0.0
        %1032 = vmatpush1.msra.mxu0 0.0
        %1033 = vmatprep.subr.mxu0 0.0
        %1034 = vmatpush1.msra.mxu0 0.0
        %1035 = vmatprep.subr.mxu0 0.0
        %1036 = vmatpush1.msra.mxu0 0.0
        %1037 = vmatprep.subr.mxu0 0.0
        %1038 = vmatpush1.msra.mxu0 0.0
        %1039 = vmatprep.subr.mxu0 0.0
        %1040 = vmatpush1.msra.mxu0 0.0
        %1041 = vmatprep.subr.mxu0 0.0
        %1042 = vmatpush1.msra.mxu0 0.0
        %1043 = vmatprep.subr.mxu0 0.0
        %1044 = vmatpush1.msra.mxu0 0.0
        %1045 = vmatprep.subr.mxu0 0.0
        %1046 = vmatpush1.msra.mxu0 0.0
        %1047 = vmatprep.subr.mxu0 0.0
        %1048 = vmatpush1.msra.mxu0 0.0
        %1049 = vmatprep.subr.mxu0 0.0
        %1050 = vmatpush1.msra.mxu0 0.0
        %1051 = vmatprep.subr.mxu0 0.0
        %1052 = vmatpush1.msra.mxu0 0.0
        %1053 = vmatprep.subr.mxu0 0.0
        %1054 = vmatpush1.msra.mxu0 0.0
        %1055 = vmatprep.subr.mxu0 0.0
        %1056 = vmatpush1.msra.mxu0 0.0
        %1057 = vmatprep.subr.mxu0 0.0
        %1058 = vmatpush1.msra.mxu0 0.0
        %1059 = vmatprep.subr.mxu0 0.0
        %1060 = vmatpush1.msra.mxu0 0.0
        %1061 = vmatprep.subr.mxu0 0.0
        %1062 = vmatpush1.msra.mxu0 0.0
        %1063 = vmatprep.subr.mxu0 0.0
        %1064 = vmatpush1.msra.mxu0 0.0
        %1065 = vmatprep.subr.mxu0 0.0
        %1066 = vmatpush1.msra.mxu0 0.0
        %1067 = vmatprep.subr.mxu0 0.0
        %1068 = vmatpush1.msra.mxu0 0.0
        %1069 = vmatprep.subr.mxu0 0.0
        %1070 = vmatpush1.msra.mxu0 0.0
        %1071 = vmatprep.subr.mxu0 0.0
        %1072 = vmatpush1.msra.mxu0 0.0
        %1073 = vmatprep.subr.mxu0 0.0
        %1074 = vmatpush1.msra.mxu0 0.0
        %1075 = vmatprep.subr.mxu0 0.0
        %1076 = vmatpush1.msra.mxu0 0.0
        %1077 = vmatprep.subr.mxu0 0.0
        %1078 = vmatpush1.msra.mxu0 0.0
        %1079 = vmatprep.mubr.f32.mxu0 0.0
        %1080 = vmatmul.mubr.f32.gmra.mrb[0].mxu0 %v920
        %v1081 = vpop.f32.mrb[0].mxu0
        %v1082 = vadd.f32 %v917, %v1081
        %v1083 = vpop.f32.mrb[0].mxu0
        %1084 = vmatprep.mubr.f32.mxu0 0.0
        %1085 = vmatmul.mubr.f32.gmra.mrb[0].mxu0 %v923
        %v1086 = vpop.f32.mrb[0].mxu0
        %v1087 = vadd.f32 %v917, %v1086
        %v1088 = vpop.f32.mrb[0].mxu0
        %1089 = vmatprep.mubr.f32.mxu0 0.0
        %1090 = vmatmul.mubr.f32.gmra.mrb[0].mxu0 %v926
        %v1091 = vpop.f32.mrb[0].mxu0
        %v1092 = vadd.f32 %v917, %v1091
        %v1093 = vpop.f32.mrb[0].mxu0
        %1094 = vmatprep.mubr.f32.mxu0 0.0
        %1095 = vmatmul.mubr.f32.gmra.mrb[0].mxu0 %v929
        %v1096 = vpop.f32.mrb[0].mxu0
        %v1097 = vadd.f32 %v917, %v1096
        %v1098 = vpop.f32.mrb[0].mxu0
        %1099 = vmatprep.mubr.f32.mxu0 0.0
        %1100 = vmatmul.mubr.f32.gmra.mrb[0].mxu0 %v932
        %v1101 = vpop.f32.mrb[0].mxu0
        %v1102 = vadd.f32 %v917, %v1101
        %v1103 = vpop.f32.mrb[0].mxu0
        %1104 = vmatprep.mubr.f32.mxu0 0.0
        %1105 = vmatmul.mubr.f32.gmra.mrb[0].mxu0 %v935
        %v1106 = vpop.f32.mrb[0].mxu0
        %v1107 = vadd.f32 %v917, %v1106
        %v1108 = vpop.f32.mrb[0].mxu0
        %1109 = vmatprep.mubr.f32.mxu0 0.0
        %1110 = vmatmul.mubr.f32.gmra.mrb[0].mxu0 %v938
        %v1111 = vpop.f32.mrb[0].mxu0
        %v1112 = vadd.f32 %v917, %v1111
        %v1113 = vpop.f32.mrb[0].mxu0
        %1114 = vmatprep.mubr.f32.mxu0 0.0
        %1115 = vmatmul.mubr.f32.gmra.mrb[0].mxu0 %v941
        %v1116 = vpop.f32.mrb[0].mxu0
        %v1117 = vadd.f32 %v917, %v1116
        %v1118 = vpop.f32.mrb[0].mxu0
        %1119 = vmatprep.mubr.f32.mxu0 0.0
        %1120 = vmatmul.mubr.f32.gmra.mrb[0].mxu0 %v944
        %v1121 = vpop.f32.mrb[0].mxu0
        %v1122 = vadd.f32 %v917, %v1121
        %v1123 = vpop.f32.mrb[0].mxu0
        %1124 = vmatprep.mubr.f32.mxu0 0.0
        %1125 = vmatmul.mubr.f32.gmra.mrb[0].mxu0 %v947
        %v1126 = vpop.f32.mrb[0].mxu0
        %v1127 = vadd.f32 %v917, %v1126
        %v1128 = vpop.f32.mrb[0].mxu0
        %1129 = vmatprep.mubr.f32.mxu0 0.0
        %1130 = vmatmul.mubr.f32.gmra.mrb[0].mxu0 %v950
        %v1131 = vpop.f32.mrb[0].mxu0
        %v1132 = vadd.f32 %v917, %v1131
        %v1133 = vpop.f32.mrb[0].mxu0
        %1134 = vmatprep.mubr.f32.mxu0 0.0
        %1135 = vmatmul.mubr.f32.gmra.mrb[0].mxu0 %v953
        %v1136 = vpop.f32.mrb[0].mxu0
        %v1137 = vadd.f32 %v917, %v1136
        %v1138 = vpop.f32.mrb[0].mxu0
        %1139 = vmatprep.mubr.f32.mxu0 0.0
        %1140 = vmatmul.mubr.f32.gmra.mrb[0].mxu0 %v956
        %v1141 = vpop.f32.mrb[0].mxu0
        %v1142 = vadd.f32 %v917, %v1141
        %v1143 = vpop.f32.mrb[0].mxu0
        %1144 = vmatprep.mubr.f32.mxu0 0.0
        %1145 = vmatmul.mubr.f32.gmra.mrb[0].mxu0 %v959
        %v1146 = vpop.f32.mrb[0].mxu0
        %v1147 = vadd.f32 %v917, %v1146
        %v1148 = vpop.f32.mrb[0].mxu0
        %1149 = vmatprep.mubr.f32.mxu0 0.0
        %1150 = vmatmul.mubr.f32.gmra.mrb[0].mxu0 %v962
        %v1151 = vpop.f32.mrb[0].mxu0
        %v1152 = vadd.f32 %v917, %v1151
        %v1153 = vpop.f32.mrb[0].mxu0
        %1154 = vmatprep.mubr.f32.mxu0 0.0
        %1155 = vmatmul.mubr.f32.gmra.mrb[0].mxu0 %v965
        %v1156 = vpop.f32.mrb[0].mxu0
        %v1157 = vadd.f32 %v917, %v1156
        %v1158 = vpop.f32.mrb[0].mxu0
        %1159 = vmatprep.mubr.f32.mxu0 0.0
        %1160 = vmatmul.mubr.f32.gmra.mrb[0].mxu0 %v968
        %v1161 = vpop.f32.mrb[0].mxu0
        %v1162 = vadd.f32 %v917, %v1161
        %v1163 = vpop.f32.mrb[0].mxu0
        %1164 = vmatprep.mubr.f32.mxu0 0.0
        %1165 = vmatmul.mubr.f32.gmra.mrb[0].mxu0 %v971
        %v1166 = vpop.f32.mrb[0].mxu0
        %v1167 = vadd.f32 %v917, %v1166
        %v1168 = vpop.f32.mrb[0].mxu0
        %1169 = vmatprep.mubr.f32.mxu0 0.0
        %1170 = vmatmul.mubr.f32.gmra.mrb[0].mxu0 %v974
        %v1171 = vpop.f32.mrb[0].mxu0
        %v1172 = vadd.f32 %v917, %v1171
        %v1173 = vpop.f32.mrb[0].mxu0
        %1174 = vmatprep.mubr.f32.mxu0 0.0
        %1175 = vmatmul.mubr.f32.gmra.mrb[0].mxu0 %v977
        %v1176 = vpop.f32.mrb[0].mxu0
        %v1177 = vadd.f32 %v917, %v1176
        %v1178 = vpop.f32.mrb[0].mxu0
        %1179 = vmatprep.mubr.f32.mxu0 0.0
        %1180 = vmatmul.mubr.f32.gmra.mrb[0].mxu0 %v980
        %v1181 = vpop.f32.mrb[0].mxu0
        %v1182 = vadd.f32 %v917, %v1181
        %v1183 = vpop.f32.mrb[0].mxu0
        %1184 = vmatprep.mubr.f32.mxu0 0.0
        %1185 = vmatmul.mubr.f32.gmra.mrb[0].mxu0 %v983
        %v1186 = vpop.f32.mrb[0].mxu0
        %v1187 = vadd.f32 %v917, %v1186
        %v1188 = vpop.f32.mrb[0].mxu0
        %1189 = vmatprep.mubr.f32.mxu0 0.0
        %1190 = vmatmul.mubr.f32.gmra.mrb[0].mxu0 %v986
        %v1191 = vpop.f32.mrb[0].mxu0
        %v1192 = vadd.f32 %v917, %v1191
        %v1193 = vpop.f32.mrb[0].mxu0
        %1194 = vmatprep.mubr.f32.mxu0 0.0
        %1195 = vmatmul.mubr.f32.gmra.mrb[0].mxu0 %v989
        %v1196 = vpop.f32.mrb[0].mxu0
        %v1197 = vadd.f32 %v917, %v1196
        %v1198 = vpop.f32.mrb[0].mxu0
        %1199 = vmatprep.mubr.f32.mxu0 0.0
        %1200 = vmatmul.mubr.f32.gmra.mrb[0].mxu0 %v992
        %v1201 = vpop.f32.mrb[0].mxu0
        %v1202 = vadd.f32 %v917, %v1201
        %v1203 = vpop.f32.mrb[0].mxu0
        %1204 = vmatprep.mubr.f32.mxu0 0.0
        %1205 = vmatmul.mubr.f32.gmra.mrb[0].mxu0 %v995
        %v1206 = vpop.f32.mrb[0].mxu0
        %v1207 = vadd.f32 %v917, %v1206
        %v1208 = vpop.f32.mrb[0].mxu0
        %1209 = vmatprep.mubr.f32.mxu0 0.0
        %1210 = vmatmul.mubr.f32.gmra.mrb[0].mxu0 %v998
        %v1211 = vpop.f32.mrb[0].mxu0
        %v1212 = vadd.f32 %v917, %v1211
        %v1213 = vpop.f32.mrb[0].mxu0
        %1214 = vmatprep.mubr.f32.mxu0 0.0
        %1215 = vmatmul.mubr.f32.gmra.mrb[0].mxu0 %v1001
        %v1216 = vpop.f32.mrb[0].mxu0
        %v1217 = vadd.f32 %v917, %v1216
        %v1218 = vpop.f32.mrb[0].mxu0
        %1219 = vmatprep.mubr.f32.mxu0 0.0
        %1220 = vmatmul.mubr.f32.gmra.mrb[0].mxu0 %v1004
        %v1221 = vpop.f32.mrb[0].mxu0
        %v1222 = vadd.f32 %v917, %v1221
        %v1223 = vpop.f32.mrb[0].mxu0
        %1224 = vmatprep.mubr.f32.mxu0 0.0
        %1225 = vmatmul.mubr.f32.gmra.mrb[0].mxu0 %v1007
        %v1226 = vpop.f32.mrb[0].mxu0
        %v1227 = vadd.f32 %v917, %v1226
        %v1228 = vpop.f32.mrb[0].mxu0
        %1229 = vmatprep.mubr.f32.mxu0 0.0
        %1230 = vmatmul.mubr.f32.gmra.mrb[0].mxu0 %v1010
        %v1231 = vpop.f32.mrb[0].mxu0
        %v1232 = vadd.f32 %v917, %v1231
        %v1233 = vpop.f32.mrb[0].mxu0
        %1234 = vmatprep.mubr.f32.mxu0 0.0
        %1235 = vmatmul.mubr.f32.gmra.mrb[0].mxu0 %v1013
        %v1236 = vpop.f32.mrb[0].mxu0
        %v1237 = vadd.f32 %v917, %v1236
        %v1238 = vpop.f32.mrb[0].mxu0
        %1239 = vdwg.mxu0
        %v1240 = vld [vmem:[%s3] sm:$0xff]
        %v1241 = vld [vmem:[%s3 + $0x8] sm:$0xff]
        %v1243 = vsel %vm553, %v717, 0
        %v1246 = vsel %vm553, %v722, 0
        %v1249 = vsel %vm553, %v727, 0
        %v1252 = vsel %vm553, %v732, 0
        %v1255 = vsel %vm553, %v737, 0
        %v1258 = vsel %vm553, %v742, 0
        %v1261 = vsel %vm553, %v747, 0
        %v1264 = vsel %vm553, %v752, 0
        %v1267 = vsel %vm553, %v757, 0
        %v1270 = vsel %vm553, %v762, 0
        %v1273 = vsel %vm553, %v767, 0
        %v1276 = vsel %vm553, %v772, 0
        %v1279 = vsel %vm553, %v777, 0
        %v1282 = vsel %vm553, %v782, 0
        %v1285 = vsel %vm553, %v787, 0
        %v1288 = vsel %vm553, %v792, 0
        %v1291 = vsel %vm553, %v797, 0
        %v1294 = vsel %vm553, %v802, 0
        %v1297 = vsel %vm553, %v807, 0
        %v1300 = vsel %vm553, %v812, 0
        %v1303 = vsel %vm553, %v817, 0
        %v1306 = vsel %vm553, %v822, 0
        %v1309 = vsel %vm553, %v827, 0
        %v1312 = vsel %vm553, %v832, 0
        %v1315 = vsel %vm553, %v837, 0
        %v1318 = vsel %vm553, %v842, 0
        %v1321 = vsel %vm553, %v847, 0
        %v1324 = vsel %vm553, %v852, 0
        %v1327 = vsel %vm553, %v857, 0
        %v1330 = vsel %vm553, %v862, 0
        %v1333 = vsel %vm553, %v867, 0
        %v1336 = vsel %vm553, %v872, 0
        %1338 = vmatprep.subr.mxu0 0.0
        %1339 = vmatpush1.msra.mxu0 %v1240
        %1340 = vmatprep.subr.mxu0 0.0
        %1341 = vmatpush1.msra.mxu0 %v1241
        %1342 = vmatprep.subr.mxu0 0.0
        %1343 = vmatpush1.msra.mxu0 0.0
        %1344 = vmatprep.subr.mxu0 0.0
        %1345 = vmatpush1.msra.mxu0 0.0
        %1346 = vmatprep.subr.mxu0 0.0
        %1347 = vmatpush1.msra.mxu0 0.0
        %1348 = vmatprep.subr.mxu0 0.0
        %1349 = vmatpush1.msra.mxu0 0.0
        %1350 = vmatprep.subr.mxu0 0.0
        %1351 = vmatpush1.msra.mxu0 0.0
        %1352 = vmatprep.subr.mxu0 0.0
        %1353 = vmatpush1.msra.mxu0 0.0
        %1354 = vmatprep.subr.mxu0 0.0
        %1355 = vmatpush1.msra.mxu0 0.0
        %1356 = vmatprep.subr.mxu0 0.0
        %1357 = vmatpush1.msra.mxu0 0.0
        %1358 = vmatprep.subr.mxu0 0.0
        %1359 = vmatpush1.msra.mxu0 0.0
        %1360 = vmatprep.subr.mxu0 0.0
        %1361 = vmatpush1.msra.mxu0 0.0
        %1362 = vmatprep.subr.mxu0 0.0
        %1363 = vmatpush1.msra.mxu0 0.0
        %1364 = vmatprep.subr.mxu0 0.0
        %1365 = vmatpush1.msra.mxu0 0.0
        %1366 = vmatprep.subr.mxu0 0.0
        %1367 = vmatpush1.msra.mxu0 0.0
        %1368 = vmatprep.subr.mxu0 0.0
        %1369 = vmatpush1.msra.mxu0 0.0
        %1370 = vmatprep.subr.mxu0 0.0
        %1371 = vmatpush1.msra.mxu0 0.0
        %1372 = vmatprep.subr.mxu0 0.0
        %1373 = vmatpush1.msra.mxu0 0.0
        %1374 = vmatprep.subr.mxu0 0.0
        %1375 = vmatpush1.msra.mxu0 0.0
        %1376 = vmatprep.subr.mxu0 0.0
        %1377 = vmatpush1.msra.mxu0 0.0
        %1378 = vmatprep.subr.mxu0 0.0
        %1379 = vmatpush1.msra.mxu0 0.0
        %1380 = vmatprep.subr.mxu0 0.0
        %1381 = vmatpush1.msra.mxu0 0.0
        %1382 = vmatprep.subr.mxu0 0.0
        %1383 = vmatpush1.msra.mxu0 0.0
        %1384 = vmatprep.subr.mxu0 0.0
        %1385 = vmatpush1.msra.mxu0 0.0
        %1386 = vmatprep.subr.mxu0 0.0
        %1387 = vmatpush1.msra.mxu0 0.0
        %1388 = vmatprep.subr.mxu0 0.0
        %1389 = vmatpush1.msra.mxu0 0.0
        %1390 = vmatprep.subr.mxu0 0.0
        %1391 = vmatpush1.msra.mxu0 0.0
        %1392 = vmatprep.subr.mxu0 0.0
        %1393 = vmatpush1.msra.mxu0 0.0
        %1394 = vmatprep.subr.mxu0 0.0
        %1395 = vmatpush1.msra.mxu0 0.0
        %1396 = vmatprep.subr.mxu0 0.0
        %1397 = vmatpush1.msra.mxu0 0.0
        %1398 = vmatprep.subr.mxu0 0.0
        %1399 = vmatpush1.msra.mxu0 0.0
        %1400 = vmatprep.subr.mxu0 0.0
        %1401 = vmatpush1.msra.mxu0 0.0
        %1402 = vmatprep.mubr.f32.mxu0 0.0
        %1403 = vmatmul.mubr.f32.gmra.mrb[0].mxu0 %v1243
        %v1404 = vpop.f32.mrb[0].mxu0
        %v1405 = vadd.f32 0.0, %v1404
        %v1406 = vpop.f32.mrb[0].mxu0
        %1407 = vmatprep.mubr.f32.mxu0 0.0
        %1408 = vmatmul.mubr.f32.gmra.mrb[0].mxu0 %v1246
        %v1409 = vpop.f32.mrb[0].mxu0
        %v1410 = vadd.f32 0.0, %v1409
        %v1411 = vpop.f32.mrb[0].mxu0
        %1412 = vmatprep.mubr.f32.mxu0 0.0
        %1413 = vmatmul.mubr.f32.gmra.mrb[0].mxu0 %v1249
        %v1414 = vpop.f32.mrb[0].mxu0
        %v1415 = vadd.f32 0.0, %v1414
        %v1416 = vpop.f32.mrb[0].mxu0
        %1417 = vmatprep.mubr.f32.mxu0 0.0
        %1418 = vmatmul.mubr.f32.gmra.mrb[0].mxu0 %v1252
        %v1419 = vpop.f32.mrb[0].mxu0
        %v1420 = vadd.f32 0.0, %v1419
        %v1421 = vpop.f32.mrb[0].mxu0
        %1422 = vmatprep.mubr.f32.mxu0 0.0
        %1423 = vmatmul.mubr.f32.gmra.mrb[0].mxu0 %v1255
        %v1424 = vpop.f32.mrb[0].mxu0
        %v1425 = vadd.f32 0.0, %v1424
        %v1426 = vpop.f32.mrb[0].mxu0
        %1427 = vmatprep.mubr.f32.mxu0 0.0
        %1428 = vmatmul.mubr.f32.gmra.mrb[0].mxu0 %v1258
        %v1429 = vpop.f32.mrb[0].mxu0
        %v1430 = vadd.f32 0.0, %v1429
        %v1431 = vpop.f32.mrb[0].mxu0
        %1432 = vmatprep.mubr.f32.mxu0 0.0
        %1433 = vmatmul.mubr.f32.gmra.mrb[0].mxu0 %v1261
        %v1434 = vpop.f32.mrb[0].mxu0
        %v1435 = vadd.f32 0.0, %v1434
        %v1436 = vpop.f32.mrb[0].mxu0
        %1437 = vmatprep.mubr.f32.mxu0 0.0
        %1438 = vmatmul.mubr.f32.gmra.mrb[0].mxu0 %v1264
        %v1439 = vpop.f32.mrb[0].mxu0
        %v1440 = vadd.f32 0.0, %v1439
        %v1441 = vpop.f32.mrb[0].mxu0
        %1442 = vmatprep.mubr.f32.mxu0 0.0
        %1443 = vmatmul.mubr.f32.gmra.mrb[0].mxu0 %v1267
        %v1444 = vpop.f32.mrb[0].mxu0
        %v1445 = vadd.f32 0.0, %v1444
        %v1446 = vpop.f32.mrb[0].mxu0
        %1447 = vmatprep.mubr.f32.mxu0 0.0
        %1448 = vmatmul.mubr.f32.gmra.mrb[0].mxu0 %v1270
        %v1449 = vpop.f32.mrb[0].mxu0
        %v1450 = vadd.f32 0.0, %v1449
        %v1451 = vpop.f32.mrb[0].mxu0
        %1452 = vmatprep.mubr.f32.mxu0 0.0
        %1453 = vmatmul.mubr.f32.gmra.mrb[0].mxu0 %v1273
        %v1454 = vpop.f32.mrb[0].mxu0
        %v1455 = vadd.f32 0.0, %v1454
        %v1456 = vpop.f32.mrb[0].mxu0
        %1457 = vmatprep.mubr.f32.mxu0 0.0
        %1458 = vmatmul.mubr.f32.gmra.mrb[0].mxu0 %v1276
        %v1459 = vpop.f32.mrb[0].mxu0
        %v1460 = vadd.f32 0.0, %v1459
        %v1461 = vpop.f32.mrb[0].mxu0
        %1462 = vmatprep.mubr.f32.mxu0 0.0
        %1463 = vmatmul.mubr.f32.gmra.mrb[0].mxu0 %v1279
        %v1464 = vpop.f32.mrb[0].mxu0
        %v1465 = vadd.f32 0.0, %v1464
        %v1466 = vpop.f32.mrb[0].mxu0
        %1467 = vmatprep.mubr.f32.mxu0 0.0
        %1468 = vmatmul.mubr.f32.gmra.mrb[0].mxu0 %v1282
        %v1469 = vpop.f32.mrb[0].mxu0
        %v1470 = vadd.f32 0.0, %v1469
        %v1471 = vpop.f32.mrb[0].mxu0
        %1472 = vmatprep.mubr.f32.mxu0 0.0
        %1473 = vmatmul.mubr.f32.gmra.mrb[0].mxu0 %v1285
        %v1474 = vpop.f32.mrb[0].mxu0
        %v1475 = vadd.f32 0.0, %v1474
        %v1476 = vpop.f32.mrb[0].mxu0
        %1477 = vmatprep.mubr.f32.mxu0 0.0
        %1478 = vmatmul.mubr.f32.gmra.mrb[0].mxu0 %v1288
        %v1479 = vpop.f32.mrb[0].mxu0
        %v1480 = vadd.f32 0.0, %v1479
        %v1481 = vpop.f32.mrb[0].mxu0
        %1482 = vmatprep.mubr.f32.mxu0 0.0
        %1483 = vmatmul.mubr.f32.gmra.mrb[0].mxu0 %v1291
        %v1484 = vpop.f32.mrb[0].mxu0
        %v1485 = vadd.f32 0.0, %v1484
        %v1486 = vpop.f32.mrb[0].mxu0
        %1487 = vmatprep.mubr.f32.mxu0 0.0
        %1488 = vmatmul.mubr.f32.gmra.mrb[0].mxu0 %v1294
        %v1489 = vpop.f32.mrb[0].mxu0
        %v1490 = vadd.f32 0.0, %v1489
        %v1491 = vpop.f32.mrb[0].mxu0
        %1492 = vmatprep.mubr.f32.mxu0 0.0
        %1493 = vmatmul.mubr.f32.gmra.mrb[0].mxu0 %v1297
        %v1494 = vpop.f32.mrb[0].mxu0
        %v1495 = vadd.f32 0.0, %v1494
        %v1496 = vpop.f32.mrb[0].mxu0
        %1497 = vmatprep.mubr.f32.mxu0 0.0
        %1498 = vmatmul.mubr.f32.gmra.mrb[0].mxu0 %v1300
        %v1499 = vpop.f32.mrb[0].mxu0
        %v1500 = vadd.f32 0.0, %v1499
        %v1501 = vpop.f32.mrb[0].mxu0
        %1502 = vmatprep.mubr.f32.mxu0 0.0
        %1503 = vmatmul.mubr.f32.gmra.mrb[0].mxu0 %v1303
        %v1504 = vpop.f32.mrb[0].mxu0
        %v1505 = vadd.f32 0.0, %v1504
        %v1506 = vpop.f32.mrb[0].mxu0
        %1507 = vmatprep.mubr.f32.mxu0 0.0
        %1508 = vmatmul.mubr.f32.gmra.mrb[0].mxu0 %v1306
        %v1509 = vpop.f32.mrb[0].mxu0
        %v1510 = vadd.f32 0.0, %v1509
        %v1511 = vpop.f32.mrb[0].mxu0
        %1512 = vmatprep.mubr.f32.mxu0 0.0
        %1513 = vmatmul.mubr.f32.gmra.mrb[0].mxu0 %v1309
        %v1514 = vpop.f32.mrb[0].mxu0
        %v1515 = vadd.f32 0.0, %v1514
        %v1516 = vpop.f32.mrb[0].mxu0
        %1517 = vmatprep.mubr.f32.mxu0 0.0
        %1518 = vmatmul.mubr.f32.gmra.mrb[0].mxu0 %v1312
        %v1519 = vpop.f32.mrb[0].mxu0
        %v1520 = vadd.f32 0.0, %v1519
        %v1521 = vpop.f32.mrb[0].mxu0
        %1522 = vmatprep.mubr.f32.mxu0 0.0
        %1523 = vmatmul.mubr.f32.gmra.mrb[0].mxu0 %v1315
        %v1524 = vpop.f32.mrb[0].mxu0
        %v1525 = vadd.f32 0.0, %v1524
        %v1526 = vpop.f32.mrb[0].mxu0
        %1527 = vmatprep.mubr.f32.mxu0 0.0
        %1528 = vmatmul.mubr.f32.gmra.mrb[0].mxu0 %v1318
        %v1529 = vpop.f32.mrb[0].mxu0
        %v1530 = vadd.f32 0.0, %v1529
        %v1531 = vpop.f32.mrb[0].mxu0
        %1532 = vmatprep.mubr.f32.mxu0 0.0
        %1533 = vmatmul.mubr.f32.gmra.mrb[0].mxu0 %v1321
        %v1534 = vpop.f32.mrb[0].mxu0
        %v1535 = vadd.f32 0.0, %v1534
        %v1536 = vpop.f32.mrb[0].mxu0
        %1537 = vmatprep.mubr.f32.mxu0 0.0
        %1538 = vmatmul.mubr.f32.gmra.mrb[0].mxu0 %v1324
        %v1539 = vpop.f32.mrb[0].mxu0
        %v1540 = vadd.f32 0.0, %v1539
        %v1541 = vpop.f32.mrb[0].mxu0
        %1542 = vmatprep.mubr.f32.mxu0 0.0
        %1543 = vmatmul.mubr.f32.gmra.mrb[0].mxu0 %v1327
        %v1544 = vpop.f32.mrb[0].mxu0
        %v1545 = vadd.f32 0.0, %v1544
        %v1546 = vpop.f32.mrb[0].mxu0
        %1547 = vmatprep.mubr.f32.mxu0 0.0
        %1548 = vmatmul.mubr.f32.gmra.mrb[0].mxu0 %v1330
        %v1549 = vpop.f32.mrb[0].mxu0
        %v1550 = vadd.f32 0.0, %v1549
        %v1551 = vpop.f32.mrb[0].mxu0
        %1552 = vmatprep.mubr.f32.mxu0 0.0
        %1553 = vmatmul.mubr.f32.gmra.mrb[0].mxu0 %v1333
        %v1554 = vpop.f32.mrb[0].mxu0
        %v1555 = vadd.f32 0.0, %v1554
        %v1556 = vpop.f32.mrb[0].mxu0
        %1557 = vmatprep.mubr.f32.mxu0 0.0
        %1558 = vmatmul.mubr.f32.gmra.mrb[0].mxu0 %v1336
        %v1559 = vpop.f32.mrb[0].mxu0
        %v1560 = vadd.f32 0.0, %v1559
        %v1561 = vpop.f32.mrb[0].mxu0
        %1562 = vdwg.mxu0
        %vm1595 = vcmask 1040384
        %v1596 = vrot.slane %v1405, 7
        %v1597 = vrot.slane %v1410, 7
        %v1598 = vsel %vm1595, %v1596, %v1597
        %v1599 = vrot.slane %v1415, 7
        %v1600 = vsel %vm1595, %v1597, %v1599
        %v1601 = vrot.slane %v1420, 7
        %v1602 = vsel %vm1595, %v1599, %v1601
        %v1603 = vrot.slane %v1425, 7
        %v1604 = vrot.slane %v1430, 7
        %v1605 = vsel %vm1595, %v1603, %v1604
        %v1606 = vrot.slane %v1435, 7
        %v1607 = vsel %vm1595, %v1604, %v1606
        %v1608 = vrot.slane %v1440, 7
        %v1609 = vsel %vm1595, %v1606, %v1608
        %v1610 = vrot.slane %v1445, 7
        %v1611 = vrot.slane %v1450, 7
        %v1612 = vsel %vm1595, %v1610, %v1611
        %v1613 = vrot.slane %v1455, 7
        %v1614 = vsel %vm1595, %v1611, %v1613
        %v1615 = vrot.slane %v1460, 7
        %v1616 = vsel %vm1595, %v1613, %v1615
        %v1617 = vrot.slane %v1465, 7
        %v1618 = vrot.slane %v1470, 7
        %v1619 = vsel %vm1595, %v1617, %v1618
        %v1620 = vrot.slane %v1475, 7
        %v1621 = vsel %vm1595, %v1618, %v1620
        %v1622 = vrot.slane %v1480, 7
        %v1623 = vsel %vm1595, %v1620, %v1622
        %v1624 = vrot.slane %v1485, 7
        %v1625 = vrot.slane %v1490, 7
        %v1626 = vsel %vm1595, %v1624, %v1625
        %v1627 = vrot.slane %v1495, 7
        %v1628 = vsel %vm1595, %v1625, %v1627
        %v1629 = vrot.slane %v1500, 7
        %v1630 = vsel %vm1595, %v1627, %v1629
        %v1631 = vrot.slane %v1505, 7
        %v1632 = vrot.slane %v1510, 7
        %v1633 = vsel %vm1595, %v1631, %v1632
        %v1634 = vrot.slane %v1515, 7
        %v1635 = vsel %vm1595, %v1632, %v1634
        %v1636 = vrot.slane %v1520, 7
        %v1637 = vsel %vm1595, %v1634, %v1636
        %v1638 = vrot.slane %v1525, 7
        %v1639 = vrot.slane %v1530, 7
        %v1640 = vsel %vm1595, %v1638, %v1639
        %v1641 = vrot.slane %v1535, 7
        %v1642 = vsel %vm1595, %v1639, %v1641
        %v1643 = vrot.slane %v1540, 7
        %v1644 = vsel %vm1595, %v1641, %v1643
        %v1645 = vrot.slane %v1545, 7
        %v1646 = vrot.slane %v1550, 7
        %v1647 = vsel %vm1595, %v1645, %v1646
        %v1648 = vrot.slane %v1555, 7
        %v1649 = vsel %vm1595, %v1646, %v1648
        %v1650 = vrot.slane %v1560, 7
        %v1651 = vsel %vm1595, %v1648, %v1650
        %1652 = vrot.lane.b32.xlu0 %v1596, 112
        %v1653 = vpop.permute.xlu0 %1652
        %1654 = vrot.lane.b32.xlu0 %v1598, 112
        %v1655 = vpop.permute.xlu0 %1654
        %1656 = vrot.lane.b32.xlu0 %v1600, 112
        %v1657 = vpop.permute.xlu0 %1656
        %1658 = vrot.lane.b32.xlu0 %v1602, 112
        %v1659 = vpop.permute.xlu0 %1658
        %1660 = vrot.lane.b32.xlu0 %v1603, 112
        %v1661 = vpop.permute.xlu0 %1660
        %1662 = vrot.lane.b32.xlu0 %v1605, 112
        %v1663 = vpop.permute.xlu0 %1662
        %1664 = vrot.lane.b32.xlu0 %v1607, 112
        %v1665 = vpop.permute.xlu0 %1664
        %1666 = vrot.lane.b32.xlu0 %v1609, 112
        %v1667 = vpop.permute.xlu0 %1666
        %1668 = vrot.lane.b32.xlu0 %v1610, 112
        %v1669 = vpop.permute.xlu0 %1668
        %1670 = vrot.lane.b32.xlu0 %v1612, 112
        %v1671 = vpop.permute.xlu0 %1670
        %1672 = vrot.lane.b32.xlu0 %v1614, 112
        %v1673 = vpop.permute.xlu0 %1672
        %1674 = vrot.lane.b32.xlu0 %v1616, 112
        %v1675 = vpop.permute.xlu0 %1674
        %1676 = vrot.lane.b32.xlu0 %v1617, 112
        %v1677 = vpop.permute.xlu0 %1676
        %1678 = vrot.lane.b32.xlu0 %v1619, 112
        %v1679 = vpop.permute.xlu0 %1678
        %1680 = vrot.lane.b32.xlu0 %v1621, 112
        %v1681 = vpop.permute.xlu0 %1680
        %1682 = vrot.lane.b32.xlu0 %v1623, 112
        %v1683 = vpop.permute.xlu0 %1682
        %1684 = vrot.lane.b32.xlu0 %v1624, 112
        %v1685 = vpop.permute.xlu0 %1684
        %1686 = vrot.lane.b32.xlu0 %v1626, 112
        %v1687 = vpop.permute.xlu0 %1686
        %1688 = vrot.lane.b32.xlu0 %v1628, 112
        %v1689 = vpop.permute.xlu0 %1688
        %1690 = vrot.lane.b32.xlu0 %v1630, 112
        %v1691 = vpop.permute.xlu0 %1690
        %1692 = vrot.lane.b32.xlu0 %v1631, 112
        %v1693 = vpop.permute.xlu0 %1692
        %1694 = vrot.lane.b32.xlu0 %v1633, 112
        %v1695 = vpop.permute.xlu0 %1694
        %1696 = vrot.lane.b32.xlu0 %v1635, 112
        %v1697 = vpop.permute.xlu0 %1696
        %1698 = vrot.lane.b32.xlu0 %v1637, 112
        %v1699 = vpop.permute.xlu0 %1698
        %1700 = vrot.lane.b32.xlu0 %v1638, 112
        %v1701 = vpop.permute.xlu0 %1700
        %1702 = vrot.lane.b32.xlu0 %v1640, 112
        %v1703 = vpop.permute.xlu0 %1702
        %1704 = vrot.lane.b32.xlu0 %v1642, 112
        %v1705 = vpop.permute.xlu0 %1704
        %1706 = vrot.lane.b32.xlu0 %v1644, 112
        %v1707 = vpop.permute.xlu0 %1706
        %1708 = vrot.lane.b32.xlu0 %v1645, 112
        %v1709 = vpop.permute.xlu0 %1708
        %1710 = vrot.lane.b32.xlu0 %v1647, 112
        %v1711 = vpop.permute.xlu0 %1710
        %1712 = vrot.lane.b32.xlu0 %v1649, 112
        %v1713 = vpop.permute.xlu0 %1712
        %1714 = vrot.lane.b32.xlu0 %v1651, 112
        %v1715 = vpop.permute.xlu0 %1714
        %v1748 = vsel %vm1595, 0.0, %v1653
        %v1749 = vsel %vm1595, 0.0, %v1661
        %v1750 = vsel %vm1595, 0.0, %v1669
        %v1751 = vsel %vm1595, 0.0, %v1677
        %v1752 = vsel %vm1595, 0.0, %v1685
        %v1753 = vsel %vm1595, 0.0, %v1693
        %v1754 = vsel %vm1595, 0.0, %v1701
        %v1755 = vsel %vm1595, 0.0, %v1709
        %v1756 = vadd.f32 %v1405, %v1748
        %v1757 = vadd.f32 %v1410, %v1655
        %v1758 = vadd.f32 %v1415, %v1657
        %v1759 = vadd.f32 %v1420, %v1659
        %v1760 = vadd.f32 %v1425, %v1749
        %v1761 = vadd.f32 %v1430, %v1663
        %v1762 = vadd.f32 %v1435, %v1665
        %v1763 = vadd.f32 %v1440, %v1667
        %v1764 = vadd.f32 %v1445, %v1750
        %v1765 = vadd.f32 %v1450, %v1671
        %v1766 = vadd.f32 %v1455, %v1673
        %v1767 = vadd.f32 %v1460, %v1675
        %v1768 = vadd.f32 %v1465, %v1751
        %v1769 = vadd.f32 %v1470, %v1679
        %v1770 = vadd.f32 %v1475, %v1681
        %v1771 = vadd.f32 %v1480, %v1683
        %v1772 = vadd.f32 %v1485, %v1752
        %v1773 = vadd.f32 %v1490, %v1687
        %v1774 = vadd.f32 %v1495, %v1689
        %v1775 = vadd.f32 %v1500, %v1691
        %v1776 = vadd.f32 %v1505, %v1753
        %v1777 = vadd.f32 %v1510, %v1695
        %v1778 = vadd.f32 %v1515, %v1697
        %v1779 = vadd.f32 %v1520, %v1699
        %v1780 = vadd.f32 %v1525, %v1754
        %v1781 = vadd.f32 %v1530, %v1703
        %v1782 = vadd.f32 %v1535, %v1705
        %v1783 = vadd.f32 %v1540, %v1707
        %v1784 = vadd.f32 %v1545, %v1755
        %v1785 = vadd.f32 %v1550, %v1711
        %v1786 = vadd.f32 %v1555, %v1713
        %v1787 = vadd.f32 %v1560, %v1715
        %v1788 = vld [vmem:[%s4] sm:$0x1]
        %v1790 = vlaneseq
        %v1791 = vshrl.u32 %v1790, 7
        %v1792 = vsub.s32 0, %v1791
        %v1793 = vrot.slane %v1788, %v1792
        %v1795 = vadd.f32 %v1756, %v1793
        %v1796 = vadd.f32 %v1757, %v1793
        %v1797 = vadd.f32 %v1758, %v1793
        %v1798 = vadd.f32 %v1759, %v1793
        %v1799 = vadd.f32 %v1760, %v1793
        %v1800 = vadd.f32 %v1761, %v1793
        %v1801 = vadd.f32 %v1762, %v1793
        %v1802 = vadd.f32 %v1763, %v1793
        %v1803 = vadd.f32 %v1764, %v1793
        %v1804 = vadd.f32 %v1765, %v1793
        %v1805 = vadd.f32 %v1766, %v1793
        %v1806 = vadd.f32 %v1767, %v1793
        %v1807 = vadd.f32 %v1768, %v1793
        %v1808 = vadd.f32 %v1769, %v1793
        %v1809 = vadd.f32 %v1770, %v1793
        %v1810 = vadd.f32 %v1771, %v1793
        %v1811 = vadd.f32 %v1772, %v1793
        %v1812 = vadd.f32 %v1773, %v1793
        %v1813 = vadd.f32 %v1774, %v1793
        %v1814 = vadd.f32 %v1775, %v1793
        %v1815 = vadd.f32 %v1776, %v1793
        %v1816 = vadd.f32 %v1777, %v1793
        %v1817 = vadd.f32 %v1778, %v1793
        %v1818 = vadd.f32 %v1779, %v1793
        %v1819 = vadd.f32 %v1780, %v1793
        %v1820 = vadd.f32 %v1781, %v1793
        %v1821 = vadd.f32 %v1782, %v1793
        %v1822 = vadd.f32 %v1783, %v1793
        %v1823 = vadd.f32 %v1784, %v1793
        %v1824 = vadd.f32 %v1785, %v1793
        %v1825 = vadd.f32 %v1786, %v1793
        %v1826 = vadd.f32 %v1787, %v1793
        %v1827 = vmax.f32 %v1795, 0.0
        %v1828 = vmax.f32 %v1796, 0.0
        %v1829 = vmax.f32 %v1797, 0.0
        %v1830 = vmax.f32 %v1798, 0.0
        %v1831 = vmax.f32 %v1799, 0.0
        %v1832 = vmax.f32 %v1800, 0.0
        %v1833 = vmax.f32 %v1801, 0.0
        %v1834 = vmax.f32 %v1802, 0.0
        %v1835 = vmax.f32 %v1803, 0.0
        %v1836 = vmax.f32 %v1804, 0.0
        %v1837 = vmax.f32 %v1805, 0.0
        %v1838 = vmax.f32 %v1806, 0.0
        %v1839 = vmax.f32 %v1807, 0.0
        %v1840 = vmax.f32 %v1808, 0.0
        %v1841 = vmax.f32 %v1809, 0.0
        %v1842 = vmax.f32 %v1810, 0.0
        %v1843 = vmax.f32 %v1811, 0.0
        %v1844 = vmax.f32 %v1812, 0.0
        %v1845 = vmax.f32 %v1813, 0.0
        %v1846 = vmax.f32 %v1814, 0.0
        %v1847 = vmax.f32 %v1815, 0.0
        %v1848 = vmax.f32 %v1816, 0.0
        %v1849 = vmax.f32 %v1817, 0.0
        %v1850 = vmax.f32 %v1818, 0.0
        %v1851 = vmax.f32 %v1819, 0.0
        %v1852 = vmax.f32 %v1820, 0.0
        %v1853 = vmax.f32 %v1821, 0.0
        %v1854 = vmax.f32 %v1822, 0.0
        %v1855 = vmax.f32 %v1823, 0.0
        %v1856 = vmax.f32 %v1824, 0.0
        %v1857 = vmax.f32 %v1825, 0.0
        %v1858 = vmax.f32 %v1826, 0.0
        %s1859 = scalar_lea.vmem %s3, 16
        %v1860 = vld [vmem:[%s1859] sm:$0xff]
        %v1861 = vld [vmem:[%s1859 + $0x8] sm:$0xff]
        %v1863 = vsel %vm553, %v1827, 0
        %v1866 = vsel %vm553, %v1828, 0
        %v1869 = vsel %vm553, %v1829, 0
        %v1872 = vsel %vm553, %v1830, 0
        %v1875 = vsel %vm553, %v1831, 0
        %v1878 = vsel %vm553, %v1832, 0
        %v1881 = vsel %vm553, %v1833, 0
        %v1884 = vsel %vm553, %v1834, 0
        %v1887 = vsel %vm553, %v1835, 0
        %v1890 = vsel %vm553, %v1836, 0
        %v1893 = vsel %vm553, %v1837, 0
        %v1896 = vsel %vm553, %v1838, 0
        %v1899 = vsel %vm553, %v1839, 0
        %v1902 = vsel %vm553, %v1840, 0
        %v1905 = vsel %vm553, %v1841, 0
        %v1908 = vsel %vm553, %v1842, 0
        %v1911 = vsel %vm553, %v1843, 0
        %v1914 = vsel %vm553, %v1844, 0
        %v1917 = vsel %vm553, %v1845, 0
        %v1920 = vsel %vm553, %v1846, 0
        %v1923 = vsel %vm553, %v1847, 0
        %v1926 = vsel %vm553, %v1848, 0
        %v1929 = vsel %vm553, %v1849, 0
        %v1932 = vsel %vm553, %v1850, 0
        %v1935 = vsel %vm553, %v1851, 0
        %v1938 = vsel %vm553, %v1852, 0
        %v1941 = vsel %vm553, %v1853, 0
        %v1944 = vsel %vm553, %v1854, 0
        %v1947 = vsel %vm553, %v1855, 0
        %v1950 = vsel %vm553, %v1856, 0
        %v1953 = vsel %vm553, %v1857, 0
        %v1956 = vsel %vm553, %v1858, 0
        %1958 = vmatprep.subr.mxu0 0.0
        %1959 = vmatpush1.msra.mxu0 %v1860
        %1960 = vmatprep.subr.mxu0 0.0
        %1961 = vmatpush1.msra.mxu0 %v1861
        %1962 = vmatprep.subr.mxu0 0.0
        %1963 = vmatpush1.msra.mxu0 0.0
        %1964 = vmatprep.subr.mxu0 0.0
        %1965 = vmatpush1.msra.mxu0 0.0
        %1966 = vmatprep.subr.mxu0 0.0
        %1967 = vmatpush1.msra.mxu0 0.0
        %1968 = vmatprep.subr.mxu0 0.0
        %1969 = vmatpush1.msra.mxu0 0.0
        %1970 = vmatprep.subr.mxu0 0.0
        %1971 = vmatpush1.msra.mxu0 0.0
        %1972 = vmatprep.subr.mxu0 0.0
        %1973 = vmatpush1.msra.mxu0 0.0
        %1974 = vmatprep.subr.mxu0 0.0
        %1975 = vmatpush1.msra.mxu0 0.0
        %1976 = vmatprep.subr.mxu0 0.0
        %1977 = vmatpush1.msra.mxu0 0.0
        %1978 = vmatprep.subr.mxu0 0.0
        %1979 = vmatpush1.msra.mxu0 0.0
        %1980 = vmatprep.subr.mxu0 0.0
        %1981 = vmatpush1.msra.mxu0 0.0
        %1982 = vmatprep.subr.mxu0 0.0
        %1983 = vmatpush1.msra.mxu0 0.0
        %1984 = vmatprep.subr.mxu0 0.0
        %1985 = vmatpush1.msra.mxu0 0.0
        %1986 = vmatprep.subr.mxu0 0.0
        %1987 = vmatpush1.msra.mxu0 0.0
        %1988 = vmatprep.subr.mxu0 0.0
        %1989 = vmatpush1.msra.mxu0 0.0
        %1990 = vmatprep.subr.mxu0 0.0
        %1991 = vmatpush1.msra.mxu0 0.0
        %1992 = vmatprep.subr.mxu0 0.0
        %1993 = vmatpush1.msra.mxu0 0.0
        %1994 = vmatprep.subr.mxu0 0.0
        %1995 = vmatpush1.msra.mxu0 0.0
        %1996 = vmatprep.subr.mxu0 0.0
        %1997 = vmatpush1.msra.mxu0 0.0
        %1998 = vmatprep.subr.mxu0 0.0
        %1999 = vmatpush1.msra.mxu0 0.0
        %2000 = vmatprep.subr.mxu0 0.0
        %2001 = vmatpush1.msra.mxu0 0.0
        %2002 = vmatprep.subr.mxu0 0.0
        %2003 = vmatpush1.msra.mxu0 0.0
        %2004 = vmatprep.subr.mxu0 0.0
        %2005 = vmatpush1.msra.mxu0 0.0
        %2006 = vmatprep.subr.mxu0 0.0
        %2007 = vmatpush1.msra.mxu0 0.0
        %2008 = vmatprep.subr.mxu0 0.0
        %2009 = vmatpush1.msra.mxu0 0.0
        %2010 = vmatprep.subr.mxu0 0.0
        %2011 = vmatpush1.msra.mxu0 0.0
        %2012 = vmatprep.subr.mxu0 0.0
        %2013 = vmatpush1.msra.mxu0 0.0
        %2014 = vmatprep.subr.mxu0 0.0
        %2015 = vmatpush1.msra.mxu0 0.0
        %2016 = vmatprep.subr.mxu0 0.0
        %2017 = vmatpush1.msra.mxu0 0.0
        %2018 = vmatprep.subr.mxu0 0.0
        %2019 = vmatpush1.msra.mxu0 0.0
        %2020 = vmatprep.subr.mxu0 0.0
        %2021 = vmatpush1.msra.mxu0 0.0
        %2022 = vmatprep.mubr.f32.mxu0 0.0
        %2023 = vmatmul.mubr.f32.gmra.mrb[0].mxu0 %v1863
        %v2024 = vpop.f32.mrb[0].mxu0
        %v2025 = vadd.f32 0.0, %v2024
        %v2026 = vpop.f32.mrb[0].mxu0
        %2027 = vmatprep.mubr.f32.mxu0 0.0
        %2028 = vmatmul.mubr.f32.gmra.mrb[0].mxu0 %v1866
        %v2029 = vpop.f32.mrb[0].mxu0
        %v2030 = vadd.f32 0.0, %v2029
        %v2031 = vpop.f32.mrb[0].mxu0
        %2032 = vmatprep.mubr.f32.mxu0 0.0
        %2033 = vmatmul.mubr.f32.gmra.mrb[0].mxu0 %v1869
        %v2034 = vpop.f32.mrb[0].mxu0
        %v2035 = vadd.f32 0.0, %v2034
        %v2036 = vpop.f32.mrb[0].mxu0
        %2037 = vmatprep.mubr.f32.mxu0 0.0
        %2038 = vmatmul.mubr.f32.gmra.mrb[0].mxu0 %v1872
        %v2039 = vpop.f32.mrb[0].mxu0
        %v2040 = vadd.f32 0.0, %v2039
        %v2041 = vpop.f32.mrb[0].mxu0
        %2042 = vmatprep.mubr.f32.mxu0 0.0
        %2043 = vmatmul.mubr.f32.gmra.mrb[0].mxu0 %v1875
        %v2044 = vpop.f32.mrb[0].mxu0
        %v2045 = vadd.f32 0.0, %v2044
        %v2046 = vpop.f32.mrb[0].mxu0
        %2047 = vmatprep.mubr.f32.mxu0 0.0
        %2048 = vmatmul.mubr.f32.gmra.mrb[0].mxu0 %v1878
        %v2049 = vpop.f32.mrb[0].mxu0
        %v2050 = vadd.f32 0.0, %v2049
        %v2051 = vpop.f32.mrb[0].mxu0
        %2052 = vmatprep.mubr.f32.mxu0 0.0
        %2053 = vmatmul.mubr.f32.gmra.mrb[0].mxu0 %v1881
        %v2054 = vpop.f32.mrb[0].mxu0
        %v2055 = vadd.f32 0.0, %v2054
        %v2056 = vpop.f32.mrb[0].mxu0
        %2057 = vmatprep.mubr.f32.mxu0 0.0
        %2058 = vmatmul.mubr.f32.gmra.mrb[0].mxu0 %v1884
        %v2059 = vpop.f32.mrb[0].mxu0
        %v2060 = vadd.f32 0.0, %v2059
        %v2061 = vpop.f32.mrb[0].mxu0
        %2062 = vmatprep.mubr.f32.mxu0 0.0
        %2063 = vmatmul.mubr.f32.gmra.mrb[0].mxu0 %v1887
        %v2064 = vpop.f32.mrb[0].mxu0
        %v2065 = vadd.f32 0.0, %v2064
        %v2066 = vpop.f32.mrb[0].mxu0
        %2067 = vmatprep.mubr.f32.mxu0 0.0
        %2068 = vmatmul.mubr.f32.gmra.mrb[0].mxu0 %v1890
        %v2069 = vpop.f32.mrb[0].mxu0
        %v2070 = vadd.f32 0.0, %v2069
        %v2071 = vpop.f32.mrb[0].mxu0
        %2072 = vmatprep.mubr.f32.mxu0 0.0
        %2073 = vmatmul.mubr.f32.gmra.mrb[0].mxu0 %v1893
        %v2074 = vpop.f32.mrb[0].mxu0
        %v2075 = vadd.f32 0.0, %v2074
        %v2076 = vpop.f32.mrb[0].mxu0
        %2077 = vmatprep.mubr.f32.mxu0 0.0
        %2078 = vmatmul.mubr.f32.gmra.mrb[0].mxu0 %v1896
        %v2079 = vpop.f32.mrb[0].mxu0
        %v2080 = vadd.f32 0.0, %v2079
        %v2081 = vpop.f32.mrb[0].mxu0
        %2082 = vmatprep.mubr.f32.mxu0 0.0
        %2083 = vmatmul.mubr.f32.gmra.mrb[0].mxu0 %v1899
        %v2084 = vpop.f32.mrb[0].mxu0
        %v2085 = vadd.f32 0.0, %v2084
        %v2086 = vpop.f32.mrb[0].mxu0
        %2087 = vmatprep.mubr.f32.mxu0 0.0
        %2088 = vmatmul.mubr.f32.gmra.mrb[0].mxu0 %v1902
        %v2089 = vpop.f32.mrb[0].mxu0
        %v2090 = vadd.f32 0.0, %v2089
        %v2091 = vpop.f32.mrb[0].mxu0
        %2092 = vmatprep.mubr.f32.mxu0 0.0
        %2093 = vmatmul.mubr.f32.gmra.mrb[0].mxu0 %v1905
        %v2094 = vpop.f32.mrb[0].mxu0
        %v2095 = vadd.f32 0.0, %v2094
        %v2096 = vpop.f32.mrb[0].mxu0
        %2097 = vmatprep.mubr.f32.mxu0 0.0
        %2098 = vmatmul.mubr.f32.gmra.mrb[0].mxu0 %v1908
        %v2099 = vpop.f32.mrb[0].mxu0
        %v2100 = vadd.f32 0.0, %v2099
        %v2101 = vpop.f32.mrb[0].mxu0
        %2102 = vmatprep.mubr.f32.mxu0 0.0
        %2103 = vmatmul.mubr.f32.gmra.mrb[0].mxu0 %v1911
        %v2104 = vpop.f32.mrb[0].mxu0
        %v2105 = vadd.f32 0.0, %v2104
        %v2106 = vpop.f32.mrb[0].mxu0
        %2107 = vmatprep.mubr.f32.mxu0 0.0
        %2108 = vmatmul.mubr.f32.gmra.mrb[0].mxu0 %v1914
        %v2109 = vpop.f32.mrb[0].mxu0
        %v2110 = vadd.f32 0.0, %v2109
        %v2111 = vpop.f32.mrb[0].mxu0
        %2112 = vmatprep.mubr.f32.mxu0 0.0
        %2113 = vmatmul.mubr.f32.gmra.mrb[0].mxu0 %v1917
        %v2114 = vpop.f32.mrb[0].mxu0
        %v2115 = vadd.f32 0.0, %v2114
        %v2116 = vpop.f32.mrb[0].mxu0
        %2117 = vmatprep.mubr.f32.mxu0 0.0
        %2118 = vmatmul.mubr.f32.gmra.mrb[0].mxu0 %v1920
        %v2119 = vpop.f32.mrb[0].mxu0
        %v2120 = vadd.f32 0.0, %v2119
        %v2121 = vpop.f32.mrb[0].mxu0
        %2122 = vmatprep.mubr.f32.mxu0 0.0
        %2123 = vmatmul.mubr.f32.gmra.mrb[0].mxu0 %v1923
        %v2124 = vpop.f32.mrb[0].mxu0
        %v2125 = vadd.f32 0.0, %v2124
        %v2126 = vpop.f32.mrb[0].mxu0
        %2127 = vmatprep.mubr.f32.mxu0 0.0
        %2128 = vmatmul.mubr.f32.gmra.mrb[0].mxu0 %v1926
        %v2129 = vpop.f32.mrb[0].mxu0
        %v2130 = vadd.f32 0.0, %v2129
        %v2131 = vpop.f32.mrb[0].mxu0
        %2132 = vmatprep.mubr.f32.mxu0 0.0
        %2133 = vmatmul.mubr.f32.gmra.mrb[0].mxu0 %v1929
        %v2134 = vpop.f32.mrb[0].mxu0
        %v2135 = vadd.f32 0.0, %v2134
        %v2136 = vpop.f32.mrb[0].mxu0
        %2137 = vmatprep.mubr.f32.mxu0 0.0
        %2138 = vmatmul.mubr.f32.gmra.mrb[0].mxu0 %v1932
        %v2139 = vpop.f32.mrb[0].mxu0
        %v2140 = vadd.f32 0.0, %v2139
        %v2141 = vpop.f32.mrb[0].mxu0
        %2142 = vmatprep.mubr.f32.mxu0 0.0
        %2143 = vmatmul.mubr.f32.gmra.mrb[0].mxu0 %v1935
        %v2144 = vpop.f32.mrb[0].mxu0
        %v2145 = vadd.f32 0.0, %v2144
        %v2146 = vpop.f32.mrb[0].mxu0
        %2147 = vmatprep.mubr.f32.mxu0 0.0
        %2148 = vmatmul.mubr.f32.gmra.mrb[0].mxu0 %v1938
        %v2149 = vpop.f32.mrb[0].mxu0
        %v2150 = vadd.f32 0.0, %v2149
        %v2151 = vpop.f32.mrb[0].mxu0
        %2152 = vmatprep.mubr.f32.mxu0 0.0
        %2153 = vmatmul.mubr.f32.gmra.mrb[0].mxu0 %v1941
        %v2154 = vpop.f32.mrb[0].mxu0
        %v2155 = vadd.f32 0.0, %v2154
        %v2156 = vpop.f32.mrb[0].mxu0
        %2157 = vmatprep.mubr.f32.mxu0 0.0
        %2158 = vmatmul.mubr.f32.gmra.mrb[0].mxu0 %v1944
        %v2159 = vpop.f32.mrb[0].mxu0
        %v2160 = vadd.f32 0.0, %v2159
        %v2161 = vpop.f32.mrb[0].mxu0
        %2162 = vmatprep.mubr.f32.mxu0 0.0
        %2163 = vmatmul.mubr.f32.gmra.mrb[0].mxu0 %v1947
        %v2164 = vpop.f32.mrb[0].mxu0
        %v2165 = vadd.f32 0.0, %v2164
        %v2166 = vpop.f32.mrb[0].mxu0
        %2167 = vmatprep.mubr.f32.mxu0 0.0
        %2168 = vmatmul.mubr.f32.gmra.mrb[0].mxu0 %v1950
        %v2169 = vpop.f32.mrb[0].mxu0
        %v2170 = vadd.f32 0.0, %v2169
        %v2171 = vpop.f32.mrb[0].mxu0
        %2172 = vmatprep.mubr.f32.mxu0 0.0
        %2173 = vmatmul.mubr.f32.gmra.mrb[0].mxu0 %v1953
        %v2174 = vpop.f32.mrb[0].mxu0
        %v2175 = vadd.f32 0.0, %v2174
        %v2176 = vpop.f32.mrb[0].mxu0
        %2177 = vmatprep.mubr.f32.mxu0 0.0
        %2178 = vmatmul.mubr.f32.gmra.mrb[0].mxu0 %v1956
        %v2179 = vpop.f32.mrb[0].mxu0
        %v2180 = vadd.f32 0.0, %v2179
        %v2181 = vpop.f32.mrb[0].mxu0
        %2182 = vdwg.mxu0
        %v2215 = vrot.slane %v2025, 7
        %v2216 = vrot.slane %v2030, 7
        %v2217 = vsel %vm1595, %v2215, %v2216
        %v2218 = vrot.slane %v2035, 7
        %v2219 = vsel %vm1595, %v2216, %v2218
        %v2220 = vrot.slane %v2040, 7
        %v2221 = vsel %vm1595, %v2218, %v2220
        %v2222 = vrot.slane %v2045, 7
        %v2223 = vrot.slane %v2050, 7
        %v2224 = vsel %vm1595, %v2222, %v2223
        %v2225 = vrot.slane %v2055, 7
        %v2226 = vsel %vm1595, %v2223, %v2225
        %v2227 = vrot.slane %v2060, 7
        %v2228 = vsel %vm1595, %v2225, %v2227
        %v2229 = vrot.slane %v2065, 7
        %v2230 = vrot.slane %v2070, 7
        %v2231 = vsel %vm1595, %v2229, %v2230
        %v2232 = vrot.slane %v2075, 7
        %v2233 = vsel %vm1595, %v2230, %v2232
        %v2234 = vrot.slane %v2080, 7
        %v2235 = vsel %vm1595, %v2232, %v2234
        %v2236 = vrot.slane %v2085, 7
        %v2237 = vrot.slane %v2090, 7
        %v2238 = vsel %vm1595, %v2236, %v2237
        %v2239 = vrot.slane %v2095, 7
        %v2240 = vsel %vm1595, %v2237, %v2239
        %v2241 = vrot.slane %v2100, 7
        %v2242 = vsel %vm1595, %v2239, %v2241
        %v2243 = vrot.slane %v2105, 7
        %v2244 = vrot.slane %v2110, 7
        %v2245 = vsel %vm1595, %v2243, %v2244
        %v2246 = vrot.slane %v2115, 7
        %v2247 = vsel %vm1595, %v2244, %v2246
        %v2248 = vrot.slane %v2120, 7
        %v2249 = vsel %vm1595, %v2246, %v2248
        %v2250 = vrot.slane %v2125, 7
        %v2251 = vrot.slane %v2130, 7
        %v2252 = vsel %vm1595, %v2250, %v2251
        %v2253 = vrot.slane %v2135, 7
        %v2254 = vsel %vm1595, %v2251, %v2253
        %v2255 = vrot.slane %v2140, 7
        %v2256 = vsel %vm1595, %v2253, %v2255
        %v2257 = vrot.slane %v2145, 7
        %v2258 = vrot.slane %v2150, 7
        %v2259 = vsel %vm1595, %v2257, %v2258
        %v2260 = vrot.slane %v2155, 7
        %v2261 = vsel %vm1595, %v2258, %v2260
        %v2262 = vrot.slane %v2160, 7
        %v2263 = vsel %vm1595, %v2260, %v2262
        %v2264 = vrot.slane %v2165, 7
        %v2265 = vrot.slane %v2170, 7
        %v2266 = vsel %vm1595, %v2264, %v2265
        %v2267 = vrot.slane %v2175, 7
        %v2268 = vsel %vm1595, %v2265, %v2267
        %v2269 = vrot.slane %v2180, 7
        %v2270 = vsel %vm1595, %v2267, %v2269
        %2271 = vrot.lane.b32.xlu0 %v2215, 112
        %v2272 = vpop.permute.xlu0 %2271
        %2273 = vrot.lane.b32.xlu0 %v2217, 112
        %v2274 = vpop.permute.xlu0 %2273
        %2275 = vrot.lane.b32.xlu0 %v2219, 112
        %v2276 = vpop.permute.xlu0 %2275
        %2277 = vrot.lane.b32.xlu0 %v2221, 112
        %v2278 = vpop.permute.xlu0 %2277
        %2279 = vrot.lane.b32.xlu0 %v2222, 112
        %v2280 = vpop.permute.xlu0 %2279
        %2281 = vrot.lane.b32.xlu0 %v2224, 112
        %v2282 = vpop.permute.xlu0 %2281
        %2283 = vrot.lane.b32.xlu0 %v2226, 112
        %v2284 = vpop.permute.xlu0 %2283
        %2285 = vrot.lane.b32.xlu0 %v2228, 112
        %v2286 = vpop.permute.xlu0 %2285
        %2287 = vrot.lane.b32.xlu0 %v2229, 112
        %v2288 = vpop.permute.xlu0 %2287
        %2289 = vrot.lane.b32.xlu0 %v2231, 112
        %v2290 = vpop.permute.xlu0 %2289
        %2291 = vrot.lane.b32.xlu0 %v2233, 112
        %v2292 = vpop.permute.xlu0 %2291
        %2293 = vrot.lane.b32.xlu0 %v2235, 112
        %v2294 = vpop.permute.xlu0 %2293
        %2295 = vrot.lane.b32.xlu0 %v2236, 112
        %v2296 = vpop.permute.xlu0 %2295
        %2297 = vrot.lane.b32.xlu0 %v2238, 112
        %v2298 = vpop.permute.xlu0 %2297
        %2299 = vrot.lane.b32.xlu0 %v2240, 112
        %v2300 = vpop.permute.xlu0 %2299
        %2301 = vrot.lane.b32.xlu0 %v2242, 112
        %v2302 = vpop.permute.xlu0 %2301
        %2303 = vrot.lane.b32.xlu0 %v2243, 112
        %v2304 = vpop.permute.xlu0 %2303
        %2305 = vrot.lane.b32.xlu0 %v2245, 112
        %v2306 = vpop.permute.xlu0 %2305
        %2307 = vrot.lane.b32.xlu0 %v2247, 112
        %v2308 = vpop.permute.xlu0 %2307
        %2309 = vrot.lane.b32.xlu0 %v2249, 112
        %v2310 = vpop.permute.xlu0 %2309
        %2311 = vrot.lane.b32.xlu0 %v2250, 112
        %v2312 = vpop.permute.xlu0 %2311
        %2313 = vrot.lane.b32.xlu0 %v2252, 112
        %v2314 = vpop.permute.xlu0 %2313
        %2315 = vrot.lane.b32.xlu0 %v2254, 112
        %v2316 = vpop.permute.xlu0 %2315
        %2317 = vrot.lane.b32.xlu0 %v2256, 112
        %v2318 = vpop.permute.xlu0 %2317
        %2319 = vrot.lane.b32.xlu0 %v2257, 112
        %v2320 = vpop.permute.xlu0 %2319
        %2321 = vrot.lane.b32.xlu0 %v2259, 112
        %v2322 = vpop.permute.xlu0 %2321
        %2323 = vrot.lane.b32.xlu0 %v2261, 112
        %v2324 = vpop.permute.xlu0 %2323
        %2325 = vrot.lane.b32.xlu0 %v2263, 112
        %v2326 = vpop.permute.xlu0 %2325
        %2327 = vrot.lane.b32.xlu0 %v2264, 112
        %v2328 = vpop.permute.xlu0 %2327
        %2329 = vrot.lane.b32.xlu0 %v2266, 112
        %v2330 = vpop.permute.xlu0 %2329
        %2331 = vrot.lane.b32.xlu0 %v2268, 112
        %v2332 = vpop.permute.xlu0 %2331
        %2333 = vrot.lane.b32.xlu0 %v2270, 112
        %v2334 = vpop.permute.xlu0 %2333
        %v2367 = vsel %vm1595, 0.0, %v2272
        %v2368 = vsel %vm1595, 0.0, %v2280
        %v2369 = vsel %vm1595, 0.0, %v2288
        %v2370 = vsel %vm1595, 0.0, %v2296
        %v2371 = vsel %vm1595, 0.0, %v2304
        %v2372 = vsel %vm1595, 0.0, %v2312
        %v2373 = vsel %vm1595, 0.0, %v2320
        %v2374 = vsel %vm1595, 0.0, %v2328
        %v2375 = vadd.f32 %v2025, %v2367
        %v2376 = vadd.f32 %v2030, %v2274
        %v2377 = vadd.f32 %v2035, %v2276
        %v2378 = vadd.f32 %v2040, %v2278
        %v2379 = vadd.f32 %v2045, %v2368
        %v2380 = vadd.f32 %v2050, %v2282
        %v2381 = vadd.f32 %v2055, %v2284
        %v2382 = vadd.f32 %v2060, %v2286
        %v2383 = vadd.f32 %v2065, %v2369
        %v2384 = vadd.f32 %v2070, %v2290
        %v2385 = vadd.f32 %v2075, %v2292
        %v2386 = vadd.f32 %v2080, %v2294
        %v2387 = vadd.f32 %v2085, %v2370
        %v2388 = vadd.f32 %v2090, %v2298
        %v2389 = vadd.f32 %v2095, %v2300
        %v2390 = vadd.f32 %v2100, %v2302
        %v2391 = vadd.f32 %v2105, %v2371
        %v2392 = vadd.f32 %v2110, %v2306
        %v2393 = vadd.f32 %v2115, %v2308
        %v2394 = vadd.f32 %v2120, %v2310
        %v2395 = vadd.f32 %v2125, %v2372
        %v2396 = vadd.f32 %v2130, %v2314
        %v2397 = vadd.f32 %v2135, %v2316
        %v2398 = vadd.f32 %v2140, %v2318
        %v2399 = vadd.f32 %v2145, %v2373
        %v2400 = vadd.f32 %v2150, %v2322
        %v2401 = vadd.f32 %v2155, %v2324
        %v2402 = vadd.f32 %v2160, %v2326
        %v2403 = vadd.f32 %v2165, %v2374
        %v2404 = vadd.f32 %v2170, %v2330
        %v2405 = vadd.f32 %v2175, %v2332
        %v2406 = vadd.f32 %v2180, %v2334
        %s2407 = scalar_lea.vmem %s4, 1
        %v2408 = vld [vmem:[%s2407] sm:$0x1]
        %v2410 = vlaneseq
        %v2411 = vshrl.u32 %v2410, 7
        %v2412 = vsub.s32 0, %v2411
        %v2413 = vrot.slane %v2408, %v2412
        %v2415 = vadd.f32 %v2375, %v2413
        %v2416 = vadd.f32 %v2376, %v2413
        %v2417 = vadd.f32 %v2377, %v2413
        %v2418 = vadd.f32 %v2378, %v2413
        %v2419 = vadd.f32 %v2379, %v2413
        %v2420 = vadd.f32 %v2380, %v2413
        %v2421 = vadd.f32 %v2381, %v2413
        %v2422 = vadd.f32 %v2382, %v2413
        %v2423 = vadd.f32 %v2383, %v2413
        %v2424 = vadd.f32 %v2384, %v2413
        %v2425 = vadd.f32 %v2385, %v2413
        %v2426 = vadd.f32 %v2386, %v2413
        %v2427 = vadd.f32 %v2387, %v2413
        %v2428 = vadd.f32 %v2388, %v2413
        %v2429 = vadd.f32 %v2389, %v2413
        %v2430 = vadd.f32 %v2390, %v2413
        %v2431 = vadd.f32 %v2391, %v2413
        %v2432 = vadd.f32 %v2392, %v2413
        %v2433 = vadd.f32 %v2393, %v2413
        %v2434 = vadd.f32 %v2394, %v2413
        %v2435 = vadd.f32 %v2395, %v2413
        %v2436 = vadd.f32 %v2396, %v2413
        %v2437 = vadd.f32 %v2397, %v2413
        %v2438 = vadd.f32 %v2398, %v2413
        %v2439 = vadd.f32 %v2399, %v2413
        %v2440 = vadd.f32 %v2400, %v2413
        %v2441 = vadd.f32 %v2401, %v2413
        %v2442 = vadd.f32 %v2402, %v2413
        %v2443 = vadd.f32 %v2403, %v2413
        %v2444 = vadd.f32 %v2404, %v2413
        %v2445 = vadd.f32 %v2405, %v2413
        %v2446 = vadd.f32 %v2406, %v2413
        %v2447 = vmax.f32 %v2415, 0.0
        %v2448 = vmax.f32 %v2416, 0.0
        %v2449 = vmax.f32 %v2417, 0.0
        %v2450 = vmax.f32 %v2418, 0.0
        %v2451 = vmax.f32 %v2419, 0.0
        %v2452 = vmax.f32 %v2420, 0.0
        %v2453 = vmax.f32 %v2421, 0.0
        %v2454 = vmax.f32 %v2422, 0.0
        %v2455 = vmax.f32 %v2423, 0.0
        %v2456 = vmax.f32 %v2424, 0.0
        %v2457 = vmax.f32 %v2425, 0.0
        %v2458 = vmax.f32 %v2426, 0.0
        %v2459 = vmax.f32 %v2427, 0.0
        %v2460 = vmax.f32 %v2428, 0.0
        %v2461 = vmax.f32 %v2429, 0.0
        %v2462 = vmax.f32 %v2430, 0.0
        %v2463 = vmax.f32 %v2431, 0.0
        %v2464 = vmax.f32 %v2432, 0.0
        %v2465 = vmax.f32 %v2433, 0.0
        %v2466 = vmax.f32 %v2434, 0.0
        %v2467 = vmax.f32 %v2435, 0.0
        %v2468 = vmax.f32 %v2436, 0.0
        %v2469 = vmax.f32 %v2437, 0.0
        %v2470 = vmax.f32 %v2438, 0.0
        %v2471 = vmax.f32 %v2439, 0.0
        %v2472 = vmax.f32 %v2440, 0.0
        %v2473 = vmax.f32 %v2441, 0.0
        %v2474 = vmax.f32 %v2442, 0.0
        %v2475 = vmax.f32 %v2443, 0.0
        %v2476 = vmax.f32 %v2444, 0.0
        %v2477 = vmax.f32 %v2445, 0.0
        %v2478 = vmax.f32 %v2446, 0.0
        %v2479 = vxor.u32 %v2447, 2147483648
        %v2480 = vxor.u32 %v2448, 2147483648
        %v2481 = vxor.u32 %v2449, 2147483648
        %v2482 = vxor.u32 %v2450, 2147483648
        %v2483 = vxor.u32 %v2451, 2147483648
        %v2484 = vxor.u32 %v2452, 2147483648
        %v2485 = vxor.u32 %v2453, 2147483648
        %v2486 = vxor.u32 %v2454, 2147483648
        %v2487 = vxor.u32 %v2455, 2147483648
        %v2488 = vxor.u32 %v2456, 2147483648
        %v2489 = vxor.u32 %v2457, 2147483648
        %v2490 = vxor.u32 %v2458, 2147483648
        %v2491 = vxor.u32 %v2459, 2147483648
        %v2492 = vxor.u32 %v2460, 2147483648
        %v2493 = vxor.u32 %v2461, 2147483648
        %v2494 = vxor.u32 %v2462, 2147483648
        %v2495 = vxor.u32 %v2463, 2147483648
        %v2496 = vxor.u32 %v2464, 2147483648
        %v2497 = vxor.u32 %v2465, 2147483648
        %v2498 = vxor.u32 %v2466, 2147483648
        %v2499 = vxor.u32 %v2467, 2147483648
        %v2500 = vxor.u32 %v2468, 2147483648
        %v2501 = vxor.u32 %v2469, 2147483648
        %v2502 = vxor.u32 %v2470, 2147483648
        %v2503 = vxor.u32 %v2471, 2147483648
        %v2504 = vxor.u32 %v2472, 2147483648
        %v2505 = vxor.u32 %v2473, 2147483648
        %v2506 = vxor.u32 %v2474, 2147483648
        %v2507 = vxor.u32 %v2475, 2147483648
        %v2508 = vxor.u32 %v2476, 2147483648
        %v2509 = vxor.u32 %v2477, 2147483648
        %v2510 = vxor.u32 %v2478, 2147483648
        %v2511 = vmul.f32 %v2479, 1.442695
        %v2512 = vpow.pop %v2511
        %v2513 = vmul.f32 %v2480, 1.442695
        %v2514 = vpow.pop %v2513
        %v2515 = vmul.f32 %v2481, 1.442695
        %v2516 = vpow.pop %v2515
        %v2517 = vmul.f32 %v2482, 1.442695
        %v2518 = vpow.pop %v2517
        %v2519 = vmul.f32 %v2483, 1.442695
        %v2520 = vpow.pop %v2519
        %v2521 = vmul.f32 %v2484, 1.442695
        %v2522 = vpow.pop %v2521
        %v2523 = vmul.f32 %v2485, 1.442695
        %v2524 = vpow.pop %v2523
        %v2525 = vmul.f32 %v2486, 1.442695
        %v2526 = vpow.pop %v2525
        %v2527 = vmul.f32 %v2487, 1.442695
        %v2528 = vpow.pop %v2527
        %v2529 = vmul.f32 %v2488, 1.442695
        %v2530 = vpow.pop %v2529
        %v2531 = vmul.f32 %v2489, 1.442695
        %v2532 = vpow.pop %v2531
        %v2533 = vmul.f32 %v2490, 1.442695
        %v2534 = vpow.pop %v2533
        %v2535 = vmul.f32 %v2491, 1.442695
        %v2536 = vpow.pop %v2535
        %v2537 = vmul.f32 %v2492, 1.442695
        %v2538 = vpow.pop %v2537
        %v2539 = vmul.f32 %v2493, 1.442695
        %v2540 = vpow.pop %v2539
        %v2541 = vmul.f32 %v2494, 1.442695
        %v2542 = vpow.pop %v2541
        %v2543 = vmul.f32 %v2495, 1.442695
        %v2544 = vpow.pop %v2543
        %v2545 = vmul.f32 %v2496, 1.442695
        %v2546 = vpow.pop %v2545
        %v2547 = vmul.f32 %v2497, 1.442695
        %v2548 = vpow.pop %v2547
        %v2549 = vmul.f32 %v2498, 1.442695
        %v2550 = vpow.pop %v2549
        %v2551 = vmul.f32 %v2499, 1.442695
        %v2552 = vpow.pop %v2551
        %v2553 = vmul.f32 %v2500, 1.442695
        %v2554 = vpow.pop %v2553
        %v2555 = vmul.f32 %v2501, 1.442695
        %v2556 = vpow.pop %v2555
        %v2557 = vmul.f32 %v2502, 1.442695
        %v2558 = vpow.pop %v2557
        %v2559 = vmul.f32 %v2503, 1.442695
        %v2560 = vpow.pop %v2559
        %v2561 = vmul.f32 %v2504, 1.442695
        %v2562 = vpow.pop %v2561
        %v2563 = vmul.f32 %v2505, 1.442695
        %v2564 = vpow.pop %v2563
        %v2565 = vmul.f32 %v2506, 1.442695
        %v2566 = vpow.pop %v2565
        %v2567 = vmul.f32 %v2507, 1.442695
        %v2568 = vpow.pop %v2567
        %v2569 = vmul.f32 %v2508, 1.442695
        %v2570 = vpow.pop %v2569
        %v2571 = vmul.f32 %v2509, 1.442695
        %v2572 = vpow.pop %v2571
        %v2573 = vmul.f32 %v2510, 1.442695
        %v2574 = vpow.pop %v2573
        %v2575 = vadd.f32 %v2512, 1.0
        %v2576 = vadd.f32 %v2514, 1.0
        %v2577 = vadd.f32 %v2516, 1.0
        %v2578 = vadd.f32 %v2518, 1.0
        %v2579 = vadd.f32 %v2520, 1.0
        %v2580 = vadd.f32 %v2522, 1.0
        %v2581 = vadd.f32 %v2524, 1.0
        %v2582 = vadd.f32 %v2526, 1.0
        %v2583 = vadd.f32 %v2528, 1.0
        %v2584 = vadd.f32 %v2530, 1.0
        %v2585 = vadd.f32 %v2532, 1.0
        %v2586 = vadd.f32 %v2534, 1.0
        %v2587 = vadd.f32 %v2536, 1.0
        %v2588 = vadd.f32 %v2538, 1.0
        %v2589 = vadd.f32 %v2540, 1.0
        %v2590 = vadd.f32 %v2542, 1.0
        %v2591 = vadd.f32 %v2544, 1.0
        %v2592 = vadd.f32 %v2546, 1.0
        %v2593 = vadd.f32 %v2548, 1.0
        %v2594 = vadd.f32 %v2550, 1.0
        %v2595 = vadd.f32 %v2552, 1.0
        %v2596 = vadd.f32 %v2554, 1.0
        %v2597 = vadd.f32 %v2556, 1.0
        %v2598 = vadd.f32 %v2558, 1.0
        %v2599 = vadd.f32 %v2560, 1.0
        %v2600 = vadd.f32 %v2562, 1.0
        %v2601 = vadd.f32 %v2564, 1.0
        %v2602 = vadd.f32 %v2566, 1.0
        %v2603 = vadd.f32 %v2568, 1.0
        %v2604 = vadd.f32 %v2570, 1.0
        %v2605 = vadd.f32 %v2572, 1.0
        %v2606 = vadd.f32 %v2574, 1.0
        %v2607 = vrcp.pop %v2575
        %v2608 = vmul.f32 1.0, %v2607
        %v2609 = vrcp.pop %v2576
        %v2610 = vmul.f32 1.0, %v2609
        %v2611 = vrcp.pop %v2577
        %v2612 = vmul.f32 1.0, %v2611
        %v2613 = vrcp.pop %v2578
        %v2614 = vmul.f32 1.0, %v2613
        %v2615 = vrcp.pop %v2579
        %v2616 = vmul.f32 1.0, %v2615
        %v2617 = vrcp.pop %v2580
        %v2618 = vmul.f32 1.0, %v2617
        %v2619 = vrcp.pop %v2581
        %v2620 = vmul.f32 1.0, %v2619
        %v2621 = vrcp.pop %v2582
        %v2622 = vmul.f32 1.0, %v2621
        %v2623 = vrcp.pop %v2583
        %v2624 = vmul.f32 1.0, %v2623
        %v2625 = vrcp.pop %v2584
        %v2626 = vmul.f32 1.0, %v2625
        %v2627 = vrcp.pop %v2585
        %v2628 = vmul.f32 1.0, %v2627
        %v2629 = vrcp.pop %v2586
        %v2630 = vmul.f32 1.0, %v2629
        %v2631 = vrcp.pop %v2587
        %v2632 = vmul.f32 1.0, %v2631
        %v2633 = vrcp.pop %v2588
        %v2634 = vmul.f32 1.0, %v2633
        %v2635 = vrcp.pop %v2589
        %v2636 = vmul.f32 1.0, %v2635
        %v2637 = vrcp.pop %v2590
        %v2638 = vmul.f32 1.0, %v2637
        %v2639 = vrcp.pop %v2591
        %v2640 = vmul.f32 1.0, %v2639
        %v2641 = vrcp.pop %v2592
        %v2642 = vmul.f32 1.0, %v2641
        %v2643 = vrcp.pop %v2593
        %v2644 = vmul.f32 1.0, %v2643
        %v2645 = vrcp.pop %v2594
        %v2646 = vmul.f32 1.0, %v2645
        %v2647 = vrcp.pop %v2595
        %v2648 = vmul.f32 1.0, %v2647
        %v2649 = vrcp.pop %v2596
        %v2650 = vmul.f32 1.0, %v2649
        %v2651 = vrcp.pop %v2597
        %v2652 = vmul.f32 1.0, %v2651
        %v2653 = vrcp.pop %v2598
        %v2654 = vmul.f32 1.0, %v2653
        %v2655 = vrcp.pop %v2599
        %v2656 = vmul.f32 1.0, %v2655
        %v2657 = vrcp.pop %v2600
        %v2658 = vmul.f32 1.0, %v2657
        %v2659 = vrcp.pop %v2601
        %v2660 = vmul.f32 1.0, %v2659
        %v2661 = vrcp.pop %v2602
        %v2662 = vmul.f32 1.0, %v2661
        %v2663 = vrcp.pop %v2603
        %v2664 = vmul.f32 1.0, %v2663
        %v2665 = vrcp.pop %v2604
        %v2666 = vmul.f32 1.0, %v2665
        %v2667 = vrcp.pop %v2605
        %v2668 = vmul.f32 1.0, %v2667
        %v2669 = vrcp.pop %v2606
        %v2670 = vmul.f32 1.0, %v2669
        %v2671 = vmul.f32 %v717, %v2608
        %v2672 = vmul.f32 %v722, %v2610
        %v2673 = vmul.f32 %v727, %v2612
        %v2674 = vmul.f32 %v732, %v2614
        %v2675 = vmul.f32 %v737, %v2616
        %v2676 = vmul.f32 %v742, %v2618
        %v2677 = vmul.f32 %v747, %v2620
        %v2678 = vmul.f32 %v752, %v2622
        %v2679 = vmul.f32 %v757, %v2624
        %v2680 = vmul.f32 %v762, %v2626
        %v2681 = vmul.f32 %v767, %v2628
        %v2682 = vmul.f32 %v772, %v2630
        %v2683 = vmul.f32 %v777, %v2632
        %v2684 = vmul.f32 %v782, %v2634
        %v2685 = vmul.f32 %v787, %v2636
        %v2686 = vmul.f32 %v792, %v2638
        %v2687 = vmul.f32 %v797, %v2640
        %v2688 = vmul.f32 %v802, %v2642
        %v2689 = vmul.f32 %v807, %v2644
        %v2690 = vmul.f32 %v812, %v2646
        %v2691 = vmul.f32 %v817, %v2648
        %v2692 = vmul.f32 %v822, %v2650
        %v2693 = vmul.f32 %v827, %v2652
        %v2694 = vmul.f32 %v832, %v2654
        %v2695 = vmul.f32 %v837, %v2656
        %v2696 = vmul.f32 %v842, %v2658
        %v2697 = vmul.f32 %v847, %v2660
        %v2698 = vmul.f32 %v852, %v2662
        %v2699 = vmul.f32 %v857, %v2664
        %v2700 = vmul.f32 %v862, %v2666
        %v2701 = vmul.f32 %v867, %v2668
        %v2702 = vmul.f32 %v872, %v2670
        %s2703 = scalar_lea.vmem %s3, 96
        %v2704 = vld [vmem:[%s2703] sm:$0xff]
        %v2705 = vld [vmem:[%s2703 + $0x8] sm:$0xff]
        %v2707 = vsel %vm553, %v1082, 0
        %v2710 = vsel %vm553, %v1087, 0
        %v2713 = vsel %vm553, %v1092, 0
        %v2716 = vsel %vm553, %v1097, 0
        %v2719 = vsel %vm553, %v1102, 0
        %v2722 = vsel %vm553, %v1107, 0
        %v2725 = vsel %vm553, %v1112, 0
        %v2728 = vsel %vm553, %v1117, 0
        %v2731 = vsel %vm553, %v1122, 0
        %v2734 = vsel %vm553, %v1127, 0
        %v2737 = vsel %vm553, %v1132, 0
        %v2740 = vsel %vm553, %v1137, 0
        %v2743 = vsel %vm553, %v1142, 0
        %v2746 = vsel %vm553, %v1147, 0
        %v2749 = vsel %vm553, %v1152, 0
        %v2752 = vsel %vm553, %v1157, 0
        %v2755 = vsel %vm553, %v1162, 0
        %v2758 = vsel %vm553, %v1167, 0
        %v2761 = vsel %vm553, %v1172, 0
        %v2764 = vsel %vm553, %v1177, 0
        %v2767 = vsel %vm553, %v1182, 0
        %v2770 = vsel %vm553, %v1187, 0
        %v2773 = vsel %vm553, %v1192, 0
        %v2776 = vsel %vm553, %v1197, 0
        %v2779 = vsel %vm553, %v1202, 0
        %v2782 = vsel %vm553, %v1207, 0
        %v2785 = vsel %vm553, %v1212, 0
        %v2788 = vsel %vm553, %v1217, 0
        %v2791 = vsel %vm553, %v1222, 0
        %v2794 = vsel %vm553, %v1227, 0
        %v2797 = vsel %vm553, %v1232, 0
        %v2800 = vsel %vm553, %v1237, 0
        %2802 = vmatprep.subr.mxu0 0.0
        %2803 = vmatpush1.msra.mxu0 %v2704
        %2804 = vmatprep.subr.mxu0 0.0
        %2805 = vmatpush1.msra.mxu0 %v2705
        %2806 = vmatprep.subr.mxu0 0.0
        %2807 = vmatpush1.msra.mxu0 0.0
        %2808 = vmatprep.subr.mxu0 0.0
        %2809 = vmatpush1.msra.mxu0 0.0
        %2810 = vmatprep.subr.mxu0 0.0
        %2811 = vmatpush1.msra.mxu0 0.0
        %2812 = vmatprep.subr.mxu0 0.0
        %2813 = vmatpush1.msra.mxu0 0.0
        %2814 = vmatprep.subr.mxu0 0.0
        %2815 = vmatpush1.msra.mxu0 0.0
        %2816 = vmatprep.subr.mxu0 0.0
        %2817 = vmatpush1.msra.mxu0 0.0
        %2818 = vmatprep.subr.mxu0 0.0
        %2819 = vmatpush1.msra.mxu0 0.0
        %2820 = vmatprep.subr.mxu0 0.0
        %2821 = vmatpush1.msra.mxu0 0.0
        %2822 = vmatprep.subr.mxu0 0.0
        %2823 = vmatpush1.msra.mxu0 0.0
        %2824 = vmatprep.subr.mxu0 0.0
        %2825 = vmatpush1.msra.mxu0 0.0
        %2826 = vmatprep.subr.mxu0 0.0
        %2827 = vmatpush1.msra.mxu0 0.0
        %2828 = vmatprep.subr.mxu0 0.0
        %2829 = vmatpush1.msra.mxu0 0.0
        %2830 = vmatprep.subr.mxu0 0.0
        %2831 = vmatpush1.msra.mxu0 0.0
        %2832 = vmatprep.subr.mxu0 0.0
        %2833 = vmatpush1.msra.mxu0 0.0
        %2834 = vmatprep.subr.mxu0 0.0
        %2835 = vmatpush1.msra.mxu0 0.0
        %2836 = vmatprep.subr.mxu0 0.0
        %2837 = vmatpush1.msra.mxu0 0.0
        %2838 = vmatprep.subr.mxu0 0.0
        %2839 = vmatpush1.msra.mxu0 0.0
        %2840 = vmatprep.subr.mxu0 0.0
        %2841 = vmatpush1.msra.mxu0 0.0
        %2842 = vmatprep.subr.mxu0 0.0
        %2843 = vmatpush1.msra.mxu0 0.0
        %2844 = vmatprep.subr.mxu0 0.0
        %2845 = vmatpush1.msra.mxu0 0.0
        %2846 = vmatprep.subr.mxu0 0.0
        %2847 = vmatpush1.msra.mxu0 0.0
        %2848 = vmatprep.subr.mxu0 0.0
        %2849 = vmatpush1.msra.mxu0 0.0
        %2850 = vmatprep.subr.mxu0 0.0
        %2851 = vmatpush1.msra.mxu0 0.0
        %2852 = vmatprep.subr.mxu0 0.0
        %2853 = vmatpush1.msra.mxu0 0.0
        %2854 = vmatprep.subr.mxu0 0.0
        %2855 = vmatpush1.msra.mxu0 0.0
        %2856 = vmatprep.subr.mxu0 0.0
        %2857 = vmatpush1.msra.mxu0 0.0
        %2858 = vmatprep.subr.mxu0 0.0
        %2859 = vmatpush1.msra.mxu0 0.0
        %2860 = vmatprep.subr.mxu0 0.0
        %2861 = vmatpush1.msra.mxu0 0.0
        %2862 = vmatprep.subr.mxu0 0.0
        %2863 = vmatpush1.msra.mxu0 0.0
        %2864 = vmatprep.subr.mxu0 0.0
        %2865 = vmatpush1.msra.mxu0 0.0
        %2866 = vmatprep.mubr.f32.mxu0 0.0
        %2867 = vmatmul.mubr.f32.gmra.mrb[0].mxu0 %v2707
        %v2868 = vpop.f32.mrb[0].mxu0
        %v2869 = vadd.f32 0.0, %v2868
        %v2870 = vpop.f32.mrb[0].mxu0
        %2871 = vmatprep.mubr.f32.mxu0 0.0
        %2872 = vmatmul.mubr.f32.gmra.mrb[0].mxu0 %v2710
        %v2873 = vpop.f32.mrb[0].mxu0
        %v2874 = vadd.f32 0.0, %v2873
        %v2875 = vpop.f32.mrb[0].mxu0
        %2876 = vmatprep.mubr.f32.mxu0 0.0
        %2877 = vmatmul.mubr.f32.gmra.mrb[0].mxu0 %v2713
        %v2878 = vpop.f32.mrb[0].mxu0
        %v2879 = vadd.f32 0.0, %v2878
        %v2880 = vpop.f32.mrb[0].mxu0
        %2881 = vmatprep.mubr.f32.mxu0 0.0
        %2882 = vmatmul.mubr.f32.gmra.mrb[0].mxu0 %v2716
        %v2883 = vpop.f32.mrb[0].mxu0
        %v2884 = vadd.f32 0.0, %v2883
        %v2885 = vpop.f32.mrb[0].mxu0
        %2886 = vmatprep.mubr.f32.mxu0 0.0
        %2887 = vmatmul.mubr.f32.gmra.mrb[0].mxu0 %v2719
        %v2888 = vpop.f32.mrb[0].mxu0
        %v2889 = vadd.f32 0.0, %v2888
        %v2890 = vpop.f32.mrb[0].mxu0
        %2891 = vmatprep.mubr.f32.mxu0 0.0
        %2892 = vmatmul.mubr.f32.gmra.mrb[0].mxu0 %v2722
        %v2893 = vpop.f32.mrb[0].mxu0
        %v2894 = vadd.f32 0.0, %v2893
        %v2895 = vpop.f32.mrb[0].mxu0
        %2896 = vmatprep.mubr.f32.mxu0 0.0
        %2897 = vmatmul.mubr.f32.gmra.mrb[0].mxu0 %v2725
        %v2898 = vpop.f32.mrb[0].mxu0
        %v2899 = vadd.f32 0.0, %v2898
        %v2900 = vpop.f32.mrb[0].mxu0
        %2901 = vmatprep.mubr.f32.mxu0 0.0
        %2902 = vmatmul.mubr.f32.gmra.mrb[0].mxu0 %v2728
        %v2903 = vpop.f32.mrb[0].mxu0
        %v2904 = vadd.f32 0.0, %v2903
        %v2905 = vpop.f32.mrb[0].mxu0
        %2906 = vmatprep.mubr.f32.mxu0 0.0
        %2907 = vmatmul.mubr.f32.gmra.mrb[0].mxu0 %v2731
        %v2908 = vpop.f32.mrb[0].mxu0
        %v2909 = vadd.f32 0.0, %v2908
        %v2910 = vpop.f32.mrb[0].mxu0
        %2911 = vmatprep.mubr.f32.mxu0 0.0
        %2912 = vmatmul.mubr.f32.gmra.mrb[0].mxu0 %v2734
        %v2913 = vpop.f32.mrb[0].mxu0
        %v2914 = vadd.f32 0.0, %v2913
        %v2915 = vpop.f32.mrb[0].mxu0
        %2916 = vmatprep.mubr.f32.mxu0 0.0
        %2917 = vmatmul.mubr.f32.gmra.mrb[0].mxu0 %v2737
        %v2918 = vpop.f32.mrb[0].mxu0
        %v2919 = vadd.f32 0.0, %v2918
        %v2920 = vpop.f32.mrb[0].mxu0
        %2921 = vmatprep.mubr.f32.mxu0 0.0
        %2922 = vmatmul.mubr.f32.gmra.mrb[0].mxu0 %v2740
        %v2923 = vpop.f32.mrb[0].mxu0
        %v2924 = vadd.f32 0.0, %v2923
        %v2925 = vpop.f32.mrb[0].mxu0
        %2926 = vmatprep.mubr.f32.mxu0 0.0
        %2927 = vmatmul.mubr.f32.gmra.mrb[0].mxu0 %v2743
        %v2928 = vpop.f32.mrb[0].mxu0
        %v2929 = vadd.f32 0.0, %v2928
        %v2930 = vpop.f32.mrb[0].mxu0
        %2931 = vmatprep.mubr.f32.mxu0 0.0
        %2932 = vmatmul.mubr.f32.gmra.mrb[0].mxu0 %v2746
        %v2933 = vpop.f32.mrb[0].mxu0
        %v2934 = vadd.f32 0.0, %v2933
        %v2935 = vpop.f32.mrb[0].mxu0
        %2936 = vmatprep.mubr.f32.mxu0 0.0
        %2937 = vmatmul.mubr.f32.gmra.mrb[0].mxu0 %v2749
        %v2938 = vpop.f32.mrb[0].mxu0
        %v2939 = vadd.f32 0.0, %v2938
        %v2940 = vpop.f32.mrb[0].mxu0
        %2941 = vmatprep.mubr.f32.mxu0 0.0
        %2942 = vmatmul.mubr.f32.gmra.mrb[0].mxu0 %v2752
        %v2943 = vpop.f32.mrb[0].mxu0
        %v2944 = vadd.f32 0.0, %v2943
        %v2945 = vpop.f32.mrb[0].mxu0
        %2946 = vmatprep.mubr.f32.mxu0 0.0
        %2947 = vmatmul.mubr.f32.gmra.mrb[0].mxu0 %v2755
        %v2948 = vpop.f32.mrb[0].mxu0
        %v2949 = vadd.f32 0.0, %v2948
        %v2950 = vpop.f32.mrb[0].mxu0
        %2951 = vmatprep.mubr.f32.mxu0 0.0
        %2952 = vmatmul.mubr.f32.gmra.mrb[0].mxu0 %v2758
        %v2953 = vpop.f32.mrb[0].mxu0
        %v2954 = vadd.f32 0.0, %v2953
        %v2955 = vpop.f32.mrb[0].mxu0
        %2956 = vmatprep.mubr.f32.mxu0 0.0
        %2957 = vmatmul.mubr.f32.gmra.mrb[0].mxu0 %v2761
        %v2958 = vpop.f32.mrb[0].mxu0
        %v2959 = vadd.f32 0.0, %v2958
        %v2960 = vpop.f32.mrb[0].mxu0
        %2961 = vmatprep.mubr.f32.mxu0 0.0
        %2962 = vmatmul.mubr.f32.gmra.mrb[0].mxu0 %v2764
        %v2963 = vpop.f32.mrb[0].mxu0
        %v2964 = vadd.f32 0.0, %v2963
        %v2965 = vpop.f32.mrb[0].mxu0
        %2966 = vmatprep.mubr.f32.mxu0 0.0
        %2967 = vmatmul.mubr.f32.gmra.mrb[0].mxu0 %v2767
        %v2968 = vpop.f32.mrb[0].mxu0
        %v2969 = vadd.f32 0.0, %v2968
        %v2970 = vpop.f32.mrb[0].mxu0
        %2971 = vmatprep.mubr.f32.mxu0 0.0
        %2972 = vmatmul.mubr.f32.gmra.mrb[0].mxu0 %v2770
        %v2973 = vpop.f32.mrb[0].mxu0
        %v2974 = vadd.f32 0.0, %v2973
        %v2975 = vpop.f32.mrb[0].mxu0
        %2976 = vmatprep.mubr.f32.mxu0 0.0
        %2977 = vmatmul.mubr.f32.gmra.mrb[0].mxu0 %v2773
        %v2978 = vpop.f32.mrb[0].mxu0
        %v2979 = vadd.f32 0.0, %v2978
        %v2980 = vpop.f32.mrb[0].mxu0
        %2981 = vmatprep.mubr.f32.mxu0 0.0
        %2982 = vmatmul.mubr.f32.gmra.mrb[0].mxu0 %v2776
        %v2983 = vpop.f32.mrb[0].mxu0
        %v2984 = vadd.f32 0.0, %v2983
        %v2985 = vpop.f32.mrb[0].mxu0
        %2986 = vmatprep.mubr.f32.mxu0 0.0
        %2987 = vmatmul.mubr.f32.gmra.mrb[0].mxu0 %v2779
        %v2988 = vpop.f32.mrb[0].mxu0
        %v2989 = vadd.f32 0.0, %v2988
        %v2990 = vpop.f32.mrb[0].mxu0
        %2991 = vmatprep.mubr.f32.mxu0 0.0
        %2992 = vmatmul.mubr.f32.gmra.mrb[0].mxu0 %v2782
        %v2993 = vpop.f32.mrb[0].mxu0
        %v2994 = vadd.f32 0.0, %v2993
        %v2995 = vpop.f32.mrb[0].mxu0
        %2996 = vmatprep.mubr.f32.mxu0 0.0
        %2997 = vmatmul.mubr.f32.gmra.mrb[0].mxu0 %v2785
        %v2998 = vpop.f32.mrb[0].mxu0
        %v2999 = vadd.f32 0.0, %v2998
        %v3000 = vpop.f32.mrb[0].mxu0
        %3001 = vmatprep.mubr.f32.mxu0 0.0
        %3002 = vmatmul.mubr.f32.gmra.mrb[0].mxu0 %v2788
        %v3003 = vpop.f32.mrb[0].mxu0
        %v3004 = vadd.f32 0.0, %v3003
        %v3005 = vpop.f32.mrb[0].mxu0
        %3006 = vmatprep.mubr.f32.mxu0 0.0
        %3007 = vmatmul.mubr.f32.gmra.mrb[0].mxu0 %v2791
        %v3008 = vpop.f32.mrb[0].mxu0
        %v3009 = vadd.f32 0.0, %v3008
        %v3010 = vpop.f32.mrb[0].mxu0
        %3011 = vmatprep.mubr.f32.mxu0 0.0
        %3012 = vmatmul.mubr.f32.gmra.mrb[0].mxu0 %v2794
        %v3013 = vpop.f32.mrb[0].mxu0
        %v3014 = vadd.f32 0.0, %v3013
        %v3015 = vpop.f32.mrb[0].mxu0
        %3016 = vmatprep.mubr.f32.mxu0 0.0
        %3017 = vmatmul.mubr.f32.gmra.mrb[0].mxu0 %v2797
        %v3018 = vpop.f32.mrb[0].mxu0
        %v3019 = vadd.f32 0.0, %v3018
        %v3020 = vpop.f32.mrb[0].mxu0
        %3021 = vmatprep.mubr.f32.mxu0 0.0
        %3022 = vmatmul.mubr.f32.gmra.mrb[0].mxu0 %v2800
        %v3023 = vpop.f32.mrb[0].mxu0
        %v3024 = vadd.f32 0.0, %v3023
        %v3025 = vpop.f32.mrb[0].mxu0
        %3026 = vdwg.mxu0
        %v3059 = vrot.slane %v2869, 7
        %v3060 = vrot.slane %v2874, 7
        %v3061 = vsel %vm1595, %v3059, %v3060
        %v3062 = vrot.slane %v2879, 7
        %v3063 = vsel %vm1595, %v3060, %v3062
        %v3064 = vrot.slane %v2884, 7
        %v3065 = vsel %vm1595, %v3062, %v3064
        %v3066 = vrot.slane %v2889, 7
        %v3067 = vrot.slane %v2894, 7
        %v3068 = vsel %vm1595, %v3066, %v3067
        %v3069 = vrot.slane %v2899, 7
        %v3070 = vsel %vm1595, %v3067, %v3069
        %v3071 = vrot.slane %v2904, 7
        %v3072 = vsel %vm1595, %v3069, %v3071
        %v3073 = vrot.slane %v2909, 7
        %v3074 = vrot.slane %v2914, 7
        %v3075 = vsel %vm1595, %v3073, %v3074
        %v3076 = vrot.slane %v2919, 7
        %v3077 = vsel %vm1595, %v3074, %v3076
        %v3078 = vrot.slane %v2924, 7
        %v3079 = vsel %vm1595, %v3076, %v3078
        %v3080 = vrot.slane %v2929, 7
        %v3081 = vrot.slane %v2934, 7
        %v3082 = vsel %vm1595, %v3080, %v3081
        %v3083 = vrot.slane %v2939, 7
        %v3084 = vsel %vm1595, %v3081, %v3083
        %v3085 = vrot.slane %v2944, 7
        %v3086 = vsel %vm1595, %v3083, %v3085
        %v3087 = vrot.slane %v2949, 7
        %v3088 = vrot.slane %v2954, 7
        %v3089 = vsel %vm1595, %v3087, %v3088
        %v3090 = vrot.slane %v2959, 7
        %v3091 = vsel %vm1595, %v3088, %v3090
        %v3092 = vrot.slane %v2964, 7
        %v3093 = vsel %vm1595, %v3090, %v3092
        %v3094 = vrot.slane %v2969, 7
        %v3095 = vrot.slane %v2974, 7
        %v3096 = vsel %vm1595, %v3094, %v3095
        %v3097 = vrot.slane %v2979, 7
        %v3098 = vsel %vm1595, %v3095, %v3097
        %v3099 = vrot.slane %v2984, 7
        %v3100 = vsel %vm1595, %v3097, %v3099
        %v3101 = vrot.slane %v2989, 7
        %v3102 = vrot.slane %v2994, 7
        %v3103 = vsel %vm1595, %v3101, %v3102
        %v3104 = vrot.slane %v2999, 7
        %v3105 = vsel %vm1595, %v3102, %v3104
        %v3106 = vrot.slane %v3004, 7
        %v3107 = vsel %vm1595, %v3104, %v3106
        %v3108 = vrot.slane %v3009, 7
        %v3109 = vrot.slane %v3014, 7
        %v3110 = vsel %vm1595, %v3108, %v3109
        %v3111 = vrot.slane %v3019, 7
        %v3112 = vsel %vm1595, %v3109, %v3111
        %v3113 = vrot.slane %v3024, 7
        %v3114 = vsel %vm1595, %v3111, %v3113
        %3115 = vrot.lane.b32.xlu0 %v3059, 112
        %v3116 = vpop.permute.xlu0 %3115
        %3117 = vrot.lane.b32.xlu0 %v3061, 112
        %v3118 = vpop.permute.xlu0 %3117
        %3119 = vrot.lane.b32.xlu0 %v3063, 112
        %v3120 = vpop.permute.xlu0 %3119
        %3121 = vrot.lane.b32.xlu0 %v3065, 112
        %v3122 = vpop.permute.xlu0 %3121
        %3123 = vrot.lane.b32.xlu0 %v3066, 112
        %v3124 = vpop.permute.xlu0 %3123
        %3125 = vrot.lane.b32.xlu0 %v3068, 112
        %v3126 = vpop.permute.xlu0 %3125
        %3127 = vrot.lane.b32.xlu0 %v3070, 112
        %v3128 = vpop.permute.xlu0 %3127
        %3129 = vrot.lane.b32.xlu0 %v3072, 112
        %v3130 = vpop.permute.xlu0 %3129
        %3131 = vrot.lane.b32.xlu0 %v3073, 112
        %v3132 = vpop.permute.xlu0 %3131
        %3133 = vrot.lane.b32.xlu0 %v3075, 112
        %v3134 = vpop.permute.xlu0 %3133
        %3135 = vrot.lane.b32.xlu0 %v3077, 112
        %v3136 = vpop.permute.xlu0 %3135
        %3137 = vrot.lane.b32.xlu0 %v3079, 112
        %v3138 = vpop.permute.xlu0 %3137
        %3139 = vrot.lane.b32.xlu0 %v3080, 112
        %v3140 = vpop.permute.xlu0 %3139
        %3141 = vrot.lane.b32.xlu0 %v3082, 112
        %v3142 = vpop.permute.xlu0 %3141
        %3143 = vrot.lane.b32.xlu0 %v3084, 112
        %v3144 = vpop.permute.xlu0 %3143
        %3145 = vrot.lane.b32.xlu0 %v3086, 112
        %v3146 = vpop.permute.xlu0 %3145
        %3147 = vrot.lane.b32.xlu0 %v3087, 112
        %v3148 = vpop.permute.xlu0 %3147
        %3149 = vrot.lane.b32.xlu0 %v3089, 112
        %v3150 = vpop.permute.xlu0 %3149
        %3151 = vrot.lane.b32.xlu0 %v3091, 112
        %v3152 = vpop.permute.xlu0 %3151
        %3153 = vrot.lane.b32.xlu0 %v3093, 112
        %v3154 = vpop.permute.xlu0 %3153
        %3155 = vrot.lane.b32.xlu0 %v3094, 112
        %v3156 = vpop.permute.xlu0 %3155
        %3157 = vrot.lane.b32.xlu0 %v3096, 112
        %v3158 = vpop.permute.xlu0 %3157
        %3159 = vrot.lane.b32.xlu0 %v3098, 112
        %v3160 = vpop.permute.xlu0 %3159
        %3161 = vrot.lane.b32.xlu0 %v3100, 112
        %v3162 = vpop.permute.xlu0 %3161
        %3163 = vrot.lane.b32.xlu0 %v3101, 112
        %v3164 = vpop.permute.xlu0 %3163
        %3165 = vrot.lane.b32.xlu0 %v3103, 112
        %v3166 = vpop.permute.xlu0 %3165
        %3167 = vrot.lane.b32.xlu0 %v3105, 112
        %v3168 = vpop.permute.xlu0 %3167
        %3169 = vrot.lane.b32.xlu0 %v3107, 112
        %v3170 = vpop.permute.xlu0 %3169
        %3171 = vrot.lane.b32.xlu0 %v3108, 112
        %v3172 = vpop.permute.xlu0 %3171
        %3173 = vrot.lane.b32.xlu0 %v3110, 112
        %v3174 = vpop.permute.xlu0 %3173
        %3175 = vrot.lane.b32.xlu0 %v3112, 112
        %v3176 = vpop.permute.xlu0 %3175
        %3177 = vrot.lane.b32.xlu0 %v3114, 112
        %v3178 = vpop.permute.xlu0 %3177
        %v3211 = vsel %vm1595, 0.0, %v3116
        %v3212 = vsel %vm1595, 0.0, %v3124
        %v3213 = vsel %vm1595, 0.0, %v3132
        %v3214 = vsel %vm1595, 0.0, %v3140
        %v3215 = vsel %vm1595, 0.0, %v3148
        %v3216 = vsel %vm1595, 0.0, %v3156
        %v3217 = vsel %vm1595, 0.0, %v3164
        %v3218 = vsel %vm1595, 0.0, %v3172
        %v3219 = vadd.f32 %v2869, %v3211
        %v3220 = vadd.f32 %v2874, %v3118
        %v3221 = vadd.f32 %v2879, %v3120
        %v3222 = vadd.f32 %v2884, %v3122
        %v3223 = vadd.f32 %v2889, %v3212
        %v3224 = vadd.f32 %v2894, %v3126
        %v3225 = vadd.f32 %v2899, %v3128
        %v3226 = vadd.f32 %v2904, %v3130
        %v3227 = vadd.f32 %v2909, %v3213
        %v3228 = vadd.f32 %v2914, %v3134
        %v3229 = vadd.f32 %v2919, %v3136
        %v3230 = vadd.f32 %v2924, %v3138
        %v3231 = vadd.f32 %v2929, %v3214
        %v3232 = vadd.f32 %v2934, %v3142
        %v3233 = vadd.f32 %v2939, %v3144
        %v3234 = vadd.f32 %v2944, %v3146
        %v3235 = vadd.f32 %v2949, %v3215
        %v3236 = vadd.f32 %v2954, %v3150
        %v3237 = vadd.f32 %v2959, %v3152
        %v3238 = vadd.f32 %v2964, %v3154
        %v3239 = vadd.f32 %v2969, %v3216
        %v3240 = vadd.f32 %v2974, %v3158
        %v3241 = vadd.f32 %v2979, %v3160
        %v3242 = vadd.f32 %v2984, %v3162
        %v3243 = vadd.f32 %v2989, %v3217
        %v3244 = vadd.f32 %v2994, %v3166
        %v3245 = vadd.f32 %v2999, %v3168
        %v3246 = vadd.f32 %v3004, %v3170
        %v3247 = vadd.f32 %v3009, %v3218
        %v3248 = vadd.f32 %v3014, %v3174
        %v3249 = vadd.f32 %v3019, %v3176
        %v3250 = vadd.f32 %v3024, %v3178
        %s3251 = scalar_lea.vmem %s4, 6
        %v3252 = vld [vmem:[%s3251] sm:$0x1]
        %v3254 = vlaneseq
        %v3255 = vshrl.u32 %v3254, 7
        %v3256 = vsub.s32 0, %v3255
        %v3257 = vrot.slane %v3252, %v3256
        %v3259 = vadd.f32 %v3219, %v3257
        %v3260 = vadd.f32 %v3220, %v3257
        %v3261 = vadd.f32 %v3221, %v3257
        %v3262 = vadd.f32 %v3222, %v3257
        %v3263 = vadd.f32 %v3223, %v3257
        %v3264 = vadd.f32 %v3224, %v3257
        %v3265 = vadd.f32 %v3225, %v3257
        %v3266 = vadd.f32 %v3226, %v3257
        %v3267 = vadd.f32 %v3227, %v3257
        %v3268 = vadd.f32 %v3228, %v3257
        %v3269 = vadd.f32 %v3229, %v3257
        %v3270 = vadd.f32 %v3230, %v3257
        %v3271 = vadd.f32 %v3231, %v3257
        %v3272 = vadd.f32 %v3232, %v3257
        %v3273 = vadd.f32 %v3233, %v3257
        %v3274 = vadd.f32 %v3234, %v3257
        %v3275 = vadd.f32 %v3235, %v3257
        %v3276 = vadd.f32 %v3236, %v3257
        %v3277 = vadd.f32 %v3237, %v3257
        %v3278 = vadd.f32 %v3238, %v3257
        %v3279 = vadd.f32 %v3239, %v3257
        %v3280 = vadd.f32 %v3240, %v3257
        %v3281 = vadd.f32 %v3241, %v3257
        %v3282 = vadd.f32 %v3242, %v3257
        %v3283 = vadd.f32 %v3243, %v3257
        %v3284 = vadd.f32 %v3244, %v3257
        %v3285 = vadd.f32 %v3245, %v3257
        %v3286 = vadd.f32 %v3246, %v3257
        %v3287 = vadd.f32 %v3247, %v3257
        %v3288 = vadd.f32 %v3248, %v3257
        %v3289 = vadd.f32 %v3249, %v3257
        %v3290 = vadd.f32 %v3250, %v3257
        %v3291 = vmax.f32 %v3259, 0.0
        %v3292 = vmax.f32 %v3260, 0.0
        %v3293 = vmax.f32 %v3261, 0.0
        %v3294 = vmax.f32 %v3262, 0.0
        %v3295 = vmax.f32 %v3263, 0.0
        %v3296 = vmax.f32 %v3264, 0.0
        %v3297 = vmax.f32 %v3265, 0.0
        %v3298 = vmax.f32 %v3266, 0.0
        %v3299 = vmax.f32 %v3267, 0.0
        %v3300 = vmax.f32 %v3268, 0.0
        %v3301 = vmax.f32 %v3269, 0.0
        %v3302 = vmax.f32 %v3270, 0.0
        %v3303 = vmax.f32 %v3271, 0.0
        %v3304 = vmax.f32 %v3272, 0.0
        %v3305 = vmax.f32 %v3273, 0.0
        %v3306 = vmax.f32 %v3274, 0.0
        %v3307 = vmax.f32 %v3275, 0.0
        %v3308 = vmax.f32 %v3276, 0.0
        %v3309 = vmax.f32 %v3277, 0.0
        %v3310 = vmax.f32 %v3278, 0.0
        %v3311 = vmax.f32 %v3279, 0.0
        %v3312 = vmax.f32 %v3280, 0.0
        %v3313 = vmax.f32 %v3281, 0.0
        %v3314 = vmax.f32 %v3282, 0.0
        %v3315 = vmax.f32 %v3283, 0.0
        %v3316 = vmax.f32 %v3284, 0.0
        %v3317 = vmax.f32 %v3285, 0.0
        %v3318 = vmax.f32 %v3286, 0.0
        %v3319 = vmax.f32 %v3287, 0.0
        %v3320 = vmax.f32 %v3288, 0.0
        %v3321 = vmax.f32 %v3289, 0.0
        %v3322 = vmax.f32 %v3290, 0.0
        %s3323 = scalar_lea.vmem %s3, 112
        %v3324 = vld [vmem:[%s3323] sm:$0xff]
        %v3325 = vld [vmem:[%s3323 + $0x8] sm:$0xff]
        %v3327 = vsel %vm553, %v3291, 0
        %v3330 = vsel %vm553, %v3292, 0
        %v3333 = vsel %vm553, %v3293, 0
        %v3336 = vsel %vm553, %v3294, 0
        %v3339 = vsel %vm553, %v3295, 0
        %v3342 = vsel %vm553, %v3296, 0
        %v3345 = vsel %vm553, %v3297, 0
        %v3348 = vsel %vm553, %v3298, 0
        %v3351 = vsel %vm553, %v3299, 0
        %v3354 = vsel %vm553, %v3300, 0
        %v3357 = vsel %vm553, %v3301, 0
        %v3360 = vsel %vm553, %v3302, 0
        %v3363 = vsel %vm553, %v3303, 0
        %v3366 = vsel %vm553, %v3304, 0
        %v3369 = vsel %vm553, %v3305, 0
        %v3372 = vsel %vm553, %v3306, 0
        %v3375 = vsel %vm553, %v3307, 0
        %v3378 = vsel %vm553, %v3308, 0
        %v3381 = vsel %vm553, %v3309, 0
        %v3384 = vsel %vm553, %v3310, 0
        %v3387 = vsel %vm553, %v3311, 0
        %v3390 = vsel %vm553, %v3312, 0
        %v3393 = vsel %vm553, %v3313, 0
        %v3396 = vsel %vm553, %v3314, 0
        %v3399 = vsel %vm553, %v3315, 0
        %v3402 = vsel %vm553, %v3316, 0
        %v3405 = vsel %vm553, %v3317, 0
        %v3408 = vsel %vm553, %v3318, 0
        %v3411 = vsel %vm553, %v3319, 0
        %v3414 = vsel %vm553, %v3320, 0
        %v3417 = vsel %vm553, %v3321, 0
        %v3420 = vsel %vm553, %v3322, 0
        %3422 = vmatprep.subr.mxu0 0.0
        %3423 = vmatpush1.msra.mxu0 %v3324
        %3424 = vmatprep.subr.mxu0 0.0
        %3425 = vmatpush1.msra.mxu0 %v3325
        %3426 = vmatprep.subr.mxu0 0.0
        %3427 = vmatpush1.msra.mxu0 0.0
        %3428 = vmatprep.subr.mxu0 0.0
        %3429 = vmatpush1.msra.mxu0 0.0
        %3430 = vmatprep.subr.mxu0 0.0
        %3431 = vmatpush1.msra.mxu0 0.0
        %3432 = vmatprep.subr.mxu0 0.0
        %3433 = vmatpush1.msra.mxu0 0.0
        %3434 = vmatprep.subr.mxu0 0.0
        %3435 = vmatpush1.msra.mxu0 0.0
        %3436 = vmatprep.subr.mxu0 0.0
        %3437 = vmatpush1.msra.mxu0 0.0
        %3438 = vmatprep.subr.mxu0 0.0
        %3439 = vmatpush1.msra.mxu0 0.0
        %3440 = vmatprep.subr.mxu0 0.0
        %3441 = vmatpush1.msra.mxu0 0.0
        %3442 = vmatprep.subr.mxu0 0.0
        %3443 = vmatpush1.msra.mxu0 0.0
        %3444 = vmatprep.subr.mxu0 0.0
        %3445 = vmatpush1.msra.mxu0 0.0
        %3446 = vmatprep.subr.mxu0 0.0
        %3447 = vmatpush1.msra.mxu0 0.0
        %3448 = vmatprep.subr.mxu0 0.0
        %3449 = vmatpush1.msra.mxu0 0.0
        %3450 = vmatprep.subr.mxu0 0.0
        %3451 = vmatpush1.msra.mxu0 0.0
        %3452 = vmatprep.subr.mxu0 0.0
        %3453 = vmatpush1.msra.mxu0 0.0
        %3454 = vmatprep.subr.mxu0 0.0
        %3455 = vmatpush1.msra.mxu0 0.0
        %3456 = vmatprep.subr.mxu0 0.0
        %3457 = vmatpush1.msra.mxu0 0.0
        %3458 = vmatprep.subr.mxu0 0.0
        %3459 = vmatpush1.msra.mxu0 0.0
        %3460 = vmatprep.subr.mxu0 0.0
        %3461 = vmatpush1.msra.mxu0 0.0
        %3462 = vmatprep.subr.mxu0 0.0
        %3463 = vmatpush1.msra.mxu0 0.0
        %3464 = vmatprep.subr.mxu0 0.0
        %3465 = vmatpush1.msra.mxu0 0.0
        %3466 = vmatprep.subr.mxu0 0.0
        %3467 = vmatpush1.msra.mxu0 0.0
        %3468 = vmatprep.subr.mxu0 0.0
        %3469 = vmatpush1.msra.mxu0 0.0
        %3470 = vmatprep.subr.mxu0 0.0
        %3471 = vmatpush1.msra.mxu0 0.0
        %3472 = vmatprep.subr.mxu0 0.0
        %3473 = vmatpush1.msra.mxu0 0.0
        %3474 = vmatprep.subr.mxu0 0.0
        %3475 = vmatpush1.msra.mxu0 0.0
        %3476 = vmatprep.subr.mxu0 0.0
        %3477 = vmatpush1.msra.mxu0 0.0
        %3478 = vmatprep.subr.mxu0 0.0
        %3479 = vmatpush1.msra.mxu0 0.0
        %3480 = vmatprep.subr.mxu0 0.0
        %3481 = vmatpush1.msra.mxu0 0.0
        %3482 = vmatprep.subr.mxu0 0.0
        %3483 = vmatpush1.msra.mxu0 0.0
        %3484 = vmatprep.subr.mxu0 0.0
        %3485 = vmatpush1.msra.mxu0 0.0
        %3486 = vmatprep.mubr.f32.mxu0 0.0
        %3487 = vmatmul.mubr.f32.gmra.mrb[0].mxu0 %v3327
        %v3488 = vpop.f32.mrb[0].mxu0
        %v3489 = vadd.f32 0.0, %v3488
        %v3490 = vpop.f32.mrb[0].mxu0
        %3491 = vmatprep.mubr.f32.mxu0 0.0
        %3492 = vmatmul.mubr.f32.gmra.mrb[0].mxu0 %v3330
        %v3493 = vpop.f32.mrb[0].mxu0
        %v3494 = vadd.f32 0.0, %v3493
        %v3495 = vpop.f32.mrb[0].mxu0
        %3496 = vmatprep.mubr.f32.mxu0 0.0
        %3497 = vmatmul.mubr.f32.gmra.mrb[0].mxu0 %v3333
        %v3498 = vpop.f32.mrb[0].mxu0
        %v3499 = vadd.f32 0.0, %v3498
        %v3500 = vpop.f32.mrb[0].mxu0
        %3501 = vmatprep.mubr.f32.mxu0 0.0
        %3502 = vmatmul.mubr.f32.gmra.mrb[0].mxu0 %v3336
        %v3503 = vpop.f32.mrb[0].mxu0
        %v3504 = vadd.f32 0.0, %v3503
        %v3505 = vpop.f32.mrb[0].mxu0
        %3506 = vmatprep.mubr.f32.mxu0 0.0
        %3507 = vmatmul.mubr.f32.gmra.mrb[0].mxu0 %v3339
        %v3508 = vpop.f32.mrb[0].mxu0
        %v3509 = vadd.f32 0.0, %v3508
        %v3510 = vpop.f32.mrb[0].mxu0
        %3511 = vmatprep.mubr.f32.mxu0 0.0
        %3512 = vmatmul.mubr.f32.gmra.mrb[0].mxu0 %v3342
        %v3513 = vpop.f32.mrb[0].mxu0
        %v3514 = vadd.f32 0.0, %v3513
        %v3515 = vpop.f32.mrb[0].mxu0
        %3516 = vmatprep.mubr.f32.mxu0 0.0
        %3517 = vmatmul.mubr.f32.gmra.mrb[0].mxu0 %v3345
        %v3518 = vpop.f32.mrb[0].mxu0
        %v3519 = vadd.f32 0.0, %v3518
        %v3520 = vpop.f32.mrb[0].mxu0
        %3521 = vmatprep.mubr.f32.mxu0 0.0
        %3522 = vmatmul.mubr.f32.gmra.mrb[0].mxu0 %v3348
        %v3523 = vpop.f32.mrb[0].mxu0
        %v3524 = vadd.f32 0.0, %v3523
        %v3525 = vpop.f32.mrb[0].mxu0
        %3526 = vmatprep.mubr.f32.mxu0 0.0
        %3527 = vmatmul.mubr.f32.gmra.mrb[0].mxu0 %v3351
        %v3528 = vpop.f32.mrb[0].mxu0
        %v3529 = vadd.f32 0.0, %v3528
        %v3530 = vpop.f32.mrb[0].mxu0
        %3531 = vmatprep.mubr.f32.mxu0 0.0
        %3532 = vmatmul.mubr.f32.gmra.mrb[0].mxu0 %v3354
        %v3533 = vpop.f32.mrb[0].mxu0
        %v3534 = vadd.f32 0.0, %v3533
        %v3535 = vpop.f32.mrb[0].mxu0
        %3536 = vmatprep.mubr.f32.mxu0 0.0
        %3537 = vmatmul.mubr.f32.gmra.mrb[0].mxu0 %v3357
        %v3538 = vpop.f32.mrb[0].mxu0
        %v3539 = vadd.f32 0.0, %v3538
        %v3540 = vpop.f32.mrb[0].mxu0
        %3541 = vmatprep.mubr.f32.mxu0 0.0
        %3542 = vmatmul.mubr.f32.gmra.mrb[0].mxu0 %v3360
        %v3543 = vpop.f32.mrb[0].mxu0
        %v3544 = vadd.f32 0.0, %v3543
        %v3545 = vpop.f32.mrb[0].mxu0
        %3546 = vmatprep.mubr.f32.mxu0 0.0
        %3547 = vmatmul.mubr.f32.gmra.mrb[0].mxu0 %v3363
        %v3548 = vpop.f32.mrb[0].mxu0
        %v3549 = vadd.f32 0.0, %v3548
        %v3550 = vpop.f32.mrb[0].mxu0
        %3551 = vmatprep.mubr.f32.mxu0 0.0
        %3552 = vmatmul.mubr.f32.gmra.mrb[0].mxu0 %v3366
        %v3553 = vpop.f32.mrb[0].mxu0
        %v3554 = vadd.f32 0.0, %v3553
        %v3555 = vpop.f32.mrb[0].mxu0
        %3556 = vmatprep.mubr.f32.mxu0 0.0
        %3557 = vmatmul.mubr.f32.gmra.mrb[0].mxu0 %v3369
        %v3558 = vpop.f32.mrb[0].mxu0
        %v3559 = vadd.f32 0.0, %v3558
        %v3560 = vpop.f32.mrb[0].mxu0
        %3561 = vmatprep.mubr.f32.mxu0 0.0
        %3562 = vmatmul.mubr.f32.gmra.mrb[0].mxu0 %v3372
        %v3563 = vpop.f32.mrb[0].mxu0
        %v3564 = vadd.f32 0.0, %v3563
        %v3565 = vpop.f32.mrb[0].mxu0
        %3566 = vmatprep.mubr.f32.mxu0 0.0
        %3567 = vmatmul.mubr.f32.gmra.mrb[0].mxu0 %v3375
        %v3568 = vpop.f32.mrb[0].mxu0
        %v3569 = vadd.f32 0.0, %v3568
        %v3570 = vpop.f32.mrb[0].mxu0
        %3571 = vmatprep.mubr.f32.mxu0 0.0
        %3572 = vmatmul.mubr.f32.gmra.mrb[0].mxu0 %v3378
        %v3573 = vpop.f32.mrb[0].mxu0
        %v3574 = vadd.f32 0.0, %v3573
        %v3575 = vpop.f32.mrb[0].mxu0
        %3576 = vmatprep.mubr.f32.mxu0 0.0
        %3577 = vmatmul.mubr.f32.gmra.mrb[0].mxu0 %v3381
        %v3578 = vpop.f32.mrb[0].mxu0
        %v3579 = vadd.f32 0.0, %v3578
        %v3580 = vpop.f32.mrb[0].mxu0
        %3581 = vmatprep.mubr.f32.mxu0 0.0
        %3582 = vmatmul.mubr.f32.gmra.mrb[0].mxu0 %v3384
        %v3583 = vpop.f32.mrb[0].mxu0
        %v3584 = vadd.f32 0.0, %v3583
        %v3585 = vpop.f32.mrb[0].mxu0
        %3586 = vmatprep.mubr.f32.mxu0 0.0
        %3587 = vmatmul.mubr.f32.gmra.mrb[0].mxu0 %v3387
        %v3588 = vpop.f32.mrb[0].mxu0
        %v3589 = vadd.f32 0.0, %v3588
        %v3590 = vpop.f32.mrb[0].mxu0
        %3591 = vmatprep.mubr.f32.mxu0 0.0
        %3592 = vmatmul.mubr.f32.gmra.mrb[0].mxu0 %v3390
        %v3593 = vpop.f32.mrb[0].mxu0
        %v3594 = vadd.f32 0.0, %v3593
        %v3595 = vpop.f32.mrb[0].mxu0
        %3596 = vmatprep.mubr.f32.mxu0 0.0
        %3597 = vmatmul.mubr.f32.gmra.mrb[0].mxu0 %v3393
        %v3598 = vpop.f32.mrb[0].mxu0
        %v3599 = vadd.f32 0.0, %v3598
        %v3600 = vpop.f32.mrb[0].mxu0
        %3601 = vmatprep.mubr.f32.mxu0 0.0
        %3602 = vmatmul.mubr.f32.gmra.mrb[0].mxu0 %v3396
        %v3603 = vpop.f32.mrb[0].mxu0
        %v3604 = vadd.f32 0.0, %v3603
        %v3605 = vpop.f32.mrb[0].mxu0
        %3606 = vmatprep.mubr.f32.mxu0 0.0
        %3607 = vmatmul.mubr.f32.gmra.mrb[0].mxu0 %v3399
        %v3608 = vpop.f32.mrb[0].mxu0
        %v3609 = vadd.f32 0.0, %v3608
        %v3610 = vpop.f32.mrb[0].mxu0
        %3611 = vmatprep.mubr.f32.mxu0 0.0
        %3612 = vmatmul.mubr.f32.gmra.mrb[0].mxu0 %v3402
        %v3613 = vpop.f32.mrb[0].mxu0
        %v3614 = vadd.f32 0.0, %v3613
        %v3615 = vpop.f32.mrb[0].mxu0
        %3616 = vmatprep.mubr.f32.mxu0 0.0
        %3617 = vmatmul.mubr.f32.gmra.mrb[0].mxu0 %v3405
        %v3618 = vpop.f32.mrb[0].mxu0
        %v3619 = vadd.f32 0.0, %v3618
        %v3620 = vpop.f32.mrb[0].mxu0
        %3621 = vmatprep.mubr.f32.mxu0 0.0
        %3622 = vmatmul.mubr.f32.gmra.mrb[0].mxu0 %v3408
        %v3623 = vpop.f32.mrb[0].mxu0
        %v3624 = vadd.f32 0.0, %v3623
        %v3625 = vpop.f32.mrb[0].mxu0
        %3626 = vmatprep.mubr.f32.mxu0 0.0
        %3627 = vmatmul.mubr.f32.gmra.mrb[0].mxu0 %v3411
        %v3628 = vpop.f32.mrb[0].mxu0
        %v3629 = vadd.f32 0.0, %v3628
        %v3630 = vpop.f32.mrb[0].mxu0
        %3631 = vmatprep.mubr.f32.mxu0 0.0
        %3632 = vmatmul.mubr.f32.gmra.mrb[0].mxu0 %v3414
        %v3633 = vpop.f32.mrb[0].mxu0
        %v3634 = vadd.f32 0.0, %v3633
        %v3635 = vpop.f32.mrb[0].mxu0
        %3636 = vmatprep.mubr.f32.mxu0 0.0
        %3637 = vmatmul.mubr.f32.gmra.mrb[0].mxu0 %v3417
        %v3638 = vpop.f32.mrb[0].mxu0
        %v3639 = vadd.f32 0.0, %v3638
        %v3640 = vpop.f32.mrb[0].mxu0
        %3641 = vmatprep.mubr.f32.mxu0 0.0
        %3642 = vmatmul.mubr.f32.gmra.mrb[0].mxu0 %v3420
        %v3643 = vpop.f32.mrb[0].mxu0
        %v3644 = vadd.f32 0.0, %v3643
        %v3645 = vpop.f32.mrb[0].mxu0
        %3646 = vdwg.mxu0
        %v3679 = vrot.slane %v3489, 7
        %v3680 = vrot.slane %v3494, 7
        %v3681 = vsel %vm1595, %v3679, %v3680
        %v3682 = vrot.slane %v3499, 7
        %v3683 = vsel %vm1595, %v3680, %v3682
        %v3684 = vrot.slane %v3504, 7
        %v3685 = vsel %vm1595, %v3682, %v3684
        %v3686 = vrot.slane %v3509, 7
        %v3687 = vrot.slane %v3514, 7
        %v3688 = vsel %vm1595, %v3686, %v3687
        %v3689 = vrot.slane %v3519, 7
        %v3690 = vsel %vm1595, %v3687, %v3689
        %v3691 = vrot.slane %v3524, 7
        %v3692 = vsel %vm1595, %v3689, %v3691
        %v3693 = vrot.slane %v3529, 7
        %v3694 = vrot.slane %v3534, 7
        %v3695 = vsel %vm1595, %v3693, %v3694
        %v3696 = vrot.slane %v3539, 7
        %v3697 = vsel %vm1595, %v3694, %v3696
        %v3698 = vrot.slane %v3544, 7
        %v3699 = vsel %vm1595, %v3696, %v3698
        %v3700 = vrot.slane %v3549, 7
        %v3701 = vrot.slane %v3554, 7
        %v3702 = vsel %vm1595, %v3700, %v3701
        %v3703 = vrot.slane %v3559, 7
        %v3704 = vsel %vm1595, %v3701, %v3703
        %v3705 = vrot.slane %v3564, 7
        %v3706 = vsel %vm1595, %v3703, %v3705
        %v3707 = vrot.slane %v3569, 7
        %v3708 = vrot.slane %v3574, 7
        %v3709 = vsel %vm1595, %v3707, %v3708
        %v3710 = vrot.slane %v3579, 7
        %v3711 = vsel %vm1595, %v3708, %v3710
        %v3712 = vrot.slane %v3584, 7
        %v3713 = vsel %vm1595, %v3710, %v3712
        %v3714 = vrot.slane %v3589, 7
        %v3715 = vrot.slane %v3594, 7
        %v3716 = vsel %vm1595, %v3714, %v3715
        %v3717 = vrot.slane %v3599, 7
        %v3718 = vsel %vm1595, %v3715, %v3717
        %v3719 = vrot.slane %v3604, 7
        %v3720 = vsel %vm1595, %v3717, %v3719
        %v3721 = vrot.slane %v3609, 7
        %v3722 = vrot.slane %v3614, 7
        %v3723 = vsel %vm1595, %v3721, %v3722
        %v3724 = vrot.slane %v3619, 7
        %v3725 = vsel %vm1595, %v3722, %v3724
        %v3726 = vrot.slane %v3624, 7
        %v3727 = vsel %vm1595, %v3724, %v3726
        %v3728 = vrot.slane %v3629, 7
        %v3729 = vrot.slane %v3634, 7
        %v3730 = vsel %vm1595, %v3728, %v3729
        %v3731 = vrot.slane %v3639, 7
        %v3732 = vsel %vm1595, %v3729, %v3731
        %v3733 = vrot.slane %v3644, 7
        %v3734 = vsel %vm1595, %v3731, %v3733
        %3735 = vrot.lane.b32.xlu0 %v3679, 112
        %v3736 = vpop.permute.xlu0 %3735
        %3737 = vrot.lane.b32.xlu0 %v3681, 112
        %v3738 = vpop.permute.xlu0 %3737
        %3739 = vrot.lane.b32.xlu0 %v3683, 112
        %v3740 = vpop.permute.xlu0 %3739
        %3741 = vrot.lane.b32.xlu0 %v3685, 112
        %v3742 = vpop.permute.xlu0 %3741
        %3743 = vrot.lane.b32.xlu0 %v3686, 112
        %v3744 = vpop.permute.xlu0 %3743
        %3745 = vrot.lane.b32.xlu0 %v3688, 112
        %v3746 = vpop.permute.xlu0 %3745
        %3747 = vrot.lane.b32.xlu0 %v3690, 112
        %v3748 = vpop.permute.xlu0 %3747
        %3749 = vrot.lane.b32.xlu0 %v3692, 112
        %v3750 = vpop.permute.xlu0 %3749
        %3751 = vrot.lane.b32.xlu0 %v3693, 112
        %v3752 = vpop.permute.xlu0 %3751
        %3753 = vrot.lane.b32.xlu0 %v3695, 112
        %v3754 = vpop.permute.xlu0 %3753
        %3755 = vrot.lane.b32.xlu0 %v3697, 112
        %v3756 = vpop.permute.xlu0 %3755
        %3757 = vrot.lane.b32.xlu0 %v3699, 112
        %v3758 = vpop.permute.xlu0 %3757
        %3759 = vrot.lane.b32.xlu0 %v3700, 112
        %v3760 = vpop.permute.xlu0 %3759
        %3761 = vrot.lane.b32.xlu0 %v3702, 112
        %v3762 = vpop.permute.xlu0 %3761
        %3763 = vrot.lane.b32.xlu0 %v3704, 112
        %v3764 = vpop.permute.xlu0 %3763
        %3765 = vrot.lane.b32.xlu0 %v3706, 112
        %v3766 = vpop.permute.xlu0 %3765
        %3767 = vrot.lane.b32.xlu0 %v3707, 112
        %v3768 = vpop.permute.xlu0 %3767
        %3769 = vrot.lane.b32.xlu0 %v3709, 112
        %v3770 = vpop.permute.xlu0 %3769
        %3771 = vrot.lane.b32.xlu0 %v3711, 112
        %v3772 = vpop.permute.xlu0 %3771
        %3773 = vrot.lane.b32.xlu0 %v3713, 112
        %v3774 = vpop.permute.xlu0 %3773
        %3775 = vrot.lane.b32.xlu0 %v3714, 112
        %v3776 = vpop.permute.xlu0 %3775
        %3777 = vrot.lane.b32.xlu0 %v3716, 112
        %v3778 = vpop.permute.xlu0 %3777
        %3779 = vrot.lane.b32.xlu0 %v3718, 112
        %v3780 = vpop.permute.xlu0 %3779
        %3781 = vrot.lane.b32.xlu0 %v3720, 112
        %v3782 = vpop.permute.xlu0 %3781
        %3783 = vrot.lane.b32.xlu0 %v3721, 112
        %v3784 = vpop.permute.xlu0 %3783
        %3785 = vrot.lane.b32.xlu0 %v3723, 112
        %v3786 = vpop.permute.xlu0 %3785
        %3787 = vrot.lane.b32.xlu0 %v3725, 112
        %v3788 = vpop.permute.xlu0 %3787
        %3789 = vrot.lane.b32.xlu0 %v3727, 112
        %v3790 = vpop.permute.xlu0 %3789
        %3791 = vrot.lane.b32.xlu0 %v3728, 112
        %v3792 = vpop.permute.xlu0 %3791
        %3793 = vrot.lane.b32.xlu0 %v3730, 112
        %v3794 = vpop.permute.xlu0 %3793
        %3795 = vrot.lane.b32.xlu0 %v3732, 112
        %v3796 = vpop.permute.xlu0 %3795
        %3797 = vrot.lane.b32.xlu0 %v3734, 112
        %v3798 = vpop.permute.xlu0 %3797
        %v3831 = vsel %vm1595, 0.0, %v3736
        %v3832 = vsel %vm1595, 0.0, %v3744
        %v3833 = vsel %vm1595, 0.0, %v3752
        %v3834 = vsel %vm1595, 0.0, %v3760
        %v3835 = vsel %vm1595, 0.0, %v3768
        %v3836 = vsel %vm1595, 0.0, %v3776
        %v3837 = vsel %vm1595, 0.0, %v3784
        %v3838 = vsel %vm1595, 0.0, %v3792
        %v3839 = vadd.f32 %v3489, %v3831
        %v3840 = vadd.f32 %v3494, %v3738
        %v3841 = vadd.f32 %v3499, %v3740
        %v3842 = vadd.f32 %v3504, %v3742
        %v3843 = vadd.f32 %v3509, %v3832
        %v3844 = vadd.f32 %v3514, %v3746
        %v3845 = vadd.f32 %v3519, %v3748
        %v3846 = vadd.f32 %v3524, %v3750
        %v3847 = vadd.f32 %v3529, %v3833
        %v3848 = vadd.f32 %v3534, %v3754
        %v3849 = vadd.f32 %v3539, %v3756
        %v3850 = vadd.f32 %v3544, %v3758
        %v3851 = vadd.f32 %v3549, %v3834
        %v3852 = vadd.f32 %v3554, %v3762
        %v3853 = vadd.f32 %v3559, %v3764
        %v3854 = vadd.f32 %v3564, %v3766
        %v3855 = vadd.f32 %v3569, %v3835
        %v3856 = vadd.f32 %v3574, %v3770
        %v3857 = vadd.f32 %v3579, %v3772
        %v3858 = vadd.f32 %v3584, %v3774
        %v3859 = vadd.f32 %v3589, %v3836
        %v3860 = vadd.f32 %v3594, %v3778
        %v3861 = vadd.f32 %v3599, %v3780
        %v3862 = vadd.f32 %v3604, %v3782
        %v3863 = vadd.f32 %v3609, %v3837
        %v3864 = vadd.f32 %v3614, %v3786
        %v3865 = vadd.f32 %v3619, %v3788
        %v3866 = vadd.f32 %v3624, %v3790
        %v3867 = vadd.f32 %v3629, %v3838
        %v3868 = vadd.f32 %v3634, %v3794
        %v3869 = vadd.f32 %v3639, %v3796
        %v3870 = vadd.f32 %v3644, %v3798
        %s3871 = scalar_lea.vmem %s4, 7
        %v3872 = vld [vmem:[%s3871] sm:$0x1]
        %v3874 = vlaneseq
        %v3875 = vshrl.u32 %v3874, 7
        %v3876 = vsub.s32 0, %v3875
        %v3877 = vrot.slane %v3872, %v3876
        %v3879 = vadd.f32 %v3839, %v3877
        %v3880 = vadd.f32 %v3840, %v3877
        %v3881 = vadd.f32 %v3841, %v3877
        %v3882 = vadd.f32 %v3842, %v3877
        %v3883 = vadd.f32 %v3843, %v3877
        %v3884 = vadd.f32 %v3844, %v3877
        %v3885 = vadd.f32 %v3845, %v3877
        %v3886 = vadd.f32 %v3846, %v3877
        %v3887 = vadd.f32 %v3847, %v3877
        %v3888 = vadd.f32 %v3848, %v3877
        %v3889 = vadd.f32 %v3849, %v3877
        %v3890 = vadd.f32 %v3850, %v3877
        %v3891 = vadd.f32 %v3851, %v3877
        %v3892 = vadd.f32 %v3852, %v3877
        %v3893 = vadd.f32 %v3853, %v3877
        %v3894 = vadd.f32 %v3854, %v3877
        %v3895 = vadd.f32 %v3855, %v3877
        %v3896 = vadd.f32 %v3856, %v3877
        %v3897 = vadd.f32 %v3857, %v3877
        %v3898 = vadd.f32 %v3858, %v3877
        %v3899 = vadd.f32 %v3859, %v3877
        %v3900 = vadd.f32 %v3860, %v3877
        %v3901 = vadd.f32 %v3861, %v3877
        %v3902 = vadd.f32 %v3862, %v3877
        %v3903 = vadd.f32 %v3863, %v3877
        %v3904 = vadd.f32 %v3864, %v3877
        %v3905 = vadd.f32 %v3865, %v3877
        %v3906 = vadd.f32 %v3866, %v3877
        %v3907 = vadd.f32 %v3867, %v3877
        %v3908 = vadd.f32 %v3868, %v3877
        %v3909 = vadd.f32 %v3869, %v3877
        %v3910 = vadd.f32 %v3870, %v3877
        %v3911 = vmax.f32 %v3879, 0.0
        %v3912 = vmax.f32 %v3880, 0.0
        %v3913 = vmax.f32 %v3881, 0.0
        %v3914 = vmax.f32 %v3882, 0.0
        %v3915 = vmax.f32 %v3883, 0.0
        %v3916 = vmax.f32 %v3884, 0.0
        %v3917 = vmax.f32 %v3885, 0.0
        %v3918 = vmax.f32 %v3886, 0.0
        %v3919 = vmax.f32 %v3887, 0.0
        %v3920 = vmax.f32 %v3888, 0.0
        %v3921 = vmax.f32 %v3889, 0.0
        %v3922 = vmax.f32 %v3890, 0.0
        %v3923 = vmax.f32 %v3891, 0.0
        %v3924 = vmax.f32 %v3892, 0.0
        %v3925 = vmax.f32 %v3893, 0.0
        %v3926 = vmax.f32 %v3894, 0.0
        %v3927 = vmax.f32 %v3895, 0.0
        %v3928 = vmax.f32 %v3896, 0.0
        %v3929 = vmax.f32 %v3897, 0.0
        %v3930 = vmax.f32 %v3898, 0.0
        %v3931 = vmax.f32 %v3899, 0.0
        %v3932 = vmax.f32 %v3900, 0.0
        %v3933 = vmax.f32 %v3901, 0.0
        %v3934 = vmax.f32 %v3902, 0.0
        %v3935 = vmax.f32 %v3903, 0.0
        %v3936 = vmax.f32 %v3904, 0.0
        %v3937 = vmax.f32 %v3905, 0.0
        %v3938 = vmax.f32 %v3906, 0.0
        %v3939 = vmax.f32 %v3907, 0.0
        %v3940 = vmax.f32 %v3908, 0.0
        %v3941 = vmax.f32 %v3909, 0.0
        %v3942 = vmax.f32 %v3910, 0.0
        %v3943 = vxor.u32 %v3911, 2147483648
        %v3944 = vxor.u32 %v3912, 2147483648
        %v3945 = vxor.u32 %v3913, 2147483648
        %v3946 = vxor.u32 %v3914, 2147483648
        %v3947 = vxor.u32 %v3915, 2147483648
        %v3948 = vxor.u32 %v3916, 2147483648
        %v3949 = vxor.u32 %v3917, 2147483648
        %v3950 = vxor.u32 %v3918, 2147483648
        %v3951 = vxor.u32 %v3919, 2147483648
        %v3952 = vxor.u32 %v3920, 2147483648
        %v3953 = vxor.u32 %v3921, 2147483648
        %v3954 = vxor.u32 %v3922, 2147483648
        %v3955 = vxor.u32 %v3923, 2147483648
        %v3956 = vxor.u32 %v3924, 2147483648
        %v3957 = vxor.u32 %v3925, 2147483648
        %v3958 = vxor.u32 %v3926, 2147483648
        %v3959 = vxor.u32 %v3927, 2147483648
        %v3960 = vxor.u32 %v3928, 2147483648
        %v3961 = vxor.u32 %v3929, 2147483648
        %v3962 = vxor.u32 %v3930, 2147483648
        %v3963 = vxor.u32 %v3931, 2147483648
        %v3964 = vxor.u32 %v3932, 2147483648
        %v3965 = vxor.u32 %v3933, 2147483648
        %v3966 = vxor.u32 %v3934, 2147483648
        %v3967 = vxor.u32 %v3935, 2147483648
        %v3968 = vxor.u32 %v3936, 2147483648
        %v3969 = vxor.u32 %v3937, 2147483648
        %v3970 = vxor.u32 %v3938, 2147483648
        %v3971 = vxor.u32 %v3939, 2147483648
        %v3972 = vxor.u32 %v3940, 2147483648
        %v3973 = vxor.u32 %v3941, 2147483648
        %v3974 = vxor.u32 %v3942, 2147483648
        %v3975 = vmul.f32 %v3943, 1.442695
        %v3976 = vpow.pop %v3975
        %v3977 = vmul.f32 %v3944, 1.442695
        %v3978 = vpow.pop %v3977
        %v3979 = vmul.f32 %v3945, 1.442695
        %v3980 = vpow.pop %v3979
        %v3981 = vmul.f32 %v3946, 1.442695
        %v3982 = vpow.pop %v3981
        %v3983 = vmul.f32 %v3947, 1.442695
        %v3984 = vpow.pop %v3983
        %v3985 = vmul.f32 %v3948, 1.442695
        %v3986 = vpow.pop %v3985
        %v3987 = vmul.f32 %v3949, 1.442695
        %v3988 = vpow.pop %v3987
        %v3989 = vmul.f32 %v3950, 1.442695
        %v3990 = vpow.pop %v3989
        %v3991 = vmul.f32 %v3951, 1.442695
        %v3992 = vpow.pop %v3991
        %v3993 = vmul.f32 %v3952, 1.442695
        %v3994 = vpow.pop %v3993
        %v3995 = vmul.f32 %v3953, 1.442695
        %v3996 = vpow.pop %v3995
        %v3997 = vmul.f32 %v3954, 1.442695
        %v3998 = vpow.pop %v3997
        %v3999 = vmul.f32 %v3955, 1.442695
        %v4000 = vpow.pop %v3999
        %v4001 = vmul.f32 %v3956, 1.442695
        %v4002 = vpow.pop %v4001
        %v4003 = vmul.f32 %v3957, 1.442695
        %v4004 = vpow.pop %v4003
        %v4005 = vmul.f32 %v3958, 1.442695
        %v4006 = vpow.pop %v4005
        %v4007 = vmul.f32 %v3959, 1.442695
        %v4008 = vpow.pop %v4007
        %v4009 = vmul.f32 %v3960, 1.442695
        %v4010 = vpow.pop %v4009
        %v4011 = vmul.f32 %v3961, 1.442695
        %v4012 = vpow.pop %v4011
        %v4013 = vmul.f32 %v3962, 1.442695
        %v4014 = vpow.pop %v4013
        %v4015 = vmul.f32 %v3963, 1.442695
        %v4016 = vpow.pop %v4015
        %v4017 = vmul.f32 %v3964, 1.442695
        %v4018 = vpow.pop %v4017
        %v4019 = vmul.f32 %v3965, 1.442695
        %v4020 = vpow.pop %v4019
        %v4021 = vmul.f32 %v3966, 1.442695
        %v4022 = vpow.pop %v4021
        %v4023 = vmul.f32 %v3967, 1.442695
        %v4024 = vpow.pop %v4023
        %v4025 = vmul.f32 %v3968, 1.442695
        %v4026 = vpow.pop %v4025
        %v4027 = vmul.f32 %v3969, 1.442695
        %v4028 = vpow.pop %v4027
        %v4029 = vmul.f32 %v3970, 1.442695
        %v4030 = vpow.pop %v4029
        %v4031 = vmul.f32 %v3971, 1.442695
        %v4032 = vpow.pop %v4031
        %v4033 = vmul.f32 %v3972, 1.442695
        %v4034 = vpow.pop %v4033
        %v4035 = vmul.f32 %v3973, 1.442695
        %v4036 = vpow.pop %v4035
        %v4037 = vmul.f32 %v3974, 1.442695
        %v4038 = vpow.pop %v4037
        %v4039 = vadd.f32 %v3976, 1.0
        %v4040 = vadd.f32 %v3978, 1.0
        %v4041 = vadd.f32 %v3980, 1.0
        %v4042 = vadd.f32 %v3982, 1.0
        %v4043 = vadd.f32 %v3984, 1.0
        %v4044 = vadd.f32 %v3986, 1.0
        %v4045 = vadd.f32 %v3988, 1.0
        %v4046 = vadd.f32 %v3990, 1.0
        %v4047 = vadd.f32 %v3992, 1.0
        %v4048 = vadd.f32 %v3994, 1.0
        %v4049 = vadd.f32 %v3996, 1.0
        %v4050 = vadd.f32 %v3998, 1.0
        %v4051 = vadd.f32 %v4000, 1.0
        %v4052 = vadd.f32 %v4002, 1.0
        %v4053 = vadd.f32 %v4004, 1.0
        %v4054 = vadd.f32 %v4006, 1.0
        %v4055 = vadd.f32 %v4008, 1.0
        %v4056 = vadd.f32 %v4010, 1.0
        %v4057 = vadd.f32 %v4012, 1.0
        %v4058 = vadd.f32 %v4014, 1.0
        %v4059 = vadd.f32 %v4016, 1.0
        %v4060 = vadd.f32 %v4018, 1.0
        %v4061 = vadd.f32 %v4020, 1.0
        %v4062 = vadd.f32 %v4022, 1.0
        %v4063 = vadd.f32 %v4024, 1.0
        %v4064 = vadd.f32 %v4026, 1.0
        %v4065 = vadd.f32 %v4028, 1.0
        %v4066 = vadd.f32 %v4030, 1.0
        %v4067 = vadd.f32 %v4032, 1.0
        %v4068 = vadd.f32 %v4034, 1.0
        %v4069 = vadd.f32 %v4036, 1.0
        %v4070 = vadd.f32 %v4038, 1.0
        %v4071 = vrcp.pop %v4039
        %v4072 = vmul.f32 1.0, %v4071
        %v4073 = vrcp.pop %v4040
        %v4074 = vmul.f32 1.0, %v4073
        %v4075 = vrcp.pop %v4041
        %v4076 = vmul.f32 1.0, %v4075
        %v4077 = vrcp.pop %v4042
        %v4078 = vmul.f32 1.0, %v4077
        %v4079 = vrcp.pop %v4043
        %v4080 = vmul.f32 1.0, %v4079
        %v4081 = vrcp.pop %v4044
        %v4082 = vmul.f32 1.0, %v4081
        %v4083 = vrcp.pop %v4045
        %v4084 = vmul.f32 1.0, %v4083
        %v4085 = vrcp.pop %v4046
        %v4086 = vmul.f32 1.0, %v4085
        %v4087 = vrcp.pop %v4047
        %v4088 = vmul.f32 1.0, %v4087
        %v4089 = vrcp.pop %v4048
        %v4090 = vmul.f32 1.0, %v4089
        %v4091 = vrcp.pop %v4049
        %v4092 = vmul.f32 1.0, %v4091
        %v4093 = vrcp.pop %v4050
        %v4094 = vmul.f32 1.0, %v4093
        %v4095 = vrcp.pop %v4051
        %v4096 = vmul.f32 1.0, %v4095
        %v4097 = vrcp.pop %v4052
        %v4098 = vmul.f32 1.0, %v4097
        %v4099 = vrcp.pop %v4053
        %v4100 = vmul.f32 1.0, %v4099
        %v4101 = vrcp.pop %v4054
        %v4102 = vmul.f32 1.0, %v4101
        %v4103 = vrcp.pop %v4055
        %v4104 = vmul.f32 1.0, %v4103
        %v4105 = vrcp.pop %v4056
        %v4106 = vmul.f32 1.0, %v4105
        %v4107 = vrcp.pop %v4057
        %v4108 = vmul.f32 1.0, %v4107
        %v4109 = vrcp.pop %v4058
        %v4110 = vmul.f32 1.0, %v4109
        %v4111 = vrcp.pop %v4059
        %v4112 = vmul.f32 1.0, %v4111
        %v4113 = vrcp.pop %v4060
        %v4114 = vmul.f32 1.0, %v4113
        %v4115 = vrcp.pop %v4061
        %v4116 = vmul.f32 1.0, %v4115
        %v4117 = vrcp.pop %v4062
        %v4118 = vmul.f32 1.0, %v4117
        %v4119 = vrcp.pop %v4063
        %v4120 = vmul.f32 1.0, %v4119
        %v4121 = vrcp.pop %v4064
        %v4122 = vmul.f32 1.0, %v4121
        %v4123 = vrcp.pop %v4065
        %v4124 = vmul.f32 1.0, %v4123
        %v4125 = vrcp.pop %v4066
        %v4126 = vmul.f32 1.0, %v4125
        %v4127 = vrcp.pop %v4067
        %v4128 = vmul.f32 1.0, %v4127
        %v4129 = vrcp.pop %v4068
        %v4130 = vmul.f32 1.0, %v4129
        %v4131 = vrcp.pop %v4069
        %v4132 = vmul.f32 1.0, %v4131
        %v4133 = vrcp.pop %v4070
        %v4134 = vmul.f32 1.0, %v4133
        %v4135 = vmul.f32 %v1082, %v4072
        %v4136 = vmul.f32 %v1087, %v4074
        %v4137 = vmul.f32 %v1092, %v4076
        %v4138 = vmul.f32 %v1097, %v4078
        %v4139 = vmul.f32 %v1102, %v4080
        %v4140 = vmul.f32 %v1107, %v4082
        %v4141 = vmul.f32 %v1112, %v4084
        %v4142 = vmul.f32 %v1117, %v4086
        %v4143 = vmul.f32 %v1122, %v4088
        %v4144 = vmul.f32 %v1127, %v4090
        %v4145 = vmul.f32 %v1132, %v4092
        %v4146 = vmul.f32 %v1137, %v4094
        %v4147 = vmul.f32 %v1142, %v4096
        %v4148 = vmul.f32 %v1147, %v4098
        %v4149 = vmul.f32 %v1152, %v4100
        %v4150 = vmul.f32 %v1157, %v4102
        %v4151 = vmul.f32 %v1162, %v4104
        %v4152 = vmul.f32 %v1167, %v4106
        %v4153 = vmul.f32 %v1172, %v4108
        %v4154 = vmul.f32 %v1177, %v4110
        %v4155 = vmul.f32 %v1182, %v4112
        %v4156 = vmul.f32 %v1187, %v4114
        %v4157 = vmul.f32 %v1192, %v4116
        %v4158 = vmul.f32 %v1197, %v4118
        %v4159 = vmul.f32 %v1202, %v4120
        %v4160 = vmul.f32 %v1207, %v4122
        %v4161 = vmul.f32 %v1212, %v4124
        %v4162 = vmul.f32 %v1217, %v4126
        %v4163 = vmul.f32 %v1222, %v4128
        %v4164 = vmul.f32 %v1227, %v4130
        %v4165 = vmul.f32 %v1232, %v4132
        %v4166 = vmul.f32 %v1237, %v4134
        %v4167 = vadd.f32 %v2671, %v4135
        %v4168 = vadd.f32 %v2672, %v4136
        %v4169 = vadd.f32 %v2673, %v4137
        %v4170 = vadd.f32 %v2674, %v4138
        %v4171 = vadd.f32 %v2675, %v4139
        %v4172 = vadd.f32 %v2676, %v4140
        %v4173 = vadd.f32 %v2677, %v4141
        %v4174 = vadd.f32 %v2678, %v4142
        %v4175 = vadd.f32 %v2679, %v4143
        %v4176 = vadd.f32 %v2680, %v4144
        %v4177 = vadd.f32 %v2681, %v4145
        %v4178 = vadd.f32 %v2682, %v4146
        %v4179 = vadd.f32 %v2683, %v4147
        %v4180 = vadd.f32 %v2684, %v4148
        %v4181 = vadd.f32 %v2685, %v4149
        %v4182 = vadd.f32 %v2686, %v4150
        %v4183 = vadd.f32 %v2687, %v4151
        %v4184 = vadd.f32 %v2688, %v4152
        %v4185 = vadd.f32 %v2689, %v4153
        %v4186 = vadd.f32 %v2690, %v4154
        %v4187 = vadd.f32 %v2691, %v4155
        %v4188 = vadd.f32 %v2692, %v4156
        %v4189 = vadd.f32 %v2693, %v4157
        %v4190 = vadd.f32 %v2694, %v4158
        %v4191 = vadd.f32 %v2695, %v4159
        %v4192 = vadd.f32 %v2696, %v4160
        %v4193 = vadd.f32 %v2697, %v4161
        %v4194 = vadd.f32 %v2698, %v4162
        %v4195 = vadd.f32 %v2699, %v4163
        %v4196 = vadd.f32 %v2700, %v4164
        %v4197 = vadd.f32 %v2701, %v4165
        %v4198 = vadd.f32 %v2702, %v4166
        %v4199 = vsel %vm553, %v4167, 0.0
        %v4200 = vsel %vm553, %v4168, 0.0
        %v4201 = vadd.f32 %v4199, %v4200
        %v4202 = vsel %vm553, %v4169, 0.0
        %v4203 = vadd.f32 %v4201, %v4202
        %v4204 = vsel %vm553, %v4170, 0.0
        %v4205 = vadd.f32 %v4203, %v4204
        %v4206 = vrot.slane %v4205, 4
        %v4207 = vadd.f32 %v4205, %v4206
        %v4208 = vrot.slane %v4207, 2
        %v4209 = vadd.f32 %v4207, %v4208
        %v4210 = vrot.slane %v4209, 1
        %v4211 = vadd.f32 %v4209, %v4210
        %v4212 = vsel %vm553, %v4171, 0.0
        %v4213 = vsel %vm553, %v4172, 0.0
        %v4214 = vadd.f32 %v4212, %v4213
        %v4215 = vsel %vm553, %v4173, 0.0
        %v4216 = vadd.f32 %v4214, %v4215
        %v4217 = vsel %vm553, %v4174, 0.0
        %v4218 = vadd.f32 %v4216, %v4217
        %v4219 = vrot.slane %v4218, 4
        %v4220 = vadd.f32 %v4218, %v4219
        %v4221 = vrot.slane %v4220, 2
        %v4222 = vadd.f32 %v4220, %v4221
        %v4223 = vrot.slane %v4222, 1
        %v4224 = vadd.f32 %v4222, %v4223
        %v4225 = vsel %vm553, %v4175, 0.0
        %v4226 = vsel %vm553, %v4176, 0.0
        %v4227 = vadd.f32 %v4225, %v4226
        %v4228 = vsel %vm553, %v4177, 0.0
        %v4229 = vadd.f32 %v4227, %v4228
        %v4230 = vsel %vm553, %v4178, 0.0
        %v4231 = vadd.f32 %v4229, %v4230
        %v4232 = vrot.slane %v4231, 4
        %v4233 = vadd.f32 %v4231, %v4232
        %v4234 = vrot.slane %v4233, 2
        %v4235 = vadd.f32 %v4233, %v4234
        %v4236 = vrot.slane %v4235, 1
        %v4237 = vadd.f32 %v4235, %v4236
        %v4238 = vsel %vm553, %v4179, 0.0
        %v4239 = vsel %vm553, %v4180, 0.0
        %v4240 = vadd.f32 %v4238, %v4239
        %v4241 = vsel %vm553, %v4181, 0.0
        %v4242 = vadd.f32 %v4240, %v4241
        %v4243 = vsel %vm553, %v4182, 0.0
        %v4244 = vadd.f32 %v4242, %v4243
        %v4245 = vrot.slane %v4244, 4
        %v4246 = vadd.f32 %v4244, %v4245
        %v4247 = vrot.slane %v4246, 2
        %v4248 = vadd.f32 %v4246, %v4247
        %v4249 = vrot.slane %v4248, 1
        %v4250 = vadd.f32 %v4248, %v4249
        %v4251 = vsel %vm553, %v4183, 0.0
        %v4252 = vsel %vm553, %v4184, 0.0
        %v4253 = vadd.f32 %v4251, %v4252
        %v4254 = vsel %vm553, %v4185, 0.0
        %v4255 = vadd.f32 %v4253, %v4254
        %v4256 = vsel %vm553, %v4186, 0.0
        %v4257 = vadd.f32 %v4255, %v4256
        %v4258 = vrot.slane %v4257, 4
        %v4259 = vadd.f32 %v4257, %v4258
        %v4260 = vrot.slane %v4259, 2
        %v4261 = vadd.f32 %v4259, %v4260
        %v4262 = vrot.slane %v4261, 1
        %v4263 = vadd.f32 %v4261, %v4262
        %v4264 = vsel %vm553, %v4187, 0.0
        %v4265 = vsel %vm553, %v4188, 0.0
        %v4266 = vadd.f32 %v4264, %v4265
        %v4267 = vsel %vm553, %v4189, 0.0
        %v4268 = vadd.f32 %v4266, %v4267
        %v4269 = vsel %vm553, %v4190, 0.0
        %v4270 = vadd.f32 %v4268, %v4269
        %v4271 = vrot.slane %v4270, 4
        %v4272 = vadd.f32 %v4270, %v4271
        %v4273 = vrot.slane %v4272, 2
        %v4274 = vadd.f32 %v4272, %v4273
        %v4275 = vrot.slane %v4274, 1
        %v4276 = vadd.f32 %v4274, %v4275
        %v4277 = vsel %vm553, %v4191, 0.0
        %v4278 = vsel %vm553, %v4192, 0.0
        %v4279 = vadd.f32 %v4277, %v4278
        %v4280 = vsel %vm553, %v4193, 0.0
        %v4281 = vadd.f32 %v4279, %v4280
        %v4282 = vsel %vm553, %v4194, 0.0
        %v4283 = vadd.f32 %v4281, %v4282
        %v4284 = vrot.slane %v4283, 4
        %v4285 = vadd.f32 %v4283, %v4284
        %v4286 = vrot.slane %v4285, 2
        %v4287 = vadd.f32 %v4285, %v4286
        %v4288 = vrot.slane %v4287, 1
        %v4289 = vadd.f32 %v4287, %v4288
        %v4290 = vsel %vm553, %v4195, 0.0
        %v4291 = vsel %vm553, %v4196, 0.0
        %v4292 = vadd.f32 %v4290, %v4291
        %v4293 = vsel %vm553, %v4197, 0.0
        %v4294 = vadd.f32 %v4292, %v4293
        %v4295 = vsel %vm553, %v4198, 0.0
        %v4296 = vadd.f32 %v4294, %v4295
        %v4297 = vrot.slane %v4296, 4
        %v4298 = vadd.f32 %v4296, %v4297
        %v4299 = vrot.slane %v4298, 2
        %v4300 = vadd.f32 %v4298, %v4299
        %v4301 = vrot.slane %v4300, 1
        %v4302 = vadd.f32 %v4300, %v4301
        %v4303 = vrcp.pop 32.0
        %v4304 = vmul.f32 %v4211, %v4303
        %v4305 = vmul.f32 %v4224, %v4303
        %v4306 = vmul.f32 %v4237, %v4303
        %v4307 = vmul.f32 %v4250, %v4303
        %v4308 = vmul.f32 %v4263, %v4303
        %v4309 = vmul.f32 %v4276, %v4303
        %v4310 = vmul.f32 %v4289, %v4303
        %v4311 = vmul.f32 %v4302, %v4303
        %vm4320 = vcmask 1041409
        %v4321 = vsel %vm4320, %v4305, %v4304
        %vm4322 = vcmask 1042434
        %v4323 = vsel %vm4322, %v4306, %v4321
        %vm4324 = vcmask 1043459
        %v4325 = vsel %vm4324, %v4307, %v4323
        %vm4326 = vcmask 1044484
        %v4327 = vsel %vm4326, %v4308, %v4325
        %vm4328 = vcmask 1045509
        %v4329 = vsel %vm4328, %v4309, %v4327
        %vm4330 = vcmask 1046534
        %v4331 = vsel %vm4330, %v4310, %v4329
        %vm4332 = vcmask 1047559
        %v4333 = vsel %vm4332, %v4311, %v4331
        %4335 = vst.msk [vmem:[%s510] sm:$0xff] %vm553, %v4333
        %s4336 = scalar_lea.vmem %s3, 32
        %v4337 = vld [vmem:[%s4336] sm:$0xff]
        %v4338 = vld [vmem:[%s4336 + $0x8] sm:$0xff]
        %v4340 = vsel %vm553, %v2671, 0
        %v4343 = vsel %vm553, %v2672, 0
        %v4346 = vsel %vm553, %v2673, 0
        %v4349 = vsel %vm553, %v2674, 0
        %v4352 = vsel %vm553, %v2675, 0
        %v4355 = vsel %vm553, %v2676, 0
        %v4358 = vsel %vm553, %v2677, 0
        %v4361 = vsel %vm553, %v2678, 0
        %v4364 = vsel %vm553, %v2679, 0
        %v4367 = vsel %vm553, %v2680, 0
        %v4370 = vsel %vm553, %v2681, 0
        %v4373 = vsel %vm553, %v2682, 0
        %v4376 = vsel %vm553, %v2683, 0
        %v4379 = vsel %vm553, %v2684, 0
        %v4382 = vsel %vm553, %v2685, 0
        %v4385 = vsel %vm553, %v2686, 0
        %v4388 = vsel %vm553, %v2687, 0
        %v4391 = vsel %vm553, %v2688, 0
        %v4394 = vsel %vm553, %v2689, 0
        %v4397 = vsel %vm553, %v2690, 0
        %v4400 = vsel %vm553, %v2691, 0
        %v4403 = vsel %vm553, %v2692, 0
        %v4406 = vsel %vm553, %v2693, 0
        %v4409 = vsel %vm553, %v2694, 0
        %v4412 = vsel %vm553, %v2695, 0
        %v4415 = vsel %vm553, %v2696, 0
        %v4418 = vsel %vm553, %v2697, 0
        %v4421 = vsel %vm553, %v2698, 0
        %v4424 = vsel %vm553, %v2699, 0
        %v4427 = vsel %vm553, %v2700, 0
        %v4430 = vsel %vm553, %v2701, 0
        %v4433 = vsel %vm553, %v2702, 0
        %4435 = vmatprep.subr.mxu0 0.0
        %4436 = vmatpush1.msra.mxu0 %v4337
        %4437 = vmatprep.subr.mxu0 0.0
        %4438 = vmatpush1.msra.mxu0 %v4338
        %4439 = vmatprep.subr.mxu0 0.0
        %4440 = vmatpush1.msra.mxu0 0.0
        %4441 = vmatprep.subr.mxu0 0.0
        %4442 = vmatpush1.msra.mxu0 0.0
        %4443 = vmatprep.subr.mxu0 0.0
        %4444 = vmatpush1.msra.mxu0 0.0
        %4445 = vmatprep.subr.mxu0 0.0
        %4446 = vmatpush1.msra.mxu0 0.0
        %4447 = vmatprep.subr.mxu0 0.0
        %4448 = vmatpush1.msra.mxu0 0.0
        %4449 = vmatprep.subr.mxu0 0.0
        %4450 = vmatpush1.msra.mxu0 0.0
        %4451 = vmatprep.subr.mxu0 0.0
        %4452 = vmatpush1.msra.mxu0 0.0
        %4453 = vmatprep.subr.mxu0 0.0
        %4454 = vmatpush1.msra.mxu0 0.0
        %4455 = vmatprep.subr.mxu0 0.0
        %4456 = vmatpush1.msra.mxu0 0.0
        %4457 = vmatprep.subr.mxu0 0.0
        %4458 = vmatpush1.msra.mxu0 0.0
        %4459 = vmatprep.subr.mxu0 0.0
        %4460 = vmatpush1.msra.mxu0 0.0
        %4461 = vmatprep.subr.mxu0 0.0
        %4462 = vmatpush1.msra.mxu0 0.0
        %4463 = vmatprep.subr.mxu0 0.0
        %4464 = vmatpush1.msra.mxu0 0.0
        %4465 = vmatprep.subr.mxu0 0.0
        %4466 = vmatpush1.msra.mxu0 0.0
        %4467 = vmatprep.subr.mxu0 0.0
        %4468 = vmatpush1.msra.mxu0 0.0
        %4469 = vmatprep.subr.mxu0 0.0
        %4470 = vmatpush1.msra.mxu0 0.0
        %4471 = vmatprep.subr.mxu0 0.0
        %4472 = vmatpush1.msra.mxu0 0.0
        %4473 = vmatprep.subr.mxu0 0.0
        %4474 = vmatpush1.msra.mxu0 0.0
        %4475 = vmatprep.subr.mxu0 0.0
        %4476 = vmatpush1.msra.mxu0 0.0
        %4477 = vmatprep.subr.mxu0 0.0
        %4478 = vmatpush1.msra.mxu0 0.0
        %4479 = vmatprep.subr.mxu0 0.0
        %4480 = vmatpush1.msra.mxu0 0.0
        %4481 = vmatprep.subr.mxu0 0.0
        %4482 = vmatpush1.msra.mxu0 0.0
        %4483 = vmatprep.subr.mxu0 0.0
        %4484 = vmatpush1.msra.mxu0 0.0
        %4485 = vmatprep.subr.mxu0 0.0
        %4486 = vmatpush1.msra.mxu0 0.0
        %4487 = vmatprep.subr.mxu0 0.0
        %4488 = vmatpush1.msra.mxu0 0.0
        %4489 = vmatprep.subr.mxu0 0.0
        %4490 = vmatpush1.msra.mxu0 0.0
        %4491 = vmatprep.subr.mxu0 0.0
        %4492 = vmatpush1.msra.mxu0 0.0
        %4493 = vmatprep.subr.mxu0 0.0
        %4494 = vmatpush1.msra.mxu0 0.0
        %4495 = vmatprep.subr.mxu0 0.0
        %4496 = vmatpush1.msra.mxu0 0.0
        %4497 = vmatprep.subr.mxu0 0.0
        %4498 = vmatpush1.msra.mxu0 0.0
        %4499 = vmatprep.mubr.f32.mxu0 0.0
        %4500 = vmatmul.mubr.f32.gmra.mrb[0].mxu0 %v4340
        %v4501 = vpop.f32.mrb[0].mxu0
        %v4502 = vadd.f32 0.0, %v4501
        %v4503 = vpop.f32.mrb[0].mxu0
        %4504 = vmatprep.mubr.f32.mxu0 0.0
        %4505 = vmatmul.mubr.f32.gmra.mrb[0].mxu0 %v4343
        %v4506 = vpop.f32.mrb[0].mxu0
        %v4507 = vadd.f32 0.0, %v4506
        %v4508 = vpop.f32.mrb[0].mxu0
        %4509 = vmatprep.mubr.f32.mxu0 0.0
        %4510 = vmatmul.mubr.f32.gmra.mrb[0].mxu0 %v4346
        %v4511 = vpop.f32.mrb[0].mxu0
        %v4512 = vadd.f32 0.0, %v4511
        %v4513 = vpop.f32.mrb[0].mxu0
        %4514 = vmatprep.mubr.f32.mxu0 0.0
        %4515 = vmatmul.mubr.f32.gmra.mrb[0].mxu0 %v4349
        %v4516 = vpop.f32.mrb[0].mxu0
        %v4517 = vadd.f32 0.0, %v4516
        %v4518 = vpop.f32.mrb[0].mxu0
        %4519 = vmatprep.mubr.f32.mxu0 0.0
        %4520 = vmatmul.mubr.f32.gmra.mrb[0].mxu0 %v4352
        %v4521 = vpop.f32.mrb[0].mxu0
        %v4522 = vadd.f32 0.0, %v4521
        %v4523 = vpop.f32.mrb[0].mxu0
        %4524 = vmatprep.mubr.f32.mxu0 0.0
        %4525 = vmatmul.mubr.f32.gmra.mrb[0].mxu0 %v4355
        %v4526 = vpop.f32.mrb[0].mxu0
        %v4527 = vadd.f32 0.0, %v4526
        %v4528 = vpop.f32.mrb[0].mxu0
        %4529 = vmatprep.mubr.f32.mxu0 0.0
        %4530 = vmatmul.mubr.f32.gmra.mrb[0].mxu0 %v4358
        %v4531 = vpop.f32.mrb[0].mxu0
        %v4532 = vadd.f32 0.0, %v4531
        %v4533 = vpop.f32.mrb[0].mxu0
        %4534 = vmatprep.mubr.f32.mxu0 0.0
        %4535 = vmatmul.mubr.f32.gmra.mrb[0].mxu0 %v4361
        %v4536 = vpop.f32.mrb[0].mxu0
        %v4537 = vadd.f32 0.0, %v4536
        %v4538 = vpop.f32.mrb[0].mxu0
        %4539 = vmatprep.mubr.f32.mxu0 0.0
        %4540 = vmatmul.mubr.f32.gmra.mrb[0].mxu0 %v4364
        %v4541 = vpop.f32.mrb[0].mxu0
        %v4542 = vadd.f32 0.0, %v4541
        %v4543 = vpop.f32.mrb[0].mxu0
        %4544 = vmatprep.mubr.f32.mxu0 0.0
        %4545 = vmatmul.mubr.f32.gmra.mrb[0].mxu0 %v4367
        %v4546 = vpop.f32.mrb[0].mxu0
        %v4547 = vadd.f32 0.0, %v4546
        %v4548 = vpop.f32.mrb[0].mxu0
        %4549 = vmatprep.mubr.f32.mxu0 0.0
        %4550 = vmatmul.mubr.f32.gmra.mrb[0].mxu0 %v4370
        %v4551 = vpop.f32.mrb[0].mxu0
        %v4552 = vadd.f32 0.0, %v4551
        %v4553 = vpop.f32.mrb[0].mxu0
        %4554 = vmatprep.mubr.f32.mxu0 0.0
        %4555 = vmatmul.mubr.f32.gmra.mrb[0].mxu0 %v4373
        %v4556 = vpop.f32.mrb[0].mxu0
        %v4557 = vadd.f32 0.0, %v4556
        %v4558 = vpop.f32.mrb[0].mxu0
        %4559 = vmatprep.mubr.f32.mxu0 0.0
        %4560 = vmatmul.mubr.f32.gmra.mrb[0].mxu0 %v4376
        %v4561 = vpop.f32.mrb[0].mxu0
        %v4562 = vadd.f32 0.0, %v4561
        %v4563 = vpop.f32.mrb[0].mxu0
        %4564 = vmatprep.mubr.f32.mxu0 0.0
        %4565 = vmatmul.mubr.f32.gmra.mrb[0].mxu0 %v4379
        %v4566 = vpop.f32.mrb[0].mxu0
        %v4567 = vadd.f32 0.0, %v4566
        %v4568 = vpop.f32.mrb[0].mxu0
        %4569 = vmatprep.mubr.f32.mxu0 0.0
        %4570 = vmatmul.mubr.f32.gmra.mrb[0].mxu0 %v4382
        %v4571 = vpop.f32.mrb[0].mxu0
        %v4572 = vadd.f32 0.0, %v4571
        %v4573 = vpop.f32.mrb[0].mxu0
        %4574 = vmatprep.mubr.f32.mxu0 0.0
        %4575 = vmatmul.mubr.f32.gmra.mrb[0].mxu0 %v4385
        %v4576 = vpop.f32.mrb[0].mxu0
        %v4577 = vadd.f32 0.0, %v4576
        %v4578 = vpop.f32.mrb[0].mxu0
        %4579 = vmatprep.mubr.f32.mxu0 0.0
        %4580 = vmatmul.mubr.f32.gmra.mrb[0].mxu0 %v4388
        %v4581 = vpop.f32.mrb[0].mxu0
        %v4582 = vadd.f32 0.0, %v4581
        %v4583 = vpop.f32.mrb[0].mxu0
        %4584 = vmatprep.mubr.f32.mxu0 0.0
        %4585 = vmatmul.mubr.f32.gmra.mrb[0].mxu0 %v4391
        %v4586 = vpop.f32.mrb[0].mxu0
        %v4587 = vadd.f32 0.0, %v4586
        %v4588 = vpop.f32.mrb[0].mxu0
        %4589 = vmatprep.mubr.f32.mxu0 0.0
        %4590 = vmatmul.mubr.f32.gmra.mrb[0].mxu0 %v4394
        %v4591 = vpop.f32.mrb[0].mxu0
        %v4592 = vadd.f32 0.0, %v4591
        %v4593 = vpop.f32.mrb[0].mxu0
        %4594 = vmatprep.mubr.f32.mxu0 0.0
        %4595 = vmatmul.mubr.f32.gmra.mrb[0].mxu0 %v4397
        %v4596 = vpop.f32.mrb[0].mxu0
        %v4597 = vadd.f32 0.0, %v4596
        %v4598 = vpop.f32.mrb[0].mxu0
        %4599 = vmatprep.mubr.f32.mxu0 0.0
        %4600 = vmatmul.mubr.f32.gmra.mrb[0].mxu0 %v4400
        %v4601 = vpop.f32.mrb[0].mxu0
        %v4602 = vadd.f32 0.0, %v4601
        %v4603 = vpop.f32.mrb[0].mxu0
        %4604 = vmatprep.mubr.f32.mxu0 0.0
        %4605 = vmatmul.mubr.f32.gmra.mrb[0].mxu0 %v4403
        %v4606 = vpop.f32.mrb[0].mxu0
        %v4607 = vadd.f32 0.0, %v4606
        %v4608 = vpop.f32.mrb[0].mxu0
        %4609 = vmatprep.mubr.f32.mxu0 0.0
        %4610 = vmatmul.mubr.f32.gmra.mrb[0].mxu0 %v4406
        %v4611 = vpop.f32.mrb[0].mxu0
        %v4612 = vadd.f32 0.0, %v4611
        %v4613 = vpop.f32.mrb[0].mxu0
        %4614 = vmatprep.mubr.f32.mxu0 0.0
        %4615 = vmatmul.mubr.f32.gmra.mrb[0].mxu0 %v4409
        %v4616 = vpop.f32.mrb[0].mxu0
        %v4617 = vadd.f32 0.0, %v4616
        %v4618 = vpop.f32.mrb[0].mxu0
        %4619 = vmatprep.mubr.f32.mxu0 0.0
        %4620 = vmatmul.mubr.f32.gmra.mrb[0].mxu0 %v4412
        %v4621 = vpop.f32.mrb[0].mxu0
        %v4622 = vadd.f32 0.0, %v4621
        %v4623 = vpop.f32.mrb[0].mxu0
        %4624 = vmatprep.mubr.f32.mxu0 0.0
        %4625 = vmatmul.mubr.f32.gmra.mrb[0].mxu0 %v4415
        %v4626 = vpop.f32.mrb[0].mxu0
        %v4627 = vadd.f32 0.0, %v4626
        %v4628 = vpop.f32.mrb[0].mxu0
        %4629 = vmatprep.mubr.f32.mxu0 0.0
        %4630 = vmatmul.mubr.f32.gmra.mrb[0].mxu0 %v4418
        %v4631 = vpop.f32.mrb[0].mxu0
        %v4632 = vadd.f32 0.0, %v4631
        %v4633 = vpop.f32.mrb[0].mxu0
        %4634 = vmatprep.mubr.f32.mxu0 0.0
        %4635 = vmatmul.mubr.f32.gmra.mrb[0].mxu0 %v4421
        %v4636 = vpop.f32.mrb[0].mxu0
        %v4637 = vadd.f32 0.0, %v4636
        %v4638 = vpop.f32.mrb[0].mxu0
        %4639 = vmatprep.mubr.f32.mxu0 0.0
        %4640 = vmatmul.mubr.f32.gmra.mrb[0].mxu0 %v4424
        %v4641 = vpop.f32.mrb[0].mxu0
        %v4642 = vadd.f32 0.0, %v4641
        %v4643 = vpop.f32.mrb[0].mxu0
        %4644 = vmatprep.mubr.f32.mxu0 0.0
        %4645 = vmatmul.mubr.f32.gmra.mrb[0].mxu0 %v4427
        %v4646 = vpop.f32.mrb[0].mxu0
        %v4647 = vadd.f32 0.0, %v4646
        %v4648 = vpop.f32.mrb[0].mxu0
        %4649 = vmatprep.mubr.f32.mxu0 0.0
        %4650 = vmatmul.mubr.f32.gmra.mrb[0].mxu0 %v4430
        %v4651 = vpop.f32.mrb[0].mxu0
        %v4652 = vadd.f32 0.0, %v4651
        %v4653 = vpop.f32.mrb[0].mxu0
        %4654 = vmatprep.mubr.f32.mxu0 0.0
        %4655 = vmatmul.mubr.f32.gmra.mrb[0].mxu0 %v4433
        %v4656 = vpop.f32.mrb[0].mxu0
        %v4657 = vadd.f32 0.0, %v4656
        %v4658 = vpop.f32.mrb[0].mxu0
        %4659 = vdwg.mxu0
        %vm4692 = vcmask 1041408
        %v4693 = vrot.slane %v4502, 6
        %v4694 = vrot.slane %v4507, 6
        %v4695 = vsel %vm4692, %v4693, %v4694
        %v4696 = vrot.slane %v4512, 6
        %v4697 = vsel %vm4692, %v4694, %v4696
        %v4698 = vrot.slane %v4517, 6
        %v4699 = vsel %vm4692, %v4696, %v4698
        %v4700 = vrot.slane %v4522, 6
        %v4701 = vrot.slane %v4527, 6
        %v4702 = vsel %vm4692, %v4700, %v4701
        %v4703 = vrot.slane %v4532, 6
        %v4704 = vsel %vm4692, %v4701, %v4703
        %v4705 = vrot.slane %v4537, 6
        %v4706 = vsel %vm4692, %v4703, %v4705
        %v4707 = vrot.slane %v4542, 6
        %v4708 = vrot.slane %v4547, 6
        %v4709 = vsel %vm4692, %v4707, %v4708
        %v4710 = vrot.slane %v4552, 6
        %v4711 = vsel %vm4692, %v4708, %v4710
        %v4712 = vrot.slane %v4557, 6
        %v4713 = vsel %vm4692, %v4710, %v4712
        %v4714 = vrot.slane %v4562, 6
        %v4715 = vrot.slane %v4567, 6
        %v4716 = vsel %vm4692, %v4714, %v4715
        %v4717 = vrot.slane %v4572, 6
        %v4718 = vsel %vm4692, %v4715, %v4717
        %v4719 = vrot.slane %v4577, 6
        %v4720 = vsel %vm4692, %v4717, %v4719
        %v4721 = vrot.slane %v4582, 6
        %v4722 = vrot.slane %v4587, 6
        %v4723 = vsel %vm4692, %v4721, %v4722
        %v4724 = vrot.slane %v4592, 6
        %v4725 = vsel %vm4692, %v4722, %v4724
        %v4726 = vrot.slane %v4597, 6
        %v4727 = vsel %vm4692, %v4724, %v4726
        %v4728 = vrot.slane %v4602, 6
        %v4729 = vrot.slane %v4607, 6
        %v4730 = vsel %vm4692, %v4728, %v4729
        %v4731 = vrot.slane %v4612, 6
        %v4732 = vsel %vm4692, %v4729, %v4731
        %v4733 = vrot.slane %v4617, 6
        %v4734 = vsel %vm4692, %v4731, %v4733
        %v4735 = vrot.slane %v4622, 6
        %v4736 = vrot.slane %v4627, 6
        %v4737 = vsel %vm4692, %v4735, %v4736
        %v4738 = vrot.slane %v4632, 6
        %v4739 = vsel %vm4692, %v4736, %v4738
        %v4740 = vrot.slane %v4637, 6
        %v4741 = vsel %vm4692, %v4738, %v4740
        %v4742 = vrot.slane %v4642, 6
        %v4743 = vrot.slane %v4647, 6
        %v4744 = vsel %vm4692, %v4742, %v4743
        %v4745 = vrot.slane %v4652, 6
        %v4746 = vsel %vm4692, %v4743, %v4745
        %v4747 = vrot.slane %v4657, 6
        %v4748 = vsel %vm4692, %v4745, %v4747
        %4749 = vrot.lane.b32.xlu0 %v4693, 112
        %v4750 = vpop.permute.xlu0 %4749
        %4751 = vrot.lane.b32.xlu0 %v4695, 112
        %v4752 = vpop.permute.xlu0 %4751
        %4753 = vrot.lane.b32.xlu0 %v4697, 112
        %v4754 = vpop.permute.xlu0 %4753
        %4755 = vrot.lane.b32.xlu0 %v4699, 112
        %v4756 = vpop.permute.xlu0 %4755
        %4757 = vrot.lane.b32.xlu0 %v4700, 112
        %v4758 = vpop.permute.xlu0 %4757
        %4759 = vrot.lane.b32.xlu0 %v4702, 112
        %v4760 = vpop.permute.xlu0 %4759
        %4761 = vrot.lane.b32.xlu0 %v4704, 112
        %v4762 = vpop.permute.xlu0 %4761
        %4763 = vrot.lane.b32.xlu0 %v4706, 112
        %v4764 = vpop.permute.xlu0 %4763
        %4765 = vrot.lane.b32.xlu0 %v4707, 112
        %v4766 = vpop.permute.xlu0 %4765
        %4767 = vrot.lane.b32.xlu0 %v4709, 112
        %v4768 = vpop.permute.xlu0 %4767
        %4769 = vrot.lane.b32.xlu0 %v4711, 112
        %v4770 = vpop.permute.xlu0 %4769
        %4771 = vrot.lane.b32.xlu0 %v4713, 112
        %v4772 = vpop.permute.xlu0 %4771
        %4773 = vrot.lane.b32.xlu0 %v4714, 112
        %v4774 = vpop.permute.xlu0 %4773
        %4775 = vrot.lane.b32.xlu0 %v4716, 112
        %v4776 = vpop.permute.xlu0 %4775
        %4777 = vrot.lane.b32.xlu0 %v4718, 112
        %v4778 = vpop.permute.xlu0 %4777
        %4779 = vrot.lane.b32.xlu0 %v4720, 112
        %v4780 = vpop.permute.xlu0 %4779
        %4781 = vrot.lane.b32.xlu0 %v4721, 112
        %v4782 = vpop.permute.xlu0 %4781
        %4783 = vrot.lane.b32.xlu0 %v4723, 112
        %v4784 = vpop.permute.xlu0 %4783
        %4785 = vrot.lane.b32.xlu0 %v4725, 112
        %v4786 = vpop.permute.xlu0 %4785
        %4787 = vrot.lane.b32.xlu0 %v4727, 112
        %v4788 = vpop.permute.xlu0 %4787
        %4789 = vrot.lane.b32.xlu0 %v4728, 112
        %v4790 = vpop.permute.xlu0 %4789
        %4791 = vrot.lane.b32.xlu0 %v4730, 112
        %v4792 = vpop.permute.xlu0 %4791
        %4793 = vrot.lane.b32.xlu0 %v4732, 112
        %v4794 = vpop.permute.xlu0 %4793
        %4795 = vrot.lane.b32.xlu0 %v4734, 112
        %v4796 = vpop.permute.xlu0 %4795
        %4797 = vrot.lane.b32.xlu0 %v4735, 112
        %v4798 = vpop.permute.xlu0 %4797
        %4799 = vrot.lane.b32.xlu0 %v4737, 112
        %v4800 = vpop.permute.xlu0 %4799
        %4801 = vrot.lane.b32.xlu0 %v4739, 112
        %v4802 = vpop.permute.xlu0 %4801
        %4803 = vrot.lane.b32.xlu0 %v4741, 112
        %v4804 = vpop.permute.xlu0 %4803
        %4805 = vrot.lane.b32.xlu0 %v4742, 112
        %v4806 = vpop.permute.xlu0 %4805
        %4807 = vrot.lane.b32.xlu0 %v4744, 112
        %v4808 = vpop.permute.xlu0 %4807
        %4809 = vrot.lane.b32.xlu0 %v4746, 112
        %v4810 = vpop.permute.xlu0 %4809
        %4811 = vrot.lane.b32.xlu0 %v4748, 112
        %v4812 = vpop.permute.xlu0 %4811
        %v4845 = vsel %vm4692, 0.0, %v4750
        %v4846 = vsel %vm4692, 0.0, %v4758
        %v4847 = vsel %vm4692, 0.0, %v4766
        %v4848 = vsel %vm4692, 0.0, %v4774
        %v4849 = vsel %vm4692, 0.0, %v4782
        %v4850 = vsel %vm4692, 0.0, %v4790
        %v4851 = vsel %vm4692, 0.0, %v4798
        %v4852 = vsel %vm4692, 0.0, %v4806
        %v4853 = vadd.f32 %v4502, %v4845
        %v4854 = vadd.f32 %v4507, %v4752
        %v4855 = vadd.f32 %v4512, %v4754
        %v4856 = vadd.f32 %v4517, %v4756
        %v4857 = vadd.f32 %v4522, %v4846
        %v4858 = vadd.f32 %v4527, %v4760
        %v4859 = vadd.f32 %v4532, %v4762
        %v4860 = vadd.f32 %v4537, %v4764
        %v4861 = vadd.f32 %v4542, %v4847
        %v4862 = vadd.f32 %v4547, %v4768
        %v4863 = vadd.f32 %v4552, %v4770
        %v4864 = vadd.f32 %v4557, %v4772
        %v4865 = vadd.f32 %v4562, %v4848
        %v4866 = vadd.f32 %v4567, %v4776
        %v4867 = vadd.f32 %v4572, %v4778
        %v4868 = vadd.f32 %v4577, %v4780
        %v4869 = vadd.f32 %v4582, %v4849
        %v4870 = vadd.f32 %v4587, %v4784
        %v4871 = vadd.f32 %v4592, %v4786
        %v4872 = vadd.f32 %v4597, %v4788
        %v4873 = vadd.f32 %v4602, %v4850
        %v4874 = vadd.f32 %v4607, %v4792
        %v4875 = vadd.f32 %v4612, %v4794
        %v4876 = vadd.f32 %v4617, %v4796
        %v4877 = vadd.f32 %v4622, %v4851
        %v4878 = vadd.f32 %v4627, %v4800
        %v4879 = vadd.f32 %v4632, %v4802
        %v4880 = vadd.f32 %v4637, %v4804
        %v4881 = vadd.f32 %v4642, %v4852
        %v4882 = vadd.f32 %v4647, %v4808
        %v4883 = vadd.f32 %v4652, %v4810
        %v4884 = vadd.f32 %v4657, %v4812
        %s4885 = scalar_lea.vmem %s4, 2
        %v4886 = vld [vmem:[%s4885] sm:$0x1]
        %v4888 = vlaneseq
        %v4889 = vshrl.u32 %v4888, 7
        %v4890 = vsub.s32 0, %v4889
        %v4891 = vrot.slane %v4886, %v4890
        %v4893 = vadd.f32 %v4853, %v4891
        %v4894 = vadd.f32 %v4854, %v4891
        %v4895 = vadd.f32 %v4855, %v4891
        %v4896 = vadd.f32 %v4856, %v4891
        %v4897 = vadd.f32 %v4857, %v4891
        %v4898 = vadd.f32 %v4858, %v4891
        %v4899 = vadd.f32 %v4859, %v4891
        %v4900 = vadd.f32 %v4860, %v4891
        %v4901 = vadd.f32 %v4861, %v4891
        %v4902 = vadd.f32 %v4862, %v4891
        %v4903 = vadd.f32 %v4863, %v4891
        %v4904 = vadd.f32 %v4864, %v4891
        %v4905 = vadd.f32 %v4865, %v4891
        %v4906 = vadd.f32 %v4866, %v4891
        %v4907 = vadd.f32 %v4867, %v4891
        %v4908 = vadd.f32 %v4868, %v4891
        %v4909 = vadd.f32 %v4869, %v4891
        %v4910 = vadd.f32 %v4870, %v4891
        %v4911 = vadd.f32 %v4871, %v4891
        %v4912 = vadd.f32 %v4872, %v4891
        %v4913 = vadd.f32 %v4873, %v4891
        %v4914 = vadd.f32 %v4874, %v4891
        %v4915 = vadd.f32 %v4875, %v4891
        %v4916 = vadd.f32 %v4876, %v4891
        %v4917 = vadd.f32 %v4877, %v4891
        %v4918 = vadd.f32 %v4878, %v4891
        %v4919 = vadd.f32 %v4879, %v4891
        %v4920 = vadd.f32 %v4880, %v4891
        %v4921 = vadd.f32 %v4881, %v4891
        %v4922 = vadd.f32 %v4882, %v4891
        %v4923 = vadd.f32 %v4883, %v4891
        %v4924 = vadd.f32 %v4884, %v4891
        %v4925 = vmax.f32 %v4893, 0.0
        %v4926 = vmax.f32 %v4894, 0.0
        %v4927 = vmax.f32 %v4895, 0.0
        %v4928 = vmax.f32 %v4896, 0.0
        %v4929 = vmax.f32 %v4897, 0.0
        %v4930 = vmax.f32 %v4898, 0.0
        %v4931 = vmax.f32 %v4899, 0.0
        %v4932 = vmax.f32 %v4900, 0.0
        %v4933 = vmax.f32 %v4901, 0.0
        %v4934 = vmax.f32 %v4902, 0.0
        %v4935 = vmax.f32 %v4903, 0.0
        %v4936 = vmax.f32 %v4904, 0.0
        %v4937 = vmax.f32 %v4905, 0.0
        %v4938 = vmax.f32 %v4906, 0.0
        %v4939 = vmax.f32 %v4907, 0.0
        %v4940 = vmax.f32 %v4908, 0.0
        %v4941 = vmax.f32 %v4909, 0.0
        %v4942 = vmax.f32 %v4910, 0.0
        %v4943 = vmax.f32 %v4911, 0.0
        %v4944 = vmax.f32 %v4912, 0.0
        %v4945 = vmax.f32 %v4913, 0.0
        %v4946 = vmax.f32 %v4914, 0.0
        %v4947 = vmax.f32 %v4915, 0.0
        %v4948 = vmax.f32 %v4916, 0.0
        %v4949 = vmax.f32 %v4917, 0.0
        %v4950 = vmax.f32 %v4918, 0.0
        %v4951 = vmax.f32 %v4919, 0.0
        %v4952 = vmax.f32 %v4920, 0.0
        %v4953 = vmax.f32 %v4921, 0.0
        %v4954 = vmax.f32 %v4922, 0.0
        %v4955 = vmax.f32 %v4923, 0.0
        %v4956 = vmax.f32 %v4924, 0.0
        %s4957 = scalar_lea.vmem %s3, 48
        %v4958 = vld [vmem:[%s4957] sm:$0xff]
        %v4959 = vld [vmem:[%s4957 + $0x8] sm:$0xff]
        %v4961 = vsel %vm553, %v4925, 0
        %v4964 = vsel %vm553, %v4926, 0
        %v4967 = vsel %vm553, %v4927, 0
        %v4970 = vsel %vm553, %v4928, 0
        %v4973 = vsel %vm553, %v4929, 0
        %v4976 = vsel %vm553, %v4930, 0
        %v4979 = vsel %vm553, %v4931, 0
        %v4982 = vsel %vm553, %v4932, 0
        %v4985 = vsel %vm553, %v4933, 0
        %v4988 = vsel %vm553, %v4934, 0
        %v4991 = vsel %vm553, %v4935, 0
        %v4994 = vsel %vm553, %v4936, 0
        %v4997 = vsel %vm553, %v4937, 0
        %v5000 = vsel %vm553, %v4938, 0
        %v5003 = vsel %vm553, %v4939, 0
        %v5006 = vsel %vm553, %v4940, 0
        %v5009 = vsel %vm553, %v4941, 0
        %v5012 = vsel %vm553, %v4942, 0
        %v5015 = vsel %vm553, %v4943, 0
        %v5018 = vsel %vm553, %v4944, 0
        %v5021 = vsel %vm553, %v4945, 0
        %v5024 = vsel %vm553, %v4946, 0
        %v5027 = vsel %vm553, %v4947, 0
        %v5030 = vsel %vm553, %v4948, 0
        %v5033 = vsel %vm553, %v4949, 0
        %v5036 = vsel %vm553, %v4950, 0
        %v5039 = vsel %vm553, %v4951, 0
        %v5042 = vsel %vm553, %v4952, 0
        %v5045 = vsel %vm553, %v4953, 0
        %v5048 = vsel %vm553, %v4954, 0
        %v5051 = vsel %vm553, %v4955, 0
        %v5054 = vsel %vm553, %v4956, 0
        %5056 = vmatprep.subr.mxu0 0.0
        %5057 = vmatpush1.msra.mxu0 %v4958
        %5058 = vmatprep.subr.mxu0 0.0
        %5059 = vmatpush1.msra.mxu0 %v4959
        %5060 = vmatprep.subr.mxu0 0.0
        %5061 = vmatpush1.msra.mxu0 0.0
        %5062 = vmatprep.subr.mxu0 0.0
        %5063 = vmatpush1.msra.mxu0 0.0
        %5064 = vmatprep.subr.mxu0 0.0
        %5065 = vmatpush1.msra.mxu0 0.0
        %5066 = vmatprep.subr.mxu0 0.0
        %5067 = vmatpush1.msra.mxu0 0.0
        %5068 = vmatprep.subr.mxu0 0.0
        %5069 = vmatpush1.msra.mxu0 0.0
        %5070 = vmatprep.subr.mxu0 0.0
        %5071 = vmatpush1.msra.mxu0 0.0
        %5072 = vmatprep.subr.mxu0 0.0
        %5073 = vmatpush1.msra.mxu0 0.0
        %5074 = vmatprep.subr.mxu0 0.0
        %5075 = vmatpush1.msra.mxu0 0.0
        %5076 = vmatprep.subr.mxu0 0.0
        %5077 = vmatpush1.msra.mxu0 0.0
        %5078 = vmatprep.subr.mxu0 0.0
        %5079 = vmatpush1.msra.mxu0 0.0
        %5080 = vmatprep.subr.mxu0 0.0
        %5081 = vmatpush1.msra.mxu0 0.0
        %5082 = vmatprep.subr.mxu0 0.0
        %5083 = vmatpush1.msra.mxu0 0.0
        %5084 = vmatprep.subr.mxu0 0.0
        %5085 = vmatpush1.msra.mxu0 0.0
        %5086 = vmatprep.subr.mxu0 0.0
        %5087 = vmatpush1.msra.mxu0 0.0
        %5088 = vmatprep.subr.mxu0 0.0
        %5089 = vmatpush1.msra.mxu0 0.0
        %5090 = vmatprep.subr.mxu0 0.0
        %5091 = vmatpush1.msra.mxu0 0.0
        %5092 = vmatprep.subr.mxu0 0.0
        %5093 = vmatpush1.msra.mxu0 0.0
        %5094 = vmatprep.subr.mxu0 0.0
        %5095 = vmatpush1.msra.mxu0 0.0
        %5096 = vmatprep.subr.mxu0 0.0
        %5097 = vmatpush1.msra.mxu0 0.0
        %5098 = vmatprep.subr.mxu0 0.0
        %5099 = vmatpush1.msra.mxu0 0.0
        %5100 = vmatprep.subr.mxu0 0.0
        %5101 = vmatpush1.msra.mxu0 0.0
        %5102 = vmatprep.subr.mxu0 0.0
        %5103 = vmatpush1.msra.mxu0 0.0
        %5104 = vmatprep.subr.mxu0 0.0
        %5105 = vmatpush1.msra.mxu0 0.0
        %5106 = vmatprep.subr.mxu0 0.0
        %5107 = vmatpush1.msra.mxu0 0.0
        %5108 = vmatprep.subr.mxu0 0.0
        %5109 = vmatpush1.msra.mxu0 0.0
        %5110 = vmatprep.subr.mxu0 0.0
        %5111 = vmatpush1.msra.mxu0 0.0
        %5112 = vmatprep.subr.mxu0 0.0
        %5113 = vmatpush1.msra.mxu0 0.0
        %5114 = vmatprep.subr.mxu0 0.0
        %5115 = vmatpush1.msra.mxu0 0.0
        %5116 = vmatprep.subr.mxu0 0.0
        %5117 = vmatpush1.msra.mxu0 0.0
        %5118 = vmatprep.subr.mxu0 0.0
        %5119 = vmatpush1.msra.mxu0 0.0
        %5120 = vmatprep.mubr.f32.mxu0 0.0
        %5121 = vmatmul.mubr.f32.gmra.mrb[0].mxu0 %v4961
        %v5122 = vpop.f32.mrb[0].mxu0
        %v5123 = vadd.f32 0.0, %v5122
        %v5124 = vpop.f32.mrb[0].mxu0
        %5125 = vmatprep.mubr.f32.mxu0 0.0
        %5126 = vmatmul.mubr.f32.gmra.mrb[0].mxu0 %v4964
        %v5127 = vpop.f32.mrb[0].mxu0
        %v5128 = vadd.f32 0.0, %v5127
        %v5129 = vpop.f32.mrb[0].mxu0
        %5130 = vmatprep.mubr.f32.mxu0 0.0
        %5131 = vmatmul.mubr.f32.gmra.mrb[0].mxu0 %v4967
        %v5132 = vpop.f32.mrb[0].mxu0
        %v5133 = vadd.f32 0.0, %v5132
        %v5134 = vpop.f32.mrb[0].mxu0
        %5135 = vmatprep.mubr.f32.mxu0 0.0
        %5136 = vmatmul.mubr.f32.gmra.mrb[0].mxu0 %v4970
        %v5137 = vpop.f32.mrb[0].mxu0
        %v5138 = vadd.f32 0.0, %v5137
        %v5139 = vpop.f32.mrb[0].mxu0
        %5140 = vmatprep.mubr.f32.mxu0 0.0
        %5141 = vmatmul.mubr.f32.gmra.mrb[0].mxu0 %v4973
        %v5142 = vpop.f32.mrb[0].mxu0
        %v5143 = vadd.f32 0.0, %v5142
        %v5144 = vpop.f32.mrb[0].mxu0
        %5145 = vmatprep.mubr.f32.mxu0 0.0
        %5146 = vmatmul.mubr.f32.gmra.mrb[0].mxu0 %v4976
        %v5147 = vpop.f32.mrb[0].mxu0
        %v5148 = vadd.f32 0.0, %v5147
        %v5149 = vpop.f32.mrb[0].mxu0
        %5150 = vmatprep.mubr.f32.mxu0 0.0
        %5151 = vmatmul.mubr.f32.gmra.mrb[0].mxu0 %v4979
        %v5152 = vpop.f32.mrb[0].mxu0
        %v5153 = vadd.f32 0.0, %v5152
        %v5154 = vpop.f32.mrb[0].mxu0
        %5155 = vmatprep.mubr.f32.mxu0 0.0
        %5156 = vmatmul.mubr.f32.gmra.mrb[0].mxu0 %v4982
        %v5157 = vpop.f32.mrb[0].mxu0
        %v5158 = vadd.f32 0.0, %v5157
        %v5159 = vpop.f32.mrb[0].mxu0
        %5160 = vmatprep.mubr.f32.mxu0 0.0
        %5161 = vmatmul.mubr.f32.gmra.mrb[0].mxu0 %v4985
        %v5162 = vpop.f32.mrb[0].mxu0
        %v5163 = vadd.f32 0.0, %v5162
        %v5164 = vpop.f32.mrb[0].mxu0
        %5165 = vmatprep.mubr.f32.mxu0 0.0
        %5166 = vmatmul.mubr.f32.gmra.mrb[0].mxu0 %v4988
        %v5167 = vpop.f32.mrb[0].mxu0
        %v5168 = vadd.f32 0.0, %v5167
        %v5169 = vpop.f32.mrb[0].mxu0
        %5170 = vmatprep.mubr.f32.mxu0 0.0
        %5171 = vmatmul.mubr.f32.gmra.mrb[0].mxu0 %v4991
        %v5172 = vpop.f32.mrb[0].mxu0
        %v5173 = vadd.f32 0.0, %v5172
        %v5174 = vpop.f32.mrb[0].mxu0
        %5175 = vmatprep.mubr.f32.mxu0 0.0
        %5176 = vmatmul.mubr.f32.gmra.mrb[0].mxu0 %v4994
        %v5177 = vpop.f32.mrb[0].mxu0
        %v5178 = vadd.f32 0.0, %v5177
        %v5179 = vpop.f32.mrb[0].mxu0
        %5180 = vmatprep.mubr.f32.mxu0 0.0
        %5181 = vmatmul.mubr.f32.gmra.mrb[0].mxu0 %v4997
        %v5182 = vpop.f32.mrb[0].mxu0
        %v5183 = vadd.f32 0.0, %v5182
        %v5184 = vpop.f32.mrb[0].mxu0
        %5185 = vmatprep.mubr.f32.mxu0 0.0
        %5186 = vmatmul.mubr.f32.gmra.mrb[0].mxu0 %v5000
        %v5187 = vpop.f32.mrb[0].mxu0
        %v5188 = vadd.f32 0.0, %v5187
        %v5189 = vpop.f32.mrb[0].mxu0
        %5190 = vmatprep.mubr.f32.mxu0 0.0
        %5191 = vmatmul.mubr.f32.gmra.mrb[0].mxu0 %v5003
        %v5192 = vpop.f32.mrb[0].mxu0
        %v5193 = vadd.f32 0.0, %v5192
        %v5194 = vpop.f32.mrb[0].mxu0
        %5195 = vmatprep.mubr.f32.mxu0 0.0
        %5196 = vmatmul.mubr.f32.gmra.mrb[0].mxu0 %v5006
        %v5197 = vpop.f32.mrb[0].mxu0
        %v5198 = vadd.f32 0.0, %v5197
        %v5199 = vpop.f32.mrb[0].mxu0
        %5200 = vmatprep.mubr.f32.mxu0 0.0
        %5201 = vmatmul.mubr.f32.gmra.mrb[0].mxu0 %v5009
        %v5202 = vpop.f32.mrb[0].mxu0
        %v5203 = vadd.f32 0.0, %v5202
        %v5204 = vpop.f32.mrb[0].mxu0
        %5205 = vmatprep.mubr.f32.mxu0 0.0
        %5206 = vmatmul.mubr.f32.gmra.mrb[0].mxu0 %v5012
        %v5207 = vpop.f32.mrb[0].mxu0
        %v5208 = vadd.f32 0.0, %v5207
        %v5209 = vpop.f32.mrb[0].mxu0
        %5210 = vmatprep.mubr.f32.mxu0 0.0
        %5211 = vmatmul.mubr.f32.gmra.mrb[0].mxu0 %v5015
        %v5212 = vpop.f32.mrb[0].mxu0
        %v5213 = vadd.f32 0.0, %v5212
        %v5214 = vpop.f32.mrb[0].mxu0
        %5215 = vmatprep.mubr.f32.mxu0 0.0
        %5216 = vmatmul.mubr.f32.gmra.mrb[0].mxu0 %v5018
        %v5217 = vpop.f32.mrb[0].mxu0
        %v5218 = vadd.f32 0.0, %v5217
        %v5219 = vpop.f32.mrb[0].mxu0
        %5220 = vmatprep.mubr.f32.mxu0 0.0
        %5221 = vmatmul.mubr.f32.gmra.mrb[0].mxu0 %v5021
        %v5222 = vpop.f32.mrb[0].mxu0
        %v5223 = vadd.f32 0.0, %v5222
        %v5224 = vpop.f32.mrb[0].mxu0
        %5225 = vmatprep.mubr.f32.mxu0 0.0
        %5226 = vmatmul.mubr.f32.gmra.mrb[0].mxu0 %v5024
        %v5227 = vpop.f32.mrb[0].mxu0
        %v5228 = vadd.f32 0.0, %v5227
        %v5229 = vpop.f32.mrb[0].mxu0
        %5230 = vmatprep.mubr.f32.mxu0 0.0
        %5231 = vmatmul.mubr.f32.gmra.mrb[0].mxu0 %v5027
        %v5232 = vpop.f32.mrb[0].mxu0
        %v5233 = vadd.f32 0.0, %v5232
        %v5234 = vpop.f32.mrb[0].mxu0
        %5235 = vmatprep.mubr.f32.mxu0 0.0
        %5236 = vmatmul.mubr.f32.gmra.mrb[0].mxu0 %v5030
        %v5237 = vpop.f32.mrb[0].mxu0
        %v5238 = vadd.f32 0.0, %v5237
        %v5239 = vpop.f32.mrb[0].mxu0
        %5240 = vmatprep.mubr.f32.mxu0 0.0
        %5241 = vmatmul.mubr.f32.gmra.mrb[0].mxu0 %v5033
        %v5242 = vpop.f32.mrb[0].mxu0
        %v5243 = vadd.f32 0.0, %v5242
        %v5244 = vpop.f32.mrb[0].mxu0
        %5245 = vmatprep.mubr.f32.mxu0 0.0
        %5246 = vmatmul.mubr.f32.gmra.mrb[0].mxu0 %v5036
        %v5247 = vpop.f32.mrb[0].mxu0
        %v5248 = vadd.f32 0.0, %v5247
        %v5249 = vpop.f32.mrb[0].mxu0
        %5250 = vmatprep.mubr.f32.mxu0 0.0
        %5251 = vmatmul.mubr.f32.gmra.mrb[0].mxu0 %v5039
        %v5252 = vpop.f32.mrb[0].mxu0
        %v5253 = vadd.f32 0.0, %v5252
        %v5254 = vpop.f32.mrb[0].mxu0
        %5255 = vmatprep.mubr.f32.mxu0 0.0
        %5256 = vmatmul.mubr.f32.gmra.mrb[0].mxu0 %v5042
        %v5257 = vpop.f32.mrb[0].mxu0
        %v5258 = vadd.f32 0.0, %v5257
        %v5259 = vpop.f32.mrb[0].mxu0
        %5260 = vmatprep.mubr.f32.mxu0 0.0
        %5261 = vmatmul.mubr.f32.gmra.mrb[0].mxu0 %v5045
        %v5262 = vpop.f32.mrb[0].mxu0
        %v5263 = vadd.f32 0.0, %v5262
        %v5264 = vpop.f32.mrb[0].mxu0
        %5265 = vmatprep.mubr.f32.mxu0 0.0
        %5266 = vmatmul.mubr.f32.gmra.mrb[0].mxu0 %v5048
        %v5267 = vpop.f32.mrb[0].mxu0
        %v5268 = vadd.f32 0.0, %v5267
        %v5269 = vpop.f32.mrb[0].mxu0
        %5270 = vmatprep.mubr.f32.mxu0 0.0
        %5271 = vmatmul.mubr.f32.gmra.mrb[0].mxu0 %v5051
        %v5272 = vpop.f32.mrb[0].mxu0
        %v5273 = vadd.f32 0.0, %v5272
        %v5274 = vpop.f32.mrb[0].mxu0
        %5275 = vmatprep.mubr.f32.mxu0 0.0
        %5276 = vmatmul.mubr.f32.gmra.mrb[0].mxu0 %v5054
        %v5277 = vpop.f32.mrb[0].mxu0
        %v5278 = vadd.f32 0.0, %v5277
        %v5279 = vpop.f32.mrb[0].mxu0
        %5280 = vdwg.mxu0
        %v5313 = vrot.slane %v5123, 6
        %v5314 = vrot.slane %v5128, 6
        %v5315 = vsel %vm4692, %v5313, %v5314
        %v5316 = vrot.slane %v5133, 6
        %v5317 = vsel %vm4692, %v5314, %v5316
        %v5318 = vrot.slane %v5138, 6
        %v5319 = vsel %vm4692, %v5316, %v5318
        %v5320 = vrot.slane %v5143, 6
        %v5321 = vrot.slane %v5148, 6
        %v5322 = vsel %vm4692, %v5320, %v5321
        %v5323 = vrot.slane %v5153, 6
        %v5324 = vsel %vm4692, %v5321, %v5323
        %v5325 = vrot.slane %v5158, 6
        %v5326 = vsel %vm4692, %v5323, %v5325
        %v5327 = vrot.slane %v5163, 6
        %v5328 = vrot.slane %v5168, 6
        %v5329 = vsel %vm4692, %v5327, %v5328
        %v5330 = vrot.slane %v5173, 6
        %v5331 = vsel %vm4692, %v5328, %v5330
        %v5332 = vrot.slane %v5178, 6
        %v5333 = vsel %vm4692, %v5330, %v5332
        %v5334 = vrot.slane %v5183, 6
        %v5335 = vrot.slane %v5188, 6
        %v5336 = vsel %vm4692, %v5334, %v5335
        %v5337 = vrot.slane %v5193, 6
        %v5338 = vsel %vm4692, %v5335, %v5337
        %v5339 = vrot.slane %v5198, 6
        %v5340 = vsel %vm4692, %v5337, %v5339
        %v5341 = vrot.slane %v5203, 6
        %v5342 = vrot.slane %v5208, 6
        %v5343 = vsel %vm4692, %v5341, %v5342
        %v5344 = vrot.slane %v5213, 6
        %v5345 = vsel %vm4692, %v5342, %v5344
        %v5346 = vrot.slane %v5218, 6
        %v5347 = vsel %vm4692, %v5344, %v5346
        %v5348 = vrot.slane %v5223, 6
        %v5349 = vrot.slane %v5228, 6
        %v5350 = vsel %vm4692, %v5348, %v5349
        %v5351 = vrot.slane %v5233, 6
        %v5352 = vsel %vm4692, %v5349, %v5351
        %v5353 = vrot.slane %v5238, 6
        %v5354 = vsel %vm4692, %v5351, %v5353
        %v5355 = vrot.slane %v5243, 6
        %v5356 = vrot.slane %v5248, 6
        %v5357 = vsel %vm4692, %v5355, %v5356
        %v5358 = vrot.slane %v5253, 6
        %v5359 = vsel %vm4692, %v5356, %v5358
        %v5360 = vrot.slane %v5258, 6
        %v5361 = vsel %vm4692, %v5358, %v5360
        %v5362 = vrot.slane %v5263, 6
        %v5363 = vrot.slane %v5268, 6
        %v5364 = vsel %vm4692, %v5362, %v5363
        %v5365 = vrot.slane %v5273, 6
        %v5366 = vsel %vm4692, %v5363, %v5365
        %v5367 = vrot.slane %v5278, 6
        %v5368 = vsel %vm4692, %v5365, %v5367
        %5369 = vrot.lane.b32.xlu0 %v5313, 112
        %v5370 = vpop.permute.xlu0 %5369
        %5371 = vrot.lane.b32.xlu0 %v5315, 112
        %v5372 = vpop.permute.xlu0 %5371
        %5373 = vrot.lane.b32.xlu0 %v5317, 112
        %v5374 = vpop.permute.xlu0 %5373
        %5375 = vrot.lane.b32.xlu0 %v5319, 112
        %v5376 = vpop.permute.xlu0 %5375
        %5377 = vrot.lane.b32.xlu0 %v5320, 112
        %v5378 = vpop.permute.xlu0 %5377
        %5379 = vrot.lane.b32.xlu0 %v5322, 112
        %v5380 = vpop.permute.xlu0 %5379
        %5381 = vrot.lane.b32.xlu0 %v5324, 112
        %v5382 = vpop.permute.xlu0 %5381
        %5383 = vrot.lane.b32.xlu0 %v5326, 112
        %v5384 = vpop.permute.xlu0 %5383
        %5385 = vrot.lane.b32.xlu0 %v5327, 112
        %v5386 = vpop.permute.xlu0 %5385
        %5387 = vrot.lane.b32.xlu0 %v5329, 112
        %v5388 = vpop.permute.xlu0 %5387
        %5389 = vrot.lane.b32.xlu0 %v5331, 112
        %v5390 = vpop.permute.xlu0 %5389
        %5391 = vrot.lane.b32.xlu0 %v5333, 112
        %v5392 = vpop.permute.xlu0 %5391
        %5393 = vrot.lane.b32.xlu0 %v5334, 112
        %v5394 = vpop.permute.xlu0 %5393
        %5395 = vrot.lane.b32.xlu0 %v5336, 112
        %v5396 = vpop.permute.xlu0 %5395
        %5397 = vrot.lane.b32.xlu0 %v5338, 112
        %v5398 = vpop.permute.xlu0 %5397
        %5399 = vrot.lane.b32.xlu0 %v5340, 112
        %v5400 = vpop.permute.xlu0 %5399
        %5401 = vrot.lane.b32.xlu0 %v5341, 112
        %v5402 = vpop.permute.xlu0 %5401
        %5403 = vrot.lane.b32.xlu0 %v5343, 112
        %v5404 = vpop.permute.xlu0 %5403
        %5405 = vrot.lane.b32.xlu0 %v5345, 112
        %v5406 = vpop.permute.xlu0 %5405
        %5407 = vrot.lane.b32.xlu0 %v5347, 112
        %v5408 = vpop.permute.xlu0 %5407
        %5409 = vrot.lane.b32.xlu0 %v5348, 112
        %v5410 = vpop.permute.xlu0 %5409
        %5411 = vrot.lane.b32.xlu0 %v5350, 112
        %v5412 = vpop.permute.xlu0 %5411
        %5413 = vrot.lane.b32.xlu0 %v5352, 112
        %v5414 = vpop.permute.xlu0 %5413
        %5415 = vrot.lane.b32.xlu0 %v5354, 112
        %v5416 = vpop.permute.xlu0 %5415
        %5417 = vrot.lane.b32.xlu0 %v5355, 112
        %v5418 = vpop.permute.xlu0 %5417
        %5419 = vrot.lane.b32.xlu0 %v5357, 112
        %v5420 = vpop.permute.xlu0 %5419
        %5421 = vrot.lane.b32.xlu0 %v5359, 112
        %v5422 = vpop.permute.xlu0 %5421
        %5423 = vrot.lane.b32.xlu0 %v5361, 112
        %v5424 = vpop.permute.xlu0 %5423
        %5425 = vrot.lane.b32.xlu0 %v5362, 112
        %v5426 = vpop.permute.xlu0 %5425
        %5427 = vrot.lane.b32.xlu0 %v5364, 112
        %v5428 = vpop.permute.xlu0 %5427
        %5429 = vrot.lane.b32.xlu0 %v5366, 112
        %v5430 = vpop.permute.xlu0 %5429
        %5431 = vrot.lane.b32.xlu0 %v5368, 112
        %v5432 = vpop.permute.xlu0 %5431
        %v5465 = vsel %vm4692, 0.0, %v5370
        %v5466 = vsel %vm4692, 0.0, %v5378
        %v5467 = vsel %vm4692, 0.0, %v5386
        %v5468 = vsel %vm4692, 0.0, %v5394
        %v5469 = vsel %vm4692, 0.0, %v5402
        %v5470 = vsel %vm4692, 0.0, %v5410
        %v5471 = vsel %vm4692, 0.0, %v5418
        %v5472 = vsel %vm4692, 0.0, %v5426
        %v5473 = vadd.f32 %v5123, %v5465
        %v5474 = vadd.f32 %v5128, %v5372
        %v5475 = vadd.f32 %v5133, %v5374
        %v5476 = vadd.f32 %v5138, %v5376
        %v5477 = vadd.f32 %v5143, %v5466
        %v5478 = vadd.f32 %v5148, %v5380
        %v5479 = vadd.f32 %v5153, %v5382
        %v5480 = vadd.f32 %v5158, %v5384
        %v5481 = vadd.f32 %v5163, %v5467
        %v5482 = vadd.f32 %v5168, %v5388
        %v5483 = vadd.f32 %v5173, %v5390
        %v5484 = vadd.f32 %v5178, %v5392
        %v5485 = vadd.f32 %v5183, %v5468
        %v5486 = vadd.f32 %v5188, %v5396
        %v5487 = vadd.f32 %v5193, %v5398
        %v5488 = vadd.f32 %v5198, %v5400
        %v5489 = vadd.f32 %v5203, %v5469
        %v5490 = vadd.f32 %v5208, %v5404
        %v5491 = vadd.f32 %v5213, %v5406
        %v5492 = vadd.f32 %v5218, %v5408
        %v5493 = vadd.f32 %v5223, %v5470
        %v5494 = vadd.f32 %v5228, %v5412
        %v5495 = vadd.f32 %v5233, %v5414
        %v5496 = vadd.f32 %v5238, %v5416
        %v5497 = vadd.f32 %v5243, %v5471
        %v5498 = vadd.f32 %v5248, %v5420
        %v5499 = vadd.f32 %v5253, %v5422
        %v5500 = vadd.f32 %v5258, %v5424
        %v5501 = vadd.f32 %v5263, %v5472
        %v5502 = vadd.f32 %v5268, %v5428
        %v5503 = vadd.f32 %v5273, %v5430
        %v5504 = vadd.f32 %v5278, %v5432
        %s5505 = scalar_lea.vmem %s4, 3
        %v5506 = vld [vmem:[%s5505] sm:$0x1]
        %v5508 = vlaneseq
        %v5509 = vshrl.u32 %v5508, 7
        %v5510 = vsub.s32 0, %v5509
        %v5511 = vrot.slane %v5506, %v5510
        %v5513 = vadd.f32 %v5473, %v5511
        %v5514 = vadd.f32 %v5474, %v5511
        %v5515 = vadd.f32 %v5475, %v5511
        %v5516 = vadd.f32 %v5476, %v5511
        %v5517 = vadd.f32 %v5477, %v5511
        %v5518 = vadd.f32 %v5478, %v5511
        %v5519 = vadd.f32 %v5479, %v5511
        %v5520 = vadd.f32 %v5480, %v5511
        %v5521 = vadd.f32 %v5481, %v5511
        %v5522 = vadd.f32 %v5482, %v5511
        %v5523 = vadd.f32 %v5483, %v5511
        %v5524 = vadd.f32 %v5484, %v5511
        %v5525 = vadd.f32 %v5485, %v5511
        %v5526 = vadd.f32 %v5486, %v5511
        %v5527 = vadd.f32 %v5487, %v5511
        %v5528 = vadd.f32 %v5488, %v5511
        %v5529 = vadd.f32 %v5489, %v5511
        %v5530 = vadd.f32 %v5490, %v5511
        %v5531 = vadd.f32 %v5491, %v5511
        %v5532 = vadd.f32 %v5492, %v5511
        %v5533 = vadd.f32 %v5493, %v5511
        %v5534 = vadd.f32 %v5494, %v5511
        %v5535 = vadd.f32 %v5495, %v5511
        %v5536 = vadd.f32 %v5496, %v5511
        %v5537 = vadd.f32 %v5497, %v5511
        %v5538 = vadd.f32 %v5498, %v5511
        %v5539 = vadd.f32 %v5499, %v5511
        %v5540 = vadd.f32 %v5500, %v5511
        %v5541 = vadd.f32 %v5501, %v5511
        %v5542 = vadd.f32 %v5502, %v5511
        %v5543 = vadd.f32 %v5503, %v5511
        %v5544 = vadd.f32 %v5504, %v5511
        %v5545 = vmax.f32 %v5513, 0.0
        %v5546 = vmax.f32 %v5514, 0.0
        %v5547 = vmax.f32 %v5515, 0.0
        %v5548 = vmax.f32 %v5516, 0.0
        %v5549 = vmax.f32 %v5517, 0.0
        %v5550 = vmax.f32 %v5518, 0.0
        %v5551 = vmax.f32 %v5519, 0.0
        %v5552 = vmax.f32 %v5520, 0.0
        %v5553 = vmax.f32 %v5521, 0.0
        %v5554 = vmax.f32 %v5522, 0.0
        %v5555 = vmax.f32 %v5523, 0.0
        %v5556 = vmax.f32 %v5524, 0.0
        %v5557 = vmax.f32 %v5525, 0.0
        %v5558 = vmax.f32 %v5526, 0.0
        %v5559 = vmax.f32 %v5527, 0.0
        %v5560 = vmax.f32 %v5528, 0.0
        %v5561 = vmax.f32 %v5529, 0.0
        %v5562 = vmax.f32 %v5530, 0.0
        %v5563 = vmax.f32 %v5531, 0.0
        %v5564 = vmax.f32 %v5532, 0.0
        %v5565 = vmax.f32 %v5533, 0.0
        %v5566 = vmax.f32 %v5534, 0.0
        %v5567 = vmax.f32 %v5535, 0.0
        %v5568 = vmax.f32 %v5536, 0.0
        %v5569 = vmax.f32 %v5537, 0.0
        %v5570 = vmax.f32 %v5538, 0.0
        %v5571 = vmax.f32 %v5539, 0.0
        %v5572 = vmax.f32 %v5540, 0.0
        %v5573 = vmax.f32 %v5541, 0.0
        %v5574 = vmax.f32 %v5542, 0.0
        %v5575 = vmax.f32 %v5543, 0.0
        %v5576 = vmax.f32 %v5544, 0.0
        %v5577 = vxor.u32 %v5545, 2147483648
        %v5578 = vxor.u32 %v5546, 2147483648
        %v5579 = vxor.u32 %v5547, 2147483648
        %v5580 = vxor.u32 %v5548, 2147483648
        %v5581 = vxor.u32 %v5549, 2147483648
        %v5582 = vxor.u32 %v5550, 2147483648
        %v5583 = vxor.u32 %v5551, 2147483648
        %v5584 = vxor.u32 %v5552, 2147483648
        %v5585 = vxor.u32 %v5553, 2147483648
        %v5586 = vxor.u32 %v5554, 2147483648
        %v5587 = vxor.u32 %v5555, 2147483648
        %v5588 = vxor.u32 %v5556, 2147483648
        %v5589 = vxor.u32 %v5557, 2147483648
        %v5590 = vxor.u32 %v5558, 2147483648
        %v5591 = vxor.u32 %v5559, 2147483648
        %v5592 = vxor.u32 %v5560, 2147483648
        %v5593 = vxor.u32 %v5561, 2147483648
        %v5594 = vxor.u32 %v5562, 2147483648
        %v5595 = vxor.u32 %v5563, 2147483648
        %v5596 = vxor.u32 %v5564, 2147483648
        %v5597 = vxor.u32 %v5565, 2147483648
        %v5598 = vxor.u32 %v5566, 2147483648
        %v5599 = vxor.u32 %v5567, 2147483648
        %v5600 = vxor.u32 %v5568, 2147483648
        %v5601 = vxor.u32 %v5569, 2147483648
        %v5602 = vxor.u32 %v5570, 2147483648
        %v5603 = vxor.u32 %v5571, 2147483648
        %v5604 = vxor.u32 %v5572, 2147483648
        %v5605 = vxor.u32 %v5573, 2147483648
        %v5606 = vxor.u32 %v5574, 2147483648
        %v5607 = vxor.u32 %v5575, 2147483648
        %v5608 = vxor.u32 %v5576, 2147483648
        %v5609 = vmul.f32 %v5577, 1.442695
        %v5610 = vpow.pop %v5609
        %v5611 = vmul.f32 %v5578, 1.442695
        %v5612 = vpow.pop %v5611
        %v5613 = vmul.f32 %v5579, 1.442695
        %v5614 = vpow.pop %v5613
        %v5615 = vmul.f32 %v5580, 1.442695
        %v5616 = vpow.pop %v5615
        %v5617 = vmul.f32 %v5581, 1.442695
        %v5618 = vpow.pop %v5617
        %v5619 = vmul.f32 %v5582, 1.442695
        %v5620 = vpow.pop %v5619
        %v5621 = vmul.f32 %v5583, 1.442695
        %v5622 = vpow.pop %v5621
        %v5623 = vmul.f32 %v5584, 1.442695
        %v5624 = vpow.pop %v5623
        %v5625 = vmul.f32 %v5585, 1.442695
        %v5626 = vpow.pop %v5625
        %v5627 = vmul.f32 %v5586, 1.442695
        %v5628 = vpow.pop %v5627
        %v5629 = vmul.f32 %v5587, 1.442695
        %v5630 = vpow.pop %v5629
        %v5631 = vmul.f32 %v5588, 1.442695
        %v5632 = vpow.pop %v5631
        %v5633 = vmul.f32 %v5589, 1.442695
        %v5634 = vpow.pop %v5633
        %v5635 = vmul.f32 %v5590, 1.442695
        %v5636 = vpow.pop %v5635
        %v5637 = vmul.f32 %v5591, 1.442695
        %v5638 = vpow.pop %v5637
        %v5639 = vmul.f32 %v5592, 1.442695
        %v5640 = vpow.pop %v5639
        %v5641 = vmul.f32 %v5593, 1.442695
        %v5642 = vpow.pop %v5641
        %v5643 = vmul.f32 %v5594, 1.442695
        %v5644 = vpow.pop %v5643
        %v5645 = vmul.f32 %v5595, 1.442695
        %v5646 = vpow.pop %v5645
        %v5647 = vmul.f32 %v5596, 1.442695
        %v5648 = vpow.pop %v5647
        %v5649 = vmul.f32 %v5597, 1.442695
        %v5650 = vpow.pop %v5649
        %v5651 = vmul.f32 %v5598, 1.442695
        %v5652 = vpow.pop %v5651
        %v5653 = vmul.f32 %v5599, 1.442695
        %v5654 = vpow.pop %v5653
        %v5655 = vmul.f32 %v5600, 1.442695
        %v5656 = vpow.pop %v5655
        %v5657 = vmul.f32 %v5601, 1.442695
        %v5658 = vpow.pop %v5657
        %v5659 = vmul.f32 %v5602, 1.442695
        %v5660 = vpow.pop %v5659
        %v5661 = vmul.f32 %v5603, 1.442695
        %v5662 = vpow.pop %v5661
        %v5663 = vmul.f32 %v5604, 1.442695
        %v5664 = vpow.pop %v5663
        %v5665 = vmul.f32 %v5605, 1.442695
        %v5666 = vpow.pop %v5665
        %v5667 = vmul.f32 %v5606, 1.442695
        %v5668 = vpow.pop %v5667
        %v5669 = vmul.f32 %v5607, 1.442695
        %v5670 = vpow.pop %v5669
        %v5671 = vmul.f32 %v5608, 1.442695
        %v5672 = vpow.pop %v5671
        %v5673 = vadd.f32 %v5610, 1.0
        %v5674 = vadd.f32 %v5612, 1.0
        %v5675 = vadd.f32 %v5614, 1.0
        %v5676 = vadd.f32 %v5616, 1.0
        %v5677 = vadd.f32 %v5618, 1.0
        %v5678 = vadd.f32 %v5620, 1.0
        %v5679 = vadd.f32 %v5622, 1.0
        %v5680 = vadd.f32 %v5624, 1.0
        %v5681 = vadd.f32 %v5626, 1.0
        %v5682 = vadd.f32 %v5628, 1.0
        %v5683 = vadd.f32 %v5630, 1.0
        %v5684 = vadd.f32 %v5632, 1.0
        %v5685 = vadd.f32 %v5634, 1.0
        %v5686 = vadd.f32 %v5636, 1.0
        %v5687 = vadd.f32 %v5638, 1.0
        %v5688 = vadd.f32 %v5640, 1.0
        %v5689 = vadd.f32 %v5642, 1.0
        %v5690 = vadd.f32 %v5644, 1.0
        %v5691 = vadd.f32 %v5646, 1.0
        %v5692 = vadd.f32 %v5648, 1.0
        %v5693 = vadd.f32 %v5650, 1.0
        %v5694 = vadd.f32 %v5652, 1.0
        %v5695 = vadd.f32 %v5654, 1.0
        %v5696 = vadd.f32 %v5656, 1.0
        %v5697 = vadd.f32 %v5658, 1.0
        %v5698 = vadd.f32 %v5660, 1.0
        %v5699 = vadd.f32 %v5662, 1.0
        %v5700 = vadd.f32 %v5664, 1.0
        %v5701 = vadd.f32 %v5666, 1.0
        %v5702 = vadd.f32 %v5668, 1.0
        %v5703 = vadd.f32 %v5670, 1.0
        %v5704 = vadd.f32 %v5672, 1.0
        %v5705 = vrcp.pop %v5673
        %v5706 = vmul.f32 1.0, %v5705
        %v5707 = vrcp.pop %v5674
        %v5708 = vmul.f32 1.0, %v5707
        %v5709 = vrcp.pop %v5675
        %v5710 = vmul.f32 1.0, %v5709
        %v5711 = vrcp.pop %v5676
        %v5712 = vmul.f32 1.0, %v5711
        %v5713 = vrcp.pop %v5677
        %v5714 = vmul.f32 1.0, %v5713
        %v5715 = vrcp.pop %v5678
        %v5716 = vmul.f32 1.0, %v5715
        %v5717 = vrcp.pop %v5679
        %v5718 = vmul.f32 1.0, %v5717
        %v5719 = vrcp.pop %v5680
        %v5720 = vmul.f32 1.0, %v5719
        %v5721 = vrcp.pop %v5681
        %v5722 = vmul.f32 1.0, %v5721
        %v5723 = vrcp.pop %v5682
        %v5724 = vmul.f32 1.0, %v5723
        %v5725 = vrcp.pop %v5683
        %v5726 = vmul.f32 1.0, %v5725
        %v5727 = vrcp.pop %v5684
        %v5728 = vmul.f32 1.0, %v5727
        %v5729 = vrcp.pop %v5685
        %v5730 = vmul.f32 1.0, %v5729
        %v5731 = vrcp.pop %v5686
        %v5732 = vmul.f32 1.0, %v5731
        %v5733 = vrcp.pop %v5687
        %v5734 = vmul.f32 1.0, %v5733
        %v5735 = vrcp.pop %v5688
        %v5736 = vmul.f32 1.0, %v5735
        %v5737 = vrcp.pop %v5689
        %v5738 = vmul.f32 1.0, %v5737
        %v5739 = vrcp.pop %v5690
        %v5740 = vmul.f32 1.0, %v5739
        %v5741 = vrcp.pop %v5691
        %v5742 = vmul.f32 1.0, %v5741
        %v5743 = vrcp.pop %v5692
        %v5744 = vmul.f32 1.0, %v5743
        %v5745 = vrcp.pop %v5693
        %v5746 = vmul.f32 1.0, %v5745
        %v5747 = vrcp.pop %v5694
        %v5748 = vmul.f32 1.0, %v5747
        %v5749 = vrcp.pop %v5695
        %v5750 = vmul.f32 1.0, %v5749
        %v5751 = vrcp.pop %v5696
        %v5752 = vmul.f32 1.0, %v5751
        %v5753 = vrcp.pop %v5697
        %v5754 = vmul.f32 1.0, %v5753
        %v5755 = vrcp.pop %v5698
        %v5756 = vmul.f32 1.0, %v5755
        %v5757 = vrcp.pop %v5699
        %v5758 = vmul.f32 1.0, %v5757
        %v5759 = vrcp.pop %v5700
        %v5760 = vmul.f32 1.0, %v5759
        %v5761 = vrcp.pop %v5701
        %v5762 = vmul.f32 1.0, %v5761
        %v5763 = vrcp.pop %v5702
        %v5764 = vmul.f32 1.0, %v5763
        %v5765 = vrcp.pop %v5703
        %v5766 = vmul.f32 1.0, %v5765
        %v5767 = vrcp.pop %v5704
        %v5768 = vmul.f32 1.0, %v5767
        %v5769 = vmul.f32 %v2671, %v5706
        %v5770 = vmul.f32 %v2672, %v5708
        %v5771 = vmul.f32 %v2673, %v5710
        %v5772 = vmul.f32 %v2674, %v5712
        %v5773 = vmul.f32 %v2675, %v5714
        %v5774 = vmul.f32 %v2676, %v5716
        %v5775 = vmul.f32 %v2677, %v5718
        %v5776 = vmul.f32 %v2678, %v5720
        %v5777 = vmul.f32 %v2679, %v5722
        %v5778 = vmul.f32 %v2680, %v5724
        %v5779 = vmul.f32 %v2681, %v5726
        %v5780 = vmul.f32 %v2682, %v5728
        %v5781 = vmul.f32 %v2683, %v5730
        %v5782 = vmul.f32 %v2684, %v5732
        %v5783 = vmul.f32 %v2685, %v5734
        %v5784 = vmul.f32 %v2686, %v5736
        %v5785 = vmul.f32 %v2687, %v5738
        %v5786 = vmul.f32 %v2688, %v5740
        %v5787 = vmul.f32 %v2689, %v5742
        %v5788 = vmul.f32 %v2690, %v5744
        %v5789 = vmul.f32 %v2691, %v5746
        %v5790 = vmul.f32 %v2692, %v5748
        %v5791 = vmul.f32 %v2693, %v5750
        %v5792 = vmul.f32 %v2694, %v5752
        %v5793 = vmul.f32 %v2695, %v5754
        %v5794 = vmul.f32 %v2696, %v5756
        %v5795 = vmul.f32 %v2697, %v5758
        %v5796 = vmul.f32 %v2698, %v5760
        %v5797 = vmul.f32 %v2699, %v5762
        %v5798 = vmul.f32 %v2700, %v5764
        %v5799 = vmul.f32 %v2701, %v5766
        %v5800 = vmul.f32 %v2702, %v5768
        %s5801 = scalar_lea.vmem %s3, 128
        %v5802 = vld [vmem:[%s5801] sm:$0xff]
        %v5803 = vld [vmem:[%s5801 + $0x8] sm:$0xff]
        %v5805 = vsel %vm553, %v4135, 0
        %v5808 = vsel %vm553, %v4136, 0
        %v5811 = vsel %vm553, %v4137, 0
        %v5814 = vsel %vm553, %v4138, 0
        %v5817 = vsel %vm553, %v4139, 0
        %v5820 = vsel %vm553, %v4140, 0
        %v5823 = vsel %vm553, %v4141, 0
        %v5826 = vsel %vm553, %v4142, 0
        %v5829 = vsel %vm553, %v4143, 0
        %v5832 = vsel %vm553, %v4144, 0
        %v5835 = vsel %vm553, %v4145, 0
        %v5838 = vsel %vm553, %v4146, 0
        %v5841 = vsel %vm553, %v4147, 0
        %v5844 = vsel %vm553, %v4148, 0
        %v5847 = vsel %vm553, %v4149, 0
        %v5850 = vsel %vm553, %v4150, 0
        %v5853 = vsel %vm553, %v4151, 0
        %v5856 = vsel %vm553, %v4152, 0
        %v5859 = vsel %vm553, %v4153, 0
        %v5862 = vsel %vm553, %v4154, 0
        %v5865 = vsel %vm553, %v4155, 0
        %v5868 = vsel %vm553, %v4156, 0
        %v5871 = vsel %vm553, %v4157, 0
        %v5874 = vsel %vm553, %v4158, 0
        %v5877 = vsel %vm553, %v4159, 0
        %v5880 = vsel %vm553, %v4160, 0
        %v5883 = vsel %vm553, %v4161, 0
        %v5886 = vsel %vm553, %v4162, 0
        %v5889 = vsel %vm553, %v4163, 0
        %v5892 = vsel %vm553, %v4164, 0
        %v5895 = vsel %vm553, %v4165, 0
        %v5898 = vsel %vm553, %v4166, 0
        %5900 = vmatprep.subr.mxu0 0.0
        %5901 = vmatpush1.msra.mxu0 %v5802
        %5902 = vmatprep.subr.mxu0 0.0
        %5903 = vmatpush1.msra.mxu0 %v5803
        %5904 = vmatprep.subr.mxu0 0.0
        %5905 = vmatpush1.msra.mxu0 0.0
        %5906 = vmatprep.subr.mxu0 0.0
        %5907 = vmatpush1.msra.mxu0 0.0
        %5908 = vmatprep.subr.mxu0 0.0
        %5909 = vmatpush1.msra.mxu0 0.0
        %5910 = vmatprep.subr.mxu0 0.0
        %5911 = vmatpush1.msra.mxu0 0.0
        %5912 = vmatprep.subr.mxu0 0.0
        %5913 = vmatpush1.msra.mxu0 0.0
        %5914 = vmatprep.subr.mxu0 0.0
        %5915 = vmatpush1.msra.mxu0 0.0
        %5916 = vmatprep.subr.mxu0 0.0
        %5917 = vmatpush1.msra.mxu0 0.0
        %5918 = vmatprep.subr.mxu0 0.0
        %5919 = vmatpush1.msra.mxu0 0.0
        %5920 = vmatprep.subr.mxu0 0.0
        %5921 = vmatpush1.msra.mxu0 0.0
        %5922 = vmatprep.subr.mxu0 0.0
        %5923 = vmatpush1.msra.mxu0 0.0
        %5924 = vmatprep.subr.mxu0 0.0
        %5925 = vmatpush1.msra.mxu0 0.0
        %5926 = vmatprep.subr.mxu0 0.0
        %5927 = vmatpush1.msra.mxu0 0.0
        %5928 = vmatprep.subr.mxu0 0.0
        %5929 = vmatpush1.msra.mxu0 0.0
        %5930 = vmatprep.subr.mxu0 0.0
        %5931 = vmatpush1.msra.mxu0 0.0
        %5932 = vmatprep.subr.mxu0 0.0
        %5933 = vmatpush1.msra.mxu0 0.0
        %5934 = vmatprep.subr.mxu0 0.0
        %5935 = vmatpush1.msra.mxu0 0.0
        %5936 = vmatprep.subr.mxu0 0.0
        %5937 = vmatpush1.msra.mxu0 0.0
        %5938 = vmatprep.subr.mxu0 0.0
        %5939 = vmatpush1.msra.mxu0 0.0
        %5940 = vmatprep.subr.mxu0 0.0
        %5941 = vmatpush1.msra.mxu0 0.0
        %5942 = vmatprep.subr.mxu0 0.0
        %5943 = vmatpush1.msra.mxu0 0.0
        %5944 = vmatprep.subr.mxu0 0.0
        %5945 = vmatpush1.msra.mxu0 0.0
        %5946 = vmatprep.subr.mxu0 0.0
        %5947 = vmatpush1.msra.mxu0 0.0
        %5948 = vmatprep.subr.mxu0 0.0
        %5949 = vmatpush1.msra.mxu0 0.0
        %5950 = vmatprep.subr.mxu0 0.0
        %5951 = vmatpush1.msra.mxu0 0.0
        %5952 = vmatprep.subr.mxu0 0.0
        %5953 = vmatpush1.msra.mxu0 0.0
        %5954 = vmatprep.subr.mxu0 0.0
        %5955 = vmatpush1.msra.mxu0 0.0
        %5956 = vmatprep.subr.mxu0 0.0
        %5957 = vmatpush1.msra.mxu0 0.0
        %5958 = vmatprep.subr.mxu0 0.0
        %5959 = vmatpush1.msra.mxu0 0.0
        %5960 = vmatprep.subr.mxu0 0.0
        %5961 = vmatpush1.msra.mxu0 0.0
        %5962 = vmatprep.subr.mxu0 0.0
        %5963 = vmatpush1.msra.mxu0 0.0
        %5964 = vmatprep.mubr.f32.mxu0 0.0
        %5965 = vmatmul.mubr.f32.gmra.mrb[0].mxu0 %v5805
        %v5966 = vpop.f32.mrb[0].mxu0
        %v5967 = vadd.f32 0.0, %v5966
        %v5968 = vpop.f32.mrb[0].mxu0
        %5969 = vmatprep.mubr.f32.mxu0 0.0
        %5970 = vmatmul.mubr.f32.gmra.mrb[0].mxu0 %v5808
        %v5971 = vpop.f32.mrb[0].mxu0
        %v5972 = vadd.f32 0.0, %v5971
        %v5973 = vpop.f32.mrb[0].mxu0
        %5974 = vmatprep.mubr.f32.mxu0 0.0
        %5975 = vmatmul.mubr.f32.gmra.mrb[0].mxu0 %v5811
        %v5976 = vpop.f32.mrb[0].mxu0
        %v5977 = vadd.f32 0.0, %v5976
        %v5978 = vpop.f32.mrb[0].mxu0
        %5979 = vmatprep.mubr.f32.mxu0 0.0
        %5980 = vmatmul.mubr.f32.gmra.mrb[0].mxu0 %v5814
        %v5981 = vpop.f32.mrb[0].mxu0
        %v5982 = vadd.f32 0.0, %v5981
        %v5983 = vpop.f32.mrb[0].mxu0
        %5984 = vmatprep.mubr.f32.mxu0 0.0
        %5985 = vmatmul.mubr.f32.gmra.mrb[0].mxu0 %v5817
        %v5986 = vpop.f32.mrb[0].mxu0
        %v5987 = vadd.f32 0.0, %v5986
        %v5988 = vpop.f32.mrb[0].mxu0
        %5989 = vmatprep.mubr.f32.mxu0 0.0
        %5990 = vmatmul.mubr.f32.gmra.mrb[0].mxu0 %v5820
        %v5991 = vpop.f32.mrb[0].mxu0
        %v5992 = vadd.f32 0.0, %v5991
        %v5993 = vpop.f32.mrb[0].mxu0
        %5994 = vmatprep.mubr.f32.mxu0 0.0
        %5995 = vmatmul.mubr.f32.gmra.mrb[0].mxu0 %v5823
        %v5996 = vpop.f32.mrb[0].mxu0
        %v5997 = vadd.f32 0.0, %v5996
        %v5998 = vpop.f32.mrb[0].mxu0
        %5999 = vmatprep.mubr.f32.mxu0 0.0
        %6000 = vmatmul.mubr.f32.gmra.mrb[0].mxu0 %v5826
        %v6001 = vpop.f32.mrb[0].mxu0
        %v6002 = vadd.f32 0.0, %v6001
        %v6003 = vpop.f32.mrb[0].mxu0
        %6004 = vmatprep.mubr.f32.mxu0 0.0
        %6005 = vmatmul.mubr.f32.gmra.mrb[0].mxu0 %v5829
        %v6006 = vpop.f32.mrb[0].mxu0
        %v6007 = vadd.f32 0.0, %v6006
        %v6008 = vpop.f32.mrb[0].mxu0
        %6009 = vmatprep.mubr.f32.mxu0 0.0
        %6010 = vmatmul.mubr.f32.gmra.mrb[0].mxu0 %v5832
        %v6011 = vpop.f32.mrb[0].mxu0
        %v6012 = vadd.f32 0.0, %v6011
        %v6013 = vpop.f32.mrb[0].mxu0
        %6014 = vmatprep.mubr.f32.mxu0 0.0
        %6015 = vmatmul.mubr.f32.gmra.mrb[0].mxu0 %v5835
        %v6016 = vpop.f32.mrb[0].mxu0
        %v6017 = vadd.f32 0.0, %v6016
        %v6018 = vpop.f32.mrb[0].mxu0
        %6019 = vmatprep.mubr.f32.mxu0 0.0
        %6020 = vmatmul.mubr.f32.gmra.mrb[0].mxu0 %v5838
        %v6021 = vpop.f32.mrb[0].mxu0
        %v6022 = vadd.f32 0.0, %v6021
        %v6023 = vpop.f32.mrb[0].mxu0
        %6024 = vmatprep.mubr.f32.mxu0 0.0
        %6025 = vmatmul.mubr.f32.gmra.mrb[0].mxu0 %v5841
        %v6026 = vpop.f32.mrb[0].mxu0
        %v6027 = vadd.f32 0.0, %v6026
        %v6028 = vpop.f32.mrb[0].mxu0
        %6029 = vmatprep.mubr.f32.mxu0 0.0
        %6030 = vmatmul.mubr.f32.gmra.mrb[0].mxu0 %v5844
        %v6031 = vpop.f32.mrb[0].mxu0
        %v6032 = vadd.f32 0.0, %v6031
        %v6033 = vpop.f32.mrb[0].mxu0
        %6034 = vmatprep.mubr.f32.mxu0 0.0
        %6035 = vmatmul.mubr.f32.gmra.mrb[0].mxu0 %v5847
        %v6036 = vpop.f32.mrb[0].mxu0
        %v6037 = vadd.f32 0.0, %v6036
        %v6038 = vpop.f32.mrb[0].mxu0
        %6039 = vmatprep.mubr.f32.mxu0 0.0
        %6040 = vmatmul.mubr.f32.gmra.mrb[0].mxu0 %v5850
        %v6041 = vpop.f32.mrb[0].mxu0
        %v6042 = vadd.f32 0.0, %v6041
        %v6043 = vpop.f32.mrb[0].mxu0
        %6044 = vmatprep.mubr.f32.mxu0 0.0
        %6045 = vmatmul.mubr.f32.gmra.mrb[0].mxu0 %v5853
        %v6046 = vpop.f32.mrb[0].mxu0
        %v6047 = vadd.f32 0.0, %v6046
        %v6048 = vpop.f32.mrb[0].mxu0
        %6049 = vmatprep.mubr.f32.mxu0 0.0
        %6050 = vmatmul.mubr.f32.gmra.mrb[0].mxu0 %v5856
        %v6051 = vpop.f32.mrb[0].mxu0
        %v6052 = vadd.f32 0.0, %v6051
        %v6053 = vpop.f32.mrb[0].mxu0
        %6054 = vmatprep.mubr.f32.mxu0 0.0
        %6055 = vmatmul.mubr.f32.gmra.mrb[0].mxu0 %v5859
        %v6056 = vpop.f32.mrb[0].mxu0
        %v6057 = vadd.f32 0.0, %v6056
        %v6058 = vpop.f32.mrb[0].mxu0
        %6059 = vmatprep.mubr.f32.mxu0 0.0
        %6060 = vmatmul.mubr.f32.gmra.mrb[0].mxu0 %v5862
        %v6061 = vpop.f32.mrb[0].mxu0
        %v6062 = vadd.f32 0.0, %v6061
        %v6063 = vpop.f32.mrb[0].mxu0
        %6064 = vmatprep.mubr.f32.mxu0 0.0
        %6065 = vmatmul.mubr.f32.gmra.mrb[0].mxu0 %v5865
        %v6066 = vpop.f32.mrb[0].mxu0
        %v6067 = vadd.f32 0.0, %v6066
        %v6068 = vpop.f32.mrb[0].mxu0
        %6069 = vmatprep.mubr.f32.mxu0 0.0
        %6070 = vmatmul.mubr.f32.gmra.mrb[0].mxu0 %v5868
        %v6071 = vpop.f32.mrb[0].mxu0
        %v6072 = vadd.f32 0.0, %v6071
        %v6073 = vpop.f32.mrb[0].mxu0
        %6074 = vmatprep.mubr.f32.mxu0 0.0
        %6075 = vmatmul.mubr.f32.gmra.mrb[0].mxu0 %v5871
        %v6076 = vpop.f32.mrb[0].mxu0
        %v6077 = vadd.f32 0.0, %v6076
        %v6078 = vpop.f32.mrb[0].mxu0
        %6079 = vmatprep.mubr.f32.mxu0 0.0
        %6080 = vmatmul.mubr.f32.gmra.mrb[0].mxu0 %v5874
        %v6081 = vpop.f32.mrb[0].mxu0
        %v6082 = vadd.f32 0.0, %v6081
        %v6083 = vpop.f32.mrb[0].mxu0
        %6084 = vmatprep.mubr.f32.mxu0 0.0
        %6085 = vmatmul.mubr.f32.gmra.mrb[0].mxu0 %v5877
        %v6086 = vpop.f32.mrb[0].mxu0
        %v6087 = vadd.f32 0.0, %v6086
        %v6088 = vpop.f32.mrb[0].mxu0
        %6089 = vmatprep.mubr.f32.mxu0 0.0
        %6090 = vmatmul.mubr.f32.gmra.mrb[0].mxu0 %v5880
        %v6091 = vpop.f32.mrb[0].mxu0
        %v6092 = vadd.f32 0.0, %v6091
        %v6093 = vpop.f32.mrb[0].mxu0
        %6094 = vmatprep.mubr.f32.mxu0 0.0
        %6095 = vmatmul.mubr.f32.gmra.mrb[0].mxu0 %v5883
        %v6096 = vpop.f32.mrb[0].mxu0
        %v6097 = vadd.f32 0.0, %v6096
        %v6098 = vpop.f32.mrb[0].mxu0
        %6099 = vmatprep.mubr.f32.mxu0 0.0
        %6100 = vmatmul.mubr.f32.gmra.mrb[0].mxu0 %v5886
        %v6101 = vpop.f32.mrb[0].mxu0
        %v6102 = vadd.f32 0.0, %v6101
        %v6103 = vpop.f32.mrb[0].mxu0
        %6104 = vmatprep.mubr.f32.mxu0 0.0
        %6105 = vmatmul.mubr.f32.gmra.mrb[0].mxu0 %v5889
        %v6106 = vpop.f32.mrb[0].mxu0
        %v6107 = vadd.f32 0.0, %v6106
        %v6108 = vpop.f32.mrb[0].mxu0
        %6109 = vmatprep.mubr.f32.mxu0 0.0
        %6110 = vmatmul.mubr.f32.gmra.mrb[0].mxu0 %v5892
        %v6111 = vpop.f32.mrb[0].mxu0
        %v6112 = vadd.f32 0.0, %v6111
        %v6113 = vpop.f32.mrb[0].mxu0
        %6114 = vmatprep.mubr.f32.mxu0 0.0
        %6115 = vmatmul.mubr.f32.gmra.mrb[0].mxu0 %v5895
        %v6116 = vpop.f32.mrb[0].mxu0
        %v6117 = vadd.f32 0.0, %v6116
        %v6118 = vpop.f32.mrb[0].mxu0
        %6119 = vmatprep.mubr.f32.mxu0 0.0
        %6120 = vmatmul.mubr.f32.gmra.mrb[0].mxu0 %v5898
        %v6121 = vpop.f32.mrb[0].mxu0
        %v6122 = vadd.f32 0.0, %v6121
        %v6123 = vpop.f32.mrb[0].mxu0
        %6124 = vdwg.mxu0
        %v6157 = vrot.slane %v5967, 6
        %v6158 = vrot.slane %v5972, 6
        %v6159 = vsel %vm4692, %v6157, %v6158
        %v6160 = vrot.slane %v5977, 6
        %v6161 = vsel %vm4692, %v6158, %v6160
        %v6162 = vrot.slane %v5982, 6
        %v6163 = vsel %vm4692, %v6160, %v6162
        %v6164 = vrot.slane %v5987, 6
        %v6165 = vrot.slane %v5992, 6
        %v6166 = vsel %vm4692, %v6164, %v6165
        %v6167 = vrot.slane %v5997, 6
        %v6168 = vsel %vm4692, %v6165, %v6167
        %v6169 = vrot.slane %v6002, 6
        %v6170 = vsel %vm4692, %v6167, %v6169
        %v6171 = vrot.slane %v6007, 6
        %v6172 = vrot.slane %v6012, 6
        %v6173 = vsel %vm4692, %v6171, %v6172
        %v6174 = vrot.slane %v6017, 6
        %v6175 = vsel %vm4692, %v6172, %v6174
        %v6176 = vrot.slane %v6022, 6
        %v6177 = vsel %vm4692, %v6174, %v6176
        %v6178 = vrot.slane %v6027, 6
        %v6179 = vrot.slane %v6032, 6
        %v6180 = vsel %vm4692, %v6178, %v6179
        %v6181 = vrot.slane %v6037, 6
        %v6182 = vsel %vm4692, %v6179, %v6181
        %v6183 = vrot.slane %v6042, 6
        %v6184 = vsel %vm4692, %v6181, %v6183
        %v6185 = vrot.slane %v6047, 6
        %v6186 = vrot.slane %v6052, 6
        %v6187 = vsel %vm4692, %v6185, %v6186
        %v6188 = vrot.slane %v6057, 6
        %v6189 = vsel %vm4692, %v6186, %v6188
        %v6190 = vrot.slane %v6062, 6
        %v6191 = vsel %vm4692, %v6188, %v6190
        %v6192 = vrot.slane %v6067, 6
        %v6193 = vrot.slane %v6072, 6
        %v6194 = vsel %vm4692, %v6192, %v6193
        %v6195 = vrot.slane %v6077, 6
        %v6196 = vsel %vm4692, %v6193, %v6195
        %v6197 = vrot.slane %v6082, 6
        %v6198 = vsel %vm4692, %v6195, %v6197
        %v6199 = vrot.slane %v6087, 6
        %v6200 = vrot.slane %v6092, 6
        %v6201 = vsel %vm4692, %v6199, %v6200
        %v6202 = vrot.slane %v6097, 6
        %v6203 = vsel %vm4692, %v6200, %v6202
        %v6204 = vrot.slane %v6102, 6
        %v6205 = vsel %vm4692, %v6202, %v6204
        %v6206 = vrot.slane %v6107, 6
        %v6207 = vrot.slane %v6112, 6
        %v6208 = vsel %vm4692, %v6206, %v6207
        %v6209 = vrot.slane %v6117, 6
        %v6210 = vsel %vm4692, %v6207, %v6209
        %v6211 = vrot.slane %v6122, 6
        %v6212 = vsel %vm4692, %v6209, %v6211
        %6213 = vrot.lane.b32.xlu0 %v6157, 112
        %v6214 = vpop.permute.xlu0 %6213
        %6215 = vrot.lane.b32.xlu0 %v6159, 112
        %v6216 = vpop.permute.xlu0 %6215
        %6217 = vrot.lane.b32.xlu0 %v6161, 112
        %v6218 = vpop.permute.xlu0 %6217
        %6219 = vrot.lane.b32.xlu0 %v6163, 112
        %v6220 = vpop.permute.xlu0 %6219
        %6221 = vrot.lane.b32.xlu0 %v6164, 112
        %v6222 = vpop.permute.xlu0 %6221
        %6223 = vrot.lane.b32.xlu0 %v6166, 112
        %v6224 = vpop.permute.xlu0 %6223
        %6225 = vrot.lane.b32.xlu0 %v6168, 112
        %v6226 = vpop.permute.xlu0 %6225
        %6227 = vrot.lane.b32.xlu0 %v6170, 112
        %v6228 = vpop.permute.xlu0 %6227
        %6229 = vrot.lane.b32.xlu0 %v6171, 112
        %v6230 = vpop.permute.xlu0 %6229
        %6231 = vrot.lane.b32.xlu0 %v6173, 112
        %v6232 = vpop.permute.xlu0 %6231
        %6233 = vrot.lane.b32.xlu0 %v6175, 112
        %v6234 = vpop.permute.xlu0 %6233
        %6235 = vrot.lane.b32.xlu0 %v6177, 112
        %v6236 = vpop.permute.xlu0 %6235
        %6237 = vrot.lane.b32.xlu0 %v6178, 112
        %v6238 = vpop.permute.xlu0 %6237
        %6239 = vrot.lane.b32.xlu0 %v6180, 112
        %v6240 = vpop.permute.xlu0 %6239
        %6241 = vrot.lane.b32.xlu0 %v6182, 112
        %v6242 = vpop.permute.xlu0 %6241
        %6243 = vrot.lane.b32.xlu0 %v6184, 112
        %v6244 = vpop.permute.xlu0 %6243
        %6245 = vrot.lane.b32.xlu0 %v6185, 112
        %v6246 = vpop.permute.xlu0 %6245
        %6247 = vrot.lane.b32.xlu0 %v6187, 112
        %v6248 = vpop.permute.xlu0 %6247
        %6249 = vrot.lane.b32.xlu0 %v6189, 112
        %v6250 = vpop.permute.xlu0 %6249
        %6251 = vrot.lane.b32.xlu0 %v6191, 112
        %v6252 = vpop.permute.xlu0 %6251
        %6253 = vrot.lane.b32.xlu0 %v6192, 112
        %v6254 = vpop.permute.xlu0 %6253
        %6255 = vrot.lane.b32.xlu0 %v6194, 112
        %v6256 = vpop.permute.xlu0 %6255
        %6257 = vrot.lane.b32.xlu0 %v6196, 112
        %v6258 = vpop.permute.xlu0 %6257
        %6259 = vrot.lane.b32.xlu0 %v6198, 112
        %v6260 = vpop.permute.xlu0 %6259
        %6261 = vrot.lane.b32.xlu0 %v6199, 112
        %v6262 = vpop.permute.xlu0 %6261
        %6263 = vrot.lane.b32.xlu0 %v6201, 112
        %v6264 = vpop.permute.xlu0 %6263
        %6265 = vrot.lane.b32.xlu0 %v6203, 112
        %v6266 = vpop.permute.xlu0 %6265
        %6267 = vrot.lane.b32.xlu0 %v6205, 112
        %v6268 = vpop.permute.xlu0 %6267
        %6269 = vrot.lane.b32.xlu0 %v6206, 112
        %v6270 = vpop.permute.xlu0 %6269
        %6271 = vrot.lane.b32.xlu0 %v6208, 112
        %v6272 = vpop.permute.xlu0 %6271
        %6273 = vrot.lane.b32.xlu0 %v6210, 112
        %v6274 = vpop.permute.xlu0 %6273
        %6275 = vrot.lane.b32.xlu0 %v6212, 112
        %v6276 = vpop.permute.xlu0 %6275
        %v6309 = vsel %vm4692, 0.0, %v6214
        %v6310 = vsel %vm4692, 0.0, %v6222
        %v6311 = vsel %vm4692, 0.0, %v6230
        %v6312 = vsel %vm4692, 0.0, %v6238
        %v6313 = vsel %vm4692, 0.0, %v6246
        %v6314 = vsel %vm4692, 0.0, %v6254
        %v6315 = vsel %vm4692, 0.0, %v6262
        %v6316 = vsel %vm4692, 0.0, %v6270
        %v6317 = vadd.f32 %v5967, %v6309
        %v6318 = vadd.f32 %v5972, %v6216
        %v6319 = vadd.f32 %v5977, %v6218
        %v6320 = vadd.f32 %v5982, %v6220
        %v6321 = vadd.f32 %v5987, %v6310
        %v6322 = vadd.f32 %v5992, %v6224
        %v6323 = vadd.f32 %v5997, %v6226
        %v6324 = vadd.f32 %v6002, %v6228
        %v6325 = vadd.f32 %v6007, %v6311
        %v6326 = vadd.f32 %v6012, %v6232
        %v6327 = vadd.f32 %v6017, %v6234
        %v6328 = vadd.f32 %v6022, %v6236
        %v6329 = vadd.f32 %v6027, %v6312
        %v6330 = vadd.f32 %v6032, %v6240
        %v6331 = vadd.f32 %v6037, %v6242
        %v6332 = vadd.f32 %v6042, %v6244
        %v6333 = vadd.f32 %v6047, %v6313
        %v6334 = vadd.f32 %v6052, %v6248
        %v6335 = vadd.f32 %v6057, %v6250
        %v6336 = vadd.f32 %v6062, %v6252
        %v6337 = vadd.f32 %v6067, %v6314
        %v6338 = vadd.f32 %v6072, %v6256
        %v6339 = vadd.f32 %v6077, %v6258
        %v6340 = vadd.f32 %v6082, %v6260
        %v6341 = vadd.f32 %v6087, %v6315
        %v6342 = vadd.f32 %v6092, %v6264
        %v6343 = vadd.f32 %v6097, %v6266
        %v6344 = vadd.f32 %v6102, %v6268
        %v6345 = vadd.f32 %v6107, %v6316
        %v6346 = vadd.f32 %v6112, %v6272
        %v6347 = vadd.f32 %v6117, %v6274
        %v6348 = vadd.f32 %v6122, %v6276
        %s6349 = scalar_lea.vmem %s4, 8
        %v6350 = vld [vmem:[%s6349] sm:$0x1]
        %v6352 = vlaneseq
        %v6353 = vshrl.u32 %v6352, 7
        %v6354 = vsub.s32 0, %v6353
        %v6355 = vrot.slane %v6350, %v6354
        %v6357 = vadd.f32 %v6317, %v6355
        %v6358 = vadd.f32 %v6318, %v6355
        %v6359 = vadd.f32 %v6319, %v6355
        %v6360 = vadd.f32 %v6320, %v6355
        %v6361 = vadd.f32 %v6321, %v6355
        %v6362 = vadd.f32 %v6322, %v6355
        %v6363 = vadd.f32 %v6323, %v6355
        %v6364 = vadd.f32 %v6324, %v6355
        %v6365 = vadd.f32 %v6325, %v6355
        %v6366 = vadd.f32 %v6326, %v6355
        %v6367 = vadd.f32 %v6327, %v6355
        %v6368 = vadd.f32 %v6328, %v6355
        %v6369 = vadd.f32 %v6329, %v6355
        %v6370 = vadd.f32 %v6330, %v6355
        %v6371 = vadd.f32 %v6331, %v6355
        %v6372 = vadd.f32 %v6332, %v6355
        %v6373 = vadd.f32 %v6333, %v6355
        %v6374 = vadd.f32 %v6334, %v6355
        %v6375 = vadd.f32 %v6335, %v6355
        %v6376 = vadd.f32 %v6336, %v6355
        %v6377 = vadd.f32 %v6337, %v6355
        %v6378 = vadd.f32 %v6338, %v6355
        %v6379 = vadd.f32 %v6339, %v6355
        %v6380 = vadd.f32 %v6340, %v6355
        %v6381 = vadd.f32 %v6341, %v6355
        %v6382 = vadd.f32 %v6342, %v6355
        %v6383 = vadd.f32 %v6343, %v6355
        %v6384 = vadd.f32 %v6344, %v6355
        %v6385 = vadd.f32 %v6345, %v6355
        %v6386 = vadd.f32 %v6346, %v6355
        %v6387 = vadd.f32 %v6347, %v6355
        %v6388 = vadd.f32 %v6348, %v6355
        %v6389 = vmax.f32 %v6357, 0.0
        %v6390 = vmax.f32 %v6358, 0.0
        %v6391 = vmax.f32 %v6359, 0.0
        %v6392 = vmax.f32 %v6360, 0.0
        %v6393 = vmax.f32 %v6361, 0.0
        %v6394 = vmax.f32 %v6362, 0.0
        %v6395 = vmax.f32 %v6363, 0.0
        %v6396 = vmax.f32 %v6364, 0.0
        %v6397 = vmax.f32 %v6365, 0.0
        %v6398 = vmax.f32 %v6366, 0.0
        %v6399 = vmax.f32 %v6367, 0.0
        %v6400 = vmax.f32 %v6368, 0.0
        %v6401 = vmax.f32 %v6369, 0.0
        %v6402 = vmax.f32 %v6370, 0.0
        %v6403 = vmax.f32 %v6371, 0.0
        %v6404 = vmax.f32 %v6372, 0.0
        %v6405 = vmax.f32 %v6373, 0.0
        %v6406 = vmax.f32 %v6374, 0.0
        %v6407 = vmax.f32 %v6375, 0.0
        %v6408 = vmax.f32 %v6376, 0.0
        %v6409 = vmax.f32 %v6377, 0.0
        %v6410 = vmax.f32 %v6378, 0.0
        %v6411 = vmax.f32 %v6379, 0.0
        %v6412 = vmax.f32 %v6380, 0.0
        %v6413 = vmax.f32 %v6381, 0.0
        %v6414 = vmax.f32 %v6382, 0.0
        %v6415 = vmax.f32 %v6383, 0.0
        %v6416 = vmax.f32 %v6384, 0.0
        %v6417 = vmax.f32 %v6385, 0.0
        %v6418 = vmax.f32 %v6386, 0.0
        %v6419 = vmax.f32 %v6387, 0.0
        %v6420 = vmax.f32 %v6388, 0.0
        %s6421 = scalar_lea.vmem %s3, 144
        %v6422 = vld [vmem:[%s6421] sm:$0xff]
        %v6423 = vld [vmem:[%s6421 + $0x8] sm:$0xff]
        %v6425 = vsel %vm553, %v6389, 0
        %v6428 = vsel %vm553, %v6390, 0
        %v6431 = vsel %vm553, %v6391, 0
        %v6434 = vsel %vm553, %v6392, 0
        %v6437 = vsel %vm553, %v6393, 0
        %v6440 = vsel %vm553, %v6394, 0
        %v6443 = vsel %vm553, %v6395, 0
        %v6446 = vsel %vm553, %v6396, 0
        %v6449 = vsel %vm553, %v6397, 0
        %v6452 = vsel %vm553, %v6398, 0
        %v6455 = vsel %vm553, %v6399, 0
        %v6458 = vsel %vm553, %v6400, 0
        %v6461 = vsel %vm553, %v6401, 0
        %v6464 = vsel %vm553, %v6402, 0
        %v6467 = vsel %vm553, %v6403, 0
        %v6470 = vsel %vm553, %v6404, 0
        %v6473 = vsel %vm553, %v6405, 0
        %v6476 = vsel %vm553, %v6406, 0
        %v6479 = vsel %vm553, %v6407, 0
        %v6482 = vsel %vm553, %v6408, 0
        %v6485 = vsel %vm553, %v6409, 0
        %v6488 = vsel %vm553, %v6410, 0
        %v6491 = vsel %vm553, %v6411, 0
        %v6494 = vsel %vm553, %v6412, 0
        %v6497 = vsel %vm553, %v6413, 0
        %v6500 = vsel %vm553, %v6414, 0
        %v6503 = vsel %vm553, %v6415, 0
        %v6506 = vsel %vm553, %v6416, 0
        %v6509 = vsel %vm553, %v6417, 0
        %v6512 = vsel %vm553, %v6418, 0
        %v6515 = vsel %vm553, %v6419, 0
        %v6518 = vsel %vm553, %v6420, 0
        %6520 = vmatprep.subr.mxu0 0.0
        %6521 = vmatpush1.msra.mxu0 %v6422
        %6522 = vmatprep.subr.mxu0 0.0
        %6523 = vmatpush1.msra.mxu0 %v6423
        %6524 = vmatprep.subr.mxu0 0.0
        %6525 = vmatpush1.msra.mxu0 0.0
        %6526 = vmatprep.subr.mxu0 0.0
        %6527 = vmatpush1.msra.mxu0 0.0
        %6528 = vmatprep.subr.mxu0 0.0
        %6529 = vmatpush1.msra.mxu0 0.0
        %6530 = vmatprep.subr.mxu0 0.0
        %6531 = vmatpush1.msra.mxu0 0.0
        %6532 = vmatprep.subr.mxu0 0.0
        %6533 = vmatpush1.msra.mxu0 0.0
        %6534 = vmatprep.subr.mxu0 0.0
        %6535 = vmatpush1.msra.mxu0 0.0
        %6536 = vmatprep.subr.mxu0 0.0
        %6537 = vmatpush1.msra.mxu0 0.0
        %6538 = vmatprep.subr.mxu0 0.0
        %6539 = vmatpush1.msra.mxu0 0.0
        %6540 = vmatprep.subr.mxu0 0.0
        %6541 = vmatpush1.msra.mxu0 0.0
        %6542 = vmatprep.subr.mxu0 0.0
        %6543 = vmatpush1.msra.mxu0 0.0
        %6544 = vmatprep.subr.mxu0 0.0
        %6545 = vmatpush1.msra.mxu0 0.0
        %6546 = vmatprep.subr.mxu0 0.0
        %6547 = vmatpush1.msra.mxu0 0.0
        %6548 = vmatprep.subr.mxu0 0.0
        %6549 = vmatpush1.msra.mxu0 0.0
        %6550 = vmatprep.subr.mxu0 0.0
        %6551 = vmatpush1.msra.mxu0 0.0
        %6552 = vmatprep.subr.mxu0 0.0
        %6553 = vmatpush1.msra.mxu0 0.0
        %6554 = vmatprep.subr.mxu0 0.0
        %6555 = vmatpush1.msra.mxu0 0.0
        %6556 = vmatprep.subr.mxu0 0.0
        %6557 = vmatpush1.msra.mxu0 0.0
        %6558 = vmatprep.subr.mxu0 0.0
        %6559 = vmatpush1.msra.mxu0 0.0
        %6560 = vmatprep.subr.mxu0 0.0
        %6561 = vmatpush1.msra.mxu0 0.0
        %6562 = vmatprep.subr.mxu0 0.0
        %6563 = vmatpush1.msra.mxu0 0.0
        %6564 = vmatprep.subr.mxu0 0.0
        %6565 = vmatpush1.msra.mxu0 0.0
        %6566 = vmatprep.subr.mxu0 0.0
        %6567 = vmatpush1.msra.mxu0 0.0
        %6568 = vmatprep.subr.mxu0 0.0
        %6569 = vmatpush1.msra.mxu0 0.0
        %6570 = vmatprep.subr.mxu0 0.0
        %6571 = vmatpush1.msra.mxu0 0.0
        %6572 = vmatprep.subr.mxu0 0.0
        %6573 = vmatpush1.msra.mxu0 0.0
        %6574 = vmatprep.subr.mxu0 0.0
        %6575 = vmatpush1.msra.mxu0 0.0
        %6576 = vmatprep.subr.mxu0 0.0
        %6577 = vmatpush1.msra.mxu0 0.0
        %6578 = vmatprep.subr.mxu0 0.0
        %6579 = vmatpush1.msra.mxu0 0.0
        %6580 = vmatprep.subr.mxu0 0.0
        %6581 = vmatpush1.msra.mxu0 0.0
        %6582 = vmatprep.subr.mxu0 0.0
        %6583 = vmatpush1.msra.mxu0 0.0
        %6584 = vmatprep.mubr.f32.mxu0 0.0
        %6585 = vmatmul.mubr.f32.gmra.mrb[0].mxu0 %v6425
        %v6586 = vpop.f32.mrb[0].mxu0
        %v6587 = vadd.f32 0.0, %v6586
        %v6588 = vpop.f32.mrb[0].mxu0
        %6589 = vmatprep.mubr.f32.mxu0 0.0
        %6590 = vmatmul.mubr.f32.gmra.mrb[0].mxu0 %v6428
        %v6591 = vpop.f32.mrb[0].mxu0
        %v6592 = vadd.f32 0.0, %v6591
        %v6593 = vpop.f32.mrb[0].mxu0
        %6594 = vmatprep.mubr.f32.mxu0 0.0
        %6595 = vmatmul.mubr.f32.gmra.mrb[0].mxu0 %v6431
        %v6596 = vpop.f32.mrb[0].mxu0
        %v6597 = vadd.f32 0.0, %v6596
        %v6598 = vpop.f32.mrb[0].mxu0
        %6599 = vmatprep.mubr.f32.mxu0 0.0
        %6600 = vmatmul.mubr.f32.gmra.mrb[0].mxu0 %v6434
        %v6601 = vpop.f32.mrb[0].mxu0
        %v6602 = vadd.f32 0.0, %v6601
        %v6603 = vpop.f32.mrb[0].mxu0
        %6604 = vmatprep.mubr.f32.mxu0 0.0
        %6605 = vmatmul.mubr.f32.gmra.mrb[0].mxu0 %v6437
        %v6606 = vpop.f32.mrb[0].mxu0
        %v6607 = vadd.f32 0.0, %v6606
        %v6608 = vpop.f32.mrb[0].mxu0
        %6609 = vmatprep.mubr.f32.mxu0 0.0
        %6610 = vmatmul.mubr.f32.gmra.mrb[0].mxu0 %v6440
        %v6611 = vpop.f32.mrb[0].mxu0
        %v6612 = vadd.f32 0.0, %v6611
        %v6613 = vpop.f32.mrb[0].mxu0
        %6614 = vmatprep.mubr.f32.mxu0 0.0
        %6615 = vmatmul.mubr.f32.gmra.mrb[0].mxu0 %v6443
        %v6616 = vpop.f32.mrb[0].mxu0
        %v6617 = vadd.f32 0.0, %v6616
        %v6618 = vpop.f32.mrb[0].mxu0
        %6619 = vmatprep.mubr.f32.mxu0 0.0
        %6620 = vmatmul.mubr.f32.gmra.mrb[0].mxu0 %v6446
        %v6621 = vpop.f32.mrb[0].mxu0
        %v6622 = vadd.f32 0.0, %v6621
        %v6623 = vpop.f32.mrb[0].mxu0
        %6624 = vmatprep.mubr.f32.mxu0 0.0
        %6625 = vmatmul.mubr.f32.gmra.mrb[0].mxu0 %v6449
        %v6626 = vpop.f32.mrb[0].mxu0
        %v6627 = vadd.f32 0.0, %v6626
        %v6628 = vpop.f32.mrb[0].mxu0
        %6629 = vmatprep.mubr.f32.mxu0 0.0
        %6630 = vmatmul.mubr.f32.gmra.mrb[0].mxu0 %v6452
        %v6631 = vpop.f32.mrb[0].mxu0
        %v6632 = vadd.f32 0.0, %v6631
        %v6633 = vpop.f32.mrb[0].mxu0
        %6634 = vmatprep.mubr.f32.mxu0 0.0
        %6635 = vmatmul.mubr.f32.gmra.mrb[0].mxu0 %v6455
        %v6636 = vpop.f32.mrb[0].mxu0
        %v6637 = vadd.f32 0.0, %v6636
        %v6638 = vpop.f32.mrb[0].mxu0
        %6639 = vmatprep.mubr.f32.mxu0 0.0
        %6640 = vmatmul.mubr.f32.gmra.mrb[0].mxu0 %v6458
        %v6641 = vpop.f32.mrb[0].mxu0
        %v6642 = vadd.f32 0.0, %v6641
        %v6643 = vpop.f32.mrb[0].mxu0
        %6644 = vmatprep.mubr.f32.mxu0 0.0
        %6645 = vmatmul.mubr.f32.gmra.mrb[0].mxu0 %v6461
        %v6646 = vpop.f32.mrb[0].mxu0
        %v6647 = vadd.f32 0.0, %v6646
        %v6648 = vpop.f32.mrb[0].mxu0
        %6649 = vmatprep.mubr.f32.mxu0 0.0
        %6650 = vmatmul.mubr.f32.gmra.mrb[0].mxu0 %v6464
        %v6651 = vpop.f32.mrb[0].mxu0
        %v6652 = vadd.f32 0.0, %v6651
        %v6653 = vpop.f32.mrb[0].mxu0
        %6654 = vmatprep.mubr.f32.mxu0 0.0
        %6655 = vmatmul.mubr.f32.gmra.mrb[0].mxu0 %v6467
        %v6656 = vpop.f32.mrb[0].mxu0
        %v6657 = vadd.f32 0.0, %v6656
        %v6658 = vpop.f32.mrb[0].mxu0
        %6659 = vmatprep.mubr.f32.mxu0 0.0
        %6660 = vmatmul.mubr.f32.gmra.mrb[0].mxu0 %v6470
        %v6661 = vpop.f32.mrb[0].mxu0
        %v6662 = vadd.f32 0.0, %v6661
        %v6663 = vpop.f32.mrb[0].mxu0
        %6664 = vmatprep.mubr.f32.mxu0 0.0
        %6665 = vmatmul.mubr.f32.gmra.mrb[0].mxu0 %v6473
        %v6666 = vpop.f32.mrb[0].mxu0
        %v6667 = vadd.f32 0.0, %v6666
        %v6668 = vpop.f32.mrb[0].mxu0
        %6669 = vmatprep.mubr.f32.mxu0 0.0
        %6670 = vmatmul.mubr.f32.gmra.mrb[0].mxu0 %v6476
        %v6671 = vpop.f32.mrb[0].mxu0
        %v6672 = vadd.f32 0.0, %v6671
        %v6673 = vpop.f32.mrb[0].mxu0
        %6674 = vmatprep.mubr.f32.mxu0 0.0
        %6675 = vmatmul.mubr.f32.gmra.mrb[0].mxu0 %v6479
        %v6676 = vpop.f32.mrb[0].mxu0
        %v6677 = vadd.f32 0.0, %v6676
        %v6678 = vpop.f32.mrb[0].mxu0
        %6679 = vmatprep.mubr.f32.mxu0 0.0
        %6680 = vmatmul.mubr.f32.gmra.mrb[0].mxu0 %v6482
        %v6681 = vpop.f32.mrb[0].mxu0
        %v6682 = vadd.f32 0.0, %v6681
        %v6683 = vpop.f32.mrb[0].mxu0
        %6684 = vmatprep.mubr.f32.mxu0 0.0
        %6685 = vmatmul.mubr.f32.gmra.mrb[0].mxu0 %v6485
        %v6686 = vpop.f32.mrb[0].mxu0
        %v6687 = vadd.f32 0.0, %v6686
        %v6688 = vpop.f32.mrb[0].mxu0
        %6689 = vmatprep.mubr.f32.mxu0 0.0
        %6690 = vmatmul.mubr.f32.gmra.mrb[0].mxu0 %v6488
        %v6691 = vpop.f32.mrb[0].mxu0
        %v6692 = vadd.f32 0.0, %v6691
        %v6693 = vpop.f32.mrb[0].mxu0
        %6694 = vmatprep.mubr.f32.mxu0 0.0
        %6695 = vmatmul.mubr.f32.gmra.mrb[0].mxu0 %v6491
        %v6696 = vpop.f32.mrb[0].mxu0
        %v6697 = vadd.f32 0.0, %v6696
        %v6698 = vpop.f32.mrb[0].mxu0
        %6699 = vmatprep.mubr.f32.mxu0 0.0
        %6700 = vmatmul.mubr.f32.gmra.mrb[0].mxu0 %v6494
        %v6701 = vpop.f32.mrb[0].mxu0
        %v6702 = vadd.f32 0.0, %v6701
        %v6703 = vpop.f32.mrb[0].mxu0
        %6704 = vmatprep.mubr.f32.mxu0 0.0
        %6705 = vmatmul.mubr.f32.gmra.mrb[0].mxu0 %v6497
        %v6706 = vpop.f32.mrb[0].mxu0
        %v6707 = vadd.f32 0.0, %v6706
        %v6708 = vpop.f32.mrb[0].mxu0
        %6709 = vmatprep.mubr.f32.mxu0 0.0
        %6710 = vmatmul.mubr.f32.gmra.mrb[0].mxu0 %v6500
        %v6711 = vpop.f32.mrb[0].mxu0
        %v6712 = vadd.f32 0.0, %v6711
        %v6713 = vpop.f32.mrb[0].mxu0
        %6714 = vmatprep.mubr.f32.mxu0 0.0
        %6715 = vmatmul.mubr.f32.gmra.mrb[0].mxu0 %v6503
        %v6716 = vpop.f32.mrb[0].mxu0
        %v6717 = vadd.f32 0.0, %v6716
        %v6718 = vpop.f32.mrb[0].mxu0
        %6719 = vmatprep.mubr.f32.mxu0 0.0
        %6720 = vmatmul.mubr.f32.gmra.mrb[0].mxu0 %v6506
        %v6721 = vpop.f32.mrb[0].mxu0
        %v6722 = vadd.f32 0.0, %v6721
        %v6723 = vpop.f32.mrb[0].mxu0
        %6724 = vmatprep.mubr.f32.mxu0 0.0
        %6725 = vmatmul.mubr.f32.gmra.mrb[0].mxu0 %v6509
        %v6726 = vpop.f32.mrb[0].mxu0
        %v6727 = vadd.f32 0.0, %v6726
        %v6728 = vpop.f32.mrb[0].mxu0
        %6729 = vmatprep.mubr.f32.mxu0 0.0
        %6730 = vmatmul.mubr.f32.gmra.mrb[0].mxu0 %v6512
        %v6731 = vpop.f32.mrb[0].mxu0
        %v6732 = vadd.f32 0.0, %v6731
        %v6733 = vpop.f32.mrb[0].mxu0
        %6734 = vmatprep.mubr.f32.mxu0 0.0
        %6735 = vmatmul.mubr.f32.gmra.mrb[0].mxu0 %v6515
        %v6736 = vpop.f32.mrb[0].mxu0
        %v6737 = vadd.f32 0.0, %v6736
        %v6738 = vpop.f32.mrb[0].mxu0
        %6739 = vmatprep.mubr.f32.mxu0 0.0
        %6740 = vmatmul.mubr.f32.gmra.mrb[0].mxu0 %v6518
        %v6741 = vpop.f32.mrb[0].mxu0
        %v6742 = vadd.f32 0.0, %v6741
        %v6743 = vpop.f32.mrb[0].mxu0
        %6744 = vdwg.mxu0
        %v6777 = vrot.slane %v6587, 6
        %v6778 = vrot.slane %v6592, 6
        %v6779 = vsel %vm4692, %v6777, %v6778
        %v6780 = vrot.slane %v6597, 6
        %v6781 = vsel %vm4692, %v6778, %v6780
        %v6782 = vrot.slane %v6602, 6
        %v6783 = vsel %vm4692, %v6780, %v6782
        %v6784 = vrot.slane %v6607, 6
        %v6785 = vrot.slane %v6612, 6
        %v6786 = vsel %vm4692, %v6784, %v6785
        %v6787 = vrot.slane %v6617, 6
        %v6788 = vsel %vm4692, %v6785, %v6787
        %v6789 = vrot.slane %v6622, 6
        %v6790 = vsel %vm4692, %v6787, %v6789
        %v6791 = vrot.slane %v6627, 6
        %v6792 = vrot.slane %v6632, 6
        %v6793 = vsel %vm4692, %v6791, %v6792
        %v6794 = vrot.slane %v6637, 6
        %v6795 = vsel %vm4692, %v6792, %v6794
        %v6796 = vrot.slane %v6642, 6
        %v6797 = vsel %vm4692, %v6794, %v6796
        %v6798 = vrot.slane %v6647, 6
        %v6799 = vrot.slane %v6652, 6
        %v6800 = vsel %vm4692, %v6798, %v6799
        %v6801 = vrot.slane %v6657, 6
        %v6802 = vsel %vm4692, %v6799, %v6801
        %v6803 = vrot.slane %v6662, 6
        %v6804 = vsel %vm4692, %v6801, %v6803
        %v6805 = vrot.slane %v6667, 6
        %v6806 = vrot.slane %v6672, 6
        %v6807 = vsel %vm4692, %v6805, %v6806
        %v6808 = vrot.slane %v6677, 6
        %v6809 = vsel %vm4692, %v6806, %v6808
        %v6810 = vrot.slane %v6682, 6
        %v6811 = vsel %vm4692, %v6808, %v6810
        %v6812 = vrot.slane %v6687, 6
        %v6813 = vrot.slane %v6692, 6
        %v6814 = vsel %vm4692, %v6812, %v6813
        %v6815 = vrot.slane %v6697, 6
        %v6816 = vsel %vm4692, %v6813, %v6815
        %v6817 = vrot.slane %v6702, 6
        %v6818 = vsel %vm4692, %v6815, %v6817
        %v6819 = vrot.slane %v6707, 6
        %v6820 = vrot.slane %v6712, 6
        %v6821 = vsel %vm4692, %v6819, %v6820
        %v6822 = vrot.slane %v6717, 6
        %v6823 = vsel %vm4692, %v6820, %v6822
        %v6824 = vrot.slane %v6722, 6
        %v6825 = vsel %vm4692, %v6822, %v6824
        %v6826 = vrot.slane %v6727, 6
        %v6827 = vrot.slane %v6732, 6
        %v6828 = vsel %vm4692, %v6826, %v6827
        %v6829 = vrot.slane %v6737, 6
        %v6830 = vsel %vm4692, %v6827, %v6829
        %v6831 = vrot.slane %v6742, 6
        %v6832 = vsel %vm4692, %v6829, %v6831
        %6833 = vrot.lane.b32.xlu0 %v6777, 112
        %v6834 = vpop.permute.xlu0 %6833
        %6835 = vrot.lane.b32.xlu0 %v6779, 112
        %v6836 = vpop.permute.xlu0 %6835
        %6837 = vrot.lane.b32.xlu0 %v6781, 112
        %v6838 = vpop.permute.xlu0 %6837
        %6839 = vrot.lane.b32.xlu0 %v6783, 112
        %v6840 = vpop.permute.xlu0 %6839
        %6841 = vrot.lane.b32.xlu0 %v6784, 112
        %v6842 = vpop.permute.xlu0 %6841
        %6843 = vrot.lane.b32.xlu0 %v6786, 112
        %v6844 = vpop.permute.xlu0 %6843
        %6845 = vrot.lane.b32.xlu0 %v6788, 112
        %v6846 = vpop.permute.xlu0 %6845
        %6847 = vrot.lane.b32.xlu0 %v6790, 112
        %v6848 = vpop.permute.xlu0 %6847
        %6849 = vrot.lane.b32.xlu0 %v6791, 112
        %v6850 = vpop.permute.xlu0 %6849
        %6851 = vrot.lane.b32.xlu0 %v6793, 112
        %v6852 = vpop.permute.xlu0 %6851
        %6853 = vrot.lane.b32.xlu0 %v6795, 112
        %v6854 = vpop.permute.xlu0 %6853
        %6855 = vrot.lane.b32.xlu0 %v6797, 112
        %v6856 = vpop.permute.xlu0 %6855
        %6857 = vrot.lane.b32.xlu0 %v6798, 112
        %v6858 = vpop.permute.xlu0 %6857
        %6859 = vrot.lane.b32.xlu0 %v6800, 112
        %v6860 = vpop.permute.xlu0 %6859
        %6861 = vrot.lane.b32.xlu0 %v6802, 112
        %v6862 = vpop.permute.xlu0 %6861
        %6863 = vrot.lane.b32.xlu0 %v6804, 112
        %v6864 = vpop.permute.xlu0 %6863
        %6865 = vrot.lane.b32.xlu0 %v6805, 112
        %v6866 = vpop.permute.xlu0 %6865
        %6867 = vrot.lane.b32.xlu0 %v6807, 112
        %v6868 = vpop.permute.xlu0 %6867
        %6869 = vrot.lane.b32.xlu0 %v6809, 112
        %v6870 = vpop.permute.xlu0 %6869
        %6871 = vrot.lane.b32.xlu0 %v6811, 112
        %v6872 = vpop.permute.xlu0 %6871
        %6873 = vrot.lane.b32.xlu0 %v6812, 112
        %v6874 = vpop.permute.xlu0 %6873
        %6875 = vrot.lane.b32.xlu0 %v6814, 112
        %v6876 = vpop.permute.xlu0 %6875
        %6877 = vrot.lane.b32.xlu0 %v6816, 112
        %v6878 = vpop.permute.xlu0 %6877
        %6879 = vrot.lane.b32.xlu0 %v6818, 112
        %v6880 = vpop.permute.xlu0 %6879
        %6881 = vrot.lane.b32.xlu0 %v6819, 112
        %v6882 = vpop.permute.xlu0 %6881
        %6883 = vrot.lane.b32.xlu0 %v6821, 112
        %v6884 = vpop.permute.xlu0 %6883
        %6885 = vrot.lane.b32.xlu0 %v6823, 112
        %v6886 = vpop.permute.xlu0 %6885
        %6887 = vrot.lane.b32.xlu0 %v6825, 112
        %v6888 = vpop.permute.xlu0 %6887
        %6889 = vrot.lane.b32.xlu0 %v6826, 112
        %v6890 = vpop.permute.xlu0 %6889
        %6891 = vrot.lane.b32.xlu0 %v6828, 112
        %v6892 = vpop.permute.xlu0 %6891
        %6893 = vrot.lane.b32.xlu0 %v6830, 112
        %v6894 = vpop.permute.xlu0 %6893
        %6895 = vrot.lane.b32.xlu0 %v6832, 112
        %v6896 = vpop.permute.xlu0 %6895
        %v6929 = vsel %vm4692, 0.0, %v6834
        %v6930 = vsel %vm4692, 0.0, %v6842
        %v6931 = vsel %vm4692, 0.0, %v6850
        %v6932 = vsel %vm4692, 0.0, %v6858
        %v6933 = vsel %vm4692, 0.0, %v6866
        %v6934 = vsel %vm4692, 0.0, %v6874
        %v6935 = vsel %vm4692, 0.0, %v6882
        %v6936 = vsel %vm4692, 0.0, %v6890
        %v6937 = vadd.f32 %v6587, %v6929
        %v6938 = vadd.f32 %v6592, %v6836
        %v6939 = vadd.f32 %v6597, %v6838
        %v6940 = vadd.f32 %v6602, %v6840
        %v6941 = vadd.f32 %v6607, %v6930
        %v6942 = vadd.f32 %v6612, %v6844
        %v6943 = vadd.f32 %v6617, %v6846
        %v6944 = vadd.f32 %v6622, %v6848
        %v6945 = vadd.f32 %v6627, %v6931
        %v6946 = vadd.f32 %v6632, %v6852
        %v6947 = vadd.f32 %v6637, %v6854
        %v6948 = vadd.f32 %v6642, %v6856
        %v6949 = vadd.f32 %v6647, %v6932
        %v6950 = vadd.f32 %v6652, %v6860
        %v6951 = vadd.f32 %v6657, %v6862
        %v6952 = vadd.f32 %v6662, %v6864
        %v6953 = vadd.f32 %v6667, %v6933
        %v6954 = vadd.f32 %v6672, %v6868
        %v6955 = vadd.f32 %v6677, %v6870
        %v6956 = vadd.f32 %v6682, %v6872
        %v6957 = vadd.f32 %v6687, %v6934
        %v6958 = vadd.f32 %v6692, %v6876
        %v6959 = vadd.f32 %v6697, %v6878
        %v6960 = vadd.f32 %v6702, %v6880
        %v6961 = vadd.f32 %v6707, %v6935
        %v6962 = vadd.f32 %v6712, %v6884
        %v6963 = vadd.f32 %v6717, %v6886
        %v6964 = vadd.f32 %v6722, %v6888
        %v6965 = vadd.f32 %v6727, %v6936
        %v6966 = vadd.f32 %v6732, %v6892
        %v6967 = vadd.f32 %v6737, %v6894
        %v6968 = vadd.f32 %v6742, %v6896
        %s6969 = scalar_lea.vmem %s4, 9
        %v6970 = vld [vmem:[%s6969] sm:$0x1]
        %v6972 = vlaneseq
        %v6973 = vshrl.u32 %v6972, 7
        %v6974 = vsub.s32 0, %v6973
        %v6975 = vrot.slane %v6970, %v6974
        %v6977 = vadd.f32 %v6937, %v6975
        %v6978 = vadd.f32 %v6938, %v6975
        %v6979 = vadd.f32 %v6939, %v6975
        %v6980 = vadd.f32 %v6940, %v6975
        %v6981 = vadd.f32 %v6941, %v6975
        %v6982 = vadd.f32 %v6942, %v6975
        %v6983 = vadd.f32 %v6943, %v6975
        %v6984 = vadd.f32 %v6944, %v6975
        %v6985 = vadd.f32 %v6945, %v6975
        %v6986 = vadd.f32 %v6946, %v6975
        %v6987 = vadd.f32 %v6947, %v6975
        %v6988 = vadd.f32 %v6948, %v6975
        %v6989 = vadd.f32 %v6949, %v6975
        %v6990 = vadd.f32 %v6950, %v6975
        %v6991 = vadd.f32 %v6951, %v6975
        %v6992 = vadd.f32 %v6952, %v6975
        %v6993 = vadd.f32 %v6953, %v6975
        %v6994 = vadd.f32 %v6954, %v6975
        %v6995 = vadd.f32 %v6955, %v6975
        %v6996 = vadd.f32 %v6956, %v6975
        %v6997 = vadd.f32 %v6957, %v6975
        %v6998 = vadd.f32 %v6958, %v6975
        %v6999 = vadd.f32 %v6959, %v6975
        %v7000 = vadd.f32 %v6960, %v6975
        %v7001 = vadd.f32 %v6961, %v6975
        %v7002 = vadd.f32 %v6962, %v6975
        %v7003 = vadd.f32 %v6963, %v6975
        %v7004 = vadd.f32 %v6964, %v6975
        %v7005 = vadd.f32 %v6965, %v6975
        %v7006 = vadd.f32 %v6966, %v6975
        %v7007 = vadd.f32 %v6967, %v6975
        %v7008 = vadd.f32 %v6968, %v6975
        %v7009 = vmax.f32 %v6977, 0.0
        %v7010 = vmax.f32 %v6978, 0.0
        %v7011 = vmax.f32 %v6979, 0.0
        %v7012 = vmax.f32 %v6980, 0.0
        %v7013 = vmax.f32 %v6981, 0.0
        %v7014 = vmax.f32 %v6982, 0.0
        %v7015 = vmax.f32 %v6983, 0.0
        %v7016 = vmax.f32 %v6984, 0.0
        %v7017 = vmax.f32 %v6985, 0.0
        %v7018 = vmax.f32 %v6986, 0.0
        %v7019 = vmax.f32 %v6987, 0.0
        %v7020 = vmax.f32 %v6988, 0.0
        %v7021 = vmax.f32 %v6989, 0.0
        %v7022 = vmax.f32 %v6990, 0.0
        %v7023 = vmax.f32 %v6991, 0.0
        %v7024 = vmax.f32 %v6992, 0.0
        %v7025 = vmax.f32 %v6993, 0.0
        %v7026 = vmax.f32 %v6994, 0.0
        %v7027 = vmax.f32 %v6995, 0.0
        %v7028 = vmax.f32 %v6996, 0.0
        %v7029 = vmax.f32 %v6997, 0.0
        %v7030 = vmax.f32 %v6998, 0.0
        %v7031 = vmax.f32 %v6999, 0.0
        %v7032 = vmax.f32 %v7000, 0.0
        %v7033 = vmax.f32 %v7001, 0.0
        %v7034 = vmax.f32 %v7002, 0.0
        %v7035 = vmax.f32 %v7003, 0.0
        %v7036 = vmax.f32 %v7004, 0.0
        %v7037 = vmax.f32 %v7005, 0.0
        %v7038 = vmax.f32 %v7006, 0.0
        %v7039 = vmax.f32 %v7007, 0.0
        %v7040 = vmax.f32 %v7008, 0.0
        %v7041 = vxor.u32 %v7009, 2147483648
        %v7042 = vxor.u32 %v7010, 2147483648
        %v7043 = vxor.u32 %v7011, 2147483648
        %v7044 = vxor.u32 %v7012, 2147483648
        %v7045 = vxor.u32 %v7013, 2147483648
        %v7046 = vxor.u32 %v7014, 2147483648
        %v7047 = vxor.u32 %v7015, 2147483648
        %v7048 = vxor.u32 %v7016, 2147483648
        %v7049 = vxor.u32 %v7017, 2147483648
        %v7050 = vxor.u32 %v7018, 2147483648
        %v7051 = vxor.u32 %v7019, 2147483648
        %v7052 = vxor.u32 %v7020, 2147483648
        %v7053 = vxor.u32 %v7021, 2147483648
        %v7054 = vxor.u32 %v7022, 2147483648
        %v7055 = vxor.u32 %v7023, 2147483648
        %v7056 = vxor.u32 %v7024, 2147483648
        %v7057 = vxor.u32 %v7025, 2147483648
        %v7058 = vxor.u32 %v7026, 2147483648
        %v7059 = vxor.u32 %v7027, 2147483648
        %v7060 = vxor.u32 %v7028, 2147483648
        %v7061 = vxor.u32 %v7029, 2147483648
        %v7062 = vxor.u32 %v7030, 2147483648
        %v7063 = vxor.u32 %v7031, 2147483648
        %v7064 = vxor.u32 %v7032, 2147483648
        %v7065 = vxor.u32 %v7033, 2147483648
        %v7066 = vxor.u32 %v7034, 2147483648
        %v7067 = vxor.u32 %v7035, 2147483648
        %v7068 = vxor.u32 %v7036, 2147483648
        %v7069 = vxor.u32 %v7037, 2147483648
        %v7070 = vxor.u32 %v7038, 2147483648
        %v7071 = vxor.u32 %v7039, 2147483648
        %v7072 = vxor.u32 %v7040, 2147483648
        %v7073 = vmul.f32 %v7041, 1.442695
        %v7074 = vpow.pop %v7073
        %v7075 = vmul.f32 %v7042, 1.442695
        %v7076 = vpow.pop %v7075
        %v7077 = vmul.f32 %v7043, 1.442695
        %v7078 = vpow.pop %v7077
        %v7079 = vmul.f32 %v7044, 1.442695
        %v7080 = vpow.pop %v7079
        %v7081 = vmul.f32 %v7045, 1.442695
        %v7082 = vpow.pop %v7081
        %v7083 = vmul.f32 %v7046, 1.442695
        %v7084 = vpow.pop %v7083
        %v7085 = vmul.f32 %v7047, 1.442695
        %v7086 = vpow.pop %v7085
        %v7087 = vmul.f32 %v7048, 1.442695
        %v7088 = vpow.pop %v7087
        %v7089 = vmul.f32 %v7049, 1.442695
        %v7090 = vpow.pop %v7089
        %v7091 = vmul.f32 %v7050, 1.442695
        %v7092 = vpow.pop %v7091
        %v7093 = vmul.f32 %v7051, 1.442695
        %v7094 = vpow.pop %v7093
        %v7095 = vmul.f32 %v7052, 1.442695
        %v7096 = vpow.pop %v7095
        %v7097 = vmul.f32 %v7053, 1.442695
        %v7098 = vpow.pop %v7097
        %v7099 = vmul.f32 %v7054, 1.442695
        %v7100 = vpow.pop %v7099
        %v7101 = vmul.f32 %v7055, 1.442695
        %v7102 = vpow.pop %v7101
        %v7103 = vmul.f32 %v7056, 1.442695
        %v7104 = vpow.pop %v7103
        %v7105 = vmul.f32 %v7057, 1.442695
        %v7106 = vpow.pop %v7105
        %v7107 = vmul.f32 %v7058, 1.442695
        %v7108 = vpow.pop %v7107
        %v7109 = vmul.f32 %v7059, 1.442695
        %v7110 = vpow.pop %v7109
        %v7111 = vmul.f32 %v7060, 1.442695
        %v7112 = vpow.pop %v7111
        %v7113 = vmul.f32 %v7061, 1.442695
        %v7114 = vpow.pop %v7113
        %v7115 = vmul.f32 %v7062, 1.442695
        %v7116 = vpow.pop %v7115
        %v7117 = vmul.f32 %v7063, 1.442695
        %v7118 = vpow.pop %v7117
        %v7119 = vmul.f32 %v7064, 1.442695
        %v7120 = vpow.pop %v7119
        %v7121 = vmul.f32 %v7065, 1.442695
        %v7122 = vpow.pop %v7121
        %v7123 = vmul.f32 %v7066, 1.442695
        %v7124 = vpow.pop %v7123
        %v7125 = vmul.f32 %v7067, 1.442695
        %v7126 = vpow.pop %v7125
        %v7127 = vmul.f32 %v7068, 1.442695
        %v7128 = vpow.pop %v7127
        %v7129 = vmul.f32 %v7069, 1.442695
        %v7130 = vpow.pop %v7129
        %v7131 = vmul.f32 %v7070, 1.442695
        %v7132 = vpow.pop %v7131
        %v7133 = vmul.f32 %v7071, 1.442695
        %v7134 = vpow.pop %v7133
        %v7135 = vmul.f32 %v7072, 1.442695
        %v7136 = vpow.pop %v7135
        %v7137 = vadd.f32 %v7074, 1.0
        %v7138 = vadd.f32 %v7076, 1.0
        %v7139 = vadd.f32 %v7078, 1.0
        %v7140 = vadd.f32 %v7080, 1.0
        %v7141 = vadd.f32 %v7082, 1.0
        %v7142 = vadd.f32 %v7084, 1.0
        %v7143 = vadd.f32 %v7086, 1.0
        %v7144 = vadd.f32 %v7088, 1.0
        %v7145 = vadd.f32 %v7090, 1.0
        %v7146 = vadd.f32 %v7092, 1.0
        %v7147 = vadd.f32 %v7094, 1.0
        %v7148 = vadd.f32 %v7096, 1.0
        %v7149 = vadd.f32 %v7098, 1.0
        %v7150 = vadd.f32 %v7100, 1.0
        %v7151 = vadd.f32 %v7102, 1.0
        %v7152 = vadd.f32 %v7104, 1.0
        %v7153 = vadd.f32 %v7106, 1.0
        %v7154 = vadd.f32 %v7108, 1.0
        %v7155 = vadd.f32 %v7110, 1.0
        %v7156 = vadd.f32 %v7112, 1.0
        %v7157 = vadd.f32 %v7114, 1.0
        %v7158 = vadd.f32 %v7116, 1.0
        %v7159 = vadd.f32 %v7118, 1.0
        %v7160 = vadd.f32 %v7120, 1.0
        %v7161 = vadd.f32 %v7122, 1.0
        %v7162 = vadd.f32 %v7124, 1.0
        %v7163 = vadd.f32 %v7126, 1.0
        %v7164 = vadd.f32 %v7128, 1.0
        %v7165 = vadd.f32 %v7130, 1.0
        %v7166 = vadd.f32 %v7132, 1.0
        %v7167 = vadd.f32 %v7134, 1.0
        %v7168 = vadd.f32 %v7136, 1.0
        %v7169 = vrcp.pop %v7137
        %v7170 = vmul.f32 1.0, %v7169
        %v7171 = vrcp.pop %v7138
        %v7172 = vmul.f32 1.0, %v7171
        %v7173 = vrcp.pop %v7139
        %v7174 = vmul.f32 1.0, %v7173
        %v7175 = vrcp.pop %v7140
        %v7176 = vmul.f32 1.0, %v7175
        %v7177 = vrcp.pop %v7141
        %v7178 = vmul.f32 1.0, %v7177
        %v7179 = vrcp.pop %v7142
        %v7180 = vmul.f32 1.0, %v7179
        %v7181 = vrcp.pop %v7143
        %v7182 = vmul.f32 1.0, %v7181
        %v7183 = vrcp.pop %v7144
        %v7184 = vmul.f32 1.0, %v7183
        %v7185 = vrcp.pop %v7145
        %v7186 = vmul.f32 1.0, %v7185
        %v7187 = vrcp.pop %v7146
        %v7188 = vmul.f32 1.0, %v7187
        %v7189 = vrcp.pop %v7147
        %v7190 = vmul.f32 1.0, %v7189
        %v7191 = vrcp.pop %v7148
        %v7192 = vmul.f32 1.0, %v7191
        %v7193 = vrcp.pop %v7149
        %v7194 = vmul.f32 1.0, %v7193
        %v7195 = vrcp.pop %v7150
        %v7196 = vmul.f32 1.0, %v7195
        %v7197 = vrcp.pop %v7151
        %v7198 = vmul.f32 1.0, %v7197
        %v7199 = vrcp.pop %v7152
        %v7200 = vmul.f32 1.0, %v7199
        %v7201 = vrcp.pop %v7153
        %v7202 = vmul.f32 1.0, %v7201
        %v7203 = vrcp.pop %v7154
        %v7204 = vmul.f32 1.0, %v7203
        %v7205 = vrcp.pop %v7155
        %v7206 = vmul.f32 1.0, %v7205
        %v7207 = vrcp.pop %v7156
        %v7208 = vmul.f32 1.0, %v7207
        %v7209 = vrcp.pop %v7157
        %v7210 = vmul.f32 1.0, %v7209
        %v7211 = vrcp.pop %v7158
        %v7212 = vmul.f32 1.0, %v7211
        %v7213 = vrcp.pop %v7159
        %v7214 = vmul.f32 1.0, %v7213
        %v7215 = vrcp.pop %v7160
        %v7216 = vmul.f32 1.0, %v7215
        %v7217 = vrcp.pop %v7161
        %v7218 = vmul.f32 1.0, %v7217
        %v7219 = vrcp.pop %v7162
        %v7220 = vmul.f32 1.0, %v7219
        %v7221 = vrcp.pop %v7163
        %v7222 = vmul.f32 1.0, %v7221
        %v7223 = vrcp.pop %v7164
        %v7224 = vmul.f32 1.0, %v7223
        %v7225 = vrcp.pop %v7165
        %v7226 = vmul.f32 1.0, %v7225
        %v7227 = vrcp.pop %v7166
        %v7228 = vmul.f32 1.0, %v7227
        %v7229 = vrcp.pop %v7167
        %v7230 = vmul.f32 1.0, %v7229
        %v7231 = vrcp.pop %v7168
        %v7232 = vmul.f32 1.0, %v7231
        %v7233 = vmul.f32 %v4135, %v7170
        %v7234 = vmul.f32 %v4136, %v7172
        %v7235 = vmul.f32 %v4137, %v7174
        %v7236 = vmul.f32 %v4138, %v7176
        %v7237 = vmul.f32 %v4139, %v7178
        %v7238 = vmul.f32 %v4140, %v7180
        %v7239 = vmul.f32 %v4141, %v7182
        %v7240 = vmul.f32 %v4142, %v7184
        %v7241 = vmul.f32 %v4143, %v7186
        %v7242 = vmul.f32 %v4144, %v7188
        %v7243 = vmul.f32 %v4145, %v7190
        %v7244 = vmul.f32 %v4146, %v7192
        %v7245 = vmul.f32 %v4147, %v7194
        %v7246 = vmul.f32 %v4148, %v7196
        %v7247 = vmul.f32 %v4149, %v7198
        %v7248 = vmul.f32 %v4150, %v7200
        %v7249 = vmul.f32 %v4151, %v7202
        %v7250 = vmul.f32 %v4152, %v7204
        %v7251 = vmul.f32 %v4153, %v7206
        %v7252 = vmul.f32 %v4154, %v7208
        %v7253 = vmul.f32 %v4155, %v7210
        %v7254 = vmul.f32 %v4156, %v7212
        %v7255 = vmul.f32 %v4157, %v7214
        %v7256 = vmul.f32 %v4158, %v7216
        %v7257 = vmul.f32 %v4159, %v7218
        %v7258 = vmul.f32 %v4160, %v7220
        %v7259 = vmul.f32 %v4161, %v7222
        %v7260 = vmul.f32 %v4162, %v7224
        %v7261 = vmul.f32 %v4163, %v7226
        %v7262 = vmul.f32 %v4164, %v7228
        %v7263 = vmul.f32 %v4165, %v7230
        %v7264 = vmul.f32 %v4166, %v7232
        %v7265 = vadd.f32 %v5769, %v7233
        %v7266 = vadd.f32 %v5770, %v7234
        %v7267 = vadd.f32 %v5771, %v7235
        %v7268 = vadd.f32 %v5772, %v7236
        %v7269 = vadd.f32 %v5773, %v7237
        %v7270 = vadd.f32 %v5774, %v7238
        %v7271 = vadd.f32 %v5775, %v7239
        %v7272 = vadd.f32 %v5776, %v7240
        %v7273 = vadd.f32 %v5777, %v7241
        %v7274 = vadd.f32 %v5778, %v7242
        %v7275 = vadd.f32 %v5779, %v7243
        %v7276 = vadd.f32 %v5780, %v7244
        %v7277 = vadd.f32 %v5781, %v7245
        %v7278 = vadd.f32 %v5782, %v7246
        %v7279 = vadd.f32 %v5783, %v7247
        %v7280 = vadd.f32 %v5784, %v7248
        %v7281 = vadd.f32 %v5785, %v7249
        %v7282 = vadd.f32 %v5786, %v7250
        %v7283 = vadd.f32 %v5787, %v7251
        %v7284 = vadd.f32 %v5788, %v7252
        %v7285 = vadd.f32 %v5789, %v7253
        %v7286 = vadd.f32 %v5790, %v7254
        %v7287 = vadd.f32 %v5791, %v7255
        %v7288 = vadd.f32 %v5792, %v7256
        %v7289 = vadd.f32 %v5793, %v7257
        %v7290 = vadd.f32 %v5794, %v7258
        %v7291 = vadd.f32 %v5795, %v7259
        %v7292 = vadd.f32 %v5796, %v7260
        %v7293 = vadd.f32 %v5797, %v7261
        %v7294 = vadd.f32 %v5798, %v7262
        %v7295 = vadd.f32 %v5799, %v7263
        %v7296 = vadd.f32 %v5800, %v7264
        %v7297 = vsel %vm553, %v7265, 0.0
        %v7298 = vsel %vm553, %v7266, 0.0
        %v7299 = vadd.f32 %v7297, %v7298
        %v7300 = vsel %vm553, %v7267, 0.0
        %v7301 = vadd.f32 %v7299, %v7300
        %v7302 = vsel %vm553, %v7268, 0.0
        %v7303 = vadd.f32 %v7301, %v7302
        %v7304 = vrot.slane %v7303, 4
        %v7305 = vadd.f32 %v7303, %v7304
        %v7306 = vrot.slane %v7305, 2
        %v7307 = vadd.f32 %v7305, %v7306
        %v7308 = vrot.slane %v7307, 1
        %v7309 = vadd.f32 %v7307, %v7308
        %v7310 = vsel %vm553, %v7269, 0.0
        %v7311 = vsel %vm553, %v7270, 0.0
        %v7312 = vadd.f32 %v7310, %v7311
        %v7313 = vsel %vm553, %v7271, 0.0
        %v7314 = vadd.f32 %v7312, %v7313
        %v7315 = vsel %vm553, %v7272, 0.0
        %v7316 = vadd.f32 %v7314, %v7315
        %v7317 = vrot.slane %v7316, 4
        %v7318 = vadd.f32 %v7316, %v7317
        %v7319 = vrot.slane %v7318, 2
        %v7320 = vadd.f32 %v7318, %v7319
        %v7321 = vrot.slane %v7320, 1
        %v7322 = vadd.f32 %v7320, %v7321
        %v7323 = vsel %vm553, %v7273, 0.0
        %v7324 = vsel %vm553, %v7274, 0.0
        %v7325 = vadd.f32 %v7323, %v7324
        %v7326 = vsel %vm553, %v7275, 0.0
        %v7327 = vadd.f32 %v7325, %v7326
        %v7328 = vsel %vm553, %v7276, 0.0
        %v7329 = vadd.f32 %v7327, %v7328
        %v7330 = vrot.slane %v7329, 4
        %v7331 = vadd.f32 %v7329, %v7330
        %v7332 = vrot.slane %v7331, 2
        %v7333 = vadd.f32 %v7331, %v7332
        %v7334 = vrot.slane %v7333, 1
        %v7335 = vadd.f32 %v7333, %v7334
        %v7336 = vsel %vm553, %v7277, 0.0
        %v7337 = vsel %vm553, %v7278, 0.0
        %v7338 = vadd.f32 %v7336, %v7337
        %v7339 = vsel %vm553, %v7279, 0.0
        %v7340 = vadd.f32 %v7338, %v7339
        %v7341 = vsel %vm553, %v7280, 0.0
        %v7342 = vadd.f32 %v7340, %v7341
        %v7343 = vrot.slane %v7342, 4
        %v7344 = vadd.f32 %v7342, %v7343
        %v7345 = vrot.slane %v7344, 2
        %v7346 = vadd.f32 %v7344, %v7345
        %v7347 = vrot.slane %v7346, 1
        %v7348 = vadd.f32 %v7346, %v7347
        %v7349 = vsel %vm553, %v7281, 0.0
        %v7350 = vsel %vm553, %v7282, 0.0
        %v7351 = vadd.f32 %v7349, %v7350
        %v7352 = vsel %vm553, %v7283, 0.0
        %v7353 = vadd.f32 %v7351, %v7352
        %v7354 = vsel %vm553, %v7284, 0.0
        %v7355 = vadd.f32 %v7353, %v7354
        %v7356 = vrot.slane %v7355, 4
        %v7357 = vadd.f32 %v7355, %v7356
        %v7358 = vrot.slane %v7357, 2
        %v7359 = vadd.f32 %v7357, %v7358
        %v7360 = vrot.slane %v7359, 1
        %v7361 = vadd.f32 %v7359, %v7360
        %v7362 = vsel %vm553, %v7285, 0.0
        %v7363 = vsel %vm553, %v7286, 0.0
        %v7364 = vadd.f32 %v7362, %v7363
        %v7365 = vsel %vm553, %v7287, 0.0
        %v7366 = vadd.f32 %v7364, %v7365
        %v7367 = vsel %vm553, %v7288, 0.0
        %v7368 = vadd.f32 %v7366, %v7367
        %v7369 = vrot.slane %v7368, 4
        %v7370 = vadd.f32 %v7368, %v7369
        %v7371 = vrot.slane %v7370, 2
        %v7372 = vadd.f32 %v7370, %v7371
        %v7373 = vrot.slane %v7372, 1
        %v7374 = vadd.f32 %v7372, %v7373
        %v7375 = vsel %vm553, %v7289, 0.0
        %v7376 = vsel %vm553, %v7290, 0.0
        %v7377 = vadd.f32 %v7375, %v7376
        %v7378 = vsel %vm553, %v7291, 0.0
        %v7379 = vadd.f32 %v7377, %v7378
        %v7380 = vsel %vm553, %v7292, 0.0
        %v7381 = vadd.f32 %v7379, %v7380
        %v7382 = vrot.slane %v7381, 4
        %v7383 = vadd.f32 %v7381, %v7382
        %v7384 = vrot.slane %v7383, 2
        %v7385 = vadd.f32 %v7383, %v7384
        %v7386 = vrot.slane %v7385, 1
        %v7387 = vadd.f32 %v7385, %v7386
        %v7388 = vsel %vm553, %v7293, 0.0
        %v7389 = vsel %vm553, %v7294, 0.0
        %v7390 = vadd.f32 %v7388, %v7389
        %v7391 = vsel %vm553, %v7295, 0.0
        %v7392 = vadd.f32 %v7390, %v7391
        %v7393 = vsel %vm553, %v7296, 0.0
        %v7394 = vadd.f32 %v7392, %v7393
        %v7395 = vrot.slane %v7394, 4
        %v7396 = vadd.f32 %v7394, %v7395
        %v7397 = vrot.slane %v7396, 2
        %v7398 = vadd.f32 %v7396, %v7397
        %v7399 = vrot.slane %v7398, 1
        %v7400 = vadd.f32 %v7398, %v7399
        %v7401 = vmul.f32 %v7309, %v4303
        %v7402 = vmul.f32 %v7322, %v4303
        %v7403 = vmul.f32 %v7335, %v4303
        %v7404 = vmul.f32 %v7348, %v4303
        %v7405 = vmul.f32 %v7361, %v4303
        %v7406 = vmul.f32 %v7374, %v4303
        %v7407 = vmul.f32 %v7387, %v4303
        %v7408 = vmul.f32 %v7400, %v4303
        %v7417 = vsel %vm4320, %v7402, %v7401
        %v7418 = vsel %vm4322, %v7403, %v7417
        %v7419 = vsel %vm4324, %v7404, %v7418
        %v7420 = vsel %vm4326, %v7405, %v7419
        %v7421 = vsel %vm4328, %v7406, %v7420
        %v7422 = vsel %vm4330, %v7407, %v7421
        %v7423 = vsel %vm4332, %v7408, %v7422
        %7424 = vrot.lane.b32.xlu0 %v7423, 16
        %v7425 = vpop.permute.xlu0 %7424
        %vm7427 = vcmask 261248
        %7428 = vst.msk [vmem:[%s510] sm:$0xff] %vm7427, %v7425
        %s7429 = scalar_lea.vmem %s3, 64
        %v7430 = vld [vmem:[%s7429] sm:$0xff]
        %v7431 = vld [vmem:[%s7429 + $0x8] sm:$0xff]
        %v7433 = vsel %vm553, %v5769, 0
        %v7436 = vsel %vm553, %v5770, 0
        %v7439 = vsel %vm553, %v5771, 0
        %v7442 = vsel %vm553, %v5772, 0
        %v7445 = vsel %vm553, %v5773, 0
        %v7448 = vsel %vm553, %v5774, 0
        %v7451 = vsel %vm553, %v5775, 0
        %v7454 = vsel %vm553, %v5776, 0
        %v7457 = vsel %vm553, %v5777, 0
        %v7460 = vsel %vm553, %v5778, 0
        %v7463 = vsel %vm553, %v5779, 0
        %v7466 = vsel %vm553, %v5780, 0
        %v7469 = vsel %vm553, %v5781, 0
        %v7472 = vsel %vm553, %v5782, 0
        %v7475 = vsel %vm553, %v5783, 0
        %v7478 = vsel %vm553, %v5784, 0
        %v7481 = vsel %vm553, %v5785, 0
        %v7484 = vsel %vm553, %v5786, 0
        %v7487 = vsel %vm553, %v5787, 0
        %v7490 = vsel %vm553, %v5788, 0
        %v7493 = vsel %vm553, %v5789, 0
        %v7496 = vsel %vm553, %v5790, 0
        %v7499 = vsel %vm553, %v5791, 0
        %v7502 = vsel %vm553, %v5792, 0
        %v7505 = vsel %vm553, %v5793, 0
        %v7508 = vsel %vm553, %v5794, 0
        %v7511 = vsel %vm553, %v5795, 0
        %v7514 = vsel %vm553, %v5796, 0
        %v7517 = vsel %vm553, %v5797, 0
        %v7520 = vsel %vm553, %v5798, 0
        %v7523 = vsel %vm553, %v5799, 0
        %v7526 = vsel %vm553, %v5800, 0
        %7528 = vmatprep.subr.mxu0 0.0
        %7529 = vmatpush1.msra.mxu0 %v7430
        %7530 = vmatprep.subr.mxu0 0.0
        %7531 = vmatpush1.msra.mxu0 %v7431
        %7532 = vmatprep.subr.mxu0 0.0
        %7533 = vmatpush1.msra.mxu0 0.0
        %7534 = vmatprep.subr.mxu0 0.0
        %7535 = vmatpush1.msra.mxu0 0.0
        %7536 = vmatprep.subr.mxu0 0.0
        %7537 = vmatpush1.msra.mxu0 0.0
        %7538 = vmatprep.subr.mxu0 0.0
        %7539 = vmatpush1.msra.mxu0 0.0
        %7540 = vmatprep.subr.mxu0 0.0
        %7541 = vmatpush1.msra.mxu0 0.0
        %7542 = vmatprep.subr.mxu0 0.0
        %7543 = vmatpush1.msra.mxu0 0.0
        %7544 = vmatprep.subr.mxu0 0.0
        %7545 = vmatpush1.msra.mxu0 0.0
        %7546 = vmatprep.subr.mxu0 0.0
        %7547 = vmatpush1.msra.mxu0 0.0
        %7548 = vmatprep.subr.mxu0 0.0
        %7549 = vmatpush1.msra.mxu0 0.0
        %7550 = vmatprep.subr.mxu0 0.0
        %7551 = vmatpush1.msra.mxu0 0.0
        %7552 = vmatprep.subr.mxu0 0.0
        %7553 = vmatpush1.msra.mxu0 0.0
        %7554 = vmatprep.subr.mxu0 0.0
        %7555 = vmatpush1.msra.mxu0 0.0
        %7556 = vmatprep.subr.mxu0 0.0
        %7557 = vmatpush1.msra.mxu0 0.0
        %7558 = vmatprep.subr.mxu0 0.0
        %7559 = vmatpush1.msra.mxu0 0.0
        %7560 = vmatprep.subr.mxu0 0.0
        %7561 = vmatpush1.msra.mxu0 0.0
        %7562 = vmatprep.subr.mxu0 0.0
        %7563 = vmatpush1.msra.mxu0 0.0
        %7564 = vmatprep.subr.mxu0 0.0
        %7565 = vmatpush1.msra.mxu0 0.0
        %7566 = vmatprep.subr.mxu0 0.0
        %7567 = vmatpush1.msra.mxu0 0.0
        %7568 = vmatprep.subr.mxu0 0.0
        %7569 = vmatpush1.msra.mxu0 0.0
        %7570 = vmatprep.subr.mxu0 0.0
        %7571 = vmatpush1.msra.mxu0 0.0
        %7572 = vmatprep.subr.mxu0 0.0
        %7573 = vmatpush1.msra.mxu0 0.0
        %7574 = vmatprep.subr.mxu0 0.0
        %7575 = vmatpush1.msra.mxu0 0.0
        %7576 = vmatprep.subr.mxu0 0.0
        %7577 = vmatpush1.msra.mxu0 0.0
        %7578 = vmatprep.subr.mxu0 0.0
        %7579 = vmatpush1.msra.mxu0 0.0
        %7580 = vmatprep.subr.mxu0 0.0
        %7581 = vmatpush1.msra.mxu0 0.0
        %7582 = vmatprep.subr.mxu0 0.0
        %7583 = vmatpush1.msra.mxu0 0.0
        %7584 = vmatprep.subr.mxu0 0.0
        %7585 = vmatpush1.msra.mxu0 0.0
        %7586 = vmatprep.subr.mxu0 0.0
        %7587 = vmatpush1.msra.mxu0 0.0
        %7588 = vmatprep.subr.mxu0 0.0
        %7589 = vmatpush1.msra.mxu0 0.0
        %7590 = vmatprep.subr.mxu0 0.0
        %7591 = vmatpush1.msra.mxu0 0.0
        %7592 = vmatprep.mubr.f32.mxu0 0.0
        %7593 = vmatmul.mubr.f32.gmra.mrb[0].mxu0 %v7433
        %v7594 = vpop.f32.mrb[0].mxu0
        %v7595 = vadd.f32 0.0, %v7594
        %v7596 = vpop.f32.mrb[0].mxu0
        %7597 = vmatprep.mubr.f32.mxu0 0.0
        %7598 = vmatmul.mubr.f32.gmra.mrb[0].mxu0 %v7436
        %v7599 = vpop.f32.mrb[0].mxu0
        %v7600 = vadd.f32 0.0, %v7599
        %v7601 = vpop.f32.mrb[0].mxu0
        %7602 = vmatprep.mubr.f32.mxu0 0.0
        %7603 = vmatmul.mubr.f32.gmra.mrb[0].mxu0 %v7439
        %v7604 = vpop.f32.mrb[0].mxu0
        %v7605 = vadd.f32 0.0, %v7604
        %v7606 = vpop.f32.mrb[0].mxu0
        %7607 = vmatprep.mubr.f32.mxu0 0.0
        %7608 = vmatmul.mubr.f32.gmra.mrb[0].mxu0 %v7442
        %v7609 = vpop.f32.mrb[0].mxu0
        %v7610 = vadd.f32 0.0, %v7609
        %v7611 = vpop.f32.mrb[0].mxu0
        %7612 = vmatprep.mubr.f32.mxu0 0.0
        %7613 = vmatmul.mubr.f32.gmra.mrb[0].mxu0 %v7445
        %v7614 = vpop.f32.mrb[0].mxu0
        %v7615 = vadd.f32 0.0, %v7614
        %v7616 = vpop.f32.mrb[0].mxu0
        %7617 = vmatprep.mubr.f32.mxu0 0.0
        %7618 = vmatmul.mubr.f32.gmra.mrb[0].mxu0 %v7448
        %v7619 = vpop.f32.mrb[0].mxu0
        %v7620 = vadd.f32 0.0, %v7619
        %v7621 = vpop.f32.mrb[0].mxu0
        %7622 = vmatprep.mubr.f32.mxu0 0.0
        %7623 = vmatmul.mubr.f32.gmra.mrb[0].mxu0 %v7451
        %v7624 = vpop.f32.mrb[0].mxu0
        %v7625 = vadd.f32 0.0, %v7624
        %v7626 = vpop.f32.mrb[0].mxu0
        %7627 = vmatprep.mubr.f32.mxu0 0.0
        %7628 = vmatmul.mubr.f32.gmra.mrb[0].mxu0 %v7454
        %v7629 = vpop.f32.mrb[0].mxu0
        %v7630 = vadd.f32 0.0, %v7629
        %v7631 = vpop.f32.mrb[0].mxu0
        %7632 = vmatprep.mubr.f32.mxu0 0.0
        %7633 = vmatmul.mubr.f32.gmra.mrb[0].mxu0 %v7457
        %v7634 = vpop.f32.mrb[0].mxu0
        %v7635 = vadd.f32 0.0, %v7634
        %v7636 = vpop.f32.mrb[0].mxu0
        %7637 = vmatprep.mubr.f32.mxu0 0.0
        %7638 = vmatmul.mubr.f32.gmra.mrb[0].mxu0 %v7460
        %v7639 = vpop.f32.mrb[0].mxu0
        %v7640 = vadd.f32 0.0, %v7639
        %v7641 = vpop.f32.mrb[0].mxu0
        %7642 = vmatprep.mubr.f32.mxu0 0.0
        %7643 = vmatmul.mubr.f32.gmra.mrb[0].mxu0 %v7463
        %v7644 = vpop.f32.mrb[0].mxu0
        %v7645 = vadd.f32 0.0, %v7644
        %v7646 = vpop.f32.mrb[0].mxu0
        %7647 = vmatprep.mubr.f32.mxu0 0.0
        %7648 = vmatmul.mubr.f32.gmra.mrb[0].mxu0 %v7466
        %v7649 = vpop.f32.mrb[0].mxu0
        %v7650 = vadd.f32 0.0, %v7649
        %v7651 = vpop.f32.mrb[0].mxu0
        %7652 = vmatprep.mubr.f32.mxu0 0.0
        %7653 = vmatmul.mubr.f32.gmra.mrb[0].mxu0 %v7469
        %v7654 = vpop.f32.mrb[0].mxu0
        %v7655 = vadd.f32 0.0, %v7654
        %v7656 = vpop.f32.mrb[0].mxu0
        %7657 = vmatprep.mubr.f32.mxu0 0.0
        %7658 = vmatmul.mubr.f32.gmra.mrb[0].mxu0 %v7472
        %v7659 = vpop.f32.mrb[0].mxu0
        %v7660 = vadd.f32 0.0, %v7659
        %v7661 = vpop.f32.mrb[0].mxu0
        %7662 = vmatprep.mubr.f32.mxu0 0.0
        %7663 = vmatmul.mubr.f32.gmra.mrb[0].mxu0 %v7475
        %v7664 = vpop.f32.mrb[0].mxu0
        %v7665 = vadd.f32 0.0, %v7664
        %v7666 = vpop.f32.mrb[0].mxu0
        %7667 = vmatprep.mubr.f32.mxu0 0.0
        %7668 = vmatmul.mubr.f32.gmra.mrb[0].mxu0 %v7478
        %v7669 = vpop.f32.mrb[0].mxu0
        %v7670 = vadd.f32 0.0, %v7669
        %v7671 = vpop.f32.mrb[0].mxu0
        %7672 = vmatprep.mubr.f32.mxu0 0.0
        %7673 = vmatmul.mubr.f32.gmra.mrb[0].mxu0 %v7481
        %v7674 = vpop.f32.mrb[0].mxu0
        %v7675 = vadd.f32 0.0, %v7674
        %v7676 = vpop.f32.mrb[0].mxu0
        %7677 = vmatprep.mubr.f32.mxu0 0.0
        %7678 = vmatmul.mubr.f32.gmra.mrb[0].mxu0 %v7484
        %v7679 = vpop.f32.mrb[0].mxu0
        %v7680 = vadd.f32 0.0, %v7679
        %v7681 = vpop.f32.mrb[0].mxu0
        %7682 = vmatprep.mubr.f32.mxu0 0.0
        %7683 = vmatmul.mubr.f32.gmra.mrb[0].mxu0 %v7487
        %v7684 = vpop.f32.mrb[0].mxu0
        %v7685 = vadd.f32 0.0, %v7684
        %v7686 = vpop.f32.mrb[0].mxu0
        %7687 = vmatprep.mubr.f32.mxu0 0.0
        %7688 = vmatmul.mubr.f32.gmra.mrb[0].mxu0 %v7490
        %v7689 = vpop.f32.mrb[0].mxu0
        %v7690 = vadd.f32 0.0, %v7689
        %v7691 = vpop.f32.mrb[0].mxu0
        %7692 = vmatprep.mubr.f32.mxu0 0.0
        %7693 = vmatmul.mubr.f32.gmra.mrb[0].mxu0 %v7493
        %v7694 = vpop.f32.mrb[0].mxu0
        %v7695 = vadd.f32 0.0, %v7694
        %v7696 = vpop.f32.mrb[0].mxu0
        %7697 = vmatprep.mubr.f32.mxu0 0.0
        %7698 = vmatmul.mubr.f32.gmra.mrb[0].mxu0 %v7496
        %v7699 = vpop.f32.mrb[0].mxu0
        %v7700 = vadd.f32 0.0, %v7699
        %v7701 = vpop.f32.mrb[0].mxu0
        %7702 = vmatprep.mubr.f32.mxu0 0.0
        %7703 = vmatmul.mubr.f32.gmra.mrb[0].mxu0 %v7499
        %v7704 = vpop.f32.mrb[0].mxu0
        %v7705 = vadd.f32 0.0, %v7704
        %v7706 = vpop.f32.mrb[0].mxu0
        %7707 = vmatprep.mubr.f32.mxu0 0.0
        %7708 = vmatmul.mubr.f32.gmra.mrb[0].mxu0 %v7502
        %v7709 = vpop.f32.mrb[0].mxu0
        %v7710 = vadd.f32 0.0, %v7709
        %v7711 = vpop.f32.mrb[0].mxu0
        %7712 = vmatprep.mubr.f32.mxu0 0.0
        %7713 = vmatmul.mubr.f32.gmra.mrb[0].mxu0 %v7505
        %v7714 = vpop.f32.mrb[0].mxu0
        %v7715 = vadd.f32 0.0, %v7714
        %v7716 = vpop.f32.mrb[0].mxu0
        %7717 = vmatprep.mubr.f32.mxu0 0.0
        %7718 = vmatmul.mubr.f32.gmra.mrb[0].mxu0 %v7508
        %v7719 = vpop.f32.mrb[0].mxu0
        %v7720 = vadd.f32 0.0, %v7719
        %v7721 = vpop.f32.mrb[0].mxu0
        %7722 = vmatprep.mubr.f32.mxu0 0.0
        %7723 = vmatmul.mubr.f32.gmra.mrb[0].mxu0 %v7511
        %v7724 = vpop.f32.mrb[0].mxu0
        %v7725 = vadd.f32 0.0, %v7724
        %v7726 = vpop.f32.mrb[0].mxu0
        %7727 = vmatprep.mubr.f32.mxu0 0.0
        %7728 = vmatmul.mubr.f32.gmra.mrb[0].mxu0 %v7514
        %v7729 = vpop.f32.mrb[0].mxu0
        %v7730 = vadd.f32 0.0, %v7729
        %v7731 = vpop.f32.mrb[0].mxu0
        %7732 = vmatprep.mubr.f32.mxu0 0.0
        %7733 = vmatmul.mubr.f32.gmra.mrb[0].mxu0 %v7517
        %v7734 = vpop.f32.mrb[0].mxu0
        %v7735 = vadd.f32 0.0, %v7734
        %v7736 = vpop.f32.mrb[0].mxu0
        %7737 = vmatprep.mubr.f32.mxu0 0.0
        %7738 = vmatmul.mubr.f32.gmra.mrb[0].mxu0 %v7520
        %v7739 = vpop.f32.mrb[0].mxu0
        %v7740 = vadd.f32 0.0, %v7739
        %v7741 = vpop.f32.mrb[0].mxu0
        %7742 = vmatprep.mubr.f32.mxu0 0.0
        %7743 = vmatmul.mubr.f32.gmra.mrb[0].mxu0 %v7523
        %v7744 = vpop.f32.mrb[0].mxu0
        %v7745 = vadd.f32 0.0, %v7744
        %v7746 = vpop.f32.mrb[0].mxu0
        %7747 = vmatprep.mubr.f32.mxu0 0.0
        %7748 = vmatmul.mubr.f32.gmra.mrb[0].mxu0 %v7526
        %v7749 = vpop.f32.mrb[0].mxu0
        %v7750 = vadd.f32 0.0, %v7749
        %v7751 = vpop.f32.mrb[0].mxu0
        %7752 = vdwg.mxu0
        %vm7785 = vcmask 1043456
        %v7786 = vrot.slane %v7595, 4
        %v7787 = vrot.slane %v7600, 4
        %v7788 = vsel %vm7785, %v7786, %v7787
        %v7789 = vrot.slane %v7605, 4
        %v7790 = vsel %vm7785, %v7787, %v7789
        %v7791 = vrot.slane %v7610, 4
        %v7792 = vsel %vm7785, %v7789, %v7791
        %v7793 = vrot.slane %v7615, 4
        %v7794 = vrot.slane %v7620, 4
        %v7795 = vsel %vm7785, %v7793, %v7794
        %v7796 = vrot.slane %v7625, 4
        %v7797 = vsel %vm7785, %v7794, %v7796
        %v7798 = vrot.slane %v7630, 4
        %v7799 = vsel %vm7785, %v7796, %v7798
        %v7800 = vrot.slane %v7635, 4
        %v7801 = vrot.slane %v7640, 4
        %v7802 = vsel %vm7785, %v7800, %v7801
        %v7803 = vrot.slane %v7645, 4
        %v7804 = vsel %vm7785, %v7801, %v7803
        %v7805 = vrot.slane %v7650, 4
        %v7806 = vsel %vm7785, %v7803, %v7805
        %v7807 = vrot.slane %v7655, 4
        %v7808 = vrot.slane %v7660, 4
        %v7809 = vsel %vm7785, %v7807, %v7808
        %v7810 = vrot.slane %v7665, 4
        %v7811 = vsel %vm7785, %v7808, %v7810
        %v7812 = vrot.slane %v7670, 4
        %v7813 = vsel %vm7785, %v7810, %v7812
        %v7814 = vrot.slane %v7675, 4
        %v7815 = vrot.slane %v7680, 4
        %v7816 = vsel %vm7785, %v7814, %v7815
        %v7817 = vrot.slane %v7685, 4
        %v7818 = vsel %vm7785, %v7815, %v7817
        %v7819 = vrot.slane %v7690, 4
        %v7820 = vsel %vm7785, %v7817, %v7819
        %v7821 = vrot.slane %v7695, 4
        %v7822 = vrot.slane %v7700, 4
        %v7823 = vsel %vm7785, %v7821, %v7822
        %v7824 = vrot.slane %v7705, 4
        %v7825 = vsel %vm7785, %v7822, %v7824
        %v7826 = vrot.slane %v7710, 4
        %v7827 = vsel %vm7785, %v7824, %v7826
        %v7828 = vrot.slane %v7715, 4
        %v7829 = vrot.slane %v7720, 4
        %v7830 = vsel %vm7785, %v7828, %v7829
        %v7831 = vrot.slane %v7725, 4
        %v7832 = vsel %vm7785, %v7829, %v7831
        %v7833 = vrot.slane %v7730, 4
        %v7834 = vsel %vm7785, %v7831, %v7833
        %v7835 = vrot.slane %v7735, 4
        %v7836 = vrot.slane %v7740, 4
        %v7837 = vsel %vm7785, %v7835, %v7836
        %v7838 = vrot.slane %v7745, 4
        %v7839 = vsel %vm7785, %v7836, %v7838
        %v7840 = vrot.slane %v7750, 4
        %v7841 = vsel %vm7785, %v7838, %v7840
        %7842 = vrot.lane.b32.xlu0 %v7786, 112
        %v7843 = vpop.permute.xlu0 %7842
        %7844 = vrot.lane.b32.xlu0 %v7788, 112
        %v7845 = vpop.permute.xlu0 %7844
        %7846 = vrot.lane.b32.xlu0 %v7790, 112
        %v7847 = vpop.permute.xlu0 %7846
        %7848 = vrot.lane.b32.xlu0 %v7792, 112
        %v7849 = vpop.permute.xlu0 %7848
        %7850 = vrot.lane.b32.xlu0 %v7793, 112
        %v7851 = vpop.permute.xlu0 %7850
        %7852 = vrot.lane.b32.xlu0 %v7795, 112
        %v7853 = vpop.permute.xlu0 %7852
        %7854 = vrot.lane.b32.xlu0 %v7797, 112
        %v7855 = vpop.permute.xlu0 %7854
        %7856 = vrot.lane.b32.xlu0 %v7799, 112
        %v7857 = vpop.permute.xlu0 %7856
        %7858 = vrot.lane.b32.xlu0 %v7800, 112
        %v7859 = vpop.permute.xlu0 %7858
        %7860 = vrot.lane.b32.xlu0 %v7802, 112
        %v7861 = vpop.permute.xlu0 %7860
        %7862 = vrot.lane.b32.xlu0 %v7804, 112
        %v7863 = vpop.permute.xlu0 %7862
        %7864 = vrot.lane.b32.xlu0 %v7806, 112
        %v7865 = vpop.permute.xlu0 %7864
        %7866 = vrot.lane.b32.xlu0 %v7807, 112
        %v7867 = vpop.permute.xlu0 %7866
        %7868 = vrot.lane.b32.xlu0 %v7809, 112
        %v7869 = vpop.permute.xlu0 %7868
        %7870 = vrot.lane.b32.xlu0 %v7811, 112
        %v7871 = vpop.permute.xlu0 %7870
        %7872 = vrot.lane.b32.xlu0 %v7813, 112
        %v7873 = vpop.permute.xlu0 %7872
        %7874 = vrot.lane.b32.xlu0 %v7814, 112
        %v7875 = vpop.permute.xlu0 %7874
        %7876 = vrot.lane.b32.xlu0 %v7816, 112
        %v7877 = vpop.permute.xlu0 %7876
        %7878 = vrot.lane.b32.xlu0 %v7818, 112
        %v7879 = vpop.permute.xlu0 %7878
        %7880 = vrot.lane.b32.xlu0 %v7820, 112
        %v7881 = vpop.permute.xlu0 %7880
        %7882 = vrot.lane.b32.xlu0 %v7821, 112
        %v7883 = vpop.permute.xlu0 %7882
        %7884 = vrot.lane.b32.xlu0 %v7823, 112
        %v7885 = vpop.permute.xlu0 %7884
        %7886 = vrot.lane.b32.xlu0 %v7825, 112
        %v7887 = vpop.permute.xlu0 %7886
        %7888 = vrot.lane.b32.xlu0 %v7827, 112
        %v7889 = vpop.permute.xlu0 %7888
        %7890 = vrot.lane.b32.xlu0 %v7828, 112
        %v7891 = vpop.permute.xlu0 %7890
        %7892 = vrot.lane.b32.xlu0 %v7830, 112
        %v7893 = vpop.permute.xlu0 %7892
        %7894 = vrot.lane.b32.xlu0 %v7832, 112
        %v7895 = vpop.permute.xlu0 %7894
        %7896 = vrot.lane.b32.xlu0 %v7834, 112
        %v7897 = vpop.permute.xlu0 %7896
        %7898 = vrot.lane.b32.xlu0 %v7835, 112
        %v7899 = vpop.permute.xlu0 %7898
        %7900 = vrot.lane.b32.xlu0 %v7837, 112
        %v7901 = vpop.permute.xlu0 %7900
        %7902 = vrot.lane.b32.xlu0 %v7839, 112
        %v7903 = vpop.permute.xlu0 %7902
        %7904 = vrot.lane.b32.xlu0 %v7841, 112
        %v7905 = vpop.permute.xlu0 %7904
        %v7938 = vsel %vm7785, 0.0, %v7843
        %v7939 = vsel %vm7785, 0.0, %v7851
        %v7940 = vsel %vm7785, 0.0, %v7859
        %v7941 = vsel %vm7785, 0.0, %v7867
        %v7942 = vsel %vm7785, 0.0, %v7875
        %v7943 = vsel %vm7785, 0.0, %v7883
        %v7944 = vsel %vm7785, 0.0, %v7891
        %v7945 = vsel %vm7785, 0.0, %v7899
        %v7946 = vadd.f32 %v7595, %v7938
        %v7947 = vadd.f32 %v7600, %v7845
        %v7948 = vadd.f32 %v7605, %v7847
        %v7949 = vadd.f32 %v7610, %v7849
        %v7950 = vadd.f32 %v7615, %v7939
        %v7951 = vadd.f32 %v7620, %v7853
        %v7952 = vadd.f32 %v7625, %v7855
        %v7953 = vadd.f32 %v7630, %v7857
        %v7954 = vadd.f32 %v7635, %v7940
        %v7955 = vadd.f32 %v7640, %v7861
        %v7956 = vadd.f32 %v7645, %v7863
        %v7957 = vadd.f32 %v7650, %v7865
        %v7958 = vadd.f32 %v7655, %v7941
        %v7959 = vadd.f32 %v7660, %v7869
        %v7960 = vadd.f32 %v7665, %v7871
        %v7961 = vadd.f32 %v7670, %v7873
        %v7962 = vadd.f32 %v7675, %v7942
        %v7963 = vadd.f32 %v7680, %v7877
        %v7964 = vadd.f32 %v7685, %v7879
        %v7965 = vadd.f32 %v7690, %v7881
        %v7966 = vadd.f32 %v7695, %v7943
        %v7967 = vadd.f32 %v7700, %v7885
        %v7968 = vadd.f32 %v7705, %v7887
        %v7969 = vadd.f32 %v7710, %v7889
        %v7970 = vadd.f32 %v7715, %v7944
        %v7971 = vadd.f32 %v7720, %v7893
        %v7972 = vadd.f32 %v7725, %v7895
        %v7973 = vadd.f32 %v7730, %v7897
        %v7974 = vadd.f32 %v7735, %v7945
        %v7975 = vadd.f32 %v7740, %v7901
        %v7976 = vadd.f32 %v7745, %v7903
        %v7977 = vadd.f32 %v7750, %v7905
        %s7978 = scalar_lea.vmem %s4, 4
        %v7979 = vld [vmem:[%s7978] sm:$0x1]
        %v7981 = vlaneseq
        %v7982 = vshrl.u32 %v7981, 7
        %v7983 = vsub.s32 0, %v7982
        %v7984 = vrot.slane %v7979, %v7983
        %v7986 = vadd.f32 %v7946, %v7984
        %v7987 = vadd.f32 %v7947, %v7984
        %v7988 = vadd.f32 %v7948, %v7984
        %v7989 = vadd.f32 %v7949, %v7984
        %v7990 = vadd.f32 %v7950, %v7984
        %v7991 = vadd.f32 %v7951, %v7984
        %v7992 = vadd.f32 %v7952, %v7984
        %v7993 = vadd.f32 %v7953, %v7984
        %v7994 = vadd.f32 %v7954, %v7984
        %v7995 = vadd.f32 %v7955, %v7984
        %v7996 = vadd.f32 %v7956, %v7984
        %v7997 = vadd.f32 %v7957, %v7984
        %v7998 = vadd.f32 %v7958, %v7984
        %v7999 = vadd.f32 %v7959, %v7984
        %v8000 = vadd.f32 %v7960, %v7984
        %v8001 = vadd.f32 %v7961, %v7984
        %v8002 = vadd.f32 %v7962, %v7984
        %v8003 = vadd.f32 %v7963, %v7984
        %v8004 = vadd.f32 %v7964, %v7984
        %v8005 = vadd.f32 %v7965, %v7984
        %v8006 = vadd.f32 %v7966, %v7984
        %v8007 = vadd.f32 %v7967, %v7984
        %v8008 = vadd.f32 %v7968, %v7984
        %v8009 = vadd.f32 %v7969, %v7984
        %v8010 = vadd.f32 %v7970, %v7984
        %v8011 = vadd.f32 %v7971, %v7984
        %v8012 = vadd.f32 %v7972, %v7984
        %v8013 = vadd.f32 %v7973, %v7984
        %v8014 = vadd.f32 %v7974, %v7984
        %v8015 = vadd.f32 %v7975, %v7984
        %v8016 = vadd.f32 %v7976, %v7984
        %v8017 = vadd.f32 %v7977, %v7984
        %v8018 = vmax.f32 %v7986, 0.0
        %v8019 = vmax.f32 %v7987, 0.0
        %v8020 = vmax.f32 %v7988, 0.0
        %v8021 = vmax.f32 %v7989, 0.0
        %v8022 = vmax.f32 %v7990, 0.0
        %v8023 = vmax.f32 %v7991, 0.0
        %v8024 = vmax.f32 %v7992, 0.0
        %v8025 = vmax.f32 %v7993, 0.0
        %v8026 = vmax.f32 %v7994, 0.0
        %v8027 = vmax.f32 %v7995, 0.0
        %v8028 = vmax.f32 %v7996, 0.0
        %v8029 = vmax.f32 %v7997, 0.0
        %v8030 = vmax.f32 %v7998, 0.0
        %v8031 = vmax.f32 %v7999, 0.0
        %v8032 = vmax.f32 %v8000, 0.0
        %v8033 = vmax.f32 %v8001, 0.0
        %v8034 = vmax.f32 %v8002, 0.0
        %v8035 = vmax.f32 %v8003, 0.0
        %v8036 = vmax.f32 %v8004, 0.0
        %v8037 = vmax.f32 %v8005, 0.0
        %v8038 = vmax.f32 %v8006, 0.0
        %v8039 = vmax.f32 %v8007, 0.0
        %v8040 = vmax.f32 %v8008, 0.0
        %v8041 = vmax.f32 %v8009, 0.0
        %v8042 = vmax.f32 %v8010, 0.0
        %v8043 = vmax.f32 %v8011, 0.0
        %v8044 = vmax.f32 %v8012, 0.0
        %v8045 = vmax.f32 %v8013, 0.0
        %v8046 = vmax.f32 %v8014, 0.0
        %v8047 = vmax.f32 %v8015, 0.0
        %v8048 = vmax.f32 %v8016, 0.0
        %v8049 = vmax.f32 %v8017, 0.0
        %s8050 = scalar_lea.vmem %s3, 80
        %v8051 = vld [vmem:[%s8050] sm:$0xff]
        %v8052 = vld [vmem:[%s8050 + $0x8] sm:$0xff]
        %v8054 = vsel %vm553, %v8018, 0
        %v8057 = vsel %vm553, %v8019, 0
        %v8060 = vsel %vm553, %v8020, 0
        %v8063 = vsel %vm553, %v8021, 0
        %v8066 = vsel %vm553, %v8022, 0
        %v8069 = vsel %vm553, %v8023, 0
        %v8072 = vsel %vm553, %v8024, 0
        %v8075 = vsel %vm553, %v8025, 0
        %v8078 = vsel %vm553, %v8026, 0
        %v8081 = vsel %vm553, %v8027, 0
        %v8084 = vsel %vm553, %v8028, 0
        %v8087 = vsel %vm553, %v8029, 0
        %v8090 = vsel %vm553, %v8030, 0
        %v8093 = vsel %vm553, %v8031, 0
        %v8096 = vsel %vm553, %v8032, 0
        %v8099 = vsel %vm553, %v8033, 0
        %v8102 = vsel %vm553, %v8034, 0
        %v8105 = vsel %vm553, %v8035, 0
        %v8108 = vsel %vm553, %v8036, 0
        %v8111 = vsel %vm553, %v8037, 0
        %v8114 = vsel %vm553, %v8038, 0
        %v8117 = vsel %vm553, %v8039, 0
        %v8120 = vsel %vm553, %v8040, 0
        %v8123 = vsel %vm553, %v8041, 0
        %v8126 = vsel %vm553, %v8042, 0
        %v8129 = vsel %vm553, %v8043, 0
        %v8132 = vsel %vm553, %v8044, 0
        %v8135 = vsel %vm553, %v8045, 0
        %v8138 = vsel %vm553, %v8046, 0
        %v8141 = vsel %vm553, %v8047, 0
        %v8144 = vsel %vm553, %v8048, 0
        %v8147 = vsel %vm553, %v8049, 0
        %8149 = vmatprep.subr.mxu0 0.0
        %8150 = vmatpush1.msra.mxu0 %v8051
        %8151 = vmatprep.subr.mxu0 0.0
        %8152 = vmatpush1.msra.mxu0 %v8052
        %8153 = vmatprep.subr.mxu0 0.0
        %8154 = vmatpush1.msra.mxu0 0.0
        %8155 = vmatprep.subr.mxu0 0.0
        %8156 = vmatpush1.msra.mxu0 0.0
        %8157 = vmatprep.subr.mxu0 0.0
        %8158 = vmatpush1.msra.mxu0 0.0
        %8159 = vmatprep.subr.mxu0 0.0
        %8160 = vmatpush1.msra.mxu0 0.0
        %8161 = vmatprep.subr.mxu0 0.0
        %8162 = vmatpush1.msra.mxu0 0.0
        %8163 = vmatprep.subr.mxu0 0.0
        %8164 = vmatpush1.msra.mxu0 0.0
        %8165 = vmatprep.subr.mxu0 0.0
        %8166 = vmatpush1.msra.mxu0 0.0
        %8167 = vmatprep.subr.mxu0 0.0
        %8168 = vmatpush1.msra.mxu0 0.0
        %8169 = vmatprep.subr.mxu0 0.0
        %8170 = vmatpush1.msra.mxu0 0.0
        %8171 = vmatprep.subr.mxu0 0.0
        %8172 = vmatpush1.msra.mxu0 0.0
        %8173 = vmatprep.subr.mxu0 0.0
        %8174 = vmatpush1.msra.mxu0 0.0
        %8175 = vmatprep.subr.mxu0 0.0
        %8176 = vmatpush1.msra.mxu0 0.0
        %8177 = vmatprep.subr.mxu0 0.0
        %8178 = vmatpush1.msra.mxu0 0.0
        %8179 = vmatprep.subr.mxu0 0.0
        %8180 = vmatpush1.msra.mxu0 0.0
        %8181 = vmatprep.subr.mxu0 0.0
        %8182 = vmatpush1.msra.mxu0 0.0
        %8183 = vmatprep.subr.mxu0 0.0
        %8184 = vmatpush1.msra.mxu0 0.0
        %8185 = vmatprep.subr.mxu0 0.0
        %8186 = vmatpush1.msra.mxu0 0.0
        %8187 = vmatprep.subr.mxu0 0.0
        %8188 = vmatpush1.msra.mxu0 0.0
        %8189 = vmatprep.subr.mxu0 0.0
        %8190 = vmatpush1.msra.mxu0 0.0
        %8191 = vmatprep.subr.mxu0 0.0
        %8192 = vmatpush1.msra.mxu0 0.0
        %8193 = vmatprep.subr.mxu0 0.0
        %8194 = vmatpush1.msra.mxu0 0.0
        %8195 = vmatprep.subr.mxu0 0.0
        %8196 = vmatpush1.msra.mxu0 0.0
        %8197 = vmatprep.subr.mxu0 0.0
        %8198 = vmatpush1.msra.mxu0 0.0
        %8199 = vmatprep.subr.mxu0 0.0
        %8200 = vmatpush1.msra.mxu0 0.0
        %8201 = vmatprep.subr.mxu0 0.0
        %8202 = vmatpush1.msra.mxu0 0.0
        %8203 = vmatprep.subr.mxu0 0.0
        %8204 = vmatpush1.msra.mxu0 0.0
        %8205 = vmatprep.subr.mxu0 0.0
        %8206 = vmatpush1.msra.mxu0 0.0
        %8207 = vmatprep.subr.mxu0 0.0
        %8208 = vmatpush1.msra.mxu0 0.0
        %8209 = vmatprep.subr.mxu0 0.0
        %8210 = vmatpush1.msra.mxu0 0.0
        %8211 = vmatprep.subr.mxu0 0.0
        %8212 = vmatpush1.msra.mxu0 0.0
        %8213 = vmatprep.mubr.f32.mxu0 0.0
        %8214 = vmatmul.mubr.f32.gmra.mrb[0].mxu0 %v8054
        %v8215 = vpop.f32.mrb[0].mxu0
        %v8216 = vadd.f32 0.0, %v8215
        %v8217 = vpop.f32.mrb[0].mxu0
        %8218 = vmatprep.mubr.f32.mxu0 0.0
        %8219 = vmatmul.mubr.f32.gmra.mrb[0].mxu0 %v8057
        %v8220 = vpop.f32.mrb[0].mxu0
        %v8221 = vadd.f32 0.0, %v8220
        %v8222 = vpop.f32.mrb[0].mxu0
        %8223 = vmatprep.mubr.f32.mxu0 0.0
        %8224 = vmatmul.mubr.f32.gmra.mrb[0].mxu0 %v8060
        %v8225 = vpop.f32.mrb[0].mxu0
        %v8226 = vadd.f32 0.0, %v8225
        %v8227 = vpop.f32.mrb[0].mxu0
        %8228 = vmatprep.mubr.f32.mxu0 0.0
        %8229 = vmatmul.mubr.f32.gmra.mrb[0].mxu0 %v8063
        %v8230 = vpop.f32.mrb[0].mxu0
        %v8231 = vadd.f32 0.0, %v8230
        %v8232 = vpop.f32.mrb[0].mxu0
        %8233 = vmatprep.mubr.f32.mxu0 0.0
        %8234 = vmatmul.mubr.f32.gmra.mrb[0].mxu0 %v8066
        %v8235 = vpop.f32.mrb[0].mxu0
        %v8236 = vadd.f32 0.0, %v8235
        %v8237 = vpop.f32.mrb[0].mxu0
        %8238 = vmatprep.mubr.f32.mxu0 0.0
        %8239 = vmatmul.mubr.f32.gmra.mrb[0].mxu0 %v8069
        %v8240 = vpop.f32.mrb[0].mxu0
        %v8241 = vadd.f32 0.0, %v8240
        %v8242 = vpop.f32.mrb[0].mxu0
        %8243 = vmatprep.mubr.f32.mxu0 0.0
        %8244 = vmatmul.mubr.f32.gmra.mrb[0].mxu0 %v8072
        %v8245 = vpop.f32.mrb[0].mxu0
        %v8246 = vadd.f32 0.0, %v8245
        %v8247 = vpop.f32.mrb[0].mxu0
        %8248 = vmatprep.mubr.f32.mxu0 0.0
        %8249 = vmatmul.mubr.f32.gmra.mrb[0].mxu0 %v8075
        %v8250 = vpop.f32.mrb[0].mxu0
        %v8251 = vadd.f32 0.0, %v8250
        %v8252 = vpop.f32.mrb[0].mxu0
        %8253 = vmatprep.mubr.f32.mxu0 0.0
        %8254 = vmatmul.mubr.f32.gmra.mrb[0].mxu0 %v8078
        %v8255 = vpop.f32.mrb[0].mxu0
        %v8256 = vadd.f32 0.0, %v8255
        %v8257 = vpop.f32.mrb[0].mxu0
        %8258 = vmatprep.mubr.f32.mxu0 0.0
        %8259 = vmatmul.mubr.f32.gmra.mrb[0].mxu0 %v8081
        %v8260 = vpop.f32.mrb[0].mxu0
        %v8261 = vadd.f32 0.0, %v8260
        %v8262 = vpop.f32.mrb[0].mxu0
        %8263 = vmatprep.mubr.f32.mxu0 0.0
        %8264 = vmatmul.mubr.f32.gmra.mrb[0].mxu0 %v8084
        %v8265 = vpop.f32.mrb[0].mxu0
        %v8266 = vadd.f32 0.0, %v8265
        %v8267 = vpop.f32.mrb[0].mxu0
        %8268 = vmatprep.mubr.f32.mxu0 0.0
        %8269 = vmatmul.mubr.f32.gmra.mrb[0].mxu0 %v8087
        %v8270 = vpop.f32.mrb[0].mxu0
        %v8271 = vadd.f32 0.0, %v8270
        %v8272 = vpop.f32.mrb[0].mxu0
        %8273 = vmatprep.mubr.f32.mxu0 0.0
        %8274 = vmatmul.mubr.f32.gmra.mrb[0].mxu0 %v8090
        %v8275 = vpop.f32.mrb[0].mxu0
        %v8276 = vadd.f32 0.0, %v8275
        %v8277 = vpop.f32.mrb[0].mxu0
        %8278 = vmatprep.mubr.f32.mxu0 0.0
        %8279 = vmatmul.mubr.f32.gmra.mrb[0].mxu0 %v8093
        %v8280 = vpop.f32.mrb[0].mxu0
        %v8281 = vadd.f32 0.0, %v8280
        %v8282 = vpop.f32.mrb[0].mxu0
        %8283 = vmatprep.mubr.f32.mxu0 0.0
        %8284 = vmatmul.mubr.f32.gmra.mrb[0].mxu0 %v8096
        %v8285 = vpop.f32.mrb[0].mxu0
        %v8286 = vadd.f32 0.0, %v8285
        %v8287 = vpop.f32.mrb[0].mxu0
        %8288 = vmatprep.mubr.f32.mxu0 0.0
        %8289 = vmatmul.mubr.f32.gmra.mrb[0].mxu0 %v8099
        %v8290 = vpop.f32.mrb[0].mxu0
        %v8291 = vadd.f32 0.0, %v8290
        %v8292 = vpop.f32.mrb[0].mxu0
        %8293 = vmatprep.mubr.f32.mxu0 0.0
        %8294 = vmatmul.mubr.f32.gmra.mrb[0].mxu0 %v8102
        %v8295 = vpop.f32.mrb[0].mxu0
        %v8296 = vadd.f32 0.0, %v8295
        %v8297 = vpop.f32.mrb[0].mxu0
        %8298 = vmatprep.mubr.f32.mxu0 0.0
        %8299 = vmatmul.mubr.f32.gmra.mrb[0].mxu0 %v8105
        %v8300 = vpop.f32.mrb[0].mxu0
        %v8301 = vadd.f32 0.0, %v8300
        %v8302 = vpop.f32.mrb[0].mxu0
        %8303 = vmatprep.mubr.f32.mxu0 0.0
        %8304 = vmatmul.mubr.f32.gmra.mrb[0].mxu0 %v8108
        %v8305 = vpop.f32.mrb[0].mxu0
        %v8306 = vadd.f32 0.0, %v8305
        %v8307 = vpop.f32.mrb[0].mxu0
        %8308 = vmatprep.mubr.f32.mxu0 0.0
        %8309 = vmatmul.mubr.f32.gmra.mrb[0].mxu0 %v8111
        %v8310 = vpop.f32.mrb[0].mxu0
        %v8311 = vadd.f32 0.0, %v8310
        %v8312 = vpop.f32.mrb[0].mxu0
        %8313 = vmatprep.mubr.f32.mxu0 0.0
        %8314 = vmatmul.mubr.f32.gmra.mrb[0].mxu0 %v8114
        %v8315 = vpop.f32.mrb[0].mxu0
        %v8316 = vadd.f32 0.0, %v8315
        %v8317 = vpop.f32.mrb[0].mxu0
        %8318 = vmatprep.mubr.f32.mxu0 0.0
        %8319 = vmatmul.mubr.f32.gmra.mrb[0].mxu0 %v8117
        %v8320 = vpop.f32.mrb[0].mxu0
        %v8321 = vadd.f32 0.0, %v8320
        %v8322 = vpop.f32.mrb[0].mxu0
        %8323 = vmatprep.mubr.f32.mxu0 0.0
        %8324 = vmatmul.mubr.f32.gmra.mrb[0].mxu0 %v8120
        %v8325 = vpop.f32.mrb[0].mxu0
        %v8326 = vadd.f32 0.0, %v8325
        %v8327 = vpop.f32.mrb[0].mxu0
        %8328 = vmatprep.mubr.f32.mxu0 0.0
        %8329 = vmatmul.mubr.f32.gmra.mrb[0].mxu0 %v8123
        %v8330 = vpop.f32.mrb[0].mxu0
        %v8331 = vadd.f32 0.0, %v8330
        %v8332 = vpop.f32.mrb[0].mxu0
        %8333 = vmatprep.mubr.f32.mxu0 0.0
        %8334 = vmatmul.mubr.f32.gmra.mrb[0].mxu0 %v8126
        %v8335 = vpop.f32.mrb[0].mxu0
        %v8336 = vadd.f32 0.0, %v8335
        %v8337 = vpop.f32.mrb[0].mxu0
        %8338 = vmatprep.mubr.f32.mxu0 0.0
        %8339 = vmatmul.mubr.f32.gmra.mrb[0].mxu0 %v8129
        %v8340 = vpop.f32.mrb[0].mxu0
        %v8341 = vadd.f32 0.0, %v8340
        %v8342 = vpop.f32.mrb[0].mxu0
        %8343 = vmatprep.mubr.f32.mxu0 0.0
        %8344 = vmatmul.mubr.f32.gmra.mrb[0].mxu0 %v8132
        %v8345 = vpop.f32.mrb[0].mxu0
        %v8346 = vadd.f32 0.0, %v8345
        %v8347 = vpop.f32.mrb[0].mxu0
        %8348 = vmatprep.mubr.f32.mxu0 0.0
        %8349 = vmatmul.mubr.f32.gmra.mrb[0].mxu0 %v8135
        %v8350 = vpop.f32.mrb[0].mxu0
        %v8351 = vadd.f32 0.0, %v8350
        %v8352 = vpop.f32.mrb[0].mxu0
        %8353 = vmatprep.mubr.f32.mxu0 0.0
        %8354 = vmatmul.mubr.f32.gmra.mrb[0].mxu0 %v8138
        %v8355 = vpop.f32.mrb[0].mxu0
        %v8356 = vadd.f32 0.0, %v8355
        %v8357 = vpop.f32.mrb[0].mxu0
        %8358 = vmatprep.mubr.f32.mxu0 0.0
        %8359 = vmatmul.mubr.f32.gmra.mrb[0].mxu0 %v8141
        %v8360 = vpop.f32.mrb[0].mxu0
        %v8361 = vadd.f32 0.0, %v8360
        %v8362 = vpop.f32.mrb[0].mxu0
        %8363 = vmatprep.mubr.f32.mxu0 0.0
        %8364 = vmatmul.mubr.f32.gmra.mrb[0].mxu0 %v8144
        %v8365 = vpop.f32.mrb[0].mxu0
        %v8366 = vadd.f32 0.0, %v8365
        %v8367 = vpop.f32.mrb[0].mxu0
        %8368 = vmatprep.mubr.f32.mxu0 0.0
        %8369 = vmatmul.mubr.f32.gmra.mrb[0].mxu0 %v8147
        %v8370 = vpop.f32.mrb[0].mxu0
        %v8371 = vadd.f32 0.0, %v8370
        %v8372 = vpop.f32.mrb[0].mxu0
        %8373 = vdwg.mxu0
        %v8406 = vrot.slane %v8216, 4
        %v8407 = vrot.slane %v8221, 4
        %v8408 = vsel %vm7785, %v8406, %v8407
        %v8409 = vrot.slane %v8226, 4
        %v8410 = vsel %vm7785, %v8407, %v8409
        %v8411 = vrot.slane %v8231, 4
        %v8412 = vsel %vm7785, %v8409, %v8411
        %v8413 = vrot.slane %v8236, 4
        %v8414 = vrot.slane %v8241, 4
        %v8415 = vsel %vm7785, %v8413, %v8414
        %v8416 = vrot.slane %v8246, 4
        %v8417 = vsel %vm7785, %v8414, %v8416
        %v8418 = vrot.slane %v8251, 4
        %v8419 = vsel %vm7785, %v8416, %v8418
        %v8420 = vrot.slane %v8256, 4
        %v8421 = vrot.slane %v8261, 4
        %v8422 = vsel %vm7785, %v8420, %v8421
        %v8423 = vrot.slane %v8266, 4
        %v8424 = vsel %vm7785, %v8421, %v8423
        %v8425 = vrot.slane %v8271, 4
        %v8426 = vsel %vm7785, %v8423, %v8425
        %v8427 = vrot.slane %v8276, 4
        %v8428 = vrot.slane %v8281, 4
        %v8429 = vsel %vm7785, %v8427, %v8428
        %v8430 = vrot.slane %v8286, 4
        %v8431 = vsel %vm7785, %v8428, %v8430
        %v8432 = vrot.slane %v8291, 4
        %v8433 = vsel %vm7785, %v8430, %v8432
        %v8434 = vrot.slane %v8296, 4
        %v8435 = vrot.slane %v8301, 4
        %v8436 = vsel %vm7785, %v8434, %v8435
        %v8437 = vrot.slane %v8306, 4
        %v8438 = vsel %vm7785, %v8435, %v8437
        %v8439 = vrot.slane %v8311, 4
        %v8440 = vsel %vm7785, %v8437, %v8439
        %v8441 = vrot.slane %v8316, 4
        %v8442 = vrot.slane %v8321, 4
        %v8443 = vsel %vm7785, %v8441, %v8442
        %v8444 = vrot.slane %v8326, 4
        %v8445 = vsel %vm7785, %v8442, %v8444
        %v8446 = vrot.slane %v8331, 4
        %v8447 = vsel %vm7785, %v8444, %v8446
        %v8448 = vrot.slane %v8336, 4
        %v8449 = vrot.slane %v8341, 4
        %v8450 = vsel %vm7785, %v8448, %v8449
        %v8451 = vrot.slane %v8346, 4
        %v8452 = vsel %vm7785, %v8449, %v8451
        %v8453 = vrot.slane %v8351, 4
        %v8454 = vsel %vm7785, %v8451, %v8453
        %v8455 = vrot.slane %v8356, 4
        %v8456 = vrot.slane %v8361, 4
        %v8457 = vsel %vm7785, %v8455, %v8456
        %v8458 = vrot.slane %v8366, 4
        %v8459 = vsel %vm7785, %v8456, %v8458
        %v8460 = vrot.slane %v8371, 4
        %v8461 = vsel %vm7785, %v8458, %v8460
        %8462 = vrot.lane.b32.xlu0 %v8406, 112
        %v8463 = vpop.permute.xlu0 %8462
        %8464 = vrot.lane.b32.xlu0 %v8408, 112
        %v8465 = vpop.permute.xlu0 %8464
        %8466 = vrot.lane.b32.xlu0 %v8410, 112
        %v8467 = vpop.permute.xlu0 %8466
        %8468 = vrot.lane.b32.xlu0 %v8412, 112
        %v8469 = vpop.permute.xlu0 %8468
        %8470 = vrot.lane.b32.xlu0 %v8413, 112
        %v8471 = vpop.permute.xlu0 %8470
        %8472 = vrot.lane.b32.xlu0 %v8415, 112
        %v8473 = vpop.permute.xlu0 %8472
        %8474 = vrot.lane.b32.xlu0 %v8417, 112
        %v8475 = vpop.permute.xlu0 %8474
        %8476 = vrot.lane.b32.xlu0 %v8419, 112
        %v8477 = vpop.permute.xlu0 %8476
        %8478 = vrot.lane.b32.xlu0 %v8420, 112
        %v8479 = vpop.permute.xlu0 %8478
        %8480 = vrot.lane.b32.xlu0 %v8422, 112
        %v8481 = vpop.permute.xlu0 %8480
        %8482 = vrot.lane.b32.xlu0 %v8424, 112
        %v8483 = vpop.permute.xlu0 %8482
        %8484 = vrot.lane.b32.xlu0 %v8426, 112
        %v8485 = vpop.permute.xlu0 %8484
        %8486 = vrot.lane.b32.xlu0 %v8427, 112
        %v8487 = vpop.permute.xlu0 %8486
        %8488 = vrot.lane.b32.xlu0 %v8429, 112
        %v8489 = vpop.permute.xlu0 %8488
        %8490 = vrot.lane.b32.xlu0 %v8431, 112
        %v8491 = vpop.permute.xlu0 %8490
        %8492 = vrot.lane.b32.xlu0 %v8433, 112
        %v8493 = vpop.permute.xlu0 %8492
        %8494 = vrot.lane.b32.xlu0 %v8434, 112
        %v8495 = vpop.permute.xlu0 %8494
        %8496 = vrot.lane.b32.xlu0 %v8436, 112
        %v8497 = vpop.permute.xlu0 %8496
        %8498 = vrot.lane.b32.xlu0 %v8438, 112
        %v8499 = vpop.permute.xlu0 %8498
        %8500 = vrot.lane.b32.xlu0 %v8440, 112
        %v8501 = vpop.permute.xlu0 %8500
        %8502 = vrot.lane.b32.xlu0 %v8441, 112
        %v8503 = vpop.permute.xlu0 %8502
        %8504 = vrot.lane.b32.xlu0 %v8443, 112
        %v8505 = vpop.permute.xlu0 %8504
        %8506 = vrot.lane.b32.xlu0 %v8445, 112
        %v8507 = vpop.permute.xlu0 %8506
        %8508 = vrot.lane.b32.xlu0 %v8447, 112
        %v8509 = vpop.permute.xlu0 %8508
        %8510 = vrot.lane.b32.xlu0 %v8448, 112
        %v8511 = vpop.permute.xlu0 %8510
        %8512 = vrot.lane.b32.xlu0 %v8450, 112
        %v8513 = vpop.permute.xlu0 %8512
        %8514 = vrot.lane.b32.xlu0 %v8452, 112
        %v8515 = vpop.permute.xlu0 %8514
        %8516 = vrot.lane.b32.xlu0 %v8454, 112
        %v8517 = vpop.permute.xlu0 %8516
        %8518 = vrot.lane.b32.xlu0 %v8455, 112
        %v8519 = vpop.permute.xlu0 %8518
        %8520 = vrot.lane.b32.xlu0 %v8457, 112
        %v8521 = vpop.permute.xlu0 %8520
        %8522 = vrot.lane.b32.xlu0 %v8459, 112
        %v8523 = vpop.permute.xlu0 %8522
        %8524 = vrot.lane.b32.xlu0 %v8461, 112
        %v8525 = vpop.permute.xlu0 %8524
        %v8558 = vsel %vm7785, 0.0, %v8463
        %v8559 = vsel %vm7785, 0.0, %v8471
        %v8560 = vsel %vm7785, 0.0, %v8479
        %v8561 = vsel %vm7785, 0.0, %v8487
        %v8562 = vsel %vm7785, 0.0, %v8495
        %v8563 = vsel %vm7785, 0.0, %v8503
        %v8564 = vsel %vm7785, 0.0, %v8511
        %v8565 = vsel %vm7785, 0.0, %v8519
        %v8566 = vadd.f32 %v8216, %v8558
        %v8567 = vadd.f32 %v8221, %v8465
        %v8568 = vadd.f32 %v8226, %v8467
        %v8569 = vadd.f32 %v8231, %v8469
        %v8570 = vadd.f32 %v8236, %v8559
        %v8571 = vadd.f32 %v8241, %v8473
        %v8572 = vadd.f32 %v8246, %v8475
        %v8573 = vadd.f32 %v8251, %v8477
        %v8574 = vadd.f32 %v8256, %v8560
        %v8575 = vadd.f32 %v8261, %v8481
        %v8576 = vadd.f32 %v8266, %v8483
        %v8577 = vadd.f32 %v8271, %v8485
        %v8578 = vadd.f32 %v8276, %v8561
        %v8579 = vadd.f32 %v8281, %v8489
        %v8580 = vadd.f32 %v8286, %v8491
        %v8581 = vadd.f32 %v8291, %v8493
        %v8582 = vadd.f32 %v8296, %v8562
        %v8583 = vadd.f32 %v8301, %v8497
        %v8584 = vadd.f32 %v8306, %v8499
        %v8585 = vadd.f32 %v8311, %v8501
        %v8586 = vadd.f32 %v8316, %v8563
        %v8587 = vadd.f32 %v8321, %v8505
        %v8588 = vadd.f32 %v8326, %v8507
        %v8589 = vadd.f32 %v8331, %v8509
        %v8590 = vadd.f32 %v8336, %v8564
        %v8591 = vadd.f32 %v8341, %v8513
        %v8592 = vadd.f32 %v8346, %v8515
        %v8593 = vadd.f32 %v8351, %v8517
        %v8594 = vadd.f32 %v8356, %v8565
        %v8595 = vadd.f32 %v8361, %v8521
        %v8596 = vadd.f32 %v8366, %v8523
        %v8597 = vadd.f32 %v8371, %v8525
        %s8598 = scalar_lea.vmem %s4, 5
        %v8599 = vld [vmem:[%s8598] sm:$0x1]
        %v8601 = vlaneseq
        %v8602 = vshrl.u32 %v8601, 7
        %v8603 = vsub.s32 0, %v8602
        %v8604 = vrot.slane %v8599, %v8603
        %v8606 = vadd.f32 %v8566, %v8604
        %v8607 = vadd.f32 %v8567, %v8604
        %v8608 = vadd.f32 %v8568, %v8604
        %v8609 = vadd.f32 %v8569, %v8604
        %v8610 = vadd.f32 %v8570, %v8604
        %v8611 = vadd.f32 %v8571, %v8604
        %v8612 = vadd.f32 %v8572, %v8604
        %v8613 = vadd.f32 %v8573, %v8604
        %v8614 = vadd.f32 %v8574, %v8604
        %v8615 = vadd.f32 %v8575, %v8604
        %v8616 = vadd.f32 %v8576, %v8604
        %v8617 = vadd.f32 %v8577, %v8604
        %v8618 = vadd.f32 %v8578, %v8604
        %v8619 = vadd.f32 %v8579, %v8604
        %v8620 = vadd.f32 %v8580, %v8604
        %v8621 = vadd.f32 %v8581, %v8604
        %v8622 = vadd.f32 %v8582, %v8604
        %v8623 = vadd.f32 %v8583, %v8604
        %v8624 = vadd.f32 %v8584, %v8604
        %v8625 = vadd.f32 %v8585, %v8604
        %v8626 = vadd.f32 %v8586, %v8604
        %v8627 = vadd.f32 %v8587, %v8604
        %v8628 = vadd.f32 %v8588, %v8604
        %v8629 = vadd.f32 %v8589, %v8604
        %v8630 = vadd.f32 %v8590, %v8604
        %v8631 = vadd.f32 %v8591, %v8604
        %v8632 = vadd.f32 %v8592, %v8604
        %v8633 = vadd.f32 %v8593, %v8604
        %v8634 = vadd.f32 %v8594, %v8604
        %v8635 = vadd.f32 %v8595, %v8604
        %v8636 = vadd.f32 %v8596, %v8604
        %v8637 = vadd.f32 %v8597, %v8604
        %v8638 = vmax.f32 %v8606, 0.0
        %v8639 = vmax.f32 %v8607, 0.0
        %v8640 = vmax.f32 %v8608, 0.0
        %v8641 = vmax.f32 %v8609, 0.0
        %v8642 = vmax.f32 %v8610, 0.0
        %v8643 = vmax.f32 %v8611, 0.0
        %v8644 = vmax.f32 %v8612, 0.0
        %v8645 = vmax.f32 %v8613, 0.0
        %v8646 = vmax.f32 %v8614, 0.0
        %v8647 = vmax.f32 %v8615, 0.0
        %v8648 = vmax.f32 %v8616, 0.0
        %v8649 = vmax.f32 %v8617, 0.0
        %v8650 = vmax.f32 %v8618, 0.0
        %v8651 = vmax.f32 %v8619, 0.0
        %v8652 = vmax.f32 %v8620, 0.0
        %v8653 = vmax.f32 %v8621, 0.0
        %v8654 = vmax.f32 %v8622, 0.0
        %v8655 = vmax.f32 %v8623, 0.0
        %v8656 = vmax.f32 %v8624, 0.0
        %v8657 = vmax.f32 %v8625, 0.0
        %v8658 = vmax.f32 %v8626, 0.0
        %v8659 = vmax.f32 %v8627, 0.0
        %v8660 = vmax.f32 %v8628, 0.0
        %v8661 = vmax.f32 %v8629, 0.0
        %v8662 = vmax.f32 %v8630, 0.0
        %v8663 = vmax.f32 %v8631, 0.0
        %v8664 = vmax.f32 %v8632, 0.0
        %v8665 = vmax.f32 %v8633, 0.0
        %v8666 = vmax.f32 %v8634, 0.0
        %v8667 = vmax.f32 %v8635, 0.0
        %v8668 = vmax.f32 %v8636, 0.0
        %v8669 = vmax.f32 %v8637, 0.0
        %v8670 = vxor.u32 %v8638, 2147483648
        %v8671 = vxor.u32 %v8639, 2147483648
        %v8672 = vxor.u32 %v8640, 2147483648
        %v8673 = vxor.u32 %v8641, 2147483648
        %v8674 = vxor.u32 %v8642, 2147483648
        %v8675 = vxor.u32 %v8643, 2147483648
        %v8676 = vxor.u32 %v8644, 2147483648
        %v8677 = vxor.u32 %v8645, 2147483648
        %v8678 = vxor.u32 %v8646, 2147483648
        %v8679 = vxor.u32 %v8647, 2147483648
        %v8680 = vxor.u32 %v8648, 2147483648
        %v8681 = vxor.u32 %v8649, 2147483648
        %v8682 = vxor.u32 %v8650, 2147483648
        %v8683 = vxor.u32 %v8651, 2147483648
        %v8684 = vxor.u32 %v8652, 2147483648
        %v8685 = vxor.u32 %v8653, 2147483648
        %v8686 = vxor.u32 %v8654, 2147483648
        %v8687 = vxor.u32 %v8655, 2147483648
        %v8688 = vxor.u32 %v8656, 2147483648
        %v8689 = vxor.u32 %v8657, 2147483648
        %v8690 = vxor.u32 %v8658, 2147483648
        %v8691 = vxor.u32 %v8659, 2147483648
        %v8692 = vxor.u32 %v8660, 2147483648
        %v8693 = vxor.u32 %v8661, 2147483648
        %v8694 = vxor.u32 %v8662, 2147483648
        %v8695 = vxor.u32 %v8663, 2147483648
        %v8696 = vxor.u32 %v8664, 2147483648
        %v8697 = vxor.u32 %v8665, 2147483648
        %v8698 = vxor.u32 %v8666, 2147483648
        %v8699 = vxor.u32 %v8667, 2147483648
        %v8700 = vxor.u32 %v8668, 2147483648
        %v8701 = vxor.u32 %v8669, 2147483648
        %v8702 = vmul.f32 %v8670, 1.442695
        %v8703 = vpow.pop %v8702
        %v8704 = vmul.f32 %v8671, 1.442695
        %v8705 = vpow.pop %v8704
        %v8706 = vmul.f32 %v8672, 1.442695
        %v8707 = vpow.pop %v8706
        %v8708 = vmul.f32 %v8673, 1.442695
        %v8709 = vpow.pop %v8708
        %v8710 = vmul.f32 %v8674, 1.442695
        %v8711 = vpow.pop %v8710
        %v8712 = vmul.f32 %v8675, 1.442695
        %v8713 = vpow.pop %v8712
        %v8714 = vmul.f32 %v8676, 1.442695
        %v8715 = vpow.pop %v8714
        %v8716 = vmul.f32 %v8677, 1.442695
        %v8717 = vpow.pop %v8716
        %v8718 = vmul.f32 %v8678, 1.442695
        %v8719 = vpow.pop %v8718
        %v8720 = vmul.f32 %v8679, 1.442695
        %v8721 = vpow.pop %v8720
        %v8722 = vmul.f32 %v8680, 1.442695
        %v8723 = vpow.pop %v8722
        %v8724 = vmul.f32 %v8681, 1.442695
        %v8725 = vpow.pop %v8724
        %v8726 = vmul.f32 %v8682, 1.442695
        %v8727 = vpow.pop %v8726
        %v8728 = vmul.f32 %v8683, 1.442695
        %v8729 = vpow.pop %v8728
        %v8730 = vmul.f32 %v8684, 1.442695
        %v8731 = vpow.pop %v8730
        %v8732 = vmul.f32 %v8685, 1.442695
        %v8733 = vpow.pop %v8732
        %v8734 = vmul.f32 %v8686, 1.442695
        %v8735 = vpow.pop %v8734
        %v8736 = vmul.f32 %v8687, 1.442695
        %v8737 = vpow.pop %v8736
        %v8738 = vmul.f32 %v8688, 1.442695
        %v8739 = vpow.pop %v8738
        %v8740 = vmul.f32 %v8689, 1.442695
        %v8741 = vpow.pop %v8740
        %v8742 = vmul.f32 %v8690, 1.442695
        %v8743 = vpow.pop %v8742
        %v8744 = vmul.f32 %v8691, 1.442695
        %v8745 = vpow.pop %v8744
        %v8746 = vmul.f32 %v8692, 1.442695
        %v8747 = vpow.pop %v8746
        %v8748 = vmul.f32 %v8693, 1.442695
        %v8749 = vpow.pop %v8748
        %v8750 = vmul.f32 %v8694, 1.442695
        %v8751 = vpow.pop %v8750
        %v8752 = vmul.f32 %v8695, 1.442695
        %v8753 = vpow.pop %v8752
        %v8754 = vmul.f32 %v8696, 1.442695
        %v8755 = vpow.pop %v8754
        %v8756 = vmul.f32 %v8697, 1.442695
        %v8757 = vpow.pop %v8756
        %v8758 = vmul.f32 %v8698, 1.442695
        %v8759 = vpow.pop %v8758
        %v8760 = vmul.f32 %v8699, 1.442695
        %v8761 = vpow.pop %v8760
        %v8762 = vmul.f32 %v8700, 1.442695
        %v8763 = vpow.pop %v8762
        %v8764 = vmul.f32 %v8701, 1.442695
        %v8765 = vpow.pop %v8764
        %v8766 = vadd.f32 %v8703, 1.0
        %v8767 = vadd.f32 %v8705, 1.0
        %v8768 = vadd.f32 %v8707, 1.0
        %v8769 = vadd.f32 %v8709, 1.0
        %v8770 = vadd.f32 %v8711, 1.0
        %v8771 = vadd.f32 %v8713, 1.0
        %v8772 = vadd.f32 %v8715, 1.0
        %v8773 = vadd.f32 %v8717, 1.0
        %v8774 = vadd.f32 %v8719, 1.0
        %v8775 = vadd.f32 %v8721, 1.0
        %v8776 = vadd.f32 %v8723, 1.0
        %v8777 = vadd.f32 %v8725, 1.0
        %v8778 = vadd.f32 %v8727, 1.0
        %v8779 = vadd.f32 %v8729, 1.0
        %v8780 = vadd.f32 %v8731, 1.0
        %v8781 = vadd.f32 %v8733, 1.0
        %v8782 = vadd.f32 %v8735, 1.0
        %v8783 = vadd.f32 %v8737, 1.0
        %v8784 = vadd.f32 %v8739, 1.0
        %v8785 = vadd.f32 %v8741, 1.0
        %v8786 = vadd.f32 %v8743, 1.0
        %v8787 = vadd.f32 %v8745, 1.0
        %v8788 = vadd.f32 %v8747, 1.0
        %v8789 = vadd.f32 %v8749, 1.0
        %v8790 = vadd.f32 %v8751, 1.0
        %v8791 = vadd.f32 %v8753, 1.0
        %v8792 = vadd.f32 %v8755, 1.0
        %v8793 = vadd.f32 %v8757, 1.0
        %v8794 = vadd.f32 %v8759, 1.0
        %v8795 = vadd.f32 %v8761, 1.0
        %v8796 = vadd.f32 %v8763, 1.0
        %v8797 = vadd.f32 %v8765, 1.0
        %v8798 = vrcp.pop %v8766
        %v8799 = vmul.f32 1.0, %v8798
        %v8800 = vrcp.pop %v8767
        %v8801 = vmul.f32 1.0, %v8800
        %v8802 = vrcp.pop %v8768
        %v8803 = vmul.f32 1.0, %v8802
        %v8804 = vrcp.pop %v8769
        %v8805 = vmul.f32 1.0, %v8804
        %v8806 = vrcp.pop %v8770
        %v8807 = vmul.f32 1.0, %v8806
        %v8808 = vrcp.pop %v8771
        %v8809 = vmul.f32 1.0, %v8808
        %v8810 = vrcp.pop %v8772
        %v8811 = vmul.f32 1.0, %v8810
        %v8812 = vrcp.pop %v8773
        %v8813 = vmul.f32 1.0, %v8812
        %v8814 = vrcp.pop %v8774
        %v8815 = vmul.f32 1.0, %v8814
        %v8816 = vrcp.pop %v8775
        %v8817 = vmul.f32 1.0, %v8816
        %v8818 = vrcp.pop %v8776
        %v8819 = vmul.f32 1.0, %v8818
        %v8820 = vrcp.pop %v8777
        %v8821 = vmul.f32 1.0, %v8820
        %v8822 = vrcp.pop %v8778
        %v8823 = vmul.f32 1.0, %v8822
        %v8824 = vrcp.pop %v8779
        %v8825 = vmul.f32 1.0, %v8824
        %v8826 = vrcp.pop %v8780
        %v8827 = vmul.f32 1.0, %v8826
        %v8828 = vrcp.pop %v8781
        %v8829 = vmul.f32 1.0, %v8828
        %v8830 = vrcp.pop %v8782
        %v8831 = vmul.f32 1.0, %v8830
        %v8832 = vrcp.pop %v8783
        %v8833 = vmul.f32 1.0, %v8832
        %v8834 = vrcp.pop %v8784
        %v8835 = vmul.f32 1.0, %v8834
        %v8836 = vrcp.pop %v8785
        %v8837 = vmul.f32 1.0, %v8836
        %v8838 = vrcp.pop %v8786
        %v8839 = vmul.f32 1.0, %v8838
        %v8840 = vrcp.pop %v8787
        %v8841 = vmul.f32 1.0, %v8840
        %v8842 = vrcp.pop %v8788
        %v8843 = vmul.f32 1.0, %v8842
        %v8844 = vrcp.pop %v8789
        %v8845 = vmul.f32 1.0, %v8844
        %v8846 = vrcp.pop %v8790
        %v8847 = vmul.f32 1.0, %v8846
        %v8848 = vrcp.pop %v8791
        %v8849 = vmul.f32 1.0, %v8848
        %v8850 = vrcp.pop %v8792
        %v8851 = vmul.f32 1.0, %v8850
        %v8852 = vrcp.pop %v8793
        %v8853 = vmul.f32 1.0, %v8852
        %v8854 = vrcp.pop %v8794
        %v8855 = vmul.f32 1.0, %v8854
        %v8856 = vrcp.pop %v8795
        %v8857 = vmul.f32 1.0, %v8856
        %v8858 = vrcp.pop %v8796
        %v8859 = vmul.f32 1.0, %v8858
        %v8860 = vrcp.pop %v8797
        %v8861 = vmul.f32 1.0, %v8860
        %v8862 = vmul.f32 %v5769, %v8799
        %v8863 = vmul.f32 %v5770, %v8801
        %v8864 = vmul.f32 %v5771, %v8803
        %v8865 = vmul.f32 %v5772, %v8805
        %v8866 = vmul.f32 %v5773, %v8807
        %v8867 = vmul.f32 %v5774, %v8809
        %v8868 = vmul.f32 %v5775, %v8811
        %v8869 = vmul.f32 %v5776, %v8813
        %v8870 = vmul.f32 %v5777, %v8815
        %v8871 = vmul.f32 %v5778, %v8817
        %v8872 = vmul.f32 %v5779, %v8819
        %v8873 = vmul.f32 %v5780, %v8821
        %v8874 = vmul.f32 %v5781, %v8823
        %v8875 = vmul.f32 %v5782, %v8825
        %v8876 = vmul.f32 %v5783, %v8827
        %v8877 = vmul.f32 %v5784, %v8829
        %v8878 = vmul.f32 %v5785, %v8831
        %v8879 = vmul.f32 %v5786, %v8833
        %v8880 = vmul.f32 %v5787, %v8835
        %v8881 = vmul.f32 %v5788, %v8837
        %v8882 = vmul.f32 %v5789, %v8839
        %v8883 = vmul.f32 %v5790, %v8841
        %v8884 = vmul.f32 %v5791, %v8843
        %v8885 = vmul.f32 %v5792, %v8845
        %v8886 = vmul.f32 %v5793, %v8847
        %v8887 = vmul.f32 %v5794, %v8849
        %v8888 = vmul.f32 %v5795, %v8851
        %v8889 = vmul.f32 %v5796, %v8853
        %v8890 = vmul.f32 %v5797, %v8855
        %v8891 = vmul.f32 %v5798, %v8857
        %v8892 = vmul.f32 %v5799, %v8859
        %v8893 = vmul.f32 %v5800, %v8861
        %s8894 = scalar_lea.vmem %s3, 160
        %v8895 = vld [vmem:[%s8894] sm:$0xff]
        %v8896 = vld [vmem:[%s8894 + $0x8] sm:$0xff]
        %v8898 = vsel %vm553, %v7233, 0
        %v8901 = vsel %vm553, %v7234, 0
        %v8904 = vsel %vm553, %v7235, 0
        %v8907 = vsel %vm553, %v7236, 0
        %v8910 = vsel %vm553, %v7237, 0
        %v8913 = vsel %vm553, %v7238, 0
        %v8916 = vsel %vm553, %v7239, 0
        %v8919 = vsel %vm553, %v7240, 0
        %v8922 = vsel %vm553, %v7241, 0
        %v8925 = vsel %vm553, %v7242, 0
        %v8928 = vsel %vm553, %v7243, 0
        %v8931 = vsel %vm553, %v7244, 0
        %v8934 = vsel %vm553, %v7245, 0
        %v8937 = vsel %vm553, %v7246, 0
        %v8940 = vsel %vm553, %v7247, 0
        %v8943 = vsel %vm553, %v7248, 0
        %v8946 = vsel %vm553, %v7249, 0
        %v8949 = vsel %vm553, %v7250, 0
        %v8952 = vsel %vm553, %v7251, 0
        %v8955 = vsel %vm553, %v7252, 0
        %v8958 = vsel %vm553, %v7253, 0
        %v8961 = vsel %vm553, %v7254, 0
        %v8964 = vsel %vm553, %v7255, 0
        %v8967 = vsel %vm553, %v7256, 0
        %v8970 = vsel %vm553, %v7257, 0
        %v8973 = vsel %vm553, %v7258, 0
        %v8976 = vsel %vm553, %v7259, 0
        %v8979 = vsel %vm553, %v7260, 0
        %v8982 = vsel %vm553, %v7261, 0
        %v8985 = vsel %vm553, %v7262, 0
        %v8988 = vsel %vm553, %v7263, 0
        %v8991 = vsel %vm553, %v7264, 0
        %8993 = vmatprep.subr.mxu0 0.0
        %8994 = vmatpush1.msra.mxu0 %v8895
        %8995 = vmatprep.subr.mxu0 0.0
        %8996 = vmatpush1.msra.mxu0 %v8896
        %8997 = vmatprep.subr.mxu0 0.0
        %8998 = vmatpush1.msra.mxu0 0.0
        %8999 = vmatprep.subr.mxu0 0.0
        %9000 = vmatpush1.msra.mxu0 0.0
        %9001 = vmatprep.subr.mxu0 0.0
        %9002 = vmatpush1.msra.mxu0 0.0
        %9003 = vmatprep.subr.mxu0 0.0
        %9004 = vmatpush1.msra.mxu0 0.0
        %9005 = vmatprep.subr.mxu0 0.0
        %9006 = vmatpush1.msra.mxu0 0.0
        %9007 = vmatprep.subr.mxu0 0.0
        %9008 = vmatpush1.msra.mxu0 0.0
        %9009 = vmatprep.subr.mxu0 0.0
        %9010 = vmatpush1.msra.mxu0 0.0
        %9011 = vmatprep.subr.mxu0 0.0
        %9012 = vmatpush1.msra.mxu0 0.0
        %9013 = vmatprep.subr.mxu0 0.0
        %9014 = vmatpush1.msra.mxu0 0.0
        %9015 = vmatprep.subr.mxu0 0.0
        %9016 = vmatpush1.msra.mxu0 0.0
        %9017 = vmatprep.subr.mxu0 0.0
        %9018 = vmatpush1.msra.mxu0 0.0
        %9019 = vmatprep.subr.mxu0 0.0
        %9020 = vmatpush1.msra.mxu0 0.0
        %9021 = vmatprep.subr.mxu0 0.0
        %9022 = vmatpush1.msra.mxu0 0.0
        %9023 = vmatprep.subr.mxu0 0.0
        %9024 = vmatpush1.msra.mxu0 0.0
        %9025 = vmatprep.subr.mxu0 0.0
        %9026 = vmatpush1.msra.mxu0 0.0
        %9027 = vmatprep.subr.mxu0 0.0
        %9028 = vmatpush1.msra.mxu0 0.0
        %9029 = vmatprep.subr.mxu0 0.0
        %9030 = vmatpush1.msra.mxu0 0.0
        %9031 = vmatprep.subr.mxu0 0.0
        %9032 = vmatpush1.msra.mxu0 0.0
        %9033 = vmatprep.subr.mxu0 0.0
        %9034 = vmatpush1.msra.mxu0 0.0
        %9035 = vmatprep.subr.mxu0 0.0
        %9036 = vmatpush1.msra.mxu0 0.0
        %9037 = vmatprep.subr.mxu0 0.0
        %9038 = vmatpush1.msra.mxu0 0.0
        %9039 = vmatprep.subr.mxu0 0.0
        %9040 = vmatpush1.msra.mxu0 0.0
        %9041 = vmatprep.subr.mxu0 0.0
        %9042 = vmatpush1.msra.mxu0 0.0
        %9043 = vmatprep.subr.mxu0 0.0
        %9044 = vmatpush1.msra.mxu0 0.0
        %9045 = vmatprep.subr.mxu0 0.0
        %9046 = vmatpush1.msra.mxu0 0.0
        %9047 = vmatprep.subr.mxu0 0.0
        %9048 = vmatpush1.msra.mxu0 0.0
        %9049 = vmatprep.subr.mxu0 0.0
        %9050 = vmatpush1.msra.mxu0 0.0
        %9051 = vmatprep.subr.mxu0 0.0
        %9052 = vmatpush1.msra.mxu0 0.0
        %9053 = vmatprep.subr.mxu0 0.0
        %9054 = vmatpush1.msra.mxu0 0.0
        %9055 = vmatprep.subr.mxu0 0.0
        %9056 = vmatpush1.msra.mxu0 0.0
        %9057 = vmatprep.mubr.f32.mxu0 0.0
        %9058 = vmatmul.mubr.f32.gmra.mrb[0].mxu0 %v8898
        %v9059 = vpop.f32.mrb[0].mxu0
        %v9060 = vadd.f32 0.0, %v9059
        %v9061 = vpop.f32.mrb[0].mxu0
        %9062 = vmatprep.mubr.f32.mxu0 0.0
        %9063 = vmatmul.mubr.f32.gmra.mrb[0].mxu0 %v8901
        %v9064 = vpop.f32.mrb[0].mxu0
        %v9065 = vadd.f32 0.0, %v9064
        %v9066 = vpop.f32.mrb[0].mxu0
        %9067 = vmatprep.mubr.f32.mxu0 0.0
        %9068 = vmatmul.mubr.f32.gmra.mrb[0].mxu0 %v8904
        %v9069 = vpop.f32.mrb[0].mxu0
        %v9070 = vadd.f32 0.0, %v9069
        %v9071 = vpop.f32.mrb[0].mxu0
        %9072 = vmatprep.mubr.f32.mxu0 0.0
        %9073 = vmatmul.mubr.f32.gmra.mrb[0].mxu0 %v8907
        %v9074 = vpop.f32.mrb[0].mxu0
        %v9075 = vadd.f32 0.0, %v9074
        %v9076 = vpop.f32.mrb[0].mxu0
        %9077 = vmatprep.mubr.f32.mxu0 0.0
        %9078 = vmatmul.mubr.f32.gmra.mrb[0].mxu0 %v8910
        %v9079 = vpop.f32.mrb[0].mxu0
        %v9080 = vadd.f32 0.0, %v9079
        %v9081 = vpop.f32.mrb[0].mxu0
        %9082 = vmatprep.mubr.f32.mxu0 0.0
        %9083 = vmatmul.mubr.f32.gmra.mrb[0].mxu0 %v8913
        %v9084 = vpop.f32.mrb[0].mxu0
        %v9085 = vadd.f32 0.0, %v9084
        %v9086 = vpop.f32.mrb[0].mxu0
        %9087 = vmatprep.mubr.f32.mxu0 0.0
        %9088 = vmatmul.mubr.f32.gmra.mrb[0].mxu0 %v8916
        %v9089 = vpop.f32.mrb[0].mxu0
        %v9090 = vadd.f32 0.0, %v9089
        %v9091 = vpop.f32.mrb[0].mxu0
        %9092 = vmatprep.mubr.f32.mxu0 0.0
        %9093 = vmatmul.mubr.f32.gmra.mrb[0].mxu0 %v8919
        %v9094 = vpop.f32.mrb[0].mxu0
        %v9095 = vadd.f32 0.0, %v9094
        %v9096 = vpop.f32.mrb[0].mxu0
        %9097 = vmatprep.mubr.f32.mxu0 0.0
        %9098 = vmatmul.mubr.f32.gmra.mrb[0].mxu0 %v8922
        %v9099 = vpop.f32.mrb[0].mxu0
        %v9100 = vadd.f32 0.0, %v9099
        %v9101 = vpop.f32.mrb[0].mxu0
        %9102 = vmatprep.mubr.f32.mxu0 0.0
        %9103 = vmatmul.mubr.f32.gmra.mrb[0].mxu0 %v8925
        %v9104 = vpop.f32.mrb[0].mxu0
        %v9105 = vadd.f32 0.0, %v9104
        %v9106 = vpop.f32.mrb[0].mxu0
        %9107 = vmatprep.mubr.f32.mxu0 0.0
        %9108 = vmatmul.mubr.f32.gmra.mrb[0].mxu0 %v8928
        %v9109 = vpop.f32.mrb[0].mxu0
        %v9110 = vadd.f32 0.0, %v9109
        %v9111 = vpop.f32.mrb[0].mxu0
        %9112 = vmatprep.mubr.f32.mxu0 0.0
        %9113 = vmatmul.mubr.f32.gmra.mrb[0].mxu0 %v8931
        %v9114 = vpop.f32.mrb[0].mxu0
        %v9115 = vadd.f32 0.0, %v9114
        %v9116 = vpop.f32.mrb[0].mxu0
        %9117 = vmatprep.mubr.f32.mxu0 0.0
        %9118 = vmatmul.mubr.f32.gmra.mrb[0].mxu0 %v8934
        %v9119 = vpop.f32.mrb[0].mxu0
        %v9120 = vadd.f32 0.0, %v9119
        %v9121 = vpop.f32.mrb[0].mxu0
        %9122 = vmatprep.mubr.f32.mxu0 0.0
        %9123 = vmatmul.mubr.f32.gmra.mrb[0].mxu0 %v8937
        %v9124 = vpop.f32.mrb[0].mxu0
        %v9125 = vadd.f32 0.0, %v9124
        %v9126 = vpop.f32.mrb[0].mxu0
        %9127 = vmatprep.mubr.f32.mxu0 0.0
        %9128 = vmatmul.mubr.f32.gmra.mrb[0].mxu0 %v8940
        %v9129 = vpop.f32.mrb[0].mxu0
        %v9130 = vadd.f32 0.0, %v9129
        %v9131 = vpop.f32.mrb[0].mxu0
        %9132 = vmatprep.mubr.f32.mxu0 0.0
        %9133 = vmatmul.mubr.f32.gmra.mrb[0].mxu0 %v8943
        %v9134 = vpop.f32.mrb[0].mxu0
        %v9135 = vadd.f32 0.0, %v9134
        %v9136 = vpop.f32.mrb[0].mxu0
        %9137 = vmatprep.mubr.f32.mxu0 0.0
        %9138 = vmatmul.mubr.f32.gmra.mrb[0].mxu0 %v8946
        %v9139 = vpop.f32.mrb[0].mxu0
        %v9140 = vadd.f32 0.0, %v9139
        %v9141 = vpop.f32.mrb[0].mxu0
        %9142 = vmatprep.mubr.f32.mxu0 0.0
        %9143 = vmatmul.mubr.f32.gmra.mrb[0].mxu0 %v8949
        %v9144 = vpop.f32.mrb[0].mxu0
        %v9145 = vadd.f32 0.0, %v9144
        %v9146 = vpop.f32.mrb[0].mxu0
        %9147 = vmatprep.mubr.f32.mxu0 0.0
        %9148 = vmatmul.mubr.f32.gmra.mrb[0].mxu0 %v8952
        %v9149 = vpop.f32.mrb[0].mxu0
        %v9150 = vadd.f32 0.0, %v9149
        %v9151 = vpop.f32.mrb[0].mxu0
        %9152 = vmatprep.mubr.f32.mxu0 0.0
        %9153 = vmatmul.mubr.f32.gmra.mrb[0].mxu0 %v8955
        %v9154 = vpop.f32.mrb[0].mxu0
        %v9155 = vadd.f32 0.0, %v9154
        %v9156 = vpop.f32.mrb[0].mxu0
        %9157 = vmatprep.mubr.f32.mxu0 0.0
        %9158 = vmatmul.mubr.f32.gmra.mrb[0].mxu0 %v8958
        %v9159 = vpop.f32.mrb[0].mxu0
        %v9160 = vadd.f32 0.0, %v9159
        %v9161 = vpop.f32.mrb[0].mxu0
        %9162 = vmatprep.mubr.f32.mxu0 0.0
        %9163 = vmatmul.mubr.f32.gmra.mrb[0].mxu0 %v8961
        %v9164 = vpop.f32.mrb[0].mxu0
        %v9165 = vadd.f32 0.0, %v9164
        %v9166 = vpop.f32.mrb[0].mxu0
        %9167 = vmatprep.mubr.f32.mxu0 0.0
        %9168 = vmatmul.mubr.f32.gmra.mrb[0].mxu0 %v8964
        %v9169 = vpop.f32.mrb[0].mxu0
        %v9170 = vadd.f32 0.0, %v9169
        %v9171 = vpop.f32.mrb[0].mxu0
        %9172 = vmatprep.mubr.f32.mxu0 0.0
        %9173 = vmatmul.mubr.f32.gmra.mrb[0].mxu0 %v8967
        %v9174 = vpop.f32.mrb[0].mxu0
        %v9175 = vadd.f32 0.0, %v9174
        %v9176 = vpop.f32.mrb[0].mxu0
        %9177 = vmatprep.mubr.f32.mxu0 0.0
        %9178 = vmatmul.mubr.f32.gmra.mrb[0].mxu0 %v8970
        %v9179 = vpop.f32.mrb[0].mxu0
        %v9180 = vadd.f32 0.0, %v9179
        %v9181 = vpop.f32.mrb[0].mxu0
        %9182 = vmatprep.mubr.f32.mxu0 0.0
        %9183 = vmatmul.mubr.f32.gmra.mrb[0].mxu0 %v8973
        %v9184 = vpop.f32.mrb[0].mxu0
        %v9185 = vadd.f32 0.0, %v9184
        %v9186 = vpop.f32.mrb[0].mxu0
        %9187 = vmatprep.mubr.f32.mxu0 0.0
        %9188 = vmatmul.mubr.f32.gmra.mrb[0].mxu0 %v8976
        %v9189 = vpop.f32.mrb[0].mxu0
        %v9190 = vadd.f32 0.0, %v9189
        %v9191 = vpop.f32.mrb[0].mxu0
        %9192 = vmatprep.mubr.f32.mxu0 0.0
        %9193 = vmatmul.mubr.f32.gmra.mrb[0].mxu0 %v8979
        %v9194 = vpop.f32.mrb[0].mxu0
        %v9195 = vadd.f32 0.0, %v9194
        %v9196 = vpop.f32.mrb[0].mxu0
        %9197 = vmatprep.mubr.f32.mxu0 0.0
        %9198 = vmatmul.mubr.f32.gmra.mrb[0].mxu0 %v8982
        %v9199 = vpop.f32.mrb[0].mxu0
        %v9200 = vadd.f32 0.0, %v9199
        %v9201 = vpop.f32.mrb[0].mxu0
        %9202 = vmatprep.mubr.f32.mxu0 0.0
        %9203 = vmatmul.mubr.f32.gmra.mrb[0].mxu0 %v8985
        %v9204 = vpop.f32.mrb[0].mxu0
        %v9205 = vadd.f32 0.0, %v9204
        %v9206 = vpop.f32.mrb[0].mxu0
        %9207 = vmatprep.mubr.f32.mxu0 0.0
        %9208 = vmatmul.mubr.f32.gmra.mrb[0].mxu0 %v8988
        %v9209 = vpop.f32.mrb[0].mxu0
        %v9210 = vadd.f32 0.0, %v9209
        %v9211 = vpop.f32.mrb[0].mxu0
        %9212 = vmatprep.mubr.f32.mxu0 0.0
        %9213 = vmatmul.mubr.f32.gmra.mrb[0].mxu0 %v8991
        %v9214 = vpop.f32.mrb[0].mxu0
        %v9215 = vadd.f32 0.0, %v9214
        %v9216 = vpop.f32.mrb[0].mxu0
        %9217 = vdwg.mxu0
        %v9250 = vrot.slane %v9060, 4
        %v9251 = vrot.slane %v9065, 4
        %v9252 = vsel %vm7785, %v9250, %v9251
        %v9253 = vrot.slane %v9070, 4
        %v9254 = vsel %vm7785, %v9251, %v9253
        %v9255 = vrot.slane %v9075, 4
        %v9256 = vsel %vm7785, %v9253, %v9255
        %v9257 = vrot.slane %v9080, 4
        %v9258 = vrot.slane %v9085, 4
        %v9259 = vsel %vm7785, %v9257, %v9258
        %v9260 = vrot.slane %v9090, 4
        %v9261 = vsel %vm7785, %v9258, %v9260
        %v9262 = vrot.slane %v9095, 4
        %v9263 = vsel %vm7785, %v9260, %v9262
        %v9264 = vrot.slane %v9100, 4
        %v9265 = vrot.slane %v9105, 4
        %v9266 = vsel %vm7785, %v9264, %v9265
        %v9267 = vrot.slane %v9110, 4
        %v9268 = vsel %vm7785, %v9265, %v9267
        %v9269 = vrot.slane %v9115, 4
        %v9270 = vsel %vm7785, %v9267, %v9269
        %v9271 = vrot.slane %v9120, 4
        %v9272 = vrot.slane %v9125, 4
        %v9273 = vsel %vm7785, %v9271, %v9272
        %v9274 = vrot.slane %v9130, 4
        %v9275 = vsel %vm7785, %v9272, %v9274
        %v9276 = vrot.slane %v9135, 4
        %v9277 = vsel %vm7785, %v9274, %v9276
        %v9278 = vrot.slane %v9140, 4
        %v9279 = vrot.slane %v9145, 4
        %v9280 = vsel %vm7785, %v9278, %v9279
        %v9281 = vrot.slane %v9150, 4
        %v9282 = vsel %vm7785, %v9279, %v9281
        %v9283 = vrot.slane %v9155, 4
        %v9284 = vsel %vm7785, %v9281, %v9283
        %v9285 = vrot.slane %v9160, 4
        %v9286 = vrot.slane %v9165, 4
        %v9287 = vsel %vm7785, %v9285, %v9286
        %v9288 = vrot.slane %v9170, 4
        %v9289 = vsel %vm7785, %v9286, %v9288
        %v9290 = vrot.slane %v9175, 4
        %v9291 = vsel %vm7785, %v9288, %v9290
        %v9292 = vrot.slane %v9180, 4
        %v9293 = vrot.slane %v9185, 4
        %v9294 = vsel %vm7785, %v9292, %v9293
        %v9295 = vrot.slane %v9190, 4
        %v9296 = vsel %vm7785, %v9293, %v9295
        %v9297 = vrot.slane %v9195, 4
        %v9298 = vsel %vm7785, %v9295, %v9297
        %v9299 = vrot.slane %v9200, 4
        %v9300 = vrot.slane %v9205, 4
        %v9301 = vsel %vm7785, %v9299, %v9300
        %v9302 = vrot.slane %v9210, 4
        %v9303 = vsel %vm7785, %v9300, %v9302
        %v9304 = vrot.slane %v9215, 4
        %v9305 = vsel %vm7785, %v9302, %v9304
        %9306 = vrot.lane.b32.xlu0 %v9250, 112
        %v9307 = vpop.permute.xlu0 %9306
        %9308 = vrot.lane.b32.xlu0 %v9252, 112
        %v9309 = vpop.permute.xlu0 %9308
        %9310 = vrot.lane.b32.xlu0 %v9254, 112
        %v9311 = vpop.permute.xlu0 %9310
        %9312 = vrot.lane.b32.xlu0 %v9256, 112
        %v9313 = vpop.permute.xlu0 %9312
        %9314 = vrot.lane.b32.xlu0 %v9257, 112
        %v9315 = vpop.permute.xlu0 %9314
        %9316 = vrot.lane.b32.xlu0 %v9259, 112
        %v9317 = vpop.permute.xlu0 %9316
        %9318 = vrot.lane.b32.xlu0 %v9261, 112
        %v9319 = vpop.permute.xlu0 %9318
        %9320 = vrot.lane.b32.xlu0 %v9263, 112
        %v9321 = vpop.permute.xlu0 %9320
        %9322 = vrot.lane.b32.xlu0 %v9264, 112
        %v9323 = vpop.permute.xlu0 %9322
        %9324 = vrot.lane.b32.xlu0 %v9266, 112
        %v9325 = vpop.permute.xlu0 %9324
        %9326 = vrot.lane.b32.xlu0 %v9268, 112
        %v9327 = vpop.permute.xlu0 %9326
        %9328 = vrot.lane.b32.xlu0 %v9270, 112
        %v9329 = vpop.permute.xlu0 %9328
        %9330 = vrot.lane.b32.xlu0 %v9271, 112
        %v9331 = vpop.permute.xlu0 %9330
        %9332 = vrot.lane.b32.xlu0 %v9273, 112
        %v9333 = vpop.permute.xlu0 %9332
        %9334 = vrot.lane.b32.xlu0 %v9275, 112
        %v9335 = vpop.permute.xlu0 %9334
        %9336 = vrot.lane.b32.xlu0 %v9277, 112
        %v9337 = vpop.permute.xlu0 %9336
        %9338 = vrot.lane.b32.xlu0 %v9278, 112
        %v9339 = vpop.permute.xlu0 %9338
        %9340 = vrot.lane.b32.xlu0 %v9280, 112
        %v9341 = vpop.permute.xlu0 %9340
        %9342 = vrot.lane.b32.xlu0 %v9282, 112
        %v9343 = vpop.permute.xlu0 %9342
        %9344 = vrot.lane.b32.xlu0 %v9284, 112
        %v9345 = vpop.permute.xlu0 %9344
        %9346 = vrot.lane.b32.xlu0 %v9285, 112
        %v9347 = vpop.permute.xlu0 %9346
        %9348 = vrot.lane.b32.xlu0 %v9287, 112
        %v9349 = vpop.permute.xlu0 %9348
        %9350 = vrot.lane.b32.xlu0 %v9289, 112
        %v9351 = vpop.permute.xlu0 %9350
        %9352 = vrot.lane.b32.xlu0 %v9291, 112
        %v9353 = vpop.permute.xlu0 %9352
        %9354 = vrot.lane.b32.xlu0 %v9292, 112
        %v9355 = vpop.permute.xlu0 %9354
        %9356 = vrot.lane.b32.xlu0 %v9294, 112
        %v9357 = vpop.permute.xlu0 %9356
        %9358 = vrot.lane.b32.xlu0 %v9296, 112
        %v9359 = vpop.permute.xlu0 %9358
        %9360 = vrot.lane.b32.xlu0 %v9298, 112
        %v9361 = vpop.permute.xlu0 %9360
        %9362 = vrot.lane.b32.xlu0 %v9299, 112
        %v9363 = vpop.permute.xlu0 %9362
        %9364 = vrot.lane.b32.xlu0 %v9301, 112
        %v9365 = vpop.permute.xlu0 %9364
        %9366 = vrot.lane.b32.xlu0 %v9303, 112
        %v9367 = vpop.permute.xlu0 %9366
        %9368 = vrot.lane.b32.xlu0 %v9305, 112
        %v9369 = vpop.permute.xlu0 %9368
        %v9402 = vsel %vm7785, 0.0, %v9307
        %v9403 = vsel %vm7785, 0.0, %v9315
        %v9404 = vsel %vm7785, 0.0, %v9323
        %v9405 = vsel %vm7785, 0.0, %v9331
        %v9406 = vsel %vm7785, 0.0, %v9339
        %v9407 = vsel %vm7785, 0.0, %v9347
        %v9408 = vsel %vm7785, 0.0, %v9355
        %v9409 = vsel %vm7785, 0.0, %v9363
        %v9410 = vadd.f32 %v9060, %v9402
        %v9411 = vadd.f32 %v9065, %v9309
        %v9412 = vadd.f32 %v9070, %v9311
        %v9413 = vadd.f32 %v9075, %v9313
        %v9414 = vadd.f32 %v9080, %v9403
        %v9415 = vadd.f32 %v9085, %v9317
        %v9416 = vadd.f32 %v9090, %v9319
        %v9417 = vadd.f32 %v9095, %v9321
        %v9418 = vadd.f32 %v9100, %v9404
        %v9419 = vadd.f32 %v9105, %v9325
        %v9420 = vadd.f32 %v9110, %v9327
        %v9421 = vadd.f32 %v9115, %v9329
        %v9422 = vadd.f32 %v9120, %v9405
        %v9423 = vadd.f32 %v9125, %v9333
        %v9424 = vadd.f32 %v9130, %v9335
        %v9425 = vadd.f32 %v9135, %v9337
        %v9426 = vadd.f32 %v9140, %v9406
        %v9427 = vadd.f32 %v9145, %v9341
        %v9428 = vadd.f32 %v9150, %v9343
        %v9429 = vadd.f32 %v9155, %v9345
        %v9430 = vadd.f32 %v9160, %v9407
        %v9431 = vadd.f32 %v9165, %v9349
        %v9432 = vadd.f32 %v9170, %v9351
        %v9433 = vadd.f32 %v9175, %v9353
        %v9434 = vadd.f32 %v9180, %v9408
        %v9435 = vadd.f32 %v9185, %v9357
        %v9436 = vadd.f32 %v9190, %v9359
        %v9437 = vadd.f32 %v9195, %v9361
        %v9438 = vadd.f32 %v9200, %v9409
        %v9439 = vadd.f32 %v9205, %v9365
        %v9440 = vadd.f32 %v9210, %v9367
        %v9441 = vadd.f32 %v9215, %v9369
        %s9442 = scalar_lea.vmem %s4, 10
        %v9443 = vld [vmem:[%s9442] sm:$0x1]
        %v9445 = vlaneseq
        %v9446 = vshrl.u32 %v9445, 7
        %v9447 = vsub.s32 0, %v9446
        %v9448 = vrot.slane %v9443, %v9447
        %v9450 = vadd.f32 %v9410, %v9448
        %v9451 = vadd.f32 %v9411, %v9448
        %v9452 = vadd.f32 %v9412, %v9448
        %v9453 = vadd.f32 %v9413, %v9448
        %v9454 = vadd.f32 %v9414, %v9448
        %v9455 = vadd.f32 %v9415, %v9448
        %v9456 = vadd.f32 %v9416, %v9448
        %v9457 = vadd.f32 %v9417, %v9448
        %v9458 = vadd.f32 %v9418, %v9448
        %v9459 = vadd.f32 %v9419, %v9448
        %v9460 = vadd.f32 %v9420, %v9448
        %v9461 = vadd.f32 %v9421, %v9448
        %v9462 = vadd.f32 %v9422, %v9448
        %v9463 = vadd.f32 %v9423, %v9448
        %v9464 = vadd.f32 %v9424, %v9448
        %v9465 = vadd.f32 %v9425, %v9448
        %v9466 = vadd.f32 %v9426, %v9448
        %v9467 = vadd.f32 %v9427, %v9448
        %v9468 = vadd.f32 %v9428, %v9448
        %v9469 = vadd.f32 %v9429, %v9448
        %v9470 = vadd.f32 %v9430, %v9448
        %v9471 = vadd.f32 %v9431, %v9448
        %v9472 = vadd.f32 %v9432, %v9448
        %v9473 = vadd.f32 %v9433, %v9448
        %v9474 = vadd.f32 %v9434, %v9448
        %v9475 = vadd.f32 %v9435, %v9448
        %v9476 = vadd.f32 %v9436, %v9448
        %v9477 = vadd.f32 %v9437, %v9448
        %v9478 = vadd.f32 %v9438, %v9448
        %v9479 = vadd.f32 %v9439, %v9448
        %v9480 = vadd.f32 %v9440, %v9448
        %v9481 = vadd.f32 %v9441, %v9448
        %v9482 = vmax.f32 %v9450, 0.0
        %v9483 = vmax.f32 %v9451, 0.0
        %v9484 = vmax.f32 %v9452, 0.0
        %v9485 = vmax.f32 %v9453, 0.0
        %v9486 = vmax.f32 %v9454, 0.0
        %v9487 = vmax.f32 %v9455, 0.0
        %v9488 = vmax.f32 %v9456, 0.0
        %v9489 = vmax.f32 %v9457, 0.0
        %v9490 = vmax.f32 %v9458, 0.0
        %v9491 = vmax.f32 %v9459, 0.0
        %v9492 = vmax.f32 %v9460, 0.0
        %v9493 = vmax.f32 %v9461, 0.0
        %v9494 = vmax.f32 %v9462, 0.0
        %v9495 = vmax.f32 %v9463, 0.0
        %v9496 = vmax.f32 %v9464, 0.0
        %v9497 = vmax.f32 %v9465, 0.0
        %v9498 = vmax.f32 %v9466, 0.0
        %v9499 = vmax.f32 %v9467, 0.0
        %v9500 = vmax.f32 %v9468, 0.0
        %v9501 = vmax.f32 %v9469, 0.0
        %v9502 = vmax.f32 %v9470, 0.0
        %v9503 = vmax.f32 %v9471, 0.0
        %v9504 = vmax.f32 %v9472, 0.0
        %v9505 = vmax.f32 %v9473, 0.0
        %v9506 = vmax.f32 %v9474, 0.0
        %v9507 = vmax.f32 %v9475, 0.0
        %v9508 = vmax.f32 %v9476, 0.0
        %v9509 = vmax.f32 %v9477, 0.0
        %v9510 = vmax.f32 %v9478, 0.0
        %v9511 = vmax.f32 %v9479, 0.0
        %v9512 = vmax.f32 %v9480, 0.0
        %v9513 = vmax.f32 %v9481, 0.0
        %s9514 = scalar_lea.vmem %s3, 176
        %v9515 = vld [vmem:[%s9514] sm:$0xff]
        %v9516 = vld [vmem:[%s9514 + $0x8] sm:$0xff]
        %v9518 = vsel %vm553, %v9482, 0
        %v9521 = vsel %vm553, %v9483, 0
        %v9524 = vsel %vm553, %v9484, 0
        %v9527 = vsel %vm553, %v9485, 0
        %v9530 = vsel %vm553, %v9486, 0
        %v9533 = vsel %vm553, %v9487, 0
        %v9536 = vsel %vm553, %v9488, 0
        %v9539 = vsel %vm553, %v9489, 0
        %v9542 = vsel %vm553, %v9490, 0
        %v9545 = vsel %vm553, %v9491, 0
        %v9548 = vsel %vm553, %v9492, 0
        %v9551 = vsel %vm553, %v9493, 0
        %v9554 = vsel %vm553, %v9494, 0
        %v9557 = vsel %vm553, %v9495, 0
        %v9560 = vsel %vm553, %v9496, 0
        %v9563 = vsel %vm553, %v9497, 0
        %v9566 = vsel %vm553, %v9498, 0
        %v9569 = vsel %vm553, %v9499, 0
        %v9572 = vsel %vm553, %v9500, 0
        %v9575 = vsel %vm553, %v9501, 0
        %v9578 = vsel %vm553, %v9502, 0
        %v9581 = vsel %vm553, %v9503, 0
        %v9584 = vsel %vm553, %v9504, 0
        %v9587 = vsel %vm553, %v9505, 0
        %v9590 = vsel %vm553, %v9506, 0
        %v9593 = vsel %vm553, %v9507, 0
        %v9596 = vsel %vm553, %v9508, 0
        %v9599 = vsel %vm553, %v9509, 0
        %v9602 = vsel %vm553, %v9510, 0
        %v9605 = vsel %vm553, %v9511, 0
        %v9608 = vsel %vm553, %v9512, 0
        %v9611 = vsel %vm553, %v9513, 0
        %9613 = vmatprep.subr.mxu0 0.0
        %9614 = vmatpush1.msra.mxu0 %v9515
        %9615 = vmatprep.subr.mxu0 0.0
        %9616 = vmatpush1.msra.mxu0 %v9516
        %9617 = vmatprep.subr.mxu0 0.0
        %9618 = vmatpush1.msra.mxu0 0.0
        %9619 = vmatprep.subr.mxu0 0.0
        %9620 = vmatpush1.msra.mxu0 0.0
        %9621 = vmatprep.subr.mxu0 0.0
        %9622 = vmatpush1.msra.mxu0 0.0
        %9623 = vmatprep.subr.mxu0 0.0
        %9624 = vmatpush1.msra.mxu0 0.0
        %9625 = vmatprep.subr.mxu0 0.0
        %9626 = vmatpush1.msra.mxu0 0.0
        %9627 = vmatprep.subr.mxu0 0.0
        %9628 = vmatpush1.msra.mxu0 0.0
        %9629 = vmatprep.subr.mxu0 0.0
        %9630 = vmatpush1.msra.mxu0 0.0
        %9631 = vmatprep.subr.mxu0 0.0
        %9632 = vmatpush1.msra.mxu0 0.0
        %9633 = vmatprep.subr.mxu0 0.0
        %9634 = vmatpush1.msra.mxu0 0.0
        %9635 = vmatprep.subr.mxu0 0.0
        %9636 = vmatpush1.msra.mxu0 0.0
        %9637 = vmatprep.subr.mxu0 0.0
        %9638 = vmatpush1.msra.mxu0 0.0
        %9639 = vmatprep.subr.mxu0 0.0
        %9640 = vmatpush1.msra.mxu0 0.0
        %9641 = vmatprep.subr.mxu0 0.0
        %9642 = vmatpush1.msra.mxu0 0.0
        %9643 = vmatprep.subr.mxu0 0.0
        %9644 = vmatpush1.msra.mxu0 0.0
        %9645 = vmatprep.subr.mxu0 0.0
        %9646 = vmatpush1.msra.mxu0 0.0
        %9647 = vmatprep.subr.mxu0 0.0
        %9648 = vmatpush1.msra.mxu0 0.0
        %9649 = vmatprep.subr.mxu0 0.0
        %9650 = vmatpush1.msra.mxu0 0.0
        %9651 = vmatprep.subr.mxu0 0.0
        %9652 = vmatpush1.msra.mxu0 0.0
        %9653 = vmatprep.subr.mxu0 0.0
        %9654 = vmatpush1.msra.mxu0 0.0
        %9655 = vmatprep.subr.mxu0 0.0
        %9656 = vmatpush1.msra.mxu0 0.0
        %9657 = vmatprep.subr.mxu0 0.0
        %9658 = vmatpush1.msra.mxu0 0.0
        %9659 = vmatprep.subr.mxu0 0.0
        %9660 = vmatpush1.msra.mxu0 0.0
        %9661 = vmatprep.subr.mxu0 0.0
        %9662 = vmatpush1.msra.mxu0 0.0
        %9663 = vmatprep.subr.mxu0 0.0
        %9664 = vmatpush1.msra.mxu0 0.0
        %9665 = vmatprep.subr.mxu0 0.0
        %9666 = vmatpush1.msra.mxu0 0.0
        %9667 = vmatprep.subr.mxu0 0.0
        %9668 = vmatpush1.msra.mxu0 0.0
        %9669 = vmatprep.subr.mxu0 0.0
        %9670 = vmatpush1.msra.mxu0 0.0
        %9671 = vmatprep.subr.mxu0 0.0
        %9672 = vmatpush1.msra.mxu0 0.0
        %9673 = vmatprep.subr.mxu0 0.0
        %9674 = vmatpush1.msra.mxu0 0.0
        %9675 = vmatprep.subr.mxu0 0.0
        %9676 = vmatpush1.msra.mxu0 0.0
        %9677 = vmatprep.mubr.f32.mxu0 0.0
        %9678 = vmatmul.mubr.f32.gmra.mrb[0].mxu0 %v9518
        %v9679 = vpop.f32.mrb[0].mxu0
        %v9680 = vadd.f32 0.0, %v9679
        %v9681 = vpop.f32.mrb[0].mxu0
        %9682 = vmatprep.mubr.f32.mxu0 0.0
        %9683 = vmatmul.mubr.f32.gmra.mrb[0].mxu0 %v9521
        %v9684 = vpop.f32.mrb[0].mxu0
        %v9685 = vadd.f32 0.0, %v9684
        %v9686 = vpop.f32.mrb[0].mxu0
        %9687 = vmatprep.mubr.f32.mxu0 0.0
        %9688 = vmatmul.mubr.f32.gmra.mrb[0].mxu0 %v9524
        %v9689 = vpop.f32.mrb[0].mxu0
        %v9690 = vadd.f32 0.0, %v9689
        %v9691 = vpop.f32.mrb[0].mxu0
        %9692 = vmatprep.mubr.f32.mxu0 0.0
        %9693 = vmatmul.mubr.f32.gmra.mrb[0].mxu0 %v9527
        %v9694 = vpop.f32.mrb[0].mxu0
        %v9695 = vadd.f32 0.0, %v9694
        %v9696 = vpop.f32.mrb[0].mxu0
        %9697 = vmatprep.mubr.f32.mxu0 0.0
        %9698 = vmatmul.mubr.f32.gmra.mrb[0].mxu0 %v9530
        %v9699 = vpop.f32.mrb[0].mxu0
        %v9700 = vadd.f32 0.0, %v9699
        %v9701 = vpop.f32.mrb[0].mxu0
        %9702 = vmatprep.mubr.f32.mxu0 0.0
        %9703 = vmatmul.mubr.f32.gmra.mrb[0].mxu0 %v9533
        %v9704 = vpop.f32.mrb[0].mxu0
        %v9705 = vadd.f32 0.0, %v9704
        %v9706 = vpop.f32.mrb[0].mxu0
        %9707 = vmatprep.mubr.f32.mxu0 0.0
        %9708 = vmatmul.mubr.f32.gmra.mrb[0].mxu0 %v9536
        %v9709 = vpop.f32.mrb[0].mxu0
        %v9710 = vadd.f32 0.0, %v9709
        %v9711 = vpop.f32.mrb[0].mxu0
        %9712 = vmatprep.mubr.f32.mxu0 0.0
        %9713 = vmatmul.mubr.f32.gmra.mrb[0].mxu0 %v9539
        %v9714 = vpop.f32.mrb[0].mxu0
        %v9715 = vadd.f32 0.0, %v9714
        %v9716 = vpop.f32.mrb[0].mxu0
        %9717 = vmatprep.mubr.f32.mxu0 0.0
        %9718 = vmatmul.mubr.f32.gmra.mrb[0].mxu0 %v9542
        %v9719 = vpop.f32.mrb[0].mxu0
        %v9720 = vadd.f32 0.0, %v9719
        %v9721 = vpop.f32.mrb[0].mxu0
        %9722 = vmatprep.mubr.f32.mxu0 0.0
        %9723 = vmatmul.mubr.f32.gmra.mrb[0].mxu0 %v9545
        %v9724 = vpop.f32.mrb[0].mxu0
        %v9725 = vadd.f32 0.0, %v9724
        %v9726 = vpop.f32.mrb[0].mxu0
        %9727 = vmatprep.mubr.f32.mxu0 0.0
        %9728 = vmatmul.mubr.f32.gmra.mrb[0].mxu0 %v9548
        %v9729 = vpop.f32.mrb[0].mxu0
        %v9730 = vadd.f32 0.0, %v9729
        %v9731 = vpop.f32.mrb[0].mxu0
        %9732 = vmatprep.mubr.f32.mxu0 0.0
        %9733 = vmatmul.mubr.f32.gmra.mrb[0].mxu0 %v9551
        %v9734 = vpop.f32.mrb[0].mxu0
        %v9735 = vadd.f32 0.0, %v9734
        %v9736 = vpop.f32.mrb[0].mxu0
        %9737 = vmatprep.mubr.f32.mxu0 0.0
        %9738 = vmatmul.mubr.f32.gmra.mrb[0].mxu0 %v9554
        %v9739 = vpop.f32.mrb[0].mxu0
        %v9740 = vadd.f32 0.0, %v9739
        %v9741 = vpop.f32.mrb[0].mxu0
        %9742 = vmatprep.mubr.f32.mxu0 0.0
        %9743 = vmatmul.mubr.f32.gmra.mrb[0].mxu0 %v9557
        %v9744 = vpop.f32.mrb[0].mxu0
        %v9745 = vadd.f32 0.0, %v9744
        %v9746 = vpop.f32.mrb[0].mxu0
        %9747 = vmatprep.mubr.f32.mxu0 0.0
        %9748 = vmatmul.mubr.f32.gmra.mrb[0].mxu0 %v9560
        %v9749 = vpop.f32.mrb[0].mxu0
        %v9750 = vadd.f32 0.0, %v9749
        %v9751 = vpop.f32.mrb[0].mxu0
        %9752 = vmatprep.mubr.f32.mxu0 0.0
        %9753 = vmatmul.mubr.f32.gmra.mrb[0].mxu0 %v9563
        %v9754 = vpop.f32.mrb[0].mxu0
        %v9755 = vadd.f32 0.0, %v9754
        %v9756 = vpop.f32.mrb[0].mxu0
        %9757 = vmatprep.mubr.f32.mxu0 0.0
        %9758 = vmatmul.mubr.f32.gmra.mrb[0].mxu0 %v9566
        %v9759 = vpop.f32.mrb[0].mxu0
        %v9760 = vadd.f32 0.0, %v9759
        %v9761 = vpop.f32.mrb[0].mxu0
        %9762 = vmatprep.mubr.f32.mxu0 0.0
        %9763 = vmatmul.mubr.f32.gmra.mrb[0].mxu0 %v9569
        %v9764 = vpop.f32.mrb[0].mxu0
        %v9765 = vadd.f32 0.0, %v9764
        %v9766 = vpop.f32.mrb[0].mxu0
        %9767 = vmatprep.mubr.f32.mxu0 0.0
        %9768 = vmatmul.mubr.f32.gmra.mrb[0].mxu0 %v9572
        %v9769 = vpop.f32.mrb[0].mxu0
        %v9770 = vadd.f32 0.0, %v9769
        %v9771 = vpop.f32.mrb[0].mxu0
        %9772 = vmatprep.mubr.f32.mxu0 0.0
        %9773 = vmatmul.mubr.f32.gmra.mrb[0].mxu0 %v9575
        %v9774 = vpop.f32.mrb[0].mxu0
        %v9775 = vadd.f32 0.0, %v9774
        %v9776 = vpop.f32.mrb[0].mxu0
        %9777 = vmatprep.mubr.f32.mxu0 0.0
        %9778 = vmatmul.mubr.f32.gmra.mrb[0].mxu0 %v9578
        %v9779 = vpop.f32.mrb[0].mxu0
        %v9780 = vadd.f32 0.0, %v9779
        %v9781 = vpop.f32.mrb[0].mxu0
        %9782 = vmatprep.mubr.f32.mxu0 0.0
        %9783 = vmatmul.mubr.f32.gmra.mrb[0].mxu0 %v9581
        %v9784 = vpop.f32.mrb[0].mxu0
        %v9785 = vadd.f32 0.0, %v9784
        %v9786 = vpop.f32.mrb[0].mxu0
        %9787 = vmatprep.mubr.f32.mxu0 0.0
        %9788 = vmatmul.mubr.f32.gmra.mrb[0].mxu0 %v9584
        %v9789 = vpop.f32.mrb[0].mxu0
        %v9790 = vadd.f32 0.0, %v9789
        %v9791 = vpop.f32.mrb[0].mxu0
        %9792 = vmatprep.mubr.f32.mxu0 0.0
        %9793 = vmatmul.mubr.f32.gmra.mrb[0].mxu0 %v9587
        %v9794 = vpop.f32.mrb[0].mxu0
        %v9795 = vadd.f32 0.0, %v9794
        %v9796 = vpop.f32.mrb[0].mxu0
        %9797 = vmatprep.mubr.f32.mxu0 0.0
        %9798 = vmatmul.mubr.f32.gmra.mrb[0].mxu0 %v9590
        %v9799 = vpop.f32.mrb[0].mxu0
        %v9800 = vadd.f32 0.0, %v9799
        %v9801 = vpop.f32.mrb[0].mxu0
        %9802 = vmatprep.mubr.f32.mxu0 0.0
        %9803 = vmatmul.mubr.f32.gmra.mrb[0].mxu0 %v9593
        %v9804 = vpop.f32.mrb[0].mxu0
        %v9805 = vadd.f32 0.0, %v9804
        %v9806 = vpop.f32.mrb[0].mxu0
        %9807 = vmatprep.mubr.f32.mxu0 0.0
        %9808 = vmatmul.mubr.f32.gmra.mrb[0].mxu0 %v9596
        %v9809 = vpop.f32.mrb[0].mxu0
        %v9810 = vadd.f32 0.0, %v9809
        %v9811 = vpop.f32.mrb[0].mxu0
        %9812 = vmatprep.mubr.f32.mxu0 0.0
        %9813 = vmatmul.mubr.f32.gmra.mrb[0].mxu0 %v9599
        %v9814 = vpop.f32.mrb[0].mxu0
        %v9815 = vadd.f32 0.0, %v9814
        %v9816 = vpop.f32.mrb[0].mxu0
        %9817 = vmatprep.mubr.f32.mxu0 0.0
        %9818 = vmatmul.mubr.f32.gmra.mrb[0].mxu0 %v9602
        %v9819 = vpop.f32.mrb[0].mxu0
        %v9820 = vadd.f32 0.0, %v9819
        %v9821 = vpop.f32.mrb[0].mxu0
        %9822 = vmatprep.mubr.f32.mxu0 0.0
        %9823 = vmatmul.mubr.f32.gmra.mrb[0].mxu0 %v9605
        %v9824 = vpop.f32.mrb[0].mxu0
        %v9825 = vadd.f32 0.0, %v9824
        %v9826 = vpop.f32.mrb[0].mxu0
        %9827 = vmatprep.mubr.f32.mxu0 0.0
        %9828 = vmatmul.mubr.f32.gmra.mrb[0].mxu0 %v9608
        %v9829 = vpop.f32.mrb[0].mxu0
        %v9830 = vadd.f32 0.0, %v9829
        %v9831 = vpop.f32.mrb[0].mxu0
        %9832 = vmatprep.mubr.f32.mxu0 0.0
        %9833 = vmatmul.mubr.f32.gmra.mrb[0].mxu0 %v9611
        %v9834 = vpop.f32.mrb[0].mxu0
        %v9835 = vadd.f32 0.0, %v9834
        %v9836 = vpop.f32.mrb[0].mxu0
        %9837 = vdwg.mxu0
        %v9870 = vrot.slane %v9680, 4
        %v9871 = vrot.slane %v9685, 4
        %v9872 = vsel %vm7785, %v9870, %v9871
        %v9873 = vrot.slane %v9690, 4
        %v9874 = vsel %vm7785, %v9871, %v9873
        %v9875 = vrot.slane %v9695, 4
        %v9876 = vsel %vm7785, %v9873, %v9875
        %v9877 = vrot.slane %v9700, 4
        %v9878 = vrot.slane %v9705, 4
        %v9879 = vsel %vm7785, %v9877, %v9878
        %v9880 = vrot.slane %v9710, 4
        %v9881 = vsel %vm7785, %v9878, %v9880
        %v9882 = vrot.slane %v9715, 4
        %v9883 = vsel %vm7785, %v9880, %v9882
        %v9884 = vrot.slane %v9720, 4
        %v9885 = vrot.slane %v9725, 4
        %v9886 = vsel %vm7785, %v9884, %v9885
        %v9887 = vrot.slane %v9730, 4
        %v9888 = vsel %vm7785, %v9885, %v9887
        %v9889 = vrot.slane %v9735, 4
        %v9890 = vsel %vm7785, %v9887, %v9889
        %v9891 = vrot.slane %v9740, 4
        %v9892 = vrot.slane %v9745, 4
        %v9893 = vsel %vm7785, %v9891, %v9892
        %v9894 = vrot.slane %v9750, 4
        %v9895 = vsel %vm7785, %v9892, %v9894
        %v9896 = vrot.slane %v9755, 4
        %v9897 = vsel %vm7785, %v9894, %v9896
        %v9898 = vrot.slane %v9760, 4
        %v9899 = vrot.slane %v9765, 4
        %v9900 = vsel %vm7785, %v9898, %v9899
        %v9901 = vrot.slane %v9770, 4
        %v9902 = vsel %vm7785, %v9899, %v9901
        %v9903 = vrot.slane %v9775, 4
        %v9904 = vsel %vm7785, %v9901, %v9903
        %v9905 = vrot.slane %v9780, 4
        %v9906 = vrot.slane %v9785, 4
        %v9907 = vsel %vm7785, %v9905, %v9906
        %v9908 = vrot.slane %v9790, 4
        %v9909 = vsel %vm7785, %v9906, %v9908
        %v9910 = vrot.slane %v9795, 4
        %v9911 = vsel %vm7785, %v9908, %v9910
        %v9912 = vrot.slane %v9800, 4
        %v9913 = vrot.slane %v9805, 4
        %v9914 = vsel %vm7785, %v9912, %v9913
        %v9915 = vrot.slane %v9810, 4
        %v9916 = vsel %vm7785, %v9913, %v9915
        %v9917 = vrot.slane %v9815, 4
        %v9918 = vsel %vm7785, %v9915, %v9917
        %v9919 = vrot.slane %v9820, 4
        %v9920 = vrot.slane %v9825, 4
        %v9921 = vsel %vm7785, %v9919, %v9920
        %v9922 = vrot.slane %v9830, 4
        %v9923 = vsel %vm7785, %v9920, %v9922
        %v9924 = vrot.slane %v9835, 4
        %v9925 = vsel %vm7785, %v9922, %v9924
        %9926 = vrot.lane.b32.xlu0 %v9870, 112
        %v9927 = vpop.permute.xlu0 %9926
        %9928 = vrot.lane.b32.xlu0 %v9872, 112
        %v9929 = vpop.permute.xlu0 %9928
        %9930 = vrot.lane.b32.xlu0 %v9874, 112
        %v9931 = vpop.permute.xlu0 %9930
        %9932 = vrot.lane.b32.xlu0 %v9876, 112
        %v9933 = vpop.permute.xlu0 %9932
        %9934 = vrot.lane.b32.xlu0 %v9877, 112
        %v9935 = vpop.permute.xlu0 %9934
        %9936 = vrot.lane.b32.xlu0 %v9879, 112
        %v9937 = vpop.permute.xlu0 %9936
        %9938 = vrot.lane.b32.xlu0 %v9881, 112
        %v9939 = vpop.permute.xlu0 %9938
        %9940 = vrot.lane.b32.xlu0 %v9883, 112
        %v9941 = vpop.permute.xlu0 %9940
        %9942 = vrot.lane.b32.xlu0 %v9884, 112
        %v9943 = vpop.permute.xlu0 %9942
        %9944 = vrot.lane.b32.xlu0 %v9886, 112
        %v9945 = vpop.permute.xlu0 %9944
        %9946 = vrot.lane.b32.xlu0 %v9888, 112
        %v9947 = vpop.permute.xlu0 %9946
        %9948 = vrot.lane.b32.xlu0 %v9890, 112
        %v9949 = vpop.permute.xlu0 %9948
        %9950 = vrot.lane.b32.xlu0 %v9891, 112
        %v9951 = vpop.permute.xlu0 %9950
        %9952 = vrot.lane.b32.xlu0 %v9893, 112
        %v9953 = vpop.permute.xlu0 %9952
        %9954 = vrot.lane.b32.xlu0 %v9895, 112
        %v9955 = vpop.permute.xlu0 %9954
        %9956 = vrot.lane.b32.xlu0 %v9897, 112
        %v9957 = vpop.permute.xlu0 %9956
        %9958 = vrot.lane.b32.xlu0 %v9898, 112
        %v9959 = vpop.permute.xlu0 %9958
        %9960 = vrot.lane.b32.xlu0 %v9900, 112
        %v9961 = vpop.permute.xlu0 %9960
        %9962 = vrot.lane.b32.xlu0 %v9902, 112
        %v9963 = vpop.permute.xlu0 %9962
        %9964 = vrot.lane.b32.xlu0 %v9904, 112
        %v9965 = vpop.permute.xlu0 %9964
        %9966 = vrot.lane.b32.xlu0 %v9905, 112
        %v9967 = vpop.permute.xlu0 %9966
        %9968 = vrot.lane.b32.xlu0 %v9907, 112
        %v9969 = vpop.permute.xlu0 %9968
        %9970 = vrot.lane.b32.xlu0 %v9909, 112
        %v9971 = vpop.permute.xlu0 %9970
        %9972 = vrot.lane.b32.xlu0 %v9911, 112
        %v9973 = vpop.permute.xlu0 %9972
        %9974 = vrot.lane.b32.xlu0 %v9912, 112
        %v9975 = vpop.permute.xlu0 %9974
        %9976 = vrot.lane.b32.xlu0 %v9914, 112
        %v9977 = vpop.permute.xlu0 %9976
        %9978 = vrot.lane.b32.xlu0 %v9916, 112
        %v9979 = vpop.permute.xlu0 %9978
        %9980 = vrot.lane.b32.xlu0 %v9918, 112
        %v9981 = vpop.permute.xlu0 %9980
        %9982 = vrot.lane.b32.xlu0 %v9919, 112
        %v9983 = vpop.permute.xlu0 %9982
        %9984 = vrot.lane.b32.xlu0 %v9921, 112
        %v9985 = vpop.permute.xlu0 %9984
        %9986 = vrot.lane.b32.xlu0 %v9923, 112
        %v9987 = vpop.permute.xlu0 %9986
        %9988 = vrot.lane.b32.xlu0 %v9925, 112
        %v9989 = vpop.permute.xlu0 %9988
        %v10022 = vsel %vm7785, 0.0, %v9927
        %v10023 = vsel %vm7785, 0.0, %v9935
        %v10024 = vsel %vm7785, 0.0, %v9943
        %v10025 = vsel %vm7785, 0.0, %v9951
        %v10026 = vsel %vm7785, 0.0, %v9959
        %v10027 = vsel %vm7785, 0.0, %v9967
        %v10028 = vsel %vm7785, 0.0, %v9975
        %v10029 = vsel %vm7785, 0.0, %v9983
        %v10030 = vadd.f32 %v9680, %v10022
        %v10031 = vadd.f32 %v9685, %v9929
        %v10032 = vadd.f32 %v9690, %v9931
        %v10033 = vadd.f32 %v9695, %v9933
        %v10034 = vadd.f32 %v9700, %v10023
        %v10035 = vadd.f32 %v9705, %v9937
        %v10036 = vadd.f32 %v9710, %v9939
        %v10037 = vadd.f32 %v9715, %v9941
        %v10038 = vadd.f32 %v9720, %v10024
        %v10039 = vadd.f32 %v9725, %v9945
        %v10040 = vadd.f32 %v9730, %v9947
        %v10041 = vadd.f32 %v9735, %v9949
        %v10042 = vadd.f32 %v9740, %v10025
        %v10043 = vadd.f32 %v9745, %v9953
        %v10044 = vadd.f32 %v9750, %v9955
        %v10045 = vadd.f32 %v9755, %v9957
        %v10046 = vadd.f32 %v9760, %v10026
        %v10047 = vadd.f32 %v9765, %v9961
        %v10048 = vadd.f32 %v9770, %v9963
        %v10049 = vadd.f32 %v9775, %v9965
        %v10050 = vadd.f32 %v9780, %v10027
        %v10051 = vadd.f32 %v9785, %v9969
        %v10052 = vadd.f32 %v9790, %v9971
        %v10053 = vadd.f32 %v9795, %v9973
        %v10054 = vadd.f32 %v9800, %v10028
        %v10055 = vadd.f32 %v9805, %v9977
        %v10056 = vadd.f32 %v9810, %v9979
        %v10057 = vadd.f32 %v9815, %v9981
        %v10058 = vadd.f32 %v9820, %v10029
        %v10059 = vadd.f32 %v9825, %v9985
        %v10060 = vadd.f32 %v9830, %v9987
        %v10061 = vadd.f32 %v9835, %v9989
        %s10062 = scalar_lea.vmem %s4, 11
        %v10063 = vld [vmem:[%s10062] sm:$0x1]
        %v10065 = vlaneseq
        %v10066 = vshrl.u32 %v10065, 7
        %v10067 = vsub.s32 0, %v10066
        %v10068 = vrot.slane %v10063, %v10067
        %v10070 = vadd.f32 %v10030, %v10068
        %v10071 = vadd.f32 %v10031, %v10068
        %v10072 = vadd.f32 %v10032, %v10068
        %v10073 = vadd.f32 %v10033, %v10068
        %v10074 = vadd.f32 %v10034, %v10068
        %v10075 = vadd.f32 %v10035, %v10068
        %v10076 = vadd.f32 %v10036, %v10068
        %v10077 = vadd.f32 %v10037, %v10068
        %v10078 = vadd.f32 %v10038, %v10068
        %v10079 = vadd.f32 %v10039, %v10068
        %v10080 = vadd.f32 %v10040, %v10068
        %v10081 = vadd.f32 %v10041, %v10068
        %v10082 = vadd.f32 %v10042, %v10068
        %v10083 = vadd.f32 %v10043, %v10068
        %v10084 = vadd.f32 %v10044, %v10068
        %v10085 = vadd.f32 %v10045, %v10068
        %v10086 = vadd.f32 %v10046, %v10068
        %v10087 = vadd.f32 %v10047, %v10068
        %v10088 = vadd.f32 %v10048, %v10068
        %v10089 = vadd.f32 %v10049, %v10068
        %v10090 = vadd.f32 %v10050, %v10068
        %v10091 = vadd.f32 %v10051, %v10068
        %v10092 = vadd.f32 %v10052, %v10068
        %v10093 = vadd.f32 %v10053, %v10068
        %v10094 = vadd.f32 %v10054, %v10068
        %v10095 = vadd.f32 %v10055, %v10068
        %v10096 = vadd.f32 %v10056, %v10068
        %v10097 = vadd.f32 %v10057, %v10068
        %v10098 = vadd.f32 %v10058, %v10068
        %v10099 = vadd.f32 %v10059, %v10068
        %v10100 = vadd.f32 %v10060, %v10068
        %v10101 = vadd.f32 %v10061, %v10068
        %v10102 = vmax.f32 %v10070, 0.0
        %v10103 = vmax.f32 %v10071, 0.0
        %v10104 = vmax.f32 %v10072, 0.0
        %v10105 = vmax.f32 %v10073, 0.0
        %v10106 = vmax.f32 %v10074, 0.0
        %v10107 = vmax.f32 %v10075, 0.0
        %v10108 = vmax.f32 %v10076, 0.0
        %v10109 = vmax.f32 %v10077, 0.0
        %v10110 = vmax.f32 %v10078, 0.0
        %v10111 = vmax.f32 %v10079, 0.0
        %v10112 = vmax.f32 %v10080, 0.0
        %v10113 = vmax.f32 %v10081, 0.0
        %v10114 = vmax.f32 %v10082, 0.0
        %v10115 = vmax.f32 %v10083, 0.0
        %v10116 = vmax.f32 %v10084, 0.0
        %v10117 = vmax.f32 %v10085, 0.0
        %v10118 = vmax.f32 %v10086, 0.0
        %v10119 = vmax.f32 %v10087, 0.0
        %v10120 = vmax.f32 %v10088, 0.0
        %v10121 = vmax.f32 %v10089, 0.0
        %v10122 = vmax.f32 %v10090, 0.0
        %v10123 = vmax.f32 %v10091, 0.0
        %v10124 = vmax.f32 %v10092, 0.0
        %v10125 = vmax.f32 %v10093, 0.0
        %v10126 = vmax.f32 %v10094, 0.0
        %v10127 = vmax.f32 %v10095, 0.0
        %v10128 = vmax.f32 %v10096, 0.0
        %v10129 = vmax.f32 %v10097, 0.0
        %v10130 = vmax.f32 %v10098, 0.0
        %v10131 = vmax.f32 %v10099, 0.0
        %v10132 = vmax.f32 %v10100, 0.0
        %v10133 = vmax.f32 %v10101, 0.0
        %v10134 = vxor.u32 %v10102, 2147483648
        %v10135 = vxor.u32 %v10103, 2147483648
        %v10136 = vxor.u32 %v10104, 2147483648
        %v10137 = vxor.u32 %v10105, 2147483648
        %v10138 = vxor.u32 %v10106, 2147483648
        %v10139 = vxor.u32 %v10107, 2147483648
        %v10140 = vxor.u32 %v10108, 2147483648
        %v10141 = vxor.u32 %v10109, 2147483648
        %v10142 = vxor.u32 %v10110, 2147483648
        %v10143 = vxor.u32 %v10111, 2147483648
        %v10144 = vxor.u32 %v10112, 2147483648
        %v10145 = vxor.u32 %v10113, 2147483648
        %v10146 = vxor.u32 %v10114, 2147483648
        %v10147 = vxor.u32 %v10115, 2147483648
        %v10148 = vxor.u32 %v10116, 2147483648
        %v10149 = vxor.u32 %v10117, 2147483648
        %v10150 = vxor.u32 %v10118, 2147483648
        %v10151 = vxor.u32 %v10119, 2147483648
        %v10152 = vxor.u32 %v10120, 2147483648
        %v10153 = vxor.u32 %v10121, 2147483648
        %v10154 = vxor.u32 %v10122, 2147483648
        %v10155 = vxor.u32 %v10123, 2147483648
        %v10156 = vxor.u32 %v10124, 2147483648
        %v10157 = vxor.u32 %v10125, 2147483648
        %v10158 = vxor.u32 %v10126, 2147483648
        %v10159 = vxor.u32 %v10127, 2147483648
        %v10160 = vxor.u32 %v10128, 2147483648
        %v10161 = vxor.u32 %v10129, 2147483648
        %v10162 = vxor.u32 %v10130, 2147483648
        %v10163 = vxor.u32 %v10131, 2147483648
        %v10164 = vxor.u32 %v10132, 2147483648
        %v10165 = vxor.u32 %v10133, 2147483648
        %v10166 = vmul.f32 %v10134, 1.442695
        %v10167 = vpow.pop %v10166
        %v10168 = vmul.f32 %v10135, 1.442695
        %v10169 = vpow.pop %v10168
        %v10170 = vmul.f32 %v10136, 1.442695
        %v10171 = vpow.pop %v10170
        %v10172 = vmul.f32 %v10137, 1.442695
        %v10173 = vpow.pop %v10172
        %v10174 = vmul.f32 %v10138, 1.442695
        %v10175 = vpow.pop %v10174
        %v10176 = vmul.f32 %v10139, 1.442695
        %v10177 = vpow.pop %v10176
        %v10178 = vmul.f32 %v10140, 1.442695
        %v10179 = vpow.pop %v10178
        %v10180 = vmul.f32 %v10141, 1.442695
        %v10181 = vpow.pop %v10180
        %v10182 = vmul.f32 %v10142, 1.442695
        %v10183 = vpow.pop %v10182
        %v10184 = vmul.f32 %v10143, 1.442695
        %v10185 = vpow.pop %v10184
        %v10186 = vmul.f32 %v10144, 1.442695
        %v10187 = vpow.pop %v10186
        %v10188 = vmul.f32 %v10145, 1.442695
        %v10189 = vpow.pop %v10188
        %v10190 = vmul.f32 %v10146, 1.442695
        %v10191 = vpow.pop %v10190
        %v10192 = vmul.f32 %v10147, 1.442695
        %v10193 = vpow.pop %v10192
        %v10194 = vmul.f32 %v10148, 1.442695
        %v10195 = vpow.pop %v10194
        %v10196 = vmul.f32 %v10149, 1.442695
        %v10197 = vpow.pop %v10196
        %v10198 = vmul.f32 %v10150, 1.442695
        %v10199 = vpow.pop %v10198
        %v10200 = vmul.f32 %v10151, 1.442695
        %v10201 = vpow.pop %v10200
        %v10202 = vmul.f32 %v10152, 1.442695
        %v10203 = vpow.pop %v10202
        %v10204 = vmul.f32 %v10153, 1.442695
        %v10205 = vpow.pop %v10204
        %v10206 = vmul.f32 %v10154, 1.442695
        %v10207 = vpow.pop %v10206
        %v10208 = vmul.f32 %v10155, 1.442695
        %v10209 = vpow.pop %v10208
        %v10210 = vmul.f32 %v10156, 1.442695
        %v10211 = vpow.pop %v10210
        %v10212 = vmul.f32 %v10157, 1.442695
        %v10213 = vpow.pop %v10212
        %v10214 = vmul.f32 %v10158, 1.442695
        %v10215 = vpow.pop %v10214
        %v10216 = vmul.f32 %v10159, 1.442695
        %v10217 = vpow.pop %v10216
        %v10218 = vmul.f32 %v10160, 1.442695
        %v10219 = vpow.pop %v10218
        %v10220 = vmul.f32 %v10161, 1.442695
        %v10221 = vpow.pop %v10220
        %v10222 = vmul.f32 %v10162, 1.442695
        %v10223 = vpow.pop %v10222
        %v10224 = vmul.f32 %v10163, 1.442695
        %v10225 = vpow.pop %v10224
        %v10226 = vmul.f32 %v10164, 1.442695
        %v10227 = vpow.pop %v10226
        %v10228 = vmul.f32 %v10165, 1.442695
        %v10229 = vpow.pop %v10228
        %v10230 = vadd.f32 %v10167, 1.0
        %v10231 = vadd.f32 %v10169, 1.0
        %v10232 = vadd.f32 %v10171, 1.0
        %v10233 = vadd.f32 %v10173, 1.0
        %v10234 = vadd.f32 %v10175, 1.0
        %v10235 = vadd.f32 %v10177, 1.0
        %v10236 = vadd.f32 %v10179, 1.0
        %v10237 = vadd.f32 %v10181, 1.0
        %v10238 = vadd.f32 %v10183, 1.0
        %v10239 = vadd.f32 %v10185, 1.0
        %v10240 = vadd.f32 %v10187, 1.0
        %v10241 = vadd.f32 %v10189, 1.0
        %v10242 = vadd.f32 %v10191, 1.0
        %v10243 = vadd.f32 %v10193, 1.0
        %v10244 = vadd.f32 %v10195, 1.0
        %v10245 = vadd.f32 %v10197, 1.0
        %v10246 = vadd.f32 %v10199, 1.0
        %v10247 = vadd.f32 %v10201, 1.0
        %v10248 = vadd.f32 %v10203, 1.0
        %v10249 = vadd.f32 %v10205, 1.0
        %v10250 = vadd.f32 %v10207, 1.0
        %v10251 = vadd.f32 %v10209, 1.0
        %v10252 = vadd.f32 %v10211, 1.0
        %v10253 = vadd.f32 %v10213, 1.0
        %v10254 = vadd.f32 %v10215, 1.0
        %v10255 = vadd.f32 %v10217, 1.0
        %v10256 = vadd.f32 %v10219, 1.0
        %v10257 = vadd.f32 %v10221, 1.0
        %v10258 = vadd.f32 %v10223, 1.0
        %v10259 = vadd.f32 %v10225, 1.0
        %v10260 = vadd.f32 %v10227, 1.0
        %v10261 = vadd.f32 %v10229, 1.0
        %v10262 = vrcp.pop %v10230
        %v10263 = vmul.f32 1.0, %v10262
        %v10264 = vrcp.pop %v10231
        %v10265 = vmul.f32 1.0, %v10264
        %v10266 = vrcp.pop %v10232
        %v10267 = vmul.f32 1.0, %v10266
        %v10268 = vrcp.pop %v10233
        %v10269 = vmul.f32 1.0, %v10268
        %v10270 = vrcp.pop %v10234
        %v10271 = vmul.f32 1.0, %v10270
        %v10272 = vrcp.pop %v10235
        %v10273 = vmul.f32 1.0, %v10272
        %v10274 = vrcp.pop %v10236
        %v10275 = vmul.f32 1.0, %v10274
        %v10276 = vrcp.pop %v10237
        %v10277 = vmul.f32 1.0, %v10276
        %v10278 = vrcp.pop %v10238
        %v10279 = vmul.f32 1.0, %v10278
        %v10280 = vrcp.pop %v10239
        %v10281 = vmul.f32 1.0, %v10280
        %v10282 = vrcp.pop %v10240
        %v10283 = vmul.f32 1.0, %v10282
        %v10284 = vrcp.pop %v10241
        %v10285 = vmul.f32 1.0, %v10284
        %v10286 = vrcp.pop %v10242
        %v10287 = vmul.f32 1.0, %v10286
        %v10288 = vrcp.pop %v10243
        %v10289 = vmul.f32 1.0, %v10288
        %v10290 = vrcp.pop %v10244
        %v10291 = vmul.f32 1.0, %v10290
        %v10292 = vrcp.pop %v10245
        %v10293 = vmul.f32 1.0, %v10292
        %v10294 = vrcp.pop %v10246
        %v10295 = vmul.f32 1.0, %v10294
        %v10296 = vrcp.pop %v10247
        %v10297 = vmul.f32 1.0, %v10296
        %v10298 = vrcp.pop %v10248
        %v10299 = vmul.f32 1.0, %v10298
        %v10300 = vrcp.pop %v10249
        %v10301 = vmul.f32 1.0, %v10300
        %v10302 = vrcp.pop %v10250
        %v10303 = vmul.f32 1.0, %v10302
        %v10304 = vrcp.pop %v10251
        %v10305 = vmul.f32 1.0, %v10304
        %v10306 = vrcp.pop %v10252
        %v10307 = vmul.f32 1.0, %v10306
        %v10308 = vrcp.pop %v10253
        %v10309 = vmul.f32 1.0, %v10308
        %v10310 = vrcp.pop %v10254
        %v10311 = vmul.f32 1.0, %v10310
        %v10312 = vrcp.pop %v10255
        %v10313 = vmul.f32 1.0, %v10312
        %v10314 = vrcp.pop %v10256
        %v10315 = vmul.f32 1.0, %v10314
        %v10316 = vrcp.pop %v10257
        %v10317 = vmul.f32 1.0, %v10316
        %v10318 = vrcp.pop %v10258
        %v10319 = vmul.f32 1.0, %v10318
        %v10320 = vrcp.pop %v10259
        %v10321 = vmul.f32 1.0, %v10320
        %v10322 = vrcp.pop %v10260
        %v10323 = vmul.f32 1.0, %v10322
        %v10324 = vrcp.pop %v10261
        %v10325 = vmul.f32 1.0, %v10324
        %v10326 = vmul.f32 %v7233, %v10263
        %v10327 = vmul.f32 %v7234, %v10265
        %v10328 = vmul.f32 %v7235, %v10267
        %v10329 = vmul.f32 %v7236, %v10269
        %v10330 = vmul.f32 %v7237, %v10271
        %v10331 = vmul.f32 %v7238, %v10273
        %v10332 = vmul.f32 %v7239, %v10275
        %v10333 = vmul.f32 %v7240, %v10277
        %v10334 = vmul.f32 %v7241, %v10279
        %v10335 = vmul.f32 %v7242, %v10281
        %v10336 = vmul.f32 %v7243, %v10283
        %v10337 = vmul.f32 %v7244, %v10285
        %v10338 = vmul.f32 %v7245, %v10287
        %v10339 = vmul.f32 %v7246, %v10289
        %v10340 = vmul.f32 %v7247, %v10291
        %v10341 = vmul.f32 %v7248, %v10293
        %v10342 = vmul.f32 %v7249, %v10295
        %v10343 = vmul.f32 %v7250, %v10297
        %v10344 = vmul.f32 %v7251, %v10299
        %v10345 = vmul.f32 %v7252, %v10301
        %v10346 = vmul.f32 %v7253, %v10303
        %v10347 = vmul.f32 %v7254, %v10305
        %v10348 = vmul.f32 %v7255, %v10307
        %v10349 = vmul.f32 %v7256, %v10309
        %v10350 = vmul.f32 %v7257, %v10311
        %v10351 = vmul.f32 %v7258, %v10313
        %v10352 = vmul.f32 %v7259, %v10315
        %v10353 = vmul.f32 %v7260, %v10317
        %v10354 = vmul.f32 %v7261, %v10319
        %v10355 = vmul.f32 %v7262, %v10321
        %v10356 = vmul.f32 %v7263, %v10323
        %v10357 = vmul.f32 %v7264, %v10325
        %v10358 = vadd.f32 %v8862, %v10326
        %v10359 = vadd.f32 %v8863, %v10327
        %v10360 = vadd.f32 %v8864, %v10328
        %v10361 = vadd.f32 %v8865, %v10329
        %v10362 = vadd.f32 %v8866, %v10330
        %v10363 = vadd.f32 %v8867, %v10331
        %v10364 = vadd.f32 %v8868, %v10332
        %v10365 = vadd.f32 %v8869, %v10333
        %v10366 = vadd.f32 %v8870, %v10334
        %v10367 = vadd.f32 %v8871, %v10335
        %v10368 = vadd.f32 %v8872, %v10336
        %v10369 = vadd.f32 %v8873, %v10337
        %v10370 = vadd.f32 %v8874, %v10338
        %v10371 = vadd.f32 %v8875, %v10339
        %v10372 = vadd.f32 %v8876, %v10340
        %v10373 = vadd.f32 %v8877, %v10341
        %v10374 = vadd.f32 %v8878, %v10342
        %v10375 = vadd.f32 %v8879, %v10343
        %v10376 = vadd.f32 %v8880, %v10344
        %v10377 = vadd.f32 %v8881, %v10345
        %v10378 = vadd.f32 %v8882, %v10346
        %v10379 = vadd.f32 %v8883, %v10347
        %v10380 = vadd.f32 %v8884, %v10348
        %v10381 = vadd.f32 %v8885, %v10349
        %v10382 = vadd.f32 %v8886, %v10350
        %v10383 = vadd.f32 %v8887, %v10351
        %v10384 = vadd.f32 %v8888, %v10352
        %v10385 = vadd.f32 %v8889, %v10353
        %v10386 = vadd.f32 %v8890, %v10354
        %v10387 = vadd.f32 %v8891, %v10355
        %v10388 = vadd.f32 %v8892, %v10356
        %v10389 = vadd.f32 %v8893, %v10357
        %v10390 = vsel %vm553, %v10358, 0.0
        %v10391 = vsel %vm553, %v10359, 0.0
        %v10392 = vadd.f32 %v10390, %v10391
        %v10393 = vsel %vm553, %v10360, 0.0
        %v10394 = vadd.f32 %v10392, %v10393
        %v10395 = vsel %vm553, %v10361, 0.0
        %v10396 = vadd.f32 %v10394, %v10395
        %v10397 = vrot.slane %v10396, 4
        %v10398 = vadd.f32 %v10396, %v10397
        %v10399 = vrot.slane %v10398, 2
        %v10400 = vadd.f32 %v10398, %v10399
        %v10401 = vrot.slane %v10400, 1
        %v10402 = vadd.f32 %v10400, %v10401
        %v10403 = vsel %vm553, %v10362, 0.0
        %v10404 = vsel %vm553, %v10363, 0.0
        %v10405 = vadd.f32 %v10403, %v10404
        %v10406 = vsel %vm553, %v10364, 0.0
        %v10407 = vadd.f32 %v10405, %v10406
        %v10408 = vsel %vm553, %v10365, 0.0
        %v10409 = vadd.f32 %v10407, %v10408
        %v10410 = vrot.slane %v10409, 4
        %v10411 = vadd.f32 %v10409, %v10410
        %v10412 = vrot.slane %v10411, 2
        %v10413 = vadd.f32 %v10411, %v10412
        %v10414 = vrot.slane %v10413, 1
        %v10415 = vadd.f32 %v10413, %v10414
        %v10416 = vsel %vm553, %v10366, 0.0
        %v10417 = vsel %vm553, %v10367, 0.0
        %v10418 = vadd.f32 %v10416, %v10417
        %v10419 = vsel %vm553, %v10368, 0.0
        %v10420 = vadd.f32 %v10418, %v10419
        %v10421 = vsel %vm553, %v10369, 0.0
        %v10422 = vadd.f32 %v10420, %v10421
        %v10423 = vrot.slane %v10422, 4
        %v10424 = vadd.f32 %v10422, %v10423
        %v10425 = vrot.slane %v10424, 2
        %v10426 = vadd.f32 %v10424, %v10425
        %v10427 = vrot.slane %v10426, 1
        %v10428 = vadd.f32 %v10426, %v10427
        %v10429 = vsel %vm553, %v10370, 0.0
        %v10430 = vsel %vm553, %v10371, 0.0
        %v10431 = vadd.f32 %v10429, %v10430
        %v10432 = vsel %vm553, %v10372, 0.0
        %v10433 = vadd.f32 %v10431, %v10432
        %v10434 = vsel %vm553, %v10373, 0.0
        %v10435 = vadd.f32 %v10433, %v10434
        %v10436 = vrot.slane %v10435, 4
        %v10437 = vadd.f32 %v10435, %v10436
        %v10438 = vrot.slane %v10437, 2
        %v10439 = vadd.f32 %v10437, %v10438
        %v10440 = vrot.slane %v10439, 1
        %v10441 = vadd.f32 %v10439, %v10440
        %v10442 = vsel %vm553, %v10374, 0.0
        %v10443 = vsel %vm553, %v10375, 0.0
        %v10444 = vadd.f32 %v10442, %v10443
        %v10445 = vsel %vm553, %v10376, 0.0
        %v10446 = vadd.f32 %v10444, %v10445
        %v10447 = vsel %vm553, %v10377, 0.0
        %v10448 = vadd.f32 %v10446, %v10447
        %v10449 = vrot.slane %v10448, 4
        %v10450 = vadd.f32 %v10448, %v10449
        %v10451 = vrot.slane %v10450, 2
        %v10452 = vadd.f32 %v10450, %v10451
        %v10453 = vrot.slane %v10452, 1
        %v10454 = vadd.f32 %v10452, %v10453
        %v10455 = vsel %vm553, %v10378, 0.0
        %v10456 = vsel %vm553, %v10379, 0.0
        %v10457 = vadd.f32 %v10455, %v10456
        %v10458 = vsel %vm553, %v10380, 0.0
        %v10459 = vadd.f32 %v10457, %v10458
        %v10460 = vsel %vm553, %v10381, 0.0
        %v10461 = vadd.f32 %v10459, %v10460
        %v10462 = vrot.slane %v10461, 4
        %v10463 = vadd.f32 %v10461, %v10462
        %v10464 = vrot.slane %v10463, 2
        %v10465 = vadd.f32 %v10463, %v10464
        %v10466 = vrot.slane %v10465, 1
        %v10467 = vadd.f32 %v10465, %v10466
        %v10468 = vsel %vm553, %v10382, 0.0
        %v10469 = vsel %vm553, %v10383, 0.0
        %v10470 = vadd.f32 %v10468, %v10469
        %v10471 = vsel %vm553, %v10384, 0.0
        %v10472 = vadd.f32 %v10470, %v10471
        %v10473 = vsel %vm553, %v10385, 0.0
        %v10474 = vadd.f32 %v10472, %v10473
        %v10475 = vrot.slane %v10474, 4
        %v10476 = vadd.f32 %v10474, %v10475
        %v10477 = vrot.slane %v10476, 2
        %v10478 = vadd.f32 %v10476, %v10477
        %v10479 = vrot.slane %v10478, 1
        %v10480 = vadd.f32 %v10478, %v10479
        %v10481 = vsel %vm553, %v10386, 0.0
        %v10482 = vsel %vm553, %v10387, 0.0
        %v10483 = vadd.f32 %v10481, %v10482
        %v10484 = vsel %vm553, %v10388, 0.0
        %v10485 = vadd.f32 %v10483, %v10484
        %v10486 = vsel %vm553, %v10389, 0.0
        %v10487 = vadd.f32 %v10485, %v10486
        %v10488 = vrot.slane %v10487, 4
        %v10489 = vadd.f32 %v10487, %v10488
        %v10490 = vrot.slane %v10489, 2
        %v10491 = vadd.f32 %v10489, %v10490
        %v10492 = vrot.slane %v10491, 1
        %v10493 = vadd.f32 %v10491, %v10492
        %v10494 = vmul.f32 %v10402, %v4303
        %v10495 = vmul.f32 %v10415, %v4303
        %v10496 = vmul.f32 %v10428, %v4303
        %v10497 = vmul.f32 %v10441, %v4303
        %v10498 = vmul.f32 %v10454, %v4303
        %v10499 = vmul.f32 %v10467, %v4303
        %v10500 = vmul.f32 %v10480, %v4303
        %v10501 = vmul.f32 %v10493, %v4303
        %v10510 = vsel %vm4320, %v10495, %v10494
        %v10511 = vsel %vm4322, %v10496, %v10510
        %v10512 = vsel %vm4324, %v10497, %v10511
        %v10513 = vsel %vm4326, %v10498, %v10512
        %v10514 = vsel %vm4328, %v10499, %v10513
        %v10515 = vsel %vm4330, %v10500, %v10514
        %v10516 = vsel %vm4332, %v10501, %v10515
        %10517 = vrot.lane.b32.xlu0 %v10516, 32
        %v10518 = vpop.permute.xlu0 %10517
        %vm10520 = vcmask 392448
        %10521 = vst.msk [vmem:[%s510] sm:$0xff] %vm10520, %v10518
        %s10522 = sand.u32 %s137, 1
        %s10523 = scalar_lea.sflag [#allocation4], %s10522
        %s10524 = sand.u32 %s137, 1
        %s10525 = smul.addr %s10524, 8
        %s10526 = scalar_lea.vmem [#allocation3], %s10525
        // Predicated region
        $region79: #{tpu_custom_call.1} parent=73 // pred_check
          %p10527 = pneg %p147
        $region80: #{tpu_custom_call.1} parent=73 // pred_check_branch
          %10529 = sbr.rel (%p10527) target = $region82
        $region81: #{tpu_custom_call.1} parent=73 // pred_region
          %s10531 = ssub.s32 128, 128
          %10532 = vsyncadd %s10523, %s10531
          %s10533 = smul.addr %s19, 128
          %s10534 = scalar_lea.hbm %s5, %s10533
          %s10536 = sshll.u32 %s10526, 4
          %s10537 = int_to_ptr.vmem [resolvable:$true] %s10536
          %10539 = dma.vmem_to_hbm [thread:$0]  %s10537, 128, %s10534, %s10523
        $region82: #{tpu_custom_call.1} parent=73 // pred_fallthru
          _
      $region74: #{tpu_custom_call.1} parent=5 // pred_fallthru
        _
      %p10540 = scmp.le.s32.totalorder 2, %s14
      // Predicated region
      $region83: #{tpu_custom_call.1} parent=5 // pred_check
        %p10541 = pneg %p10540
      $region84: #{tpu_custom_call.1} parent=5 // pred_check_branch
        %10543 = sbr.rel (%p10541) target = $region86
      $region85: #{tpu_custom_call.1} parent=5 // pred_region
        %s10544 = ssub.s32 %s14, 2
        // Predicated region
        $region87: #{tpu_custom_call.1} parent=85 // pred_check
          %p10545 = pneg %p153
        $region88: #{tpu_custom_call.1} parent=85 // pred_check_branch
          %10547 = sbr.rel (%p10545) target = $region90
        $region89: #{tpu_custom_call.1} parent=85 // pred_region
          %s10548 = sand.u32 %s138, 1
          %s10549 = scalar_lea.sflag [#allocation4], %s10548
          %s10550 = sand.u32 %s138, 1
          %s10551 = smul.addr %s10550, 8
          %s10552 = scalar_lea.vmem [#allocation3], %s10551
          %10553 = dma.done %s10549, 128
        $region90: #{tpu_custom_call.1} parent=85 // pred_fallthru
          _
      $region86: #{tpu_custom_call.1} parent=5 // pred_fallthru
        _
    $region6: #{tpu_custom_call.1} parent=1 // loop_footer
      %s18 = sadd.s32 1, %s14
    $region7: #{tpu_custom_call.1} parent=1 // loop_footer_branch
      %13 = sbr.rel target = $region3
    $region8: #{tpu_custom_call.1} parent=1 // loop_exit
      _
    %10554 = vsyncpa [#allocation4], 1
    %s10555 = scalar_lea.sflag [#allocation4], 1
    %10556 = vsyncpa %s10555, 1

</llo_original>
